<compile_context>
chip_gen: v6e
topology: v6e:2x2x1
jax: 0.10.0
libtpu: 0.0.40
codegen_flags: <defaults>
</compile_context>

<pallas_src>
import functools

import jax
import jax.numpy as jnp
from jax.experimental import pallas as pl
from jax.experimental.pallas import tpu as pltpu


OC_PAD = 128       # lane-dense padded output-channel / class width
FC_HPAD = 512      # fc1 hidden dim (500) padded to a lane multiple
CONV_B_TILE = 8    # images per conv grid step (safe on v5e; raise on v6e/v7x)
FC_M_TILE = 128    # batch rows per fc grid step


def _round_up(x, m):
    return ((x + m - 1) // m) * m


# ----------------------------- Pallas kernels ------------------------------

def _conv_relu_pool_kernel(x_ref, w_ref, b_ref, o_ref, *, pooled_rows, b_tile):
    """Fused conv (as im2col matmul) + bias + ReLU + 2x2/2 max pool.

    x_ref: (B, 4*P, K) bf16  pool-phase-major im2col patches for B images
    w_ref: (K, 128)    bf16  flattened conv weights, OC zero-padded to 128
    b_ref: (1, 128)    f32   bias, zero-padded
    o_ref: (B, P, 128) bf16  pooled output, row p = ph*POW + pw
    """
    P = pooled_rows
    k = x_ref.shape[-1]
    w = w_ref[...]

    def phase_dot(ph):
        # Static, sublane-aligned slab (P % 16 == 0); leading-dim reshape is free.
        xs = x_ref[:, ph * P:(ph + 1) * P, :].reshape(b_tile * P, k)
        return jnp.dot(xs, w, preferred_element_type=jnp.float32)

    # 2x2/2 max pool == max over the 4 pool-phase slabs (done phase-by-phase
    # so only two (B*P, 128) f32 temporaries are ever live).
    m = phase_dot(0)
    for ph in range(1, 4):
        m = jnp.maximum(m, phase_dot(ph))
    m = m.reshape(b_tile, P, OC_PAD)
    # Per-channel bias and monotone ReLU commute with the max pool; epilogue in f32.
    o_ref[...] = jnp.maximum(m + b_ref[...], 0.0).astype(o_ref.dtype)


def _fc_fused_kernel(x_ref, w1_ref, b1_ref, w2_ref, b2_ref, o_ref):
    """Fused fc1 + bias + ReLU + fc2 + bias; hidden activation stays in VMEM."""
    h = jnp.dot(x_ref[...], w1_ref[...], preferred_element_type=jnp.float32)
    h = jnp.maximum(h + b1_ref[...], 0.0)          # f32 epilogue
    out = jnp.dot(h.astype(w2_ref.dtype), w2_ref[...],
                  preferred_element_type=jnp.float32) + b2_ref[...]
    o_ref[...] = out.astype(o_ref.dtype)


# ------------------------------ Pallas wrappers ----------------------------

def conv_relu_pool_pallas(patches, wmat, bias, pooled_rows, b_tile):
    """patches: (N, 4*P, K) bf16, N % b_tile == 0 -> (N, P, 128) bf16."""
    n, rows, k = patches.shape
    assert n % b_tile == 0 and rows == 4 * pooled_rows
    return pl.pallas_call(
        functools.partial(_conv_relu_pool_kernel,
                          pooled_rows=pooled_rows, b_tile=b_tile),
        out_shape=jax.ShapeDtypeStruct((n, pooled_rows, OC_PAD), jnp.bfloat16),
        grid=(n // b_tile,),
        in_specs=[
            # NOTE: add pipeline_mode=pl.Buffered(3) here only if a trace
            # shows exposed patch DMA after the B_TILE change.
            pl.BlockSpec((b_tile, rows, k), lambda b: (b, 0, 0)),
            pl.BlockSpec((k, OC_PAD), lambda b: (0, 0)),      # resident weights
            pl.BlockSpec((1, OC_PAD), lambda b: (0, 0)),      # resident bias
        ],
        out_specs=pl.BlockSpec((b_tile, pooled_rows, OC_PAD), lambda b: (b, 0, 0)),
        compiler_params=pltpu.CompilerParams(dimension_semantics=("parallel",)),
    )(patches, wmat, bias)


def fc_fused_pallas(x, w1, b1, w2, b2, m_tile=FC_M_TILE):
    """x: (B, K1) bf16; w1: (K1, H) bf16; w2: (H, 128) bf16 -> (B, 128) f32."""
    n, k1 = x.shape
    hdim = w1.shape[1]
    tm = min(m_tile, _round_up(n, 8))
    npad = _round_up(n, tm)
    if npad != n:
        x = jnp.pad(x, ((0, npad - n), (0, 0)))
    out = pl.pallas_call(
        _fc_fused_kernel,
        out_shape=jax.ShapeDtypeStruct((npad, OC_PAD), jnp.float32),
        grid=(npad // tm,),
        in_specs=[
            pl.BlockSpec((tm, k1), lambda i: (i, 0)),
            pl.BlockSpec((k1, hdim), lambda i: (0, 0)),       # resident fc1 weight
            pl.BlockSpec((1, hdim), lambda i: (0, 0)),
            pl.BlockSpec((hdim, OC_PAD), lambda i: (0, 0)),   # resident fc2 weight
            pl.BlockSpec((1, OC_PAD), lambda i: (0, 0)),
        ],
        out_specs=pl.BlockSpec((tm, OC_PAD), lambda i: (i, 0)),
        compiler_params=pltpu.CompilerParams(dimension_semantics=("parallel",)),
    )(x, w1, b1, w2, b2)
    return out[:n]


# ------------------------------ JAX glue -----------------------------------

def _pool_phase_patches(x_nhwc, kh, kw):
    """im2col patches for a VALID stride-1 conv followed by 2x2/2 max pool.

    x_nhwc: (N, H, W, C) -> (N, 4*P, KH*KW*C), plus (POH, POW).
    Row order: pool phase (dh*2+dw) major, pooled pixel (ph*POW+pw) minor, so
    the kernel pools via contiguous row slabs. K order is (kh, kw, c) and must
    match the conv-weight flattening in prepare_params().
    """
    n, h, w, c = x_nhwc.shape
    oh, ow = h - kh + 1, w - kw + 1
    poh, pw_ = oh // 2, ow // 2
    taps = [x_nhwc[:, i:i + oh, j:j + ow, :] for i in range(kh) for j in range(kw)]
    pat = jnp.stack(taps, axis=3)                      # (N, OH, OW, KH*KW, C)
    pat = pat[:, :2 * poh, :2 * pw_]                   # floor-pool crop (no-op here)
    pat = pat.reshape(n, poh, 2, pw_, 2, kh * kw, c)
    pat = pat.transpose(0, 2, 4, 1, 3, 5, 6)           # (N, 2, 2, POH, POW, T, C)
    return pat.reshape(n, 4 * poh * pw_, kh * kw * c), poh, pw_


# ------------------------------- LeNet model --------------------------------

def init_lenet_params(key, num_channels, classes):
    """PyTorch-shaped parameters (uniform(-1/sqrt(fan_in), 1/sqrt(fan_in)))."""
    def u(k, shape, fan_in):
        bound = 1.0 / float(fan_in) ** 0.5
        return jax.random.uniform(k, shape, jnp.float32, -bound, bound)

    ks = jax.random.split(key, 8)
    return {
        "w1": u(ks[0], (20, num_channels, 5, 5), num_channels * 25),
        "b1": u(ks[1], (20,), num_channels * 25),
        "w2": u(ks[2], (30, 20, 5, 5), 20 * 25),
        "b2": u(ks[3], (30,), 20 * 25),
        "wf1": u(ks[4], (500, 480), 480),
        "bf1": u(ks[5], (500,), 480),
        "wf2": u(ks[6], (classes, 500), 500),
        "bf2": u(ks[7], (classes,), 500),
    }


def prepare_params(params):
    """One-time weight prep (hoisted out of the forward path): transpose,
    flatten, zero-pad and cast into the lane-dense bf16 kernel layouts."""
    def conv_w(w):                              # (OC, C, KH, KW) -> (KH*KW*C, 128) bf16
        oc, c, kh, kw = w.shape
        wt = jnp.transpose(w, (2, 3, 1, 0)).reshape(kh * kw * c, oc)
        return jnp.pad(wt, ((0, 0), (0, OC_PAD - oc))).astype(jnp.bfloat16)

    def bias_row(b, width):                     # f32 (epilogue math stays f32)
        return jnp.pad(b, (0, width - b.shape[0])).reshape(1, width).astype(jnp.float32)

    # fc1: PyTorch flatten order is (c, h, w) over (30, 4, 4); our pooled
    # activation is stored as (p = h*4+w, c_padded_to_128). Permute + zero-pad
    # the fc1 weight columns once so flatten becomes a free reshape.
    wf1 = params["wf1"]                                        # (500, 480)
    hdim = wf1.shape[0]
    w1m = wf1.reshape(hdim, 30, 16).transpose(2, 1, 0)         # (16, 30, 500)
    w1m = jnp.pad(w1m, ((0, 0), (0, OC_PAD - 30), (0, FC_HPAD - hdim)))
    w1m = w1m.reshape(16 * OC_PAD, FC_HPAD)                    # (2048, 512)

    wf2 = params["wf2"]                                        # (classes, 500)
    classes = wf2.shape[0]
    w2m = jnp.pad(wf2.T, ((0, FC_HPAD - hdim), (0, OC_PAD - classes)))  # (512, 128)

    return {
        "cw1": conv_w(params["w1"]), "cb1": bias_row(params["b1"], OC_PAD),
        "cw2": conv_w(params["w2"]), "cb2": bias_row(params["b2"], OC_PAD),
        "fw1": w1m.astype(jnp.bfloat16), "fb1": bias_row(params["bf1"], FC_HPAD),
        "fw2": w2m.astype(jnp.bfloat16), "fb2": bias_row(params["bf2"], OC_PAD),
    }


def lenet_forward(prepped, x, *, classes, b_tile=CONV_B_TILE):
    # x: (N, C, 28, 28) NCHW f32, like the PyTorch module.
    n = x.shape[0]
    b_tile = min(b_tile, _round_up(n, 8))
    npad = _round_up(n, b_tile)
    x = jnp.transpose(x, (0, 2, 3, 1)).astype(jnp.bfloat16)          # NHWC bf16
    if npad != n:
        x = jnp.pad(x, ((0, npad - n), (0, 0), (0, 0), (0, 0)))
    # --- stage 1: conv1 + ReLU + pool1 (fused kernel) ---
    p1, poh1, pow1 = _pool_phase_patches(x, 5, 5)                    # (Np, 576, 25*C)
    y1 = conv_relu_pool_pallas(p1, prepped["cw1"], prepped["cb1"],
                               poh1 * pow1, b_tile)                  # (Np, 144, 128)
    # --- stage 2: conv2 + ReLU + pool2 (fused kernel) ---
    y1 = y1[:, :, :20].reshape(npad, poh1, pow1, 20)                 # (Np, 12, 12, 20)
    p2, poh2, pow2 = _pool_phase_patches(y1, 5, 5)                   # (Np, 64, 500)
    y2 = conv_relu_pool_pallas(p2, prepped["cw2"], prepped["cb2"],
                               poh2 * pow2, b_tile)                  # (Np, 16, 128)
    # --- stage 3: flatten + fc1 + ReLU + fc2 (fused, batch-tiled kernel) ---
    flat = y2.reshape(npad, poh2 * pow2 * OC_PAD)                    # (Np, 2048)
    out = fc_fused_pallas(flat, prepped["fw1"], prepped["fb1"],
                          prepped["fw2"], prepped["fb2"])            # (Np, 128) f32
    return out[:n, :classes]


# ------------------------------ reference (plain JAX) ------------------------

def lenet_reference(params, x):
    def conv(x, w, b):
        y = jax.lax.conv_general_dilated(
            x, w, (1, 1), "VALID", dimension_numbers=("NCHW", "OIHW", "NCHW"))
        return jax.nn.relu(y + b[None, :, None, None])

    def pool(y):
        return jax.lax.reduce_window(y, -jnp.inf, jax.lax.max,
                                     (1, 1, 2, 2), (1, 1, 2, 2), "VALID")

    y = pool(conv(x, params["w1"], params["b1"]))
    y = pool(conv(y, params["w2"], params["b2"]))
    flat = y.reshape(y.shape[0], -1)
    h = jax.nn.relu(flat @ params["wf1"].T + params["bf1"])
    return h @ params["wf2"].T + params["bf2"]


if __name__ == "__main__":
    num_channels, classes = 1, 10
    key = jax.random.PRNGKey(0)
    kx, kx2, kp = jax.random.split(key, 3)
    params = init_lenet_params(kp, num_channels, classes)
    prepped = prepare_params(params)              # one-time weight prep (hoisted)
    fwd = jax.jit(functools.partial(lenet_forward, classes=classes))

    # Small-shape check (batch=2), as the module implies 28x28 inputs.
    x = jax.random.normal(kx, (2, num_channels, 28, 28), jnp.float32)
    out = jax.block_until_ready(fwd(prepped, x))
    assert out.shape == (2, classes)
    assert bool(jnp.all(jnp.isfinite(out)))
    ref = lenet_reference(params, x)
    assert bool(jnp.allclose(out, ref, atol=2e-2, rtol=2e-2)), "mismatch (batch=2)"

    # Second check with a batch that exercises multiple conv grid steps.
    xb = jax.random.normal(kx2, (32, num_channels, 28, 28), jnp.float32)
    outb = jax.block_until_ready(fwd(prepped, xb))
    refb = lenet_reference(params, xb)
    assert outb.shape == (32, classes)
    assert bool(jnp.allclose(outb, refb, atol=2e-2, rtol=2e-2)), "mismatch (batch=32)"

    print("KERNEL_OK")
</pallas_src>

<mosaic_0001>
module attributes {stable_mosaic.version = 11 : i64} {
  func.func @_conv_relu_pool_kernel(%arg0: i32, %arg1: memref<8x576x25xbf16, #tpu.memory_space<vmem>>, %arg2: memref<25x128xbf16, #tpu.memory_space<vmem>>, %arg3: memref<1x128xf32, #tpu.memory_space<vmem>>, %arg4: memref<8x144x128xbf16, #tpu.memory_space<vmem>>) attributes {dimension_semantics = [#tpu.dimension_semantics<parallel>], iteration_bounds = array<i64: 1>, scalar_prefetch = 0 : i64, scratch_operands = 0 : i64, tpu.core_type = #tpu.core_type<tc>, window_params = [{transform_indices = @transform_0, window_bounds = array<i64: 8, 576, 25>}, {pipeline_mode = #tpu.pipeline_mode<synchronous>, transform_indices = @transform_1, window_bounds = array<i64: 25, 128>}, {pipeline_mode = #tpu.pipeline_mode<synchronous>, transform_indices = @transform_2, window_bounds = array<i64: 1, 128>}, {transform_indices = @transform_3, window_bounds = array<i64: 8, 144, 128>}]} {
    %c0 = arith.constant 0 : index
    %c0_0 = arith.constant 0 : index
    %0 = vector.load %arg2[%c0, %c0_0] : memref<25x128xbf16, #tpu.memory_space<vmem>>, vector<25x128xbf16>
    %c0_1 = arith.constant 0 : index
    %c0_2 = arith.constant 0 : index
    %c0_3 = arith.constant 0 : index
    %1 = vector.load %arg1[%c0_1, %c0_2, %c0_3] : memref<8x576x25xbf16, #tpu.memory_space<vmem>>, vector<8x144x25xbf16>
    %2 = vector.shape_cast %1 : vector<8x144x25xbf16> to vector<1152x25xbf16>
    %cst = arith.constant dense<0.000000e+00> : vector<1152x128xf32>
    %3 = tpu.matmul %2, %0, %cst {dimension_numbers = #tpu.dot_dimension_numbers<[1], [0], [0], [1], [0, 0, 1, 1], [], []>} : vector<1152x25xbf16>, vector<25x128xbf16>, vector<1152x128xf32> -> vector<1152x128xf32>
    %c0_4 = arith.constant 0 : index
    %c144 = arith.constant 144 : index
    %c0_5 = arith.constant 0 : index
    %4 = vector.load %arg1[%c0_4, %c144, %c0_5] : memref<8x576x25xbf16, #tpu.memory_space<vmem>>, vector<8x144x25xbf16>
    %5 = vector.shape_cast %4 : vector<8x144x25xbf16> to vector<1152x25xbf16>
    %cst_6 = arith.constant dense<0.000000e+00> : vector<1152x128xf32>
    %6 = tpu.matmul %5, %0, %cst_6 {dimension_numbers = #tpu.dot_dimension_numbers<[1], [0], [0], [1], [0, 0, 1, 1], [], []>} : vector<1152x25xbf16>, vector<25x128xbf16>, vector<1152x128xf32> -> vector<1152x128xf32>
    %7 = arith.maximumf %3, %6 : vector<1152x128xf32>
    %c0_7 = arith.constant 0 : index
    %c288 = arith.constant 288 : index
    %c0_8 = arith.constant 0 : index
    %8 = vector.load %arg1[%c0_7, %c288, %c0_8] : memref<8x576x25xbf16, #tpu.memory_space<vmem>>, vector<8x144x25xbf16>
    %9 = vector.shape_cast %8 : vector<8x144x25xbf16> to vector<1152x25xbf16>
    %cst_9 = arith.constant dense<0.000000e+00> : vector<1152x128xf32>
    %10 = tpu.matmul %9, %0, %cst_9 {dimension_numbers = #tpu.dot_dimension_numbers<[1], [0], [0], [1], [0, 0, 1, 1], [], []>} : vector<1152x25xbf16>, vector<25x128xbf16>, vector<1152x128xf32> -> vector<1152x128xf32>
    %11 = arith.maximumf %7, %10 : vector<1152x128xf32>
    %c0_10 = arith.constant 0 : index
    %c432 = arith.constant 432 : index
    %c0_11 = arith.constant 0 : index
    %12 = vector.load %arg1[%c0_10, %c432, %c0_11] : memref<8x576x25xbf16, #tpu.memory_space<vmem>>, vector<8x144x25xbf16>
    %13 = vector.shape_cast %12 : vector<8x144x25xbf16> to vector<1152x25xbf16>
    %cst_12 = arith.constant dense<0.000000e+00> : vector<1152x128xf32>
    %14 = tpu.matmul %13, %0, %cst_12 {dimension_numbers = #tpu.dot_dimension_numbers<[1], [0], [0], [1], [0, 0, 1, 1], [], []>} : vector<1152x25xbf16>, vector<25x128xbf16>, vector<1152x128xf32> -> vector<1152x128xf32>
    %15 = arith.maximumf %11, %14 : vector<1152x128xf32>
    %16 = vector.shape_cast %15 : vector<1152x128xf32> to vector<8x144x128xf32>
    %c0_13 = arith.constant 0 : index
    %c0_14 = arith.constant 0 : index
    %17 = vector.load %arg3[%c0_13, %c0_14] : memref<1x128xf32, #tpu.memory_space<vmem>>, vector<1x128xf32>
    %18 = vector.shape_cast %17 : vector<1x128xf32> to vector<1x1x128xf32>
    %19 = vector.broadcast %18 : vector<1x1x128xf32> to vector<8x144x128xf32>
    %20 = arith.addf %16, %19 : vector<8x144x128xf32>
    %cst_15 = arith.constant 0.000000e+00 : f32
    %21 = vector.broadcast %cst_15 : f32 to vector<8x144x128xf32>
    %22 = arith.maximumf %20, %21 : vector<8x144x128xf32>
    %23 = arith.truncf %22 : vector<8x144x128xf32> to vector<8x144x128xbf16>
    %c0_16 = arith.constant 0 : index
    %c0_17 = arith.constant 0 : index
    %c0_18 = arith.constant 0 : index
    %24 = vector.load %arg4[%c0_16, %c0_17, %c0_18] : memref<8x144x128xbf16, #tpu.memory_space<vmem>>, vector<8x144x128xbf16>
    tpu.vector_store %arg4[%c0_16, %c0_17, %c0_18], %23 {strides = array<i32>} : memref<8x144x128xbf16, #tpu.memory_space<vmem>>, vector<8x144x128xbf16>,
    return
  }
  func.func @transform_0(%arg0: i32) -> (i32, i32, i32) {
    %c0_i32 = arith.constant 0 : i32
    %c0_i32_0 = arith.constant 0 : i32
    %c0_i32_1 = arith.constant 0 : i32
    return %arg0, %c0_i32, %c0_i32_0 : i32, i32, i32
  }
  func.func @transform_1(%arg0: i32) -> (i32, i32) {
    %c0_i32 = arith.constant 0 : i32
    %c0_i32_0 = arith.constant 0 : i32
    %c0_i32_1 = arith.constant 0 : i32
    return %c0_i32, %c0_i32_0 : i32, i32
  }
  func.func @transform_2(%arg0: i32) -> (i32, i32) {
    %c0_i32 = arith.constant 0 : i32
    %c0_i32_0 = arith.constant 0 : i32
    %c0_i32_1 = arith.constant 0 : i32
    return %c0_i32, %c0_i32_0 : i32, i32
  }
  func.func @transform_3(%arg0: i32) -> (i32, i32, i32) {
    %c0_i32 = arith.constant 0 : i32
    %c0_i32_0 = arith.constant 0 : i32
    %c0_i32_1 = arith.constant 0 : i32
    return %arg0, %c0_i32, %c0_i32_0 : i32, i32, i32
  }
}

module attributes {stable_mosaic.version = 11 : i64} {
  func.func @_conv_relu_pool_kernel(%arg0: i32, %arg1: memref<8x64x500xbf16, #tpu.memory_space<vmem>>, %arg2: memref<500x128xbf16, #tpu.memory_space<vmem>>, %arg3: memref<1x128xf32, #tpu.memory_space<vmem>>, %arg4: memref<8x16x128xbf16, #tpu.memory_space<vmem>>) attributes {dimension_semantics = [#tpu.dimension_semantics<parallel>], iteration_bounds = array<i64: 1>, scalar_prefetch = 0 : i64, scratch_operands = 0 : i64, tpu.core_type = #tpu.core_type<tc>, window_params = [{transform_indices = @transform_0, window_bounds = array<i64: 8, 64, 500>}, {pipeline_mode = #tpu.pipeline_mode<synchronous>, transform_indices = @transform_1, window_bounds = array<i64: 500, 128>}, {pipeline_mode = #tpu.pipeline_mode<synchronous>, transform_indices = @transform_2, window_bounds = array<i64: 1, 128>}, {transform_indices = @transform_3, window_bounds = array<i64: 8, 16, 128>}]} {
    %c0 = arith.constant 0 : index
    %c0_0 = arith.constant 0 : index
    %0 = vector.load %arg2[%c0, %c0_0] : memref<500x128xbf16, #tpu.memory_space<vmem>>, vector<500x128xbf16>
    %c0_1 = arith.constant 0 : index
    %c0_2 = arith.constant 0 : index
    %c0_3 = arith.constant 0 : index
    %1 = vector.load %arg1[%c0_1, %c0_2, %c0_3] : memref<8x64x500xbf16, #tpu.memory_space<vmem>>, vector<8x16x500xbf16>
    %2 = vector.shape_cast %1 : vector<8x16x500xbf16> to vector<128x500xbf16>
    %cst = arith.constant dense<0.000000e+00> : vector<128x128xf32>
    %3 = tpu.matmul %2, %0, %cst {dimension_numbers = #tpu.dot_dimension_numbers<[1], [0], [0], [1], [0, 0, 1, 1], [], []>} : vector<128x500xbf16>, vector<500x128xbf16>, vector<128x128xf32> -> vector<128x128xf32>
    %c0_4 = arith.constant 0 : index
    %c16 = arith.constant 16 : index
    %c0_5 = arith.constant 0 : index
    %4 = vector.load %arg1[%c0_4, %c16, %c0_5] : memref<8x64x500xbf16, #tpu.memory_space<vmem>>, vector<8x16x500xbf16>
    %5 = vector.shape_cast %4 : vector<8x16x500xbf16> to vector<128x500xbf16>
    %cst_6 = arith.constant dense<0.000000e+00> : vector<128x128xf32>
    %6 = tpu.matmul %5, %0, %cst_6 {dimension_numbers = #tpu.dot_dimension_numbers<[1], [0], [0], [1], [0, 0, 1, 1], [], []>} : vector<128x500xbf16>, vector<500x128xbf16>, vector<128x128xf32> -> vector<128x128xf32>
    %7 = arith.maximumf %3, %6 : vector<128x128xf32>
    %c0_7 = arith.constant 0 : index
    %c32 = arith.constant 32 : index
    %c0_8 = arith.constant 0 : index
    %8 = vector.load %arg1[%c0_7, %c32, %c0_8] : memref<8x64x500xbf16, #tpu.memory_space<vmem>>, vector<8x16x500xbf16>
    %9 = vector.shape_cast %8 : vector<8x16x500xbf16> to vector<128x500xbf16>
    %cst_9 = arith.constant dense<0.000000e+00> : vector<128x128xf32>
    %10 = tpu.matmul %9, %0, %cst_9 {dimension_numbers = #tpu.dot_dimension_numbers<[1], [0], [0], [1], [0, 0, 1, 1], [], []>} : vector<128x500xbf16>, vector<500x128xbf16>, vector<128x128xf32> -> vector<128x128xf32>
    %11 = arith.maximumf %7, %10 : vector<128x128xf32>
    %c0_10 = arith.constant 0 : index
    %c48 = arith.constant 48 : index
    %c0_11 = arith.constant 0 : index
    %12 = vector.load %arg1[%c0_10, %c48, %c0_11] : memref<8x64x500xbf16, #tpu.memory_space<vmem>>, vector<8x16x500xbf16>
    %13 = vector.shape_cast %12 : vector<8x16x500xbf16> to vector<128x500xbf16>
    %cst_12 = arith.constant dense<0.000000e+00> : vector<128x128xf32>
    %14 = tpu.matmul %13, %0, %cst_12 {dimension_numbers = #tpu.dot_dimension_numbers<[1], [0], [0], [1], [0, 0, 1, 1], [], []>} : vector<128x500xbf16>, vector<500x128xbf16>, vector<128x128xf32> -> vector<128x128xf32>
    %15 = arith.maximumf %11, %14 : vector<128x128xf32>
    %16 = vector.shape_cast %15 : vector<128x128xf32> to vector<8x16x128xf32>
    %c0_13 = arith.constant 0 : index
    %c0_14 = arith.constant 0 : index
    %17 = vector.load %arg3[%c0_13, %c0_14] : memref<1x128xf32, #tpu.memory_space<vmem>>, vector<1x128xf32>
    %18 = vector.shape_cast %17 : vector<1x128xf32> to vector<1x1x128xf32>
    %19 = vector.broadcast %18 : vector<1x1x128xf32> to vector<8x16x128xf32>
    %20 = arith.addf %16, %19 : vector<8x16x128xf32>
    %cst_15 = arith.constant 0.000000e+00 : f32
    %21 = vector.broadcast %cst_15 : f32 to vector<8x16x128xf32>
    %22 = arith.maximumf %20, %21 : vector<8x16x128xf32>
    %23 = arith.truncf %22 : vector<8x16x128xf32> to vector<8x16x128xbf16>
    %c0_16 = arith.constant 0 : index
    %c0_17 = arith.constant 0 : index
    %c0_18 = arith.constant 0 : index
    %24 = vector.load %arg4[%c0_16, %c0_17, %c0_18] : memref<8x16x128xbf16, #tpu.memory_space<vmem>>, vector<8x16x128xbf16>
    tpu.vector_store %arg4[%c0_16, %c0_17, %c0_18], %23 {strides = array<i32>} : memref<8x16x128xbf16, #tpu.memory_space<vmem>>, vector<8x16x128xbf16>,
    return
  }
  func.func @transform_0(%arg0: i32) -> (i32, i32, i32) {
    %c0_i32 = arith.constant 0 : i32
    %c0_i32_0 = arith.constant 0 : i32
    %c0_i32_1 = arith.constant 0 : i32
    return %arg0, %c0_i32, %c0_i32_0 : i32, i32, i32
  }
  func.func @transform_1(%arg0: i32) -> (i32, i32) {
    %c0_i32 = arith.constant 0 : i32
    %c0_i32_0 = arith.constant 0 : i32
    %c0_i32_1 = arith.constant 0 : i32
    return %c0_i32, %c0_i32_0 : i32, i32
  }
  func.func @transform_2(%arg0: i32) -> (i32, i32) {
    %c0_i32 = arith.constant 0 : i32
    %c0_i32_0 = arith.constant 0 : i32
    %c0_i32_1 = arith.constant 0 : i32
    return %c0_i32, %c0_i32_0 : i32, i32
  }
  func.func @transform_3(%arg0: i32) -> (i32, i32, i32) {
    %c0_i32 = arith.constant 0 : i32
    %c0_i32_0 = arith.constant 0 : i32
    %c0_i32_1 = arith.constant 0 : i32
    return %arg0, %c0_i32, %c0_i32_0 : i32, i32, i32
  }
}

module attributes {stable_mosaic.version = 11 : i64} {
  func.func @_fc_fused_kernel(%arg0: i32, %arg1: memref<8x2048xbf16, #tpu.memory_space<vmem>>, %arg2: memref<2048x512xbf16, #tpu.memory_space<vmem>>, %arg3: memref<1x512xf32, #tpu.memory_space<vmem>>, %arg4: memref<512x128xbf16, #tpu.memory_space<vmem>>, %arg5: memref<1x128xf32, #tpu.memory_space<vmem>>, %arg6: memref<8x128xf32, #tpu.memory_space<vmem>>) attributes {dimension_semantics = [#tpu.dimension_semantics<parallel>], iteration_bounds = array<i64: 1>, scalar_prefetch = 0 : i64, scratch_operands = 0 : i64, tpu.core_type = #tpu.core_type<tc>, window_params = [{transform_indices = @transform_0, window_bounds = array<i64: 8, 2048>}, {pipeline_mode = #tpu.pipeline_mode<synchronous>, transform_indices = @transform_1, window_bounds = array<i64: 2048, 512>}, {pipeline_mode = #tpu.pipeline_mode<synchronous>, transform_indices = @transform_2, window_bounds = array<i64: 1, 512>}, {pipeline_mode = #tpu.pipeline_mode<synchronous>, transform_indices = @transform_3, window_bounds = array<i64: 512, 128>}, {pipeline_mode = #tpu.pipeline_mode<synchronous>, transform_indices = @transform_4, window_bounds = array<i64: 1, 128>}, {transform_indices = @transform_5, window_bounds = array<i64: 8, 128>}]} {
    %c0 = arith.constant 0 : index
    %c0_0 = arith.constant 0 : index
    %0 = vector.load %arg1[%c0, %c0_0] : memref<8x2048xbf16, #tpu.memory_space<vmem>>, vector<8x2048xbf16>
    %c0_1 = arith.constant 0 : index
    %c0_2 = arith.constant 0 : index
    %1 = vector.load %arg2[%c0_1, %c0_2] : memref<2048x512xbf16, #tpu.memory_space<vmem>>, vector<2048x512xbf16>
    %cst = arith.constant dense<0.000000e+00> : vector<8x512xf32>
    %2 = tpu.matmul %0, %1, %cst {dimension_numbers = #tpu.dot_dimension_numbers<[1], [0], [0], [1], [0, 0, 1, 1], [], []>} : vector<8x2048xbf16>, vector<2048x512xbf16>, vector<8x512xf32> -> vector<8x512xf32>
    %c0_3 = arith.constant 0 : index
    %c0_4 = arith.constant 0 : index
    %3 = vector.load %arg3[%c0_3, %c0_4] : memref<1x512xf32, #tpu.memory_space<vmem>>, vector<1x512xf32>
    %4 = vector.broadcast %3 : vector<1x512xf32> to vector<8x512xf32>
    %5 = arith.addf %2, %4 : vector<8x512xf32>
    %cst_5 = arith.constant 0.000000e+00 : f32
    %6 = vector.broadcast %cst_5 : f32 to vector<8x512xf32>
    %7 = arith.maximumf %5, %6 : vector<8x512xf32>
    %8 = arith.truncf %7 : vector<8x512xf32> to vector<8x512xbf16>
    %c0_6 = arith.constant 0 : index
    %c0_7 = arith.constant 0 : index
    %9 = vector.load %arg4[%c0_6, %c0_7] : memref<512x128xbf16, #tpu.memory_space<vmem>>, vector<512x128xbf16>
    %cst_8 = arith.constant dense<0.000000e+00> : vector<8x128xf32>
    %10 = tpu.matmul %8, %9, %cst_8 {dimension_numbers = #tpu.dot_dimension_numbers<[1], [0], [0], [1], [0, 0, 1, 1], [], []>} : vector<8x512xbf16>, vector<512x128xbf16>, vector<8x128xf32> -> vector<8x128xf32>
    %c0_9 = arith.constant 0 : index
    %c0_10 = arith.constant 0 : index
    %11 = vector.load %arg5[%c0_9, %c0_10] : memref<1x128xf32, #tpu.memory_space<vmem>>, vector<1x128xf32>
    %12 = vector.broadcast %11 : vector<1x128xf32> to vector<8x128xf32>
    %13 = arith.addf %10, %12 : vector<8x128xf32>
    %c0_11 = arith.constant 0 : index
    %c0_12 = arith.constant 0 : index
    %14 = vector.load %arg6[%c0_11, %c0_12] : memref<8x128xf32, #tpu.memory_space<vmem>>, vector<8x128xf32>
    tpu.vector_store %arg6[%c0_11, %c0_12], %13 {strides = array<i32>} : memref<8x128xf32, #tpu.memory_space<vmem>>, vector<8x128xf32>,
    return
  }
  func.func @transform_0(%arg0: i32) -> (i32, i32) {
    %c0_i32 = arith.constant 0 : i32
    %c0_i32_0 = arith.constant 0 : i32
    return %arg0, %c0_i32 : i32, i32
  }
  func.func @transform_1(%arg0: i32) -> (i32, i32) {
    %c0_i32 = arith.constant 0 : i32
    %c0_i32_0 = arith.constant 0 : i32
    %c0_i32_1 = arith.constant 0 : i32
    return %c0_i32, %c0_i32_0 : i32, i32
  }
  func.func @transform_2(%arg0: i32) -> (i32, i32) {
    %c0_i32 = arith.constant 0 : i32
    %c0_i32_0 = arith.constant 0 : i32
    %c0_i32_1 = arith.constant 0 : i32
    return %c0_i32, %c0_i32_0 : i32, i32
  }
  func.func @transform_3(%arg0: i32) -> (i32, i32) {
    %c0_i32 = arith.constant 0 : i32
    %c0_i32_0 = arith.constant 0 : i32
    %c0_i32_1 = arith.constant 0 : i32
    return %c0_i32, %c0_i32_0 : i32, i32
  }
  func.func @transform_4(%arg0: i32) -> (i32, i32) {
    %c0_i32 = arith.constant 0 : i32
    %c0_i32_0 = arith.constant 0 : i32
    %c0_i32_1 = arith.constant 0 : i32
    return %c0_i32, %c0_i32_0 : i32, i32
  }
  func.func @transform_5(%arg0: i32) -> (i32, i32) {
    %c0_i32 = arith.constant 0 : i32
    %c0_i32_0 = arith.constant 0 : i32
    return %arg0, %c0_i32 : i32, i32
  }
}

</mosaic_0001>

<llo_original>
// kernel: lenet_forward.3
$region0: #{lenet_forward.3}
  #allocation0 [shape = 'u32[]', space=smem, size = 0x4, offset = 0x4, fixed_abs, tag = 'smem constant byte address 0x4 - core index']
  #allocation1 [shape = 'u32[144,128]{1,0:T(1,128)}', space=vmem, size = 0x12000, scoped, tag = 'internal scratch']
  %s0 = inlined_call_operand.vmem [shape: bf16[8,576,25], index: 0, kind: input, shape index: {}]
  %s1 = inlined_call_operand.vmem [shape: bf16[25,128], index: 1, kind: input, shape index: {}]
  %s2 = inlined_call_operand.vmem [shape: f32[1,128], index: 2, kind: input, shape index: {}]
  %s3 = inlined_call_operand.vmem [shape: bf16[8,144,128], index: 3, kind: output, shape index: {}]
  %s4 = sld [smem:[#allocation0]]
  $region22: #{lenet_forward.3} parent=0
    _
  %s6 = ssub.s32 1, %s4
  %s7 = scalar_select 0, %s6, %s4
  // Predicated region
  $region2: #{lenet_forward.3} parent=0 // pred_check
    _
  $region3: #{lenet_forward.3} parent=0 // pred_check_branch
    %9 = sbr.rel (0) target = $region5
  $region4: #{lenet_forward.3} parent=0 // pred_region
    _
  $region5: #{lenet_forward.3} parent=0 // pred_fallthru
    _
  // Predicated region
  $region6: #{lenet_forward.3} parent=0 // pred_check
    _
  $region7: #{lenet_forward.3} parent=0 // pred_check_branch
    %11 = sbr.rel (0) target = $region9
  $region8: #{lenet_forward.3} parent=0 // pred_region
    _
  $region9: #{lenet_forward.3} parent=0 // pred_fallthru
    _
  // Predicated region
  $region10: #{lenet_forward.3} parent=0 // pred_check
    _
  $region11: #{lenet_forward.3} parent=0 // pred_check_branch
    %13 = sbr.rel (0) target = $region13
  $region12: #{lenet_forward.3} parent=0 // pred_region
    _
  $region13: #{lenet_forward.3} parent=0 // pred_fallthru
    _
  %v15 = vld [vmem:[%s1] sm:$0xf]
  %v16 = vld [vmem:[%s1 + $0x4] sm:$0xf]
  %v17 = vld [vmem:[%s1 + $0x8] sm:$0xf]
  %v18 = vld [vmem:[%s1 + $0xc] sm:$0x1]
  %v19 = vld [vmem:[%s0] sm:$0xf]
  %v20 = vld [vmem:[%s0 + $0x4] sm:$0xf]
  %v21 = vld [vmem:[%s0 + $0x8] sm:$0xf]
  %v22 = vld [vmem:[%s0 + $0xc] sm:$0xf]
  %v23 = vld [vmem:[%s0 + $0x10] sm:$0xf]
  %v24 = vld [vmem:[%s0 + $0x14] sm:$0xf]
  %v25 = vld [vmem:[%s0 + $0x18] sm:$0xf]
  %v26 = vld [vmem:[%s0 + $0x1c] sm:$0xf]
  %v27 = vld [vmem:[%s0 + $0x20] sm:$0xf]
  %v28 = vld [vmem:[%s0 + $0x24] sm:$0xf]
  %v29 = vld [vmem:[%s0 + $0x28] sm:$0xf]
  %v30 = vld [vmem:[%s0 + $0x2c] sm:$0xf]
  %v31 = vld [vmem:[%s0 + $0x30] sm:$0xf]
  %v32 = vld [vmem:[%s0 + $0x34] sm:$0xf]
  %v33 = vld [vmem:[%s0 + $0x38] sm:$0xf]
  %v34 = vld [vmem:[%s0 + $0x3c] sm:$0xf]
  %v35 = vld [vmem:[%s0 + $0x40] sm:$0xf]
  %v36 = vld [vmem:[%s0 + $0x44] sm:$0xf]
  %v37 = vld [vmem:[%s0 + $0x120] sm:$0xf]
  %v38 = vld [vmem:[%s0 + $0x124] sm:$0xf]
  %v39 = vld [vmem:[%s0 + $0x128] sm:$0xf]
  %v40 = vld [vmem:[%s0 + $0x12c] sm:$0xf]
  %v41 = vld [vmem:[%s0 + $0x130] sm:$0xf]
  %v42 = vld [vmem:[%s0 + $0x134] sm:$0xf]
  %v43 = vld [vmem:[%s0 + $0x138] sm:$0xf]
  %v44 = vld [vmem:[%s0 + $0x13c] sm:$0xf]
  %v45 = vld [vmem:[%s0 + $0x140] sm:$0xf]
  %v46 = vld [vmem:[%s0 + $0x144] sm:$0xf]
  %v47 = vld [vmem:[%s0 + $0x148] sm:$0xf]
  %v48 = vld [vmem:[%s0 + $0x14c] sm:$0xf]
  %v49 = vld [vmem:[%s0 + $0x150] sm:$0xf]
  %v50 = vld [vmem:[%s0 + $0x154] sm:$0xf]
  %v51 = vld [vmem:[%s0 + $0x158] sm:$0xf]
  %v52 = vld [vmem:[%s0 + $0x15c] sm:$0xf]
  %v53 = vld [vmem:[%s0 + $0x160] sm:$0xf]
  %v54 = vld [vmem:[%s0 + $0x164] sm:$0xf]
  %v55 = vld [vmem:[%s0 + $0x240] sm:$0xf]
  %v56 = vld [vmem:[%s0 + $0x244] sm:$0xf]
  %v57 = vld [vmem:[%s0 + $0x248] sm:$0xf]
  %v58 = vld [vmem:[%s0 + $0x24c] sm:$0xf]
  %v59 = vld [vmem:[%s0 + $0x250] sm:$0xf]
  %v60 = vld [vmem:[%s0 + $0x254] sm:$0xf]
  %v61 = vld [vmem:[%s0 + $0x258] sm:$0xf]
  %v62 = vld [vmem:[%s0 + $0x25c] sm:$0xf]
  %v63 = vld [vmem:[%s0 + $0x260] sm:$0xf]
  %v64 = vld [vmem:[%s0 + $0x264] sm:$0xf]
  %v65 = vld [vmem:[%s0 + $0x268] sm:$0xf]
  %v66 = vld [vmem:[%s0 + $0x26c] sm:$0xf]
  %v67 = vld [vmem:[%s0 + $0x270] sm:$0xf]
  %v68 = vld [vmem:[%s0 + $0x274] sm:$0xf]
  %v69 = vld [vmem:[%s0 + $0x278] sm:$0xf]
  %v70 = vld [vmem:[%s0 + $0x27c] sm:$0xf]
  %v71 = vld [vmem:[%s0 + $0x280] sm:$0xf]
  %v72 = vld [vmem:[%s0 + $0x284] sm:$0xf]
  %v73 = vld [vmem:[%s0 + $0x360] sm:$0xf]
  %v74 = vld [vmem:[%s0 + $0x364] sm:$0xf]
  %v75 = vld [vmem:[%s0 + $0x368] sm:$0xf]
  %v76 = vld [vmem:[%s0 + $0x36c] sm:$0xf]
  %v77 = vld [vmem:[%s0 + $0x370] sm:$0xf]
  %v78 = vld [vmem:[%s0 + $0x374] sm:$0xf]
  %v79 = vld [vmem:[%s0 + $0x378] sm:$0xf]
  %v80 = vld [vmem:[%s0 + $0x37c] sm:$0xf]
  %v81 = vld [vmem:[%s0 + $0x380] sm:$0xf]
  %v82 = vld [vmem:[%s0 + $0x384] sm:$0xf]
  %v83 = vld [vmem:[%s0 + $0x388] sm:$0xf]
  %v84 = vld [vmem:[%s0 + $0x38c] sm:$0xf]
  %v85 = vld [vmem:[%s0 + $0x390] sm:$0xf]
  %v86 = vld [vmem:[%s0 + $0x394] sm:$0xf]
  %v87 = vld [vmem:[%s0 + $0x398] sm:$0xf]
  %v88 = vld [vmem:[%s0 + $0x39c] sm:$0xf]
  %v89 = vld [vmem:[%s0 + $0x3a0] sm:$0xf]
  %v90 = vld [vmem:[%s0 + $0x3a4] sm:$0xf]
  %v91 = vld [vmem:[%s0 + $0x480] sm:$0xf]
  %v92 = vld [vmem:[%s0 + $0x484] sm:$0xf]
  %v93 = vld [vmem:[%s0 + $0x488] sm:$0xf]
  %v94 = vld [vmem:[%s0 + $0x48c] sm:$0xf]
  %v95 = vld [vmem:[%s0 + $0x490] sm:$0xf]
  %v96 = vld [vmem:[%s0 + $0x494] sm:$0xf]
  %v97 = vld [vmem:[%s0 + $0x498] sm:$0xf]
  %v98 = vld [vmem:[%s0 + $0x49c] sm:$0xf]
  %v99 = vld [vmem:[%s0 + $0x4a0] sm:$0xf]
  %v100 = vld [vmem:[%s0 + $0x4a4] sm:$0xf]
  %v101 = vld [vmem:[%s0 + $0x4a8] sm:$0xf]
  %v102 = vld [vmem:[%s0 + $0x4ac] sm:$0xf]
  %v103 = vld [vmem:[%s0 + $0x4b0] sm:$0xf]
  %v104 = vld [vmem:[%s0 + $0x4b4] sm:$0xf]
  %v105 = vld [vmem:[%s0 + $0x4b8] sm:$0xf]
  %v106 = vld [vmem:[%s0 + $0x4bc] sm:$0xf]
  %v107 = vld [vmem:[%s0 + $0x4c0] sm:$0xf]
  %v108 = vld [vmem:[%s0 + $0x4c4] sm:$0xf]
  %v109 = vld [vmem:[%s0 + $0x5a0] sm:$0xf]
  %v110 = vld [vmem:[%s0 + $0x5a4] sm:$0xf]
  %v111 = vld [vmem:[%s0 + $0x5a8] sm:$0xf]
  %v112 = vld [vmem:[%s0 + $0x5ac] sm:$0xf]
  %v113 = vld [vmem:[%s0 + $0x5b0] sm:$0xf]
  %v114 = vld [vmem:[%s0 + $0x5b4] sm:$0xf]
  %v115 = vld [vmem:[%s0 + $0x5b8] sm:$0xf]
  %v116 = vld [vmem:[%s0 + $0x5bc] sm:$0xf]
  %v117 = vld [vmem:[%s0 + $0x5c0] sm:$0xf]
  %v118 = vld [vmem:[%s0 + $0x5c4] sm:$0xf]
  %v119 = vld [vmem:[%s0 + $0x5c8] sm:$0xf]
  %v120 = vld [vmem:[%s0 + $0x5cc] sm:$0xf]
  %v121 = vld [vmem:[%s0 + $0x5d0] sm:$0xf]
  %v122 = vld [vmem:[%s0 + $0x5d4] sm:$0xf]
  %v123 = vld [vmem:[%s0 + $0x5d8] sm:$0xf]
  %v124 = vld [vmem:[%s0 + $0x5dc] sm:$0xf]
  %v125 = vld [vmem:[%s0 + $0x5e0] sm:$0xf]
  %v126 = vld [vmem:[%s0 + $0x5e4] sm:$0xf]
  %v127 = vld [vmem:[%s0 + $0x6c0] sm:$0xf]
  %v128 = vld [vmem:[%s0 + $0x6c4] sm:$0xf]
  %v129 = vld [vmem:[%s0 + $0x6c8] sm:$0xf]
  %v130 = vld [vmem:[%s0 + $0x6cc] sm:$0xf]
  %v131 = vld [vmem:[%s0 + $0x6d0] sm:$0xf]
  %v132 = vld [vmem:[%s0 + $0x6d4] sm:$0xf]
  %v133 = vld [vmem:[%s0 + $0x6d8] sm:$0xf]
  %v134 = vld [vmem:[%s0 + $0x6dc] sm:$0xf]
  %v135 = vld [vmem:[%s0 + $0x6e0] sm:$0xf]
  %v136 = vld [vmem:[%s0 + $0x6e4] sm:$0xf]
  %v137 = vld [vmem:[%s0 + $0x6e8] sm:$0xf]
  %v138 = vld [vmem:[%s0 + $0x6ec] sm:$0xf]
  %v139 = vld [vmem:[%s0 + $0x6f0] sm:$0xf]
  %v140 = vld [vmem:[%s0 + $0x6f4] sm:$0xf]
  %v141 = vld [vmem:[%s0 + $0x6f8] sm:$0xf]
  %v142 = vld [vmem:[%s0 + $0x6fc] sm:$0xf]
  %v143 = vld [vmem:[%s0 + $0x700] sm:$0xf]
  %v144 = vld [vmem:[%s0 + $0x704] sm:$0xf]
  %v145 = vld [vmem:[%s0 + $0x7e0] sm:$0xf]
  %v146 = vld [vmem:[%s0 + $0x7e4] sm:$0xf]
  %v147 = vld [vmem:[%s0 + $0x7e8] sm:$0xf]
  %v148 = vld [vmem:[%s0 + $0x7ec] sm:$0xf]
  %v149 = vld [vmem:[%s0 + $0x7f0] sm:$0xf]
  %v150 = vld [vmem:[%s0 + $0x7f4] sm:$0xf]
  %v151 = vld [vmem:[%s0 + $0x7f8] sm:$0xf]
  %v152 = vld [vmem:[%s0 + $0x7fc] sm:$0xf]
  %v153 = vld [vmem:[%s0 + $0x800] sm:$0xf]
  %v154 = vld [vmem:[%s0 + $0x804] sm:$0xf]
  %v155 = vld [vmem:[%s0 + $0x808] sm:$0xf]
  %v156 = vld [vmem:[%s0 + $0x80c] sm:$0xf]
  %v157 = vld [vmem:[%s0 + $0x810] sm:$0xf]
  %v158 = vld [vmem:[%s0 + $0x814] sm:$0xf]
  %v159 = vld [vmem:[%s0 + $0x818] sm:$0xf]
  %v160 = vld [vmem:[%s0 + $0x81c] sm:$0xf]
  %v161 = vld [vmem:[%s0 + $0x820] sm:$0xf]
  %v162 = vld [vmem:[%s0 + $0x824] sm:$0xf]
  %v307 = vunpack.c.l.b16 %v19
  %v308 = vunpack.c.l.b16 %v20
  %v309 = vunpack.c.l.b16 %v21
  %v310 = vunpack.c.l.b16 %v22
  %v311 = vunpack.c.l.b16 %v23
  %v312 = vunpack.c.l.b16 %v24
  %v313 = vunpack.c.l.b16 %v25
  %v314 = vunpack.c.l.b16 %v26
  %v315 = vunpack.c.l.b16 %v27
  %v316 = vunpack.c.l.b16 %v28
  %v317 = vunpack.c.l.b16 %v29
  %v318 = vunpack.c.l.b16 %v30
  %v319 = vunpack.c.l.b16 %v31
  %v320 = vunpack.c.l.b16 %v32
  %v321 = vunpack.c.l.b16 %v33
  %v322 = vunpack.c.l.b16 %v34
  %v323 = vunpack.c.l.b16 %v35
  %v324 = vunpack.c.l.b16 %v36
  %v325 = vunpack.c.l.b16 %v37
  %v326 = vunpack.c.l.b16 %v38
  %v327 = vunpack.c.l.b16 %v39
  %v328 = vunpack.c.l.b16 %v40
  %v329 = vunpack.c.l.b16 %v41
  %v330 = vunpack.c.l.b16 %v42
  %v331 = vunpack.c.l.b16 %v43
  %v332 = vunpack.c.l.b16 %v44
  %v333 = vunpack.c.l.b16 %v45
  %v334 = vunpack.c.l.b16 %v46
  %v335 = vunpack.c.l.b16 %v47
  %v336 = vunpack.c.l.b16 %v48
  %v337 = vunpack.c.l.b16 %v49
  %v338 = vunpack.c.l.b16 %v50
  %v339 = vunpack.c.l.b16 %v51
  %v340 = vunpack.c.l.b16 %v52
  %v341 = vunpack.c.l.b16 %v53
  %v342 = vunpack.c.l.b16 %v54
  %v343 = vunpack.c.l.b16 %v55
  %v344 = vunpack.c.l.b16 %v56
  %v345 = vunpack.c.l.b16 %v57
  %v346 = vunpack.c.l.b16 %v58
  %v347 = vunpack.c.l.b16 %v59
  %v348 = vunpack.c.l.b16 %v60
  %v349 = vunpack.c.l.b16 %v61
  %v350 = vunpack.c.l.b16 %v62
  %v351 = vunpack.c.l.b16 %v63
  %v352 = vunpack.c.l.b16 %v64
  %v353 = vunpack.c.l.b16 %v65
  %v354 = vunpack.c.l.b16 %v66
  %v355 = vunpack.c.l.b16 %v67
  %v356 = vunpack.c.l.b16 %v68
  %v357 = vunpack.c.l.b16 %v69
  %v358 = vunpack.c.l.b16 %v70
  %v359 = vunpack.c.l.b16 %v71
  %v360 = vunpack.c.l.b16 %v72
  %v361 = vunpack.c.l.b16 %v73
  %v362 = vunpack.c.l.b16 %v74
  %v363 = vunpack.c.l.b16 %v75
  %v364 = vunpack.c.l.b16 %v76
  %v365 = vunpack.c.l.b16 %v77
  %v366 = vunpack.c.l.b16 %v78
  %v367 = vunpack.c.l.b16 %v79
  %v368 = vunpack.c.l.b16 %v80
  %v369 = vunpack.c.l.b16 %v81
  %v370 = vunpack.c.l.b16 %v82
  %v371 = vunpack.c.l.b16 %v83
  %v372 = vunpack.c.l.b16 %v84
  %v373 = vunpack.c.l.b16 %v85
  %v374 = vunpack.c.l.b16 %v86
  %v375 = vunpack.c.l.b16 %v87
  %v376 = vunpack.c.l.b16 %v88
  %v377 = vunpack.c.l.b16 %v89
  %v378 = vunpack.c.l.b16 %v90
  %v379 = vunpack.c.l.b16 %v91
  %v380 = vunpack.c.l.b16 %v92
  %v381 = vunpack.c.l.b16 %v93
  %v382 = vunpack.c.l.b16 %v94
  %v383 = vunpack.c.l.b16 %v95
  %v384 = vunpack.c.l.b16 %v96
  %v385 = vunpack.c.l.b16 %v97
  %v386 = vunpack.c.l.b16 %v98
  %v387 = vunpack.c.l.b16 %v99
  %v388 = vunpack.c.l.b16 %v100
  %v389 = vunpack.c.l.b16 %v101
  %v390 = vunpack.c.l.b16 %v102
  %v391 = vunpack.c.l.b16 %v103
  %v392 = vunpack.c.l.b16 %v104
  %v393 = vunpack.c.l.b16 %v105
  %v394 = vunpack.c.l.b16 %v106
  %v395 = vunpack.c.l.b16 %v107
  %v396 = vunpack.c.l.b16 %v108
  %v397 = vunpack.c.l.b16 %v109
  %v398 = vunpack.c.l.b16 %v110
  %v399 = vunpack.c.l.b16 %v111
  %v400 = vunpack.c.l.b16 %v112
  %v401 = vunpack.c.l.b16 %v113
  %v402 = vunpack.c.l.b16 %v114
  %v403 = vunpack.c.l.b16 %v115
  %v404 = vunpack.c.l.b16 %v116
  %v405 = vunpack.c.l.b16 %v117
  %v406 = vunpack.c.l.b16 %v118
  %v407 = vunpack.c.l.b16 %v119
  %v408 = vunpack.c.l.b16 %v120
  %v409 = vunpack.c.l.b16 %v121
  %v410 = vunpack.c.l.b16 %v122
  %v411 = vunpack.c.l.b16 %v123
  %v412 = vunpack.c.l.b16 %v124
  %v413 = vunpack.c.l.b16 %v125
  %v414 = vunpack.c.l.b16 %v126
  %v415 = vunpack.c.l.b16 %v127
  %v416 = vunpack.c.l.b16 %v128
  %v417 = vunpack.c.l.b16 %v129
  %v418 = vunpack.c.l.b16 %v130
  %v419 = vunpack.c.l.b16 %v131
  %v420 = vunpack.c.l.b16 %v132
  %v421 = vunpack.c.l.b16 %v133
  %v422 = vunpack.c.l.b16 %v134
  %v423 = vunpack.c.l.b16 %v135
  %v424 = vunpack.c.l.b16 %v136
  %v425 = vunpack.c.l.b16 %v137
  %v426 = vunpack.c.l.b16 %v138
  %v427 = vunpack.c.l.b16 %v139
  %v428 = vunpack.c.l.b16 %v140
  %v429 = vunpack.c.l.b16 %v141
  %v430 = vunpack.c.l.b16 %v142
  %v431 = vunpack.c.l.b16 %v143
  %v432 = vunpack.c.l.b16 %v144
  %v433 = vunpack.c.l.b16 %v145
  %v434 = vunpack.c.l.b16 %v146
  %v435 = vunpack.c.l.b16 %v147
  %v436 = vunpack.c.l.b16 %v148
  %v437 = vunpack.c.l.b16 %v149
  %v438 = vunpack.c.l.b16 %v150
  %v439 = vunpack.c.l.b16 %v151
  %v440 = vunpack.c.l.b16 %v152
  %v441 = vunpack.c.l.b16 %v153
  %v442 = vunpack.c.l.b16 %v154
  %v443 = vunpack.c.l.b16 %v155
  %v444 = vunpack.c.l.b16 %v156
  %v445 = vunpack.c.l.b16 %v157
  %v446 = vunpack.c.l.b16 %v158
  %v447 = vunpack.c.l.b16 %v159
  %v448 = vunpack.c.l.b16 %v160
  %v449 = vunpack.c.l.b16 %v161
  %v450 = vunpack.c.l.b16 %v162
  %v451 = vpack.c.b16 %v308, %v307
  %v452 = vpack.c.b16 %v310, %v309
  %v453 = vpack.c.b16 %v312, %v311
  %v454 = vpack.c.b16 %v314, %v313
  %v455 = vpack.c.b16 %v316, %v315
  %v456 = vpack.c.b16 %v318, %v317
  %v457 = vpack.c.b16 %v320, %v319
  %v458 = vpack.c.b16 %v322, %v321
  %v459 = vpack.c.b16 %v324, %v323
  %v460 = vpack.c.b16 %v326, %v325
  %v461 = vpack.c.b16 %v328, %v327
  %v462 = vpack.c.b16 %v330, %v329
  %v463 = vpack.c.b16 %v332, %v331
  %v464 = vpack.c.b16 %v334, %v333
  %v465 = vpack.c.b16 %v336, %v335
  %v466 = vpack.c.b16 %v338, %v337
  %v467 = vpack.c.b16 %v340, %v339
  %v468 = vpack.c.b16 %v342, %v341
  %v469 = vpack.c.b16 %v344, %v343
  %v470 = vpack.c.b16 %v346, %v345
  %v471 = vpack.c.b16 %v348, %v347
  %v472 = vpack.c.b16 %v350, %v349
  %v473 = vpack.c.b16 %v352, %v351
  %v474 = vpack.c.b16 %v354, %v353
  %v475 = vpack.c.b16 %v356, %v355
  %v476 = vpack.c.b16 %v358, %v357
  %v477 = vpack.c.b16 %v360, %v359
  %v478 = vpack.c.b16 %v362, %v361
  %v479 = vpack.c.b16 %v364, %v363
  %v480 = vpack.c.b16 %v366, %v365
  %v481 = vpack.c.b16 %v368, %v367
  %v482 = vpack.c.b16 %v370, %v369
  %v483 = vpack.c.b16 %v372, %v371
  %v484 = vpack.c.b16 %v374, %v373
  %v485 = vpack.c.b16 %v376, %v375
  %v486 = vpack.c.b16 %v378, %v377
  %v487 = vpack.c.b16 %v380, %v379
  %v488 = vpack.c.b16 %v382, %v381
  %v489 = vpack.c.b16 %v384, %v383
  %v490 = vpack.c.b16 %v386, %v385
  %v491 = vpack.c.b16 %v388, %v387
  %v492 = vpack.c.b16 %v390, %v389
  %v493 = vpack.c.b16 %v392, %v391
  %v494 = vpack.c.b16 %v394, %v393
  %v495 = vpack.c.b16 %v396, %v395
  %v496 = vpack.c.b16 %v398, %v397
  %v497 = vpack.c.b16 %v400, %v399
  %v498 = vpack.c.b16 %v402, %v401
  %v499 = vpack.c.b16 %v404, %v403
  %v500 = vpack.c.b16 %v406, %v405
  %v501 = vpack.c.b16 %v408, %v407
  %v502 = vpack.c.b16 %v410, %v409
  %v503 = vpack.c.b16 %v412, %v411
  %v504 = vpack.c.b16 %v414, %v413
  %v505 = vpack.c.b16 %v416, %v415
  %v506 = vpack.c.b16 %v418, %v417
  %v507 = vpack.c.b16 %v420, %v419
  %v508 = vpack.c.b16 %v422, %v421
  %v509 = vpack.c.b16 %v424, %v423
  %v510 = vpack.c.b16 %v426, %v425
  %v511 = vpack.c.b16 %v428, %v427
  %v512 = vpack.c.b16 %v430, %v429
  %v513 = vpack.c.b16 %v432, %v431
  %v514 = vpack.c.b16 %v434, %v433
  %v515 = vpack.c.b16 %v436, %v435
  %v516 = vpack.c.b16 %v438, %v437
  %v517 = vpack.c.b16 %v440, %v439
  %v518 = vpack.c.b16 %v442, %v441
  %v519 = vpack.c.b16 %v444, %v443
  %v520 = vpack.c.b16 %v446, %v445
  %v521 = vpack.c.b16 %v448, %v447
  %v522 = vpack.c.b16 %v450, %v449
  %v527 = vunpack.c.l.b16 %v15
  %v528 = vunpack.c.l.b16 %v16
  %v529 = vunpack.c.l.b16 %v17
  %v530 = vunpack.c.l.b16 %v18
  %v531 = vpack.c.b16 %v528, %v527
  %v532 = vpack.c.b16 %v530, %v529
  %vm534 = vcmask 203776
  %v536 = vsel %vm534, %v451, 0
  %v539 = vsel %vm534, %v452, 0
  %v542 = vsel %vm534, %v453, 0
  %v545 = vsel %vm534, %v454, 0
  %v548 = vsel %vm534, %v455, 0
  %v551 = vsel %vm534, %v456, 0
  %v554 = vsel %vm534, %v457, 0
  %v557 = vsel %vm534, %v458, 0
  %v560 = vsel %vm534, %v459, 0
  %v563 = vsel %vm534, %v460, 0
  %v566 = vsel %vm534, %v461, 0
  %v569 = vsel %vm534, %v462, 0
  %v572 = vsel %vm534, %v463, 0
  %v575 = vsel %vm534, %v464, 0
  %v578 = vsel %vm534, %v465, 0
  %v581 = vsel %vm534, %v466, 0
  %v584 = vsel %vm534, %v467, 0
  %v587 = vsel %vm534, %v468, 0
  %v590 = vsel %vm534, %v469, 0
  %v593 = vsel %vm534, %v470, 0
  %v596 = vsel %vm534, %v471, 0
  %v599 = vsel %vm534, %v472, 0
  %v602 = vsel %vm534, %v473, 0
  %v605 = vsel %vm534, %v474, 0
  %v608 = vsel %vm534, %v475, 0
  %v611 = vsel %vm534, %v476, 0
  %v614 = vsel %vm534, %v477, 0
  %v617 = vsel %vm534, %v478, 0
  %v620 = vsel %vm534, %v479, 0
  %v623 = vsel %vm534, %v480, 0
  %v626 = vsel %vm534, %v481, 0
  %v629 = vsel %vm534, %v482, 0
  %v632 = vsel %vm534, %v483, 0
  %v635 = vsel %vm534, %v484, 0
  %v638 = vsel %vm534, %v485, 0
  %v641 = vsel %vm534, %v486, 0
  %v644 = vsel %vm534, %v487, 0
  %v647 = vsel %vm534, %v488, 0
  %v650 = vsel %vm534, %v489, 0
  %v653 = vsel %vm534, %v490, 0
  %v656 = vsel %vm534, %v491, 0
  %v659 = vsel %vm534, %v492, 0
  %v662 = vsel %vm534, %v493, 0
  %v665 = vsel %vm534, %v494, 0
  %v668 = vsel %vm534, %v495, 0
  %v671 = vsel %vm534, %v496, 0
  %v674 = vsel %vm534, %v497, 0
  %v677 = vsel %vm534, %v498, 0
  %v680 = vsel %vm534, %v499, 0
  %v683 = vsel %vm534, %v500, 0
  %v686 = vsel %vm534, %v501, 0
  %v689 = vsel %vm534, %v502, 0
  %v692 = vsel %vm534, %v503, 0
  %v695 = vsel %vm534, %v504, 0
  %v698 = vsel %vm534, %v505, 0
  %v701 = vsel %vm534, %v506, 0
  %v704 = vsel %vm534, %v507, 0
  %v707 = vsel %vm534, %v508, 0
  %v710 = vsel %vm534, %v509, 0
  %v713 = vsel %vm534, %v510, 0
  %v716 = vsel %vm534, %v511, 0
  %v719 = vsel %vm534, %v512, 0
  %v722 = vsel %vm534, %v513, 0
  %v725 = vsel %vm534, %v514, 0
  %v728 = vsel %vm534, %v515, 0
  %v731 = vsel %vm534, %v516, 0
  %v734 = vsel %vm534, %v517, 0
  %v737 = vsel %vm534, %v518, 0
  %v740 = vsel %vm534, %v519, 0
  %v743 = vsel %vm534, %v520, 0
  %v746 = vsel %vm534, %v521, 0
  %v749 = vsel %vm534, %v522, 0
  %vm751 = vcmask 1043456
  %vm752 = vcmask 1044480
  %v753 = vsel %vm751, 4294967295, 65535
  %v754 = vsel %vm752, %v753, 0
  %v756 = vand.u32 %v532, %v754
  %758 = vmatprep.subr.bf16.mxu0 0
  %759 = vmatpush1.bf16.msra.mxu0 0
  %760 = vmatprep.subr.bf16.mxu0 0
  %761 = vmatpush1.bf16.msra.mxu0 0
  %762 = vmatprep.subr.bf16.mxu0 0
  %763 = vmatpush1.bf16.msra.mxu0 0
  %764 = vmatprep.subr.bf16.mxu0 0
  %765 = vmatpush1.bf16.msra.mxu0 0
  %766 = vmatprep.subr.bf16.mxu0 0
  %767 = vmatpush1.bf16.msra.mxu0 0
  %768 = vmatprep.subr.bf16.mxu0 0
  %769 = vmatpush1.bf16.msra.mxu0 0
  %770 = vmatprep.subr.bf16.mxu0 0
  %771 = vmatpush1.bf16.msra.mxu0 %v756
  %772 = vmatprep.subr.bf16.mxu0 0
  %773 = vmatpush1.bf16.msra.mxu0 %v531
  %774 = vmatprep.subr.bf16.mxu0 0
  %775 = vmatpush2.bf16.msra.mxu0 0
  %776 = vmatprep.subr.bf16.mxu0 0
  %777 = vmatpush2.bf16.msra.mxu0 0
  %778 = vmatprep.subr.bf16.mxu0 0
  %779 = vmatpush2.bf16.msra.mxu0 0
  %780 = vmatprep.subr.bf16.mxu0 0
  %781 = vmatpush2.bf16.msra.mxu0 0
  %782 = vmatprep.subr.bf16.mxu0 0
  %783 = vmatpush2.bf16.msra.mxu0 0
  %784 = vmatprep.subr.bf16.mxu0 0
  %785 = vmatpush2.bf16.msra.mxu0 0
  %786 = vmatprep.subr.bf16.mxu0 0
  %787 = vmatpush2.bf16.msra.mxu0 0
  %788 = vmatprep.subr.bf16.mxu0 0
  %789 = vmatpush2.bf16.msra.mxu0 0
  %790 = vmatprep.mubr.bf16.mxu0 0
  %791 = vmatmul.mubr.bf16.gmra.mxu0 %v536
  %v792 = vpop.f32.mrf.mxu0
  %v793 = vadd.f32 0.0, %v792
  %v794 = vpop.f32.mrf.mxu0
  %v795 = vpop.f32.mrf.mxu0
  %v796 = vadd.f32 0.0, %v795
  %v797 = vpop.f32.mrf.mxu0
  %798 = vmatprep.mubr.bf16.mxu0 0
  %799 = vmatmul.mubr.bf16.gmra.mxu0 %v539
  %v800 = vpop.f32.mrf.mxu0
  %v801 = vadd.f32 0.0, %v800
  %v802 = vpop.f32.mrf.mxu0
  %v803 = vpop.f32.mrf.mxu0
  %v804 = vadd.f32 0.0, %v803
  %v805 = vpop.f32.mrf.mxu0
  %806 = vmatprep.mubr.bf16.mxu0 0
  %807 = vmatmul.mubr.bf16.gmra.mxu0 %v542
  %v808 = vpop.f32.mrf.mxu0
  %v809 = vadd.f32 0.0, %v808
  %v810 = vpop.f32.mrf.mxu0
  %v811 = vpop.f32.mrf.mxu0
  %v812 = vadd.f32 0.0, %v811
  %v813 = vpop.f32.mrf.mxu0
  %814 = vmatprep.mubr.bf16.mxu0 0
  %815 = vmatmul.mubr.bf16.gmra.mxu0 %v545
  %v816 = vpop.f32.mrf.mxu0
  %v817 = vadd.f32 0.0, %v816
  %v818 = vpop.f32.mrf.mxu0
  %v819 = vpop.f32.mrf.mxu0
  %v820 = vadd.f32 0.0, %v819
  %v821 = vpop.f32.mrf.mxu0
  %822 = vmatprep.mubr.bf16.mxu0 0
  %823 = vmatmul.mubr.bf16.gmra.mxu0 %v548
  %v824 = vpop.f32.mrf.mxu0
  %v825 = vadd.f32 0.0, %v824
  %v826 = vpop.f32.mrf.mxu0
  %v827 = vpop.f32.mrf.mxu0
  %v828 = vadd.f32 0.0, %v827
  %v829 = vpop.f32.mrf.mxu0
  %830 = vmatprep.mubr.bf16.mxu0 0
  %831 = vmatmul.mubr.bf16.gmra.mxu0 %v551
  %v832 = vpop.f32.mrf.mxu0
  %v833 = vadd.f32 0.0, %v832
  %v834 = vpop.f32.mrf.mxu0
  %v835 = vpop.f32.mrf.mxu0
  %v836 = vadd.f32 0.0, %v835
  %v837 = vpop.f32.mrf.mxu0
  %838 = vmatprep.mubr.bf16.mxu0 0
  %839 = vmatmul.mubr.bf16.gmra.mxu0 %v554
  %v840 = vpop.f32.mrf.mxu0
  %v841 = vadd.f32 0.0, %v840
  %v842 = vpop.f32.mrf.mxu0
  %v843 = vpop.f32.mrf.mxu0
  %v844 = vadd.f32 0.0, %v843
  %v845 = vpop.f32.mrf.mxu0
  %846 = vmatprep.mubr.bf16.mxu0 0
  %847 = vmatmul.mubr.bf16.gmra.mxu0 %v557
  %v848 = vpop.f32.mrf.mxu0
  %v849 = vadd.f32 0.0, %v848
  %v850 = vpop.f32.mrf.mxu0
  %v851 = vpop.f32.mrf.mxu0
  %v852 = vadd.f32 0.0, %v851
  %v853 = vpop.f32.mrf.mxu0
  %854 = vmatprep.mubr.bf16.mxu0 0
  %855 = vmatmul.mubr.bf16.gmra.mxu0 %v560
  %v856 = vpop.f32.mrf.mxu0
  %v857 = vadd.f32 0.0, %v856
  %v858 = vpop.f32.mrf.mxu0
  %v859 = vpop.f32.mrf.mxu0
  %v860 = vadd.f32 0.0, %v859
  %v861 = vpop.f32.mrf.mxu0
  %862 = vmatprep.mubr.bf16.mxu0 0
  %863 = vmatmul.mubr.bf16.gmra.mxu0 %v563
  %v864 = vpop.f32.mrf.mxu0
  %v865 = vadd.f32 0.0, %v864
  %v866 = vpop.f32.mrf.mxu0
  %v867 = vpop.f32.mrf.mxu0
  %v868 = vadd.f32 0.0, %v867
  %v869 = vpop.f32.mrf.mxu0
  %870 = vmatprep.mubr.bf16.mxu0 0
  %871 = vmatmul.mubr.bf16.gmra.mxu0 %v566
  %v872 = vpop.f32.mrf.mxu0
  %v873 = vadd.f32 0.0, %v872
  %v874 = vpop.f32.mrf.mxu0
  %v875 = vpop.f32.mrf.mxu0
  %v876 = vadd.f32 0.0, %v875
  %v877 = vpop.f32.mrf.mxu0
  %878 = vmatprep.mubr.bf16.mxu0 0
  %879 = vmatmul.mubr.bf16.gmra.mxu0 %v569
  %v880 = vpop.f32.mrf.mxu0
  %v881 = vadd.f32 0.0, %v880
  %v882 = vpop.f32.mrf.mxu0
  %v883 = vpop.f32.mrf.mxu0
  %v884 = vadd.f32 0.0, %v883
  %v885 = vpop.f32.mrf.mxu0
  %886 = vmatprep.mubr.bf16.mxu0 0
  %887 = vmatmul.mubr.bf16.gmra.mxu0 %v572
  %v888 = vpop.f32.mrf.mxu0
  %v889 = vadd.f32 0.0, %v888
  %v890 = vpop.f32.mrf.mxu0
  %v891 = vpop.f32.mrf.mxu0
  %v892 = vadd.f32 0.0, %v891
  %v893 = vpop.f32.mrf.mxu0
  %894 = vmatprep.mubr.bf16.mxu0 0
  %895 = vmatmul.mubr.bf16.gmra.mxu0 %v575
  %v896 = vpop.f32.mrf.mxu0
  %v897 = vadd.f32 0.0, %v896
  %v898 = vpop.f32.mrf.mxu0
  %v899 = vpop.f32.mrf.mxu0
  %v900 = vadd.f32 0.0, %v899
  %v901 = vpop.f32.mrf.mxu0
  %902 = vmatprep.mubr.bf16.mxu0 0
  %903 = vmatmul.mubr.bf16.gmra.mxu0 %v578
  %v904 = vpop.f32.mrf.mxu0
  %v905 = vadd.f32 0.0, %v904
  %v906 = vpop.f32.mrf.mxu0
  %v907 = vpop.f32.mrf.mxu0
  %v908 = vadd.f32 0.0, %v907
  %v909 = vpop.f32.mrf.mxu0
  %910 = vmatprep.mubr.bf16.mxu0 0
  %911 = vmatmul.mubr.bf16.gmra.mxu0 %v581
  %v912 = vpop.f32.mrf.mxu0
  %v913 = vadd.f32 0.0, %v912
  %v914 = vpop.f32.mrf.mxu0
  %v915 = vpop.f32.mrf.mxu0
  %v916 = vadd.f32 0.0, %v915
  %v917 = vpop.f32.mrf.mxu0
  %918 = vmatprep.mubr.bf16.mxu0 0
  %919 = vmatmul.mubr.bf16.gmra.mxu0 %v584
  %v920 = vpop.f32.mrf.mxu0
  %v921 = vadd.f32 0.0, %v920
  %v922 = vpop.f32.mrf.mxu0
  %v923 = vpop.f32.mrf.mxu0
  %v924 = vadd.f32 0.0, %v923
  %v925 = vpop.f32.mrf.mxu0
  %926 = vmatprep.mubr.bf16.mxu0 0
  %927 = vmatmul.mubr.bf16.gmra.mxu0 %v587
  %v928 = vpop.f32.mrf.mxu0
  %v929 = vadd.f32 0.0, %v928
  %v930 = vpop.f32.mrf.mxu0
  %v931 = vpop.f32.mrf.mxu0
  %v932 = vadd.f32 0.0, %v931
  %v933 = vpop.f32.mrf.mxu0
  %934 = vmatprep.mubr.bf16.mxu0 0
  %935 = vmatmul.mubr.bf16.gmra.mxu0 %v590
  %v936 = vpop.f32.mrf.mxu0
  %v937 = vadd.f32 0.0, %v936
  %v938 = vpop.f32.mrf.mxu0
  %v939 = vpop.f32.mrf.mxu0
  %v940 = vadd.f32 0.0, %v939
  %v941 = vpop.f32.mrf.mxu0
  %942 = vmatprep.mubr.bf16.mxu0 0
  %943 = vmatmul.mubr.bf16.gmra.mxu0 %v593
  %v944 = vpop.f32.mrf.mxu0
  %v945 = vadd.f32 0.0, %v944
  %v946 = vpop.f32.mrf.mxu0
  %v947 = vpop.f32.mrf.mxu0
  %v948 = vadd.f32 0.0, %v947
  %v949 = vpop.f32.mrf.mxu0
  %950 = vmatprep.mubr.bf16.mxu0 0
  %951 = vmatmul.mubr.bf16.gmra.mxu0 %v596
  %v952 = vpop.f32.mrf.mxu0
  %v953 = vadd.f32 0.0, %v952
  %v954 = vpop.f32.mrf.mxu0
  %v955 = vpop.f32.mrf.mxu0
  %v956 = vadd.f32 0.0, %v955
  %v957 = vpop.f32.mrf.mxu0
  %958 = vmatprep.mubr.bf16.mxu0 0
  %959 = vmatmul.mubr.bf16.gmra.mxu0 %v599
  %v960 = vpop.f32.mrf.mxu0
  %v961 = vadd.f32 0.0, %v960
  %v962 = vpop.f32.mrf.mxu0
  %v963 = vpop.f32.mrf.mxu0
  %v964 = vadd.f32 0.0, %v963
  %v965 = vpop.f32.mrf.mxu0
  %966 = vmatprep.mubr.bf16.mxu0 0
  %967 = vmatmul.mubr.bf16.gmra.mxu0 %v602
  %v968 = vpop.f32.mrf.mxu0
  %v969 = vadd.f32 0.0, %v968
  %v970 = vpop.f32.mrf.mxu0
  %v971 = vpop.f32.mrf.mxu0
  %v972 = vadd.f32 0.0, %v971
  %v973 = vpop.f32.mrf.mxu0
  %974 = vmatprep.mubr.bf16.mxu0 0
  %975 = vmatmul.mubr.bf16.gmra.mxu0 %v605
  %v976 = vpop.f32.mrf.mxu0
  %v977 = vadd.f32 0.0, %v976
  %v978 = vpop.f32.mrf.mxu0
  %v979 = vpop.f32.mrf.mxu0
  %v980 = vadd.f32 0.0, %v979
  %v981 = vpop.f32.mrf.mxu0
  %982 = vmatprep.mubr.bf16.mxu0 0
  %983 = vmatmul.mubr.bf16.gmra.mxu0 %v608
  %v984 = vpop.f32.mrf.mxu0
  %v985 = vadd.f32 0.0, %v984
  %v986 = vpop.f32.mrf.mxu0
  %v987 = vpop.f32.mrf.mxu0
  %v988 = vadd.f32 0.0, %v987
  %v989 = vpop.f32.mrf.mxu0
  %990 = vmatprep.mubr.bf16.mxu0 0
  %991 = vmatmul.mubr.bf16.gmra.mxu0 %v611
  %v992 = vpop.f32.mrf.mxu0
  %v993 = vadd.f32 0.0, %v992
  %v994 = vpop.f32.mrf.mxu0
  %v995 = vpop.f32.mrf.mxu0
  %v996 = vadd.f32 0.0, %v995
  %v997 = vpop.f32.mrf.mxu0
  %998 = vmatprep.mubr.bf16.mxu0 0
  %999 = vmatmul.mubr.bf16.gmra.mxu0 %v614
  %v1000 = vpop.f32.mrf.mxu0
  %v1001 = vadd.f32 0.0, %v1000
  %v1002 = vpop.f32.mrf.mxu0
  %v1003 = vpop.f32.mrf.mxu0
  %v1004 = vadd.f32 0.0, %v1003
  %v1005 = vpop.f32.mrf.mxu0
  %1006 = vmatprep.mubr.bf16.mxu0 0
  %1007 = vmatmul.mubr.bf16.gmra.mxu0 %v617
  %v1008 = vpop.f32.mrf.mxu0
  %v1009 = vadd.f32 0.0, %v1008
  %v1010 = vpop.f32.mrf.mxu0
  %v1011 = vpop.f32.mrf.mxu0
  %v1012 = vadd.f32 0.0, %v1011
  %v1013 = vpop.f32.mrf.mxu0
  %1014 = vmatprep.mubr.bf16.mxu0 0
  %1015 = vmatmul.mubr.bf16.gmra.mxu0 %v620
  %v1016 = vpop.f32.mrf.mxu0
  %v1017 = vadd.f32 0.0, %v1016
  %v1018 = vpop.f32.mrf.mxu0
  %v1019 = vpop.f32.mrf.mxu0
  %v1020 = vadd.f32 0.0, %v1019
  %v1021 = vpop.f32.mrf.mxu0
  %1022 = vmatprep.mubr.bf16.mxu0 0
  %1023 = vmatmul.mubr.bf16.gmra.mxu0 %v623
  %v1024 = vpop.f32.mrf.mxu0
  %v1025 = vadd.f32 0.0, %v1024
  %v1026 = vpop.f32.mrf.mxu0
  %v1027 = vpop.f32.mrf.mxu0
  %v1028 = vadd.f32 0.0, %v1027
  %v1029 = vpop.f32.mrf.mxu0
  %1030 = vmatprep.mubr.bf16.mxu0 0
  %1031 = vmatmul.mubr.bf16.gmra.mxu0 %v626
  %v1032 = vpop.f32.mrf.mxu0
  %v1033 = vadd.f32 0.0, %v1032
  %v1034 = vpop.f32.mrf.mxu0
  %v1035 = vpop.f32.mrf.mxu0
  %v1036 = vadd.f32 0.0, %v1035
  %v1037 = vpop.f32.mrf.mxu0
  %1038 = vmatprep.mubr.bf16.mxu0 0
  %1039 = vmatmul.mubr.bf16.gmra.mxu0 %v629
  %v1040 = vpop.f32.mrf.mxu0
  %v1041 = vadd.f32 0.0, %v1040
  %v1042 = vpop.f32.mrf.mxu0
  %v1043 = vpop.f32.mrf.mxu0
  %v1044 = vadd.f32 0.0, %v1043
  %v1045 = vpop.f32.mrf.mxu0
  %1046 = vmatprep.mubr.bf16.mxu0 0
  %1047 = vmatmul.mubr.bf16.gmra.mxu0 %v632
  %v1048 = vpop.f32.mrf.mxu0
  %v1049 = vadd.f32 0.0, %v1048
  %v1050 = vpop.f32.mrf.mxu0
  %v1051 = vpop.f32.mrf.mxu0
  %v1052 = vadd.f32 0.0, %v1051
  %v1053 = vpop.f32.mrf.mxu0
  %1054 = vmatprep.mubr.bf16.mxu0 0
  %1055 = vmatmul.mubr.bf16.gmra.mxu0 %v635
  %v1056 = vpop.f32.mrf.mxu0
  %v1057 = vadd.f32 0.0, %v1056
  %v1058 = vpop.f32.mrf.mxu0
  %v1059 = vpop.f32.mrf.mxu0
  %v1060 = vadd.f32 0.0, %v1059
  %v1061 = vpop.f32.mrf.mxu0
  %1062 = vmatprep.mubr.bf16.mxu0 0
  %1063 = vmatmul.mubr.bf16.gmra.mxu0 %v638
  %v1064 = vpop.f32.mrf.mxu0
  %v1065 = vadd.f32 0.0, %v1064
  %v1066 = vpop.f32.mrf.mxu0
  %v1067 = vpop.f32.mrf.mxu0
  %v1068 = vadd.f32 0.0, %v1067
  %v1069 = vpop.f32.mrf.mxu0
  %1070 = vmatprep.mubr.bf16.mxu0 0
  %1071 = vmatmul.mubr.bf16.gmra.mxu0 %v641
  %v1072 = vpop.f32.mrf.mxu0
  %v1073 = vadd.f32 0.0, %v1072
  %v1074 = vpop.f32.mrf.mxu0
  %v1075 = vpop.f32.mrf.mxu0
  %v1076 = vadd.f32 0.0, %v1075
  %v1077 = vpop.f32.mrf.mxu0
  %1078 = vmatprep.mubr.bf16.mxu0 0
  %1079 = vmatmul.mubr.bf16.gmra.mxu0 %v644
  %v1080 = vpop.f32.mrf.mxu0
  %v1081 = vadd.f32 0.0, %v1080
  %v1082 = vpop.f32.mrf.mxu0
  %v1083 = vpop.f32.mrf.mxu0
  %v1084 = vadd.f32 0.0, %v1083
  %v1085 = vpop.f32.mrf.mxu0
  %1086 = vmatprep.mubr.bf16.mxu0 0
  %1087 = vmatmul.mubr.bf16.gmra.mxu0 %v647
  %v1088 = vpop.f32.mrf.mxu0
  %v1089 = vadd.f32 0.0, %v1088
  %v1090 = vpop.f32.mrf.mxu0
  %v1091 = vpop.f32.mrf.mxu0
  %v1092 = vadd.f32 0.0, %v1091
  %v1093 = vpop.f32.mrf.mxu0
  %1094 = vmatprep.mubr.bf16.mxu0 0
  %1095 = vmatmul.mubr.bf16.gmra.mxu0 %v650
  %v1096 = vpop.f32.mrf.mxu0
  %v1097 = vadd.f32 0.0, %v1096
  %v1098 = vpop.f32.mrf.mxu0
  %v1099 = vpop.f32.mrf.mxu0
  %v1100 = vadd.f32 0.0, %v1099
  %v1101 = vpop.f32.mrf.mxu0
  %1102 = vmatprep.mubr.bf16.mxu0 0
  %1103 = vmatmul.mubr.bf16.gmra.mxu0 %v653
  %v1104 = vpop.f32.mrf.mxu0
  %v1105 = vadd.f32 0.0, %v1104
  %v1106 = vpop.f32.mrf.mxu0
  %v1107 = vpop.f32.mrf.mxu0
  %v1108 = vadd.f32 0.0, %v1107
  %v1109 = vpop.f32.mrf.mxu0
  %1110 = vmatprep.mubr.bf16.mxu0 0
  %1111 = vmatmul.mubr.bf16.gmra.mxu0 %v656
  %v1112 = vpop.f32.mrf.mxu0
  %v1113 = vadd.f32 0.0, %v1112
  %v1114 = vpop.f32.mrf.mxu0
  %v1115 = vpop.f32.mrf.mxu0
  %v1116 = vadd.f32 0.0, %v1115
  %v1117 = vpop.f32.mrf.mxu0
  %1118 = vmatprep.mubr.bf16.mxu0 0
  %1119 = vmatmul.mubr.bf16.gmra.mxu0 %v659
  %v1120 = vpop.f32.mrf.mxu0
  %v1121 = vadd.f32 0.0, %v1120
  %v1122 = vpop.f32.mrf.mxu0
  %v1123 = vpop.f32.mrf.mxu0
  %v1124 = vadd.f32 0.0, %v1123
  %v1125 = vpop.f32.mrf.mxu0
  %1126 = vmatprep.mubr.bf16.mxu0 0
  %1127 = vmatmul.mubr.bf16.gmra.mxu0 %v662
  %v1128 = vpop.f32.mrf.mxu0
  %v1129 = vadd.f32 0.0, %v1128
  %v1130 = vpop.f32.mrf.mxu0
  %v1131 = vpop.f32.mrf.mxu0
  %v1132 = vadd.f32 0.0, %v1131
  %v1133 = vpop.f32.mrf.mxu0
  %1134 = vmatprep.mubr.bf16.mxu0 0
  %1135 = vmatmul.mubr.bf16.gmra.mxu0 %v665
  %v1136 = vpop.f32.mrf.mxu0
  %v1137 = vadd.f32 0.0, %v1136
  %v1138 = vpop.f32.mrf.mxu0
  %v1139 = vpop.f32.mrf.mxu0
  %v1140 = vadd.f32 0.0, %v1139
  %v1141 = vpop.f32.mrf.mxu0
  %1142 = vmatprep.mubr.bf16.mxu0 0
  %1143 = vmatmul.mubr.bf16.gmra.mxu0 %v668
  %v1144 = vpop.f32.mrf.mxu0
  %v1145 = vadd.f32 0.0, %v1144
  %v1146 = vpop.f32.mrf.mxu0
  %v1147 = vpop.f32.mrf.mxu0
  %v1148 = vadd.f32 0.0, %v1147
  %v1149 = vpop.f32.mrf.mxu0
  %1150 = vmatprep.mubr.bf16.mxu0 0
  %1151 = vmatmul.mubr.bf16.gmra.mxu0 %v671
  %v1152 = vpop.f32.mrf.mxu0
  %v1153 = vadd.f32 0.0, %v1152
  %v1154 = vpop.f32.mrf.mxu0
  %v1155 = vpop.f32.mrf.mxu0
  %v1156 = vadd.f32 0.0, %v1155
  %v1157 = vpop.f32.mrf.mxu0
  %1158 = vmatprep.mubr.bf16.mxu0 0
  %1159 = vmatmul.mubr.bf16.gmra.mxu0 %v674
  %v1160 = vpop.f32.mrf.mxu0
  %v1161 = vadd.f32 0.0, %v1160
  %v1162 = vpop.f32.mrf.mxu0
  %v1163 = vpop.f32.mrf.mxu0
  %v1164 = vadd.f32 0.0, %v1163
  %v1165 = vpop.f32.mrf.mxu0
  %1166 = vmatprep.mubr.bf16.mxu0 0
  %1167 = vmatmul.mubr.bf16.gmra.mxu0 %v677
  %v1168 = vpop.f32.mrf.mxu0
  %v1169 = vadd.f32 0.0, %v1168
  %v1170 = vpop.f32.mrf.mxu0
  %v1171 = vpop.f32.mrf.mxu0
  %v1172 = vadd.f32 0.0, %v1171
  %v1173 = vpop.f32.mrf.mxu0
  %1174 = vmatprep.mubr.bf16.mxu0 0
  %1175 = vmatmul.mubr.bf16.gmra.mxu0 %v680
  %v1176 = vpop.f32.mrf.mxu0
  %v1177 = vadd.f32 0.0, %v1176
  %v1178 = vpop.f32.mrf.mxu0
  %v1179 = vpop.f32.mrf.mxu0
  %v1180 = vadd.f32 0.0, %v1179
  %v1181 = vpop.f32.mrf.mxu0
  %1182 = vmatprep.mubr.bf16.mxu0 0
  %1183 = vmatmul.mubr.bf16.gmra.mxu0 %v683
  %v1184 = vpop.f32.mrf.mxu0
  %v1185 = vadd.f32 0.0, %v1184
  %v1186 = vpop.f32.mrf.mxu0
  %v1187 = vpop.f32.mrf.mxu0
  %v1188 = vadd.f32 0.0, %v1187
  %v1189 = vpop.f32.mrf.mxu0
  %1190 = vmatprep.mubr.bf16.mxu0 0
  %1191 = vmatmul.mubr.bf16.gmra.mxu0 %v686
  %v1192 = vpop.f32.mrf.mxu0
  %v1193 = vadd.f32 0.0, %v1192
  %v1194 = vpop.f32.mrf.mxu0
  %v1195 = vpop.f32.mrf.mxu0
  %v1196 = vadd.f32 0.0, %v1195
  %v1197 = vpop.f32.mrf.mxu0
  %1198 = vmatprep.mubr.bf16.mxu0 0
  %1199 = vmatmul.mubr.bf16.gmra.mxu0 %v689
  %v1200 = vpop.f32.mrf.mxu0
  %v1201 = vadd.f32 0.0, %v1200
  %v1202 = vpop.f32.mrf.mxu0
  %v1203 = vpop.f32.mrf.mxu0
  %v1204 = vadd.f32 0.0, %v1203
  %v1205 = vpop.f32.mrf.mxu0
  %1206 = vmatprep.mubr.bf16.mxu0 0
  %1207 = vmatmul.mubr.bf16.gmra.mxu0 %v692
  %v1208 = vpop.f32.mrf.mxu0
  %v1209 = vadd.f32 0.0, %v1208
  %v1210 = vpop.f32.mrf.mxu0
  %v1211 = vpop.f32.mrf.mxu0
  %v1212 = vadd.f32 0.0, %v1211
  %v1213 = vpop.f32.mrf.mxu0
  %1214 = vmatprep.mubr.bf16.mxu0 0
  %1215 = vmatmul.mubr.bf16.gmra.mxu0 %v695
  %v1216 = vpop.f32.mrf.mxu0
  %v1217 = vadd.f32 0.0, %v1216
  %v1218 = vpop.f32.mrf.mxu0
  %v1219 = vpop.f32.mrf.mxu0
  %v1220 = vadd.f32 0.0, %v1219
  %v1221 = vpop.f32.mrf.mxu0
  %1222 = vmatprep.mubr.bf16.mxu0 0
  %1223 = vmatmul.mubr.bf16.gmra.mxu0 %v698
  %v1224 = vpop.f32.mrf.mxu0
  %v1225 = vadd.f32 0.0, %v1224
  %v1226 = vpop.f32.mrf.mxu0
  %v1227 = vpop.f32.mrf.mxu0
  %v1228 = vadd.f32 0.0, %v1227
  %v1229 = vpop.f32.mrf.mxu0
  %1230 = vmatprep.mubr.bf16.mxu0 0
  %1231 = vmatmul.mubr.bf16.gmra.mxu0 %v701
  %v1232 = vpop.f32.mrf.mxu0
  %v1233 = vadd.f32 0.0, %v1232
  %v1234 = vpop.f32.mrf.mxu0
  %v1235 = vpop.f32.mrf.mxu0
  %v1236 = vadd.f32 0.0, %v1235
  %v1237 = vpop.f32.mrf.mxu0
  %1238 = vmatprep.mubr.bf16.mxu0 0
  %1239 = vmatmul.mubr.bf16.gmra.mxu0 %v704
  %v1240 = vpop.f32.mrf.mxu0
  %v1241 = vadd.f32 0.0, %v1240
  %v1242 = vpop.f32.mrf.mxu0
  %v1243 = vpop.f32.mrf.mxu0
  %v1244 = vadd.f32 0.0, %v1243
  %v1245 = vpop.f32.mrf.mxu0
  %1246 = vmatprep.mubr.bf16.mxu0 0
  %1247 = vmatmul.mubr.bf16.gmra.mxu0 %v707
  %v1248 = vpop.f32.mrf.mxu0
  %v1249 = vadd.f32 0.0, %v1248
  %v1250 = vpop.f32.mrf.mxu0
  %v1251 = vpop.f32.mrf.mxu0
  %v1252 = vadd.f32 0.0, %v1251
  %v1253 = vpop.f32.mrf.mxu0
  %1254 = vmatprep.mubr.bf16.mxu0 0
  %1255 = vmatmul.mubr.bf16.gmra.mxu0 %v710
  %v1256 = vpop.f32.mrf.mxu0
  %v1257 = vadd.f32 0.0, %v1256
  %v1258 = vpop.f32.mrf.mxu0
  %v1259 = vpop.f32.mrf.mxu0
  %v1260 = vadd.f32 0.0, %v1259
  %v1261 = vpop.f32.mrf.mxu0
  %1262 = vmatprep.mubr.bf16.mxu0 0
  %1263 = vmatmul.mubr.bf16.gmra.mxu0 %v713
  %v1264 = vpop.f32.mrf.mxu0
  %v1265 = vadd.f32 0.0, %v1264
  %v1266 = vpop.f32.mrf.mxu0
  %v1267 = vpop.f32.mrf.mxu0
  %v1268 = vadd.f32 0.0, %v1267
  %v1269 = vpop.f32.mrf.mxu0
  %1270 = vmatprep.mubr.bf16.mxu0 0
  %1271 = vmatmul.mubr.bf16.gmra.mxu0 %v716
  %v1272 = vpop.f32.mrf.mxu0
  %v1273 = vadd.f32 0.0, %v1272
  %v1274 = vpop.f32.mrf.mxu0
  %v1275 = vpop.f32.mrf.mxu0
  %v1276 = vadd.f32 0.0, %v1275
  %v1277 = vpop.f32.mrf.mxu0
  %1278 = vmatprep.mubr.bf16.mxu0 0
  %1279 = vmatmul.mubr.bf16.gmra.mxu0 %v719
  %v1280 = vpop.f32.mrf.mxu0
  %v1281 = vadd.f32 0.0, %v1280
  %v1282 = vpop.f32.mrf.mxu0
  %v1283 = vpop.f32.mrf.mxu0
  %v1284 = vadd.f32 0.0, %v1283
  %v1285 = vpop.f32.mrf.mxu0
  %1286 = vmatprep.mubr.bf16.mxu0 0
  %1287 = vmatmul.mubr.bf16.gmra.mxu0 %v722
  %v1288 = vpop.f32.mrf.mxu0
  %v1289 = vadd.f32 0.0, %v1288
  %v1290 = vpop.f32.mrf.mxu0
  %v1291 = vpop.f32.mrf.mxu0
  %v1292 = vadd.f32 0.0, %v1291
  %v1293 = vpop.f32.mrf.mxu0
  %1294 = vmatprep.mubr.bf16.mxu0 0
  %1295 = vmatmul.mubr.bf16.gmra.mxu0 %v725
  %v1296 = vpop.f32.mrf.mxu0
  %v1297 = vadd.f32 0.0, %v1296
  %v1298 = vpop.f32.mrf.mxu0
  %v1299 = vpop.f32.mrf.mxu0
  %v1300 = vadd.f32 0.0, %v1299
  %v1301 = vpop.f32.mrf.mxu0
  %1302 = vmatprep.mubr.bf16.mxu0 0
  %1303 = vmatmul.mubr.bf16.gmra.mxu0 %v728
  %v1304 = vpop.f32.mrf.mxu0
  %v1305 = vadd.f32 0.0, %v1304
  %v1306 = vpop.f32.mrf.mxu0
  %v1307 = vpop.f32.mrf.mxu0
  %v1308 = vadd.f32 0.0, %v1307
  %v1309 = vpop.f32.mrf.mxu0
  %1310 = vmatprep.mubr.bf16.mxu0 0
  %1311 = vmatmul.mubr.bf16.gmra.mxu0 %v731
  %v1312 = vpop.f32.mrf.mxu0
  %v1313 = vadd.f32 0.0, %v1312
  %v1314 = vpop.f32.mrf.mxu0
  %v1315 = vpop.f32.mrf.mxu0
  %v1316 = vadd.f32 0.0, %v1315
  %v1317 = vpop.f32.mrf.mxu0
  %1318 = vmatprep.mubr.bf16.mxu0 0
  %1319 = vmatmul.mubr.bf16.gmra.mxu0 %v734
  %v1320 = vpop.f32.mrf.mxu0
  %v1321 = vadd.f32 0.0, %v1320
  %v1322 = vpop.f32.mrf.mxu0
  %v1323 = vpop.f32.mrf.mxu0
  %v1324 = vadd.f32 0.0, %v1323
  %v1325 = vpop.f32.mrf.mxu0
  %1326 = vmatprep.mubr.bf16.mxu0 0
  %1327 = vmatmul.mubr.bf16.gmra.mxu0 %v737
  %v1328 = vpop.f32.mrf.mxu0
  %v1329 = vadd.f32 0.0, %v1328
  %v1330 = vpop.f32.mrf.mxu0
  %v1331 = vpop.f32.mrf.mxu0
  %v1332 = vadd.f32 0.0, %v1331
  %v1333 = vpop.f32.mrf.mxu0
  %1334 = vmatprep.mubr.bf16.mxu0 0
  %1335 = vmatmul.mubr.bf16.gmra.mxu0 %v740
  %v1336 = vpop.f32.mrf.mxu0
  %v1337 = vadd.f32 0.0, %v1336
  %v1338 = vpop.f32.mrf.mxu0
  %v1339 = vpop.f32.mrf.mxu0
  %v1340 = vadd.f32 0.0, %v1339
  %v1341 = vpop.f32.mrf.mxu0
  %1342 = vmatprep.mubr.bf16.mxu0 0
  %1343 = vmatmul.mubr.bf16.gmra.mxu0 %v743
  %v1344 = vpop.f32.mrf.mxu0
  %v1345 = vadd.f32 0.0, %v1344
  %v1346 = vpop.f32.mrf.mxu0
  %v1347 = vpop.f32.mrf.mxu0
  %v1348 = vadd.f32 0.0, %v1347
  %v1349 = vpop.f32.mrf.mxu0
  %1350 = vmatprep.mubr.bf16.mxu0 0
  %1351 = vmatmul.mubr.bf16.gmra.mxu0 %v746
  %v1352 = vpop.f32.mrf.mxu0
  %v1353 = vadd.f32 0.0, %v1352
  %v1354 = vpop.f32.mrf.mxu0
  %v1355 = vpop.f32.mrf.mxu0
  %v1356 = vadd.f32 0.0, %v1355
  %v1357 = vpop.f32.mrf.mxu0
  %1358 = vmatprep.mubr.bf16.mxu0 0
  %1359 = vmatmul.mubr.bf16.gmra.mxu0 %v749
  %v1360 = vpop.f32.mrf.mxu0
  %v1361 = vadd.f32 0.0, %v1360
  %v1362 = vpop.f32.mrf.mxu0
  %v1363 = vpop.f32.mrf.mxu0
  %v1364 = vadd.f32 0.0, %v1363
  %v1365 = vpop.f32.mrf.mxu0
  %1366 = vdwg.mxu0
  %v1367 = vld [vmem:[%s0 + $0x48] sm:$0xf]
  %v1368 = vld [vmem:[%s0 + $0x4c] sm:$0xf]
  %v1369 = vld [vmem:[%s0 + $0x50] sm:$0xf]
  %v1370 = vld [vmem:[%s0 + $0x54] sm:$0xf]
  %v1371 = vld [vmem:[%s0 + $0x58] sm:$0xf]
  %v1372 = vld [vmem:[%s0 + $0x5c] sm:$0xf]
  %v1373 = vld [vmem:[%s0 + $0x60] sm:$0xf]
  %v1374 = vld [vmem:[%s0 + $0x64] sm:$0xf]
  %v1375 = vld [vmem:[%s0 + $0x68] sm:$0xf]
  %v1376 = vld [vmem:[%s0 + $0x6c] sm:$0xf]
  %v1377 = vld [vmem:[%s0 + $0x70] sm:$0xf]
  %v1378 = vld [vmem:[%s0 + $0x74] sm:$0xf]
  %v1379 = vld [vmem:[%s0 + $0x78] sm:$0xf]
  %v1380 = vld [vmem:[%s0 + $0x7c] sm:$0xf]
  %v1381 = vld [vmem:[%s0 + $0x80] sm:$0xf]
  %v1382 = vld [vmem:[%s0 + $0x84] sm:$0xf]
  %v1383 = vld [vmem:[%s0 + $0x88] sm:$0xf]
  %v1384 = vld [vmem:[%s0 + $0x8c] sm:$0xf]
  %v1385 = vld [vmem:[%s0 + $0x168] sm:$0xf]
  %v1386 = vld [vmem:[%s0 + $0x16c] sm:$0xf]
  %v1387 = vld [vmem:[%s0 + $0x170] sm:$0xf]
  %v1388 = vld [vmem:[%s0 + $0x174] sm:$0xf]
  %v1389 = vld [vmem:[%s0 + $0x178] sm:$0xf]
  %v1390 = vld [vmem:[%s0 + $0x17c] sm:$0xf]
  %v1391 = vld [vmem:[%s0 + $0x180] sm:$0xf]
  %v1392 = vld [vmem:[%s0 + $0x184] sm:$0xf]
  %v1393 = vld [vmem:[%s0 + $0x188] sm:$0xf]
  %v1394 = vld [vmem:[%s0 + $0x18c] sm:$0xf]
  %v1395 = vld [vmem:[%s0 + $0x190] sm:$0xf]
  %v1396 = vld [vmem:[%s0 + $0x194] sm:$0xf]
  %v1397 = vld [vmem:[%s0 + $0x198] sm:$0xf]
  %v1398 = vld [vmem:[%s0 + $0x19c] sm:$0xf]
  %v1399 = vld [vmem:[%s0 + $0x1a0] sm:$0xf]
  %v1400 = vld [vmem:[%s0 + $0x1a4] sm:$0xf]
  %v1401 = vld [vmem:[%s0 + $0x1a8] sm:$0xf]
  %v1402 = vld [vmem:[%s0 + $0x1ac] sm:$0xf]
  %v1403 = vld [vmem:[%s0 + $0x288] sm:$0xf]
  %v1404 = vld [vmem:[%s0 + $0x28c] sm:$0xf]
  %v1405 = vld [vmem:[%s0 + $0x290] sm:$0xf]
  %v1406 = vld [vmem:[%s0 + $0x294] sm:$0xf]
  %v1407 = vld [vmem:[%s0 + $0x298] sm:$0xf]
  %v1408 = vld [vmem:[%s0 + $0x29c] sm:$0xf]
  %v1409 = vld [vmem:[%s0 + $0x2a0] sm:$0xf]
  %v1410 = vld [vmem:[%s0 + $0x2a4] sm:$0xf]
  %v1411 = vld [vmem:[%s0 + $0x2a8] sm:$0xf]
  %v1412 = vld [vmem:[%s0 + $0x2ac] sm:$0xf]
  %v1413 = vld [vmem:[%s0 + $0x2b0] sm:$0xf]
  %v1414 = vld [vmem:[%s0 + $0x2b4] sm:$0xf]
  %v1415 = vld [vmem:[%s0 + $0x2b8] sm:$0xf]
  %v1416 = vld [vmem:[%s0 + $0x2bc] sm:$0xf]
  %v1417 = vld [vmem:[%s0 + $0x2c0] sm:$0xf]
  %v1418 = vld [vmem:[%s0 + $0x2c4] sm:$0xf]
  %v1419 = vld [vmem:[%s0 + $0x2c8] sm:$0xf]
  %v1420 = vld [vmem:[%s0 + $0x2cc] sm:$0xf]
  %v1421 = vld [vmem:[%s0 + $0x3a8] sm:$0xf]
  %v1422 = vld [vmem:[%s0 + $0x3ac] sm:$0xf]
  %v1423 = vld [vmem:[%s0 + $0x3b0] sm:$0xf]
  %v1424 = vld [vmem:[%s0 + $0x3b4] sm:$0xf]
  %v1425 = vld [vmem:[%s0 + $0x3b8] sm:$0xf]
  %v1426 = vld [vmem:[%s0 + $0x3bc] sm:$0xf]
  %v1427 = vld [vmem:[%s0 + $0x3c0] sm:$0xf]
  %v1428 = vld [vmem:[%s0 + $0x3c4] sm:$0xf]
  %v1429 = vld [vmem:[%s0 + $0x3c8] sm:$0xf]
  %v1430 = vld [vmem:[%s0 + $0x3cc] sm:$0xf]
  %v1431 = vld [vmem:[%s0 + $0x3d0] sm:$0xf]
  %v1432 = vld [vmem:[%s0 + $0x3d4] sm:$0xf]
  %v1433 = vld [vmem:[%s0 + $0x3d8] sm:$0xf]
  %v1434 = vld [vmem:[%s0 + $0x3dc] sm:$0xf]
  %v1435 = vld [vmem:[%s0 + $0x3e0] sm:$0xf]
  %v1436 = vld [vmem:[%s0 + $0x3e4] sm:$0xf]
  %v1437 = vld [vmem:[%s0 + $0x3e8] sm:$0xf]
  %v1438 = vld [vmem:[%s0 + $0x3ec] sm:$0xf]
  %v1439 = vld [vmem:[%s0 + $0x4c8] sm:$0xf]
  %v1440 = vld [vmem:[%s0 + $0x4cc] sm:$0xf]
  %v1441 = vld [vmem:[%s0 + $0x4d0] sm:$0xf]
  %v1442 = vld [vmem:[%s0 + $0x4d4] sm:$0xf]
  %v1443 = vld [vmem:[%s0 + $0x4d8] sm:$0xf]
  %v1444 = vld [vmem:[%s0 + $0x4dc] sm:$0xf]
  %v1445 = vld [vmem:[%s0 + $0x4e0] sm:$0xf]
  %v1446 = vld [vmem:[%s0 + $0x4e4] sm:$0xf]
  %v1447 = vld [vmem:[%s0 + $0x4e8] sm:$0xf]
  %v1448 = vld [vmem:[%s0 + $0x4ec] sm:$0xf]
  %v1449 = vld [vmem:[%s0 + $0x4f0] sm:$0xf]
  %v1450 = vld [vmem:[%s0 + $0x4f4] sm:$0xf]
  %v1451 = vld [vmem:[%s0 + $0x4f8] sm:$0xf]
  %v1452 = vld [vmem:[%s0 + $0x4fc] sm:$0xf]
  %v1453 = vld [vmem:[%s0 + $0x500] sm:$0xf]
  %v1454 = vld [vmem:[%s0 + $0x504] sm:$0xf]
  %v1455 = vld [vmem:[%s0 + $0x508] sm:$0xf]
  %v1456 = vld [vmem:[%s0 + $0x50c] sm:$0xf]
  %v1457 = vld [vmem:[%s0 + $0x5e8] sm:$0xf]
  %v1458 = vld [vmem:[%s0 + $0x5ec] sm:$0xf]
  %v1459 = vld [vmem:[%s0 + $0x5f0] sm:$0xf]
  %v1460 = vld [vmem:[%s0 + $0x5f4] sm:$0xf]
  %v1461 = vld [vmem:[%s0 + $0x5f8] sm:$0xf]
  %v1462 = vld [vmem:[%s0 + $0x5fc] sm:$0xf]
  %v1463 = vld [vmem:[%s0 + $0x600] sm:$0xf]
  %v1464 = vld [vmem:[%s0 + $0x604] sm:$0xf]
  %v1465 = vld [vmem:[%s0 + $0x608] sm:$0xf]
  %v1466 = vld [vmem:[%s0 + $0x60c] sm:$0xf]
  %v1467 = vld [vmem:[%s0 + $0x610] sm:$0xf]
  %v1468 = vld [vmem:[%s0 + $0x614] sm:$0xf]
  %v1469 = vld [vmem:[%s0 + $0x618] sm:$0xf]
  %v1470 = vld [vmem:[%s0 + $0x61c] sm:$0xf]
  %v1471 = vld [vmem:[%s0 + $0x620] sm:$0xf]
  %v1472 = vld [vmem:[%s0 + $0x624] sm:$0xf]
  %v1473 = vld [vmem:[%s0 + $0x628] sm:$0xf]
  %v1474 = vld [vmem:[%s0 + $0x62c] sm:$0xf]
  %v1475 = vld [vmem:[%s0 + $0x708] sm:$0xf]
  %v1476 = vld [vmem:[%s0 + $0x70c] sm:$0xf]
  %v1477 = vld [vmem:[%s0 + $0x710] sm:$0xf]
  %v1478 = vld [vmem:[%s0 + $0x714] sm:$0xf]
  %v1479 = vld [vmem:[%s0 + $0x718] sm:$0xf]
  %v1480 = vld [vmem:[%s0 + $0x71c] sm:$0xf]
  %v1481 = vld [vmem:[%s0 + $0x720] sm:$0xf]
  %v1482 = vld [vmem:[%s0 + $0x724] sm:$0xf]
  %v1483 = vld [vmem:[%s0 + $0x728] sm:$0xf]
  %v1484 = vld [vmem:[%s0 + $0x72c] sm:$0xf]
  %v1485 = vld [vmem:[%s0 + $0x730] sm:$0xf]
  %v1486 = vld [vmem:[%s0 + $0x734] sm:$0xf]
  %v1487 = vld [vmem:[%s0 + $0x738] sm:$0xf]
  %v1488 = vld [vmem:[%s0 + $0x73c] sm:$0xf]
  %v1489 = vld [vmem:[%s0 + $0x740] sm:$0xf]
  %v1490 = vld [vmem:[%s0 + $0x744] sm:$0xf]
  %v1491 = vld [vmem:[%s0 + $0x748] sm:$0xf]
  %v1492 = vld [vmem:[%s0 + $0x74c] sm:$0xf]
  %v1493 = vld [vmem:[%s0 + $0x828] sm:$0xf]
  %v1494 = vld [vmem:[%s0 + $0x82c] sm:$0xf]
  %v1495 = vld [vmem:[%s0 + $0x830] sm:$0xf]
  %v1496 = vld [vmem:[%s0 + $0x834] sm:$0xf]
  %v1497 = vld [vmem:[%s0 + $0x838] sm:$0xf]
  %v1498 = vld [vmem:[%s0 + $0x83c] sm:$0xf]
  %v1499 = vld [vmem:[%s0 + $0x840] sm:$0xf]
  %v1500 = vld [vmem:[%s0 + $0x844] sm:$0xf]
  %v1501 = vld [vmem:[%s0 + $0x848] sm:$0xf]
  %v1502 = vld [vmem:[%s0 + $0x84c] sm:$0xf]
  %v1503 = vld [vmem:[%s0 + $0x850] sm:$0xf]
  %v1504 = vld [vmem:[%s0 + $0x854] sm:$0xf]
  %v1505 = vld [vmem:[%s0 + $0x858] sm:$0xf]
  %v1506 = vld [vmem:[%s0 + $0x85c] sm:$0xf]
  %v1507 = vld [vmem:[%s0 + $0x860] sm:$0xf]
  %v1508 = vld [vmem:[%s0 + $0x864] sm:$0xf]
  %v1509 = vld [vmem:[%s0 + $0x868] sm:$0xf]
  %v1510 = vld [vmem:[%s0 + $0x86c] sm:$0xf]
  %v1655 = vunpack.c.l.b16 %v1367
  %v1656 = vunpack.c.l.b16 %v1368
  %v1657 = vunpack.c.l.b16 %v1369
  %v1658 = vunpack.c.l.b16 %v1370
  %v1659 = vunpack.c.l.b16 %v1371
  %v1660 = vunpack.c.l.b16 %v1372
  %v1661 = vunpack.c.l.b16 %v1373
  %v1662 = vunpack.c.l.b16 %v1374
  %v1663 = vunpack.c.l.b16 %v1375
  %v1664 = vunpack.c.l.b16 %v1376
  %v1665 = vunpack.c.l.b16 %v1377
  %v1666 = vunpack.c.l.b16 %v1378
  %v1667 = vunpack.c.l.b16 %v1379
  %v1668 = vunpack.c.l.b16 %v1380
  %v1669 = vunpack.c.l.b16 %v1381
  %v1670 = vunpack.c.l.b16 %v1382
  %v1671 = vunpack.c.l.b16 %v1383
  %v1672 = vunpack.c.l.b16 %v1384
  %v1673 = vunpack.c.l.b16 %v1385
  %v1674 = vunpack.c.l.b16 %v1386
  %v1675 = vunpack.c.l.b16 %v1387
  %v1676 = vunpack.c.l.b16 %v1388
  %v1677 = vunpack.c.l.b16 %v1389
  %v1678 = vunpack.c.l.b16 %v1390
  %v1679 = vunpack.c.l.b16 %v1391
  %v1680 = vunpack.c.l.b16 %v1392
  %v1681 = vunpack.c.l.b16 %v1393
  %v1682 = vunpack.c.l.b16 %v1394
  %v1683 = vunpack.c.l.b16 %v1395
  %v1684 = vunpack.c.l.b16 %v1396
  %v1685 = vunpack.c.l.b16 %v1397
  %v1686 = vunpack.c.l.b16 %v1398
  %v1687 = vunpack.c.l.b16 %v1399
  %v1688 = vunpack.c.l.b16 %v1400
  %v1689 = vunpack.c.l.b16 %v1401
  %v1690 = vunpack.c.l.b16 %v1402
  %v1691 = vunpack.c.l.b16 %v1403
  %v1692 = vunpack.c.l.b16 %v1404
  %v1693 = vunpack.c.l.b16 %v1405
  %v1694 = vunpack.c.l.b16 %v1406
  %v1695 = vunpack.c.l.b16 %v1407
  %v1696 = vunpack.c.l.b16 %v1408
  %v1697 = vunpack.c.l.b16 %v1409
  %v1698 = vunpack.c.l.b16 %v1410
  %v1699 = vunpack.c.l.b16 %v1411
  %v1700 = vunpack.c.l.b16 %v1412
  %v1701 = vunpack.c.l.b16 %v1413
  %v1702 = vunpack.c.l.b16 %v1414
  %v1703 = vunpack.c.l.b16 %v1415
  %v1704 = vunpack.c.l.b16 %v1416
  %v1705 = vunpack.c.l.b16 %v1417
  %v1706 = vunpack.c.l.b16 %v1418
  %v1707 = vunpack.c.l.b16 %v1419
  %v1708 = vunpack.c.l.b16 %v1420
  %v1709 = vunpack.c.l.b16 %v1421
  %v1710 = vunpack.c.l.b16 %v1422
  %v1711 = vunpack.c.l.b16 %v1423
  %v1712 = vunpack.c.l.b16 %v1424
  %v1713 = vunpack.c.l.b16 %v1425
  %v1714 = vunpack.c.l.b16 %v1426
  %v1715 = vunpack.c.l.b16 %v1427
  %v1716 = vunpack.c.l.b16 %v1428
  %v1717 = vunpack.c.l.b16 %v1429
  %v1718 = vunpack.c.l.b16 %v1430
  %v1719 = vunpack.c.l.b16 %v1431
  %v1720 = vunpack.c.l.b16 %v1432
  %v1721 = vunpack.c.l.b16 %v1433
  %v1722 = vunpack.c.l.b16 %v1434
  %v1723 = vunpack.c.l.b16 %v1435
  %v1724 = vunpack.c.l.b16 %v1436
  %v1725 = vunpack.c.l.b16 %v1437
  %v1726 = vunpack.c.l.b16 %v1438
  %v1727 = vunpack.c.l.b16 %v1439
  %v1728 = vunpack.c.l.b16 %v1440
  %v1729 = vunpack.c.l.b16 %v1441
  %v1730 = vunpack.c.l.b16 %v1442
  %v1731 = vunpack.c.l.b16 %v1443
  %v1732 = vunpack.c.l.b16 %v1444
  %v1733 = vunpack.c.l.b16 %v1445
  %v1734 = vunpack.c.l.b16 %v1446
  %v1735 = vunpack.c.l.b16 %v1447
  %v1736 = vunpack.c.l.b16 %v1448
  %v1737 = vunpack.c.l.b16 %v1449
  %v1738 = vunpack.c.l.b16 %v1450
  %v1739 = vunpack.c.l.b16 %v1451
  %v1740 = vunpack.c.l.b16 %v1452
  %v1741 = vunpack.c.l.b16 %v1453
  %v1742 = vunpack.c.l.b16 %v1454
  %v1743 = vunpack.c.l.b16 %v1455
  %v1744 = vunpack.c.l.b16 %v1456
  %v1745 = vunpack.c.l.b16 %v1457
  %v1746 = vunpack.c.l.b16 %v1458
  %v1747 = vunpack.c.l.b16 %v1459
  %v1748 = vunpack.c.l.b16 %v1460
  %v1749 = vunpack.c.l.b16 %v1461
  %v1750 = vunpack.c.l.b16 %v1462
  %v1751 = vunpack.c.l.b16 %v1463
  %v1752 = vunpack.c.l.b16 %v1464
  %v1753 = vunpack.c.l.b16 %v1465
  %v1754 = vunpack.c.l.b16 %v1466
  %v1755 = vunpack.c.l.b16 %v1467
  %v1756 = vunpack.c.l.b16 %v1468
  %v1757 = vunpack.c.l.b16 %v1469
  %v1758 = vunpack.c.l.b16 %v1470
  %v1759 = vunpack.c.l.b16 %v1471
  %v1760 = vunpack.c.l.b16 %v1472
  %v1761 = vunpack.c.l.b16 %v1473
  %v1762 = vunpack.c.l.b16 %v1474
  %v1763 = vunpack.c.l.b16 %v1475
  %v1764 = vunpack.c.l.b16 %v1476
  %v1765 = vunpack.c.l.b16 %v1477
  %v1766 = vunpack.c.l.b16 %v1478
  %v1767 = vunpack.c.l.b16 %v1479
  %v1768 = vunpack.c.l.b16 %v1480
  %v1769 = vunpack.c.l.b16 %v1481
  %v1770 = vunpack.c.l.b16 %v1482
  %v1771 = vunpack.c.l.b16 %v1483
  %v1772 = vunpack.c.l.b16 %v1484
  %v1773 = vunpack.c.l.b16 %v1485
  %v1774 = vunpack.c.l.b16 %v1486
  %v1775 = vunpack.c.l.b16 %v1487
  %v1776 = vunpack.c.l.b16 %v1488
  %v1777 = vunpack.c.l.b16 %v1489
  %v1778 = vunpack.c.l.b16 %v1490
  %v1779 = vunpack.c.l.b16 %v1491
  %v1780 = vunpack.c.l.b16 %v1492
  %v1781 = vunpack.c.l.b16 %v1493
  %v1782 = vunpack.c.l.b16 %v1494
  %v1783 = vunpack.c.l.b16 %v1495
  %v1784 = vunpack.c.l.b16 %v1496
  %v1785 = vunpack.c.l.b16 %v1497
  %v1786 = vunpack.c.l.b16 %v1498
  %v1787 = vunpack.c.l.b16 %v1499
  %v1788 = vunpack.c.l.b16 %v1500
  %v1789 = vunpack.c.l.b16 %v1501
  %v1790 = vunpack.c.l.b16 %v1502
  %v1791 = vunpack.c.l.b16 %v1503
  %v1792 = vunpack.c.l.b16 %v1504
  %v1793 = vunpack.c.l.b16 %v1505
  %v1794 = vunpack.c.l.b16 %v1506
  %v1795 = vunpack.c.l.b16 %v1507
  %v1796 = vunpack.c.l.b16 %v1508
  %v1797 = vunpack.c.l.b16 %v1509
  %v1798 = vunpack.c.l.b16 %v1510
  %v1799 = vpack.c.b16 %v1656, %v1655
  %v1800 = vpack.c.b16 %v1658, %v1657
  %v1801 = vpack.c.b16 %v1660, %v1659
  %v1802 = vpack.c.b16 %v1662, %v1661
  %v1803 = vpack.c.b16 %v1664, %v1663
  %v1804 = vpack.c.b16 %v1666, %v1665
  %v1805 = vpack.c.b16 %v1668, %v1667
  %v1806 = vpack.c.b16 %v1670, %v1669
  %v1807 = vpack.c.b16 %v1672, %v1671
  %v1808 = vpack.c.b16 %v1674, %v1673
  %v1809 = vpack.c.b16 %v1676, %v1675
  %v1810 = vpack.c.b16 %v1678, %v1677
  %v1811 = vpack.c.b16 %v1680, %v1679
  %v1812 = vpack.c.b16 %v1682, %v1681
  %v1813 = vpack.c.b16 %v1684, %v1683
  %v1814 = vpack.c.b16 %v1686, %v1685
  %v1815 = vpack.c.b16 %v1688, %v1687
  %v1816 = vpack.c.b16 %v1690, %v1689
  %v1817 = vpack.c.b16 %v1692, %v1691
  %v1818 = vpack.c.b16 %v1694, %v1693
  %v1819 = vpack.c.b16 %v1696, %v1695
  %v1820 = vpack.c.b16 %v1698, %v1697
  %v1821 = vpack.c.b16 %v1700, %v1699
  %v1822 = vpack.c.b16 %v1702, %v1701
  %v1823 = vpack.c.b16 %v1704, %v1703
  %v1824 = vpack.c.b16 %v1706, %v1705
  %v1825 = vpack.c.b16 %v1708, %v1707
  %v1826 = vpack.c.b16 %v1710, %v1709
  %v1827 = vpack.c.b16 %v1712, %v1711
  %v1828 = vpack.c.b16 %v1714, %v1713
  %v1829 = vpack.c.b16 %v1716, %v1715
  %v1830 = vpack.c.b16 %v1718, %v1717
  %v1831 = vpack.c.b16 %v1720, %v1719
  %v1832 = vpack.c.b16 %v1722, %v1721
  %v1833 = vpack.c.b16 %v1724, %v1723
  %v1834 = vpack.c.b16 %v1726, %v1725
  %v1835 = vpack.c.b16 %v1728, %v1727
  %v1836 = vpack.c.b16 %v1730, %v1729
  %v1837 = vpack.c.b16 %v1732, %v1731
  %v1838 = vpack.c.b16 %v1734, %v1733
  %v1839 = vpack.c.b16 %v1736, %v1735
  %v1840 = vpack.c.b16 %v1738, %v1737
  %v1841 = vpack.c.b16 %v1740, %v1739
  %v1842 = vpack.c.b16 %v1742, %v1741
  %v1843 = vpack.c.b16 %v1744, %v1743
  %v1844 = vpack.c.b16 %v1746, %v1745
  %v1845 = vpack.c.b16 %v1748, %v1747
  %v1846 = vpack.c.b16 %v1750, %v1749
  %v1847 = vpack.c.b16 %v1752, %v1751
  %v1848 = vpack.c.b16 %v1754, %v1753
  %v1849 = vpack.c.b16 %v1756, %v1755
  %v1850 = vpack.c.b16 %v1758, %v1757
  %v1851 = vpack.c.b16 %v1760, %v1759
  %v1852 = vpack.c.b16 %v1762, %v1761
  %v1853 = vpack.c.b16 %v1764, %v1763
  %v1854 = vpack.c.b16 %v1766, %v1765
  %v1855 = vpack.c.b16 %v1768, %v1767
  %v1856 = vpack.c.b16 %v1770, %v1769
  %v1857 = vpack.c.b16 %v1772, %v1771
  %v1858 = vpack.c.b16 %v1774, %v1773
  %v1859 = vpack.c.b16 %v1776, %v1775
  %v1860 = vpack.c.b16 %v1778, %v1777
  %v1861 = vpack.c.b16 %v1780, %v1779
  %v1862 = vpack.c.b16 %v1782, %v1781
  %v1863 = vpack.c.b16 %v1784, %v1783
  %v1864 = vpack.c.b16 %v1786, %v1785
  %v1865 = vpack.c.b16 %v1788, %v1787
  %v1866 = vpack.c.b16 %v1790, %v1789
  %v1867 = vpack.c.b16 %v1792, %v1791
  %v1868 = vpack.c.b16 %v1794, %v1793
  %v1869 = vpack.c.b16 %v1796, %v1795
  %v1870 = vpack.c.b16 %v1798, %v1797
  %v1872 = vsel %vm534, %v1799, 0
  %v1875 = vsel %vm534, %v1800, 0
  %v1878 = vsel %vm534, %v1801, 0
  %v1881 = vsel %vm534, %v1802, 0
  %v1884 = vsel %vm534, %v1803, 0
  %v1887 = vsel %vm534, %v1804, 0
  %v1890 = vsel %vm534, %v1805, 0
  %v1893 = vsel %vm534, %v1806, 0
  %v1896 = vsel %vm534, %v1807, 0
  %v1899 = vsel %vm534, %v1808, 0
  %v1902 = vsel %vm534, %v1809, 0
  %v1905 = vsel %vm534, %v1810, 0
  %v1908 = vsel %vm534, %v1811, 0
  %v1911 = vsel %vm534, %v1812, 0
  %v1914 = vsel %vm534, %v1813, 0
  %v1917 = vsel %vm534, %v1814, 0
  %v1920 = vsel %vm534, %v1815, 0
  %v1923 = vsel %vm534, %v1816, 0
  %v1926 = vsel %vm534, %v1817, 0
  %v1929 = vsel %vm534, %v1818, 0
  %v1932 = vsel %vm534, %v1819, 0
  %v1935 = vsel %vm534, %v1820, 0
  %v1938 = vsel %vm534, %v1821, 0
  %v1941 = vsel %vm534, %v1822, 0
  %v1944 = vsel %vm534, %v1823, 0
  %v1947 = vsel %vm534, %v1824, 0
  %v1950 = vsel %vm534, %v1825, 0
  %v1953 = vsel %vm534, %v1826, 0
  %v1956 = vsel %vm534, %v1827, 0
  %v1959 = vsel %vm534, %v1828, 0
  %v1962 = vsel %vm534, %v1829, 0
  %v1965 = vsel %vm534, %v1830, 0
  %v1968 = vsel %vm534, %v1831, 0
  %v1971 = vsel %vm534, %v1832, 0
  %v1974 = vsel %vm534, %v1833, 0
  %v1977 = vsel %vm534, %v1834, 0
  %v1980 = vsel %vm534, %v1835, 0
  %v1983 = vsel %vm534, %v1836, 0
  %v1986 = vsel %vm534, %v1837, 0
  %v1989 = vsel %vm534, %v1838, 0
  %v1992 = vsel %vm534, %v1839, 0
  %v1995 = vsel %vm534, %v1840, 0
  %v1998 = vsel %vm534, %v1841, 0
  %v2001 = vsel %vm534, %v1842, 0
  %v2004 = vsel %vm534, %v1843, 0
  %v2007 = vsel %vm534, %v1844, 0
  %v2010 = vsel %vm534, %v1845, 0
  %v2013 = vsel %vm534, %v1846, 0
  %v2016 = vsel %vm534, %v1847, 0
  %v2019 = vsel %vm534, %v1848, 0
  %v2022 = vsel %vm534, %v1849, 0
  %v2025 = vsel %vm534, %v1850, 0
  %v2028 = vsel %vm534, %v1851, 0
  %v2031 = vsel %vm534, %v1852, 0
  %v2034 = vsel %vm534, %v1853, 0
  %v2037 = vsel %vm534, %v1854, 0
  %v2040 = vsel %vm534, %v1855, 0
  %v2043 = vsel %vm534, %v1856, 0
  %v2046 = vsel %vm534, %v1857, 0
  %v2049 = vsel %vm534, %v1858, 0
  %v2052 = vsel %vm534, %v1859, 0
  %v2055 = vsel %vm534, %v1860, 0
  %v2058 = vsel %vm534, %v1861, 0
  %v2061 = vsel %vm534, %v1862, 0
  %v2064 = vsel %vm534, %v1863, 0
  %v2067 = vsel %vm534, %v1864, 0
  %v2070 = vsel %vm534, %v1865, 0
  %v2073 = vsel %vm534, %v1866, 0
  %v2076 = vsel %vm534, %v1867, 0
  %v2079 = vsel %vm534, %v1868, 0
  %v2082 = vsel %vm534, %v1869, 0
  %v2085 = vsel %vm534, %v1870, 0
  %2087 = vmatprep.subr.bf16.mxu0 0
  %2088 = vmatpush1.bf16.msra.mxu0 0
  %2089 = vmatprep.subr.bf16.mxu0 0
  %2090 = vmatpush1.bf16.msra.mxu0 0
  %2091 = vmatprep.subr.bf16.mxu0 0
  %2092 = vmatpush1.bf16.msra.mxu0 0
  %2093 = vmatprep.subr.bf16.mxu0 0
  %2094 = vmatpush1.bf16.msra.mxu0 0
  %2095 = vmatprep.subr.bf16.mxu0 0
  %2096 = vmatpush1.bf16.msra.mxu0 0
  %2097 = vmatprep.subr.bf16.mxu0 0
  %2098 = vmatpush1.bf16.msra.mxu0 0
  %2099 = vmatprep.subr.bf16.mxu0 0
  %2100 = vmatpush1.bf16.msra.mxu0 %v756
  %2101 = vmatprep.subr.bf16.mxu0 0
  %2102 = vmatpush1.bf16.msra.mxu0 %v531
  %2103 = vmatprep.subr.bf16.mxu0 0
  %2104 = vmatpush2.bf16.msra.mxu0 0
  %2105 = vmatprep.subr.bf16.mxu0 0
  %2106 = vmatpush2.bf16.msra.mxu0 0
  %2107 = vmatprep.subr.bf16.mxu0 0
  %2108 = vmatpush2.bf16.msra.mxu0 0
  %2109 = vmatprep.subr.bf16.mxu0 0
  %2110 = vmatpush2.bf16.msra.mxu0 0
  %2111 = vmatprep.subr.bf16.mxu0 0
  %2112 = vmatpush2.bf16.msra.mxu0 0
  %2113 = vmatprep.subr.bf16.mxu0 0
  %2114 = vmatpush2.bf16.msra.mxu0 0
  %2115 = vmatprep.subr.bf16.mxu0 0
  %2116 = vmatpush2.bf16.msra.mxu0 0
  %2117 = vmatprep.subr.bf16.mxu0 0
  %2118 = vmatpush2.bf16.msra.mxu0 0
  %2119 = vmatprep.mubr.bf16.mxu0 0
  %2120 = vmatmul.mubr.bf16.gmra.mxu0 %v1872
  %v2121 = vpop.f32.mrf.mxu0
  %v2122 = vadd.f32 0.0, %v2121
  %v2123 = vpop.f32.mrf.mxu0
  %v2124 = vpop.f32.mrf.mxu0
  %v2125 = vadd.f32 0.0, %v2124
  %v2126 = vpop.f32.mrf.mxu0
  %2127 = vmatprep.mubr.bf16.mxu0 0
  %2128 = vmatmul.mubr.bf16.gmra.mxu0 %v1875
  %v2129 = vpop.f32.mrf.mxu0
  %v2130 = vadd.f32 0.0, %v2129
  %v2131 = vpop.f32.mrf.mxu0
  %v2132 = vpop.f32.mrf.mxu0
  %v2133 = vadd.f32 0.0, %v2132
  %v2134 = vpop.f32.mrf.mxu0
  %2135 = vmatprep.mubr.bf16.mxu0 0
  %2136 = vmatmul.mubr.bf16.gmra.mxu0 %v1878
  %v2137 = vpop.f32.mrf.mxu0
  %v2138 = vadd.f32 0.0, %v2137
  %v2139 = vpop.f32.mrf.mxu0
  %v2140 = vpop.f32.mrf.mxu0
  %v2141 = vadd.f32 0.0, %v2140
  %v2142 = vpop.f32.mrf.mxu0
  %2143 = vmatprep.mubr.bf16.mxu0 0
  %2144 = vmatmul.mubr.bf16.gmra.mxu0 %v1881
  %v2145 = vpop.f32.mrf.mxu0
  %v2146 = vadd.f32 0.0, %v2145
  %v2147 = vpop.f32.mrf.mxu0
  %v2148 = vpop.f32.mrf.mxu0
  %v2149 = vadd.f32 0.0, %v2148
  %v2150 = vpop.f32.mrf.mxu0
  %2151 = vmatprep.mubr.bf16.mxu0 0
  %2152 = vmatmul.mubr.bf16.gmra.mxu0 %v1884
  %v2153 = vpop.f32.mrf.mxu0
  %v2154 = vadd.f32 0.0, %v2153
  %v2155 = vpop.f32.mrf.mxu0
  %v2156 = vpop.f32.mrf.mxu0
  %v2157 = vadd.f32 0.0, %v2156
  %v2158 = vpop.f32.mrf.mxu0
  %2159 = vmatprep.mubr.bf16.mxu0 0
  %2160 = vmatmul.mubr.bf16.gmra.mxu0 %v1887
  %v2161 = vpop.f32.mrf.mxu0
  %v2162 = vadd.f32 0.0, %v2161
  %v2163 = vpop.f32.mrf.mxu0
  %v2164 = vpop.f32.mrf.mxu0
  %v2165 = vadd.f32 0.0, %v2164
  %v2166 = vpop.f32.mrf.mxu0
  %2167 = vmatprep.mubr.bf16.mxu0 0
  %2168 = vmatmul.mubr.bf16.gmra.mxu0 %v1890
  %v2169 = vpop.f32.mrf.mxu0
  %v2170 = vadd.f32 0.0, %v2169
  %v2171 = vpop.f32.mrf.mxu0
  %v2172 = vpop.f32.mrf.mxu0
  %v2173 = vadd.f32 0.0, %v2172
  %v2174 = vpop.f32.mrf.mxu0
  %2175 = vmatprep.mubr.bf16.mxu0 0
  %2176 = vmatmul.mubr.bf16.gmra.mxu0 %v1893
  %v2177 = vpop.f32.mrf.mxu0
  %v2178 = vadd.f32 0.0, %v2177
  %v2179 = vpop.f32.mrf.mxu0
  %v2180 = vpop.f32.mrf.mxu0
  %v2181 = vadd.f32 0.0, %v2180
  %v2182 = vpop.f32.mrf.mxu0
  %2183 = vmatprep.mubr.bf16.mxu0 0
  %2184 = vmatmul.mubr.bf16.gmra.mxu0 %v1896
  %v2185 = vpop.f32.mrf.mxu0
  %v2186 = vadd.f32 0.0, %v2185
  %v2187 = vpop.f32.mrf.mxu0
  %v2188 = vpop.f32.mrf.mxu0
  %v2189 = vadd.f32 0.0, %v2188
  %v2190 = vpop.f32.mrf.mxu0
  %2191 = vmatprep.mubr.bf16.mxu0 0
  %2192 = vmatmul.mubr.bf16.gmra.mxu0 %v1899
  %v2193 = vpop.f32.mrf.mxu0
  %v2194 = vadd.f32 0.0, %v2193
  %v2195 = vpop.f32.mrf.mxu0
  %v2196 = vpop.f32.mrf.mxu0
  %v2197 = vadd.f32 0.0, %v2196
  %v2198 = vpop.f32.mrf.mxu0
  %2199 = vmatprep.mubr.bf16.mxu0 0
  %2200 = vmatmul.mubr.bf16.gmra.mxu0 %v1902
  %v2201 = vpop.f32.mrf.mxu0
  %v2202 = vadd.f32 0.0, %v2201
  %v2203 = vpop.f32.mrf.mxu0
  %v2204 = vpop.f32.mrf.mxu0
  %v2205 = vadd.f32 0.0, %v2204
  %v2206 = vpop.f32.mrf.mxu0
  %2207 = vmatprep.mubr.bf16.mxu0 0
  %2208 = vmatmul.mubr.bf16.gmra.mxu0 %v1905
  %v2209 = vpop.f32.mrf.mxu0
  %v2210 = vadd.f32 0.0, %v2209
  %v2211 = vpop.f32.mrf.mxu0
  %v2212 = vpop.f32.mrf.mxu0
  %v2213 = vadd.f32 0.0, %v2212
  %v2214 = vpop.f32.mrf.mxu0
  %2215 = vmatprep.mubr.bf16.mxu0 0
  %2216 = vmatmul.mubr.bf16.gmra.mxu0 %v1908
  %v2217 = vpop.f32.mrf.mxu0
  %v2218 = vadd.f32 0.0, %v2217
  %v2219 = vpop.f32.mrf.mxu0
  %v2220 = vpop.f32.mrf.mxu0
  %v2221 = vadd.f32 0.0, %v2220
  %v2222 = vpop.f32.mrf.mxu0
  %2223 = vmatprep.mubr.bf16.mxu0 0
  %2224 = vmatmul.mubr.bf16.gmra.mxu0 %v1911
  %v2225 = vpop.f32.mrf.mxu0
  %v2226 = vadd.f32 0.0, %v2225
  %v2227 = vpop.f32.mrf.mxu0
  %v2228 = vpop.f32.mrf.mxu0
  %v2229 = vadd.f32 0.0, %v2228
  %v2230 = vpop.f32.mrf.mxu0
  %2231 = vmatprep.mubr.bf16.mxu0 0
  %2232 = vmatmul.mubr.bf16.gmra.mxu0 %v1914
  %v2233 = vpop.f32.mrf.mxu0
  %v2234 = vadd.f32 0.0, %v2233
  %v2235 = vpop.f32.mrf.mxu0
  %v2236 = vpop.f32.mrf.mxu0
  %v2237 = vadd.f32 0.0, %v2236
  %v2238 = vpop.f32.mrf.mxu0
  %2239 = vmatprep.mubr.bf16.mxu0 0
  %2240 = vmatmul.mubr.bf16.gmra.mxu0 %v1917
  %v2241 = vpop.f32.mrf.mxu0
  %v2242 = vadd.f32 0.0, %v2241
  %v2243 = vpop.f32.mrf.mxu0
  %v2244 = vpop.f32.mrf.mxu0
  %v2245 = vadd.f32 0.0, %v2244
  %v2246 = vpop.f32.mrf.mxu0
  %2247 = vmatprep.mubr.bf16.mxu0 0
  %2248 = vmatmul.mubr.bf16.gmra.mxu0 %v1920
  %v2249 = vpop.f32.mrf.mxu0
  %v2250 = vadd.f32 0.0, %v2249
  %v2251 = vpop.f32.mrf.mxu0
  %v2252 = vpop.f32.mrf.mxu0
  %v2253 = vadd.f32 0.0, %v2252
  %v2254 = vpop.f32.mrf.mxu0
  %2255 = vmatprep.mubr.bf16.mxu0 0
  %2256 = vmatmul.mubr.bf16.gmra.mxu0 %v1923
  %v2257 = vpop.f32.mrf.mxu0
  %v2258 = vadd.f32 0.0, %v2257
  %v2259 = vpop.f32.mrf.mxu0
  %v2260 = vpop.f32.mrf.mxu0
  %v2261 = vadd.f32 0.0, %v2260
  %v2262 = vpop.f32.mrf.mxu0
  %2263 = vmatprep.mubr.bf16.mxu0 0
  %2264 = vmatmul.mubr.bf16.gmra.mxu0 %v1926
  %v2265 = vpop.f32.mrf.mxu0
  %v2266 = vadd.f32 0.0, %v2265
  %v2267 = vpop.f32.mrf.mxu0
  %v2268 = vpop.f32.mrf.mxu0
  %v2269 = vadd.f32 0.0, %v2268
  %v2270 = vpop.f32.mrf.mxu0
  %2271 = vmatprep.mubr.bf16.mxu0 0
  %2272 = vmatmul.mubr.bf16.gmra.mxu0 %v1929
  %v2273 = vpop.f32.mrf.mxu0
  %v2274 = vadd.f32 0.0, %v2273
  %v2275 = vpop.f32.mrf.mxu0
  %v2276 = vpop.f32.mrf.mxu0
  %v2277 = vadd.f32 0.0, %v2276
  %v2278 = vpop.f32.mrf.mxu0
  %2279 = vmatprep.mubr.bf16.mxu0 0
  %2280 = vmatmul.mubr.bf16.gmra.mxu0 %v1932
  %v2281 = vpop.f32.mrf.mxu0
  %v2282 = vadd.f32 0.0, %v2281
  %v2283 = vpop.f32.mrf.mxu0
  %v2284 = vpop.f32.mrf.mxu0
  %v2285 = vadd.f32 0.0, %v2284
  %v2286 = vpop.f32.mrf.mxu0
  %2287 = vmatprep.mubr.bf16.mxu0 0
  %2288 = vmatmul.mubr.bf16.gmra.mxu0 %v1935
  %v2289 = vpop.f32.mrf.mxu0
  %v2290 = vadd.f32 0.0, %v2289
  %v2291 = vpop.f32.mrf.mxu0
  %v2292 = vpop.f32.mrf.mxu0
  %v2293 = vadd.f32 0.0, %v2292
  %v2294 = vpop.f32.mrf.mxu0
  %2295 = vmatprep.mubr.bf16.mxu0 0
  %2296 = vmatmul.mubr.bf16.gmra.mxu0 %v1938
  %v2297 = vpop.f32.mrf.mxu0
  %v2298 = vadd.f32 0.0, %v2297
  %v2299 = vpop.f32.mrf.mxu0
  %v2300 = vpop.f32.mrf.mxu0
  %v2301 = vadd.f32 0.0, %v2300
  %v2302 = vpop.f32.mrf.mxu0
  %2303 = vmatprep.mubr.bf16.mxu0 0
  %2304 = vmatmul.mubr.bf16.gmra.mxu0 %v1941
  %v2305 = vpop.f32.mrf.mxu0
  %v2306 = vadd.f32 0.0, %v2305
  %v2307 = vpop.f32.mrf.mxu0
  %v2308 = vpop.f32.mrf.mxu0
  %v2309 = vadd.f32 0.0, %v2308
  %v2310 = vpop.f32.mrf.mxu0
  %2311 = vmatprep.mubr.bf16.mxu0 0
  %2312 = vmatmul.mubr.bf16.gmra.mxu0 %v1944
  %v2313 = vpop.f32.mrf.mxu0
  %v2314 = vadd.f32 0.0, %v2313
  %v2315 = vpop.f32.mrf.mxu0
  %v2316 = vpop.f32.mrf.mxu0
  %v2317 = vadd.f32 0.0, %v2316
  %v2318 = vpop.f32.mrf.mxu0
  %2319 = vmatprep.mubr.bf16.mxu0 0
  %2320 = vmatmul.mubr.bf16.gmra.mxu0 %v1947
  %v2321 = vpop.f32.mrf.mxu0
  %v2322 = vadd.f32 0.0, %v2321
  %v2323 = vpop.f32.mrf.mxu0
  %v2324 = vpop.f32.mrf.mxu0
  %v2325 = vadd.f32 0.0, %v2324
  %v2326 = vpop.f32.mrf.mxu0
  %2327 = vmatprep.mubr.bf16.mxu0 0
  %2328 = vmatmul.mubr.bf16.gmra.mxu0 %v1950
  %v2329 = vpop.f32.mrf.mxu0
  %v2330 = vadd.f32 0.0, %v2329
  %v2331 = vpop.f32.mrf.mxu0
  %v2332 = vpop.f32.mrf.mxu0
  %v2333 = vadd.f32 0.0, %v2332
  %v2334 = vpop.f32.mrf.mxu0
  %2335 = vmatprep.mubr.bf16.mxu0 0
  %2336 = vmatmul.mubr.bf16.gmra.mxu0 %v1953
  %v2337 = vpop.f32.mrf.mxu0
  %v2338 = vadd.f32 0.0, %v2337
  %v2339 = vpop.f32.mrf.mxu0
  %v2340 = vpop.f32.mrf.mxu0
  %v2341 = vadd.f32 0.0, %v2340
  %v2342 = vpop.f32.mrf.mxu0
  %2343 = vmatprep.mubr.bf16.mxu0 0
  %2344 = vmatmul.mubr.bf16.gmra.mxu0 %v1956
  %v2345 = vpop.f32.mrf.mxu0
  %v2346 = vadd.f32 0.0, %v2345
  %v2347 = vpop.f32.mrf.mxu0
  %v2348 = vpop.f32.mrf.mxu0
  %v2349 = vadd.f32 0.0, %v2348
  %v2350 = vpop.f32.mrf.mxu0
  %2351 = vmatprep.mubr.bf16.mxu0 0
  %2352 = vmatmul.mubr.bf16.gmra.mxu0 %v1959
  %v2353 = vpop.f32.mrf.mxu0
  %v2354 = vadd.f32 0.0, %v2353
  %v2355 = vpop.f32.mrf.mxu0
  %v2356 = vpop.f32.mrf.mxu0
  %v2357 = vadd.f32 0.0, %v2356
  %v2358 = vpop.f32.mrf.mxu0
  %2359 = vmatprep.mubr.bf16.mxu0 0
  %2360 = vmatmul.mubr.bf16.gmra.mxu0 %v1962
  %v2361 = vpop.f32.mrf.mxu0
  %v2362 = vadd.f32 0.0, %v2361
  %v2363 = vpop.f32.mrf.mxu0
  %v2364 = vpop.f32.mrf.mxu0
  %v2365 = vadd.f32 0.0, %v2364
  %v2366 = vpop.f32.mrf.mxu0
  %2367 = vmatprep.mubr.bf16.mxu0 0
  %2368 = vmatmul.mubr.bf16.gmra.mxu0 %v1965
  %v2369 = vpop.f32.mrf.mxu0
  %v2370 = vadd.f32 0.0, %v2369
  %v2371 = vpop.f32.mrf.mxu0
  %v2372 = vpop.f32.mrf.mxu0
  %v2373 = vadd.f32 0.0, %v2372
  %v2374 = vpop.f32.mrf.mxu0
  %2375 = vmatprep.mubr.bf16.mxu0 0
  %2376 = vmatmul.mubr.bf16.gmra.mxu0 %v1968
  %v2377 = vpop.f32.mrf.mxu0
  %v2378 = vadd.f32 0.0, %v2377
  %v2379 = vpop.f32.mrf.mxu0
  %v2380 = vpop.f32.mrf.mxu0
  %v2381 = vadd.f32 0.0, %v2380
  %v2382 = vpop.f32.mrf.mxu0
  %2383 = vmatprep.mubr.bf16.mxu0 0
  %2384 = vmatmul.mubr.bf16.gmra.mxu0 %v1971
  %v2385 = vpop.f32.mrf.mxu0
  %v2386 = vadd.f32 0.0, %v2385
  %v2387 = vpop.f32.mrf.mxu0
  %v2388 = vpop.f32.mrf.mxu0
  %v2389 = vadd.f32 0.0, %v2388
  %v2390 = vpop.f32.mrf.mxu0
  %2391 = vmatprep.mubr.bf16.mxu0 0
  %2392 = vmatmul.mubr.bf16.gmra.mxu0 %v1974
  %v2393 = vpop.f32.mrf.mxu0
  %v2394 = vadd.f32 0.0, %v2393
  %v2395 = vpop.f32.mrf.mxu0
  %v2396 = vpop.f32.mrf.mxu0
  %v2397 = vadd.f32 0.0, %v2396
  %v2398 = vpop.f32.mrf.mxu0
  %2399 = vmatprep.mubr.bf16.mxu0 0
  %2400 = vmatmul.mubr.bf16.gmra.mxu0 %v1977
  %v2401 = vpop.f32.mrf.mxu0
  %v2402 = vadd.f32 0.0, %v2401
  %v2403 = vpop.f32.mrf.mxu0
  %v2404 = vpop.f32.mrf.mxu0
  %v2405 = vadd.f32 0.0, %v2404
  %v2406 = vpop.f32.mrf.mxu0
  %2407 = vmatprep.mubr.bf16.mxu0 0
  %2408 = vmatmul.mubr.bf16.gmra.mxu0 %v1980
  %v2409 = vpop.f32.mrf.mxu0
  %v2410 = vadd.f32 0.0, %v2409
  %v2411 = vpop.f32.mrf.mxu0
  %v2412 = vpop.f32.mrf.mxu0
  %v2413 = vadd.f32 0.0, %v2412
  %v2414 = vpop.f32.mrf.mxu0
  %2415 = vmatprep.mubr.bf16.mxu0 0
  %2416 = vmatmul.mubr.bf16.gmra.mxu0 %v1983
  %v2417 = vpop.f32.mrf.mxu0
  %v2418 = vadd.f32 0.0, %v2417
  %v2419 = vpop.f32.mrf.mxu0
  %v2420 = vpop.f32.mrf.mxu0
  %v2421 = vadd.f32 0.0, %v2420
  %v2422 = vpop.f32.mrf.mxu0
  %2423 = vmatprep.mubr.bf16.mxu0 0
  %2424 = vmatmul.mubr.bf16.gmra.mxu0 %v1986
  %v2425 = vpop.f32.mrf.mxu0
  %v2426 = vadd.f32 0.0, %v2425
  %v2427 = vpop.f32.mrf.mxu0
  %v2428 = vpop.f32.mrf.mxu0
  %v2429 = vadd.f32 0.0, %v2428
  %v2430 = vpop.f32.mrf.mxu0
  %2431 = vmatprep.mubr.bf16.mxu0 0
  %2432 = vmatmul.mubr.bf16.gmra.mxu0 %v1989
  %v2433 = vpop.f32.mrf.mxu0
  %v2434 = vadd.f32 0.0, %v2433
  %v2435 = vpop.f32.mrf.mxu0
  %v2436 = vpop.f32.mrf.mxu0
  %v2437 = vadd.f32 0.0, %v2436
  %v2438 = vpop.f32.mrf.mxu0
  %2439 = vmatprep.mubr.bf16.mxu0 0
  %2440 = vmatmul.mubr.bf16.gmra.mxu0 %v1992
  %v2441 = vpop.f32.mrf.mxu0
  %v2442 = vadd.f32 0.0, %v2441
  %v2443 = vpop.f32.mrf.mxu0
  %v2444 = vpop.f32.mrf.mxu0
  %v2445 = vadd.f32 0.0, %v2444
  %v2446 = vpop.f32.mrf.mxu0
  %2447 = vmatprep.mubr.bf16.mxu0 0
  %2448 = vmatmul.mubr.bf16.gmra.mxu0 %v1995
  %v2449 = vpop.f32.mrf.mxu0
  %v2450 = vadd.f32 0.0, %v2449
  %v2451 = vpop.f32.mrf.mxu0
  %v2452 = vpop.f32.mrf.mxu0
  %v2453 = vadd.f32 0.0, %v2452
  %v2454 = vpop.f32.mrf.mxu0
  %2455 = vmatprep.mubr.bf16.mxu0 0
  %2456 = vmatmul.mubr.bf16.gmra.mxu0 %v1998
  %v2457 = vpop.f32.mrf.mxu0
  %v2458 = vadd.f32 0.0, %v2457
  %v2459 = vpop.f32.mrf.mxu0
  %v2460 = vpop.f32.mrf.mxu0
  %v2461 = vadd.f32 0.0, %v2460
  %v2462 = vpop.f32.mrf.mxu0
  %2463 = vmatprep.mubr.bf16.mxu0 0
  %2464 = vmatmul.mubr.bf16.gmra.mxu0 %v2001
  %v2465 = vpop.f32.mrf.mxu0
  %v2466 = vadd.f32 0.0, %v2465
  %v2467 = vpop.f32.mrf.mxu0
  %v2468 = vpop.f32.mrf.mxu0
  %v2469 = vadd.f32 0.0, %v2468
  %v2470 = vpop.f32.mrf.mxu0
  %2471 = vmatprep.mubr.bf16.mxu0 0
  %2472 = vmatmul.mubr.bf16.gmra.mxu0 %v2004
  %v2473 = vpop.f32.mrf.mxu0
  %v2474 = vadd.f32 0.0, %v2473
  %v2475 = vpop.f32.mrf.mxu0
  %v2476 = vpop.f32.mrf.mxu0
  %v2477 = vadd.f32 0.0, %v2476
  %v2478 = vpop.f32.mrf.mxu0
  %2479 = vmatprep.mubr.bf16.mxu0 0
  %2480 = vmatmul.mubr.bf16.gmra.mxu0 %v2007
  %v2481 = vpop.f32.mrf.mxu0
  %v2482 = vadd.f32 0.0, %v2481
  %v2483 = vpop.f32.mrf.mxu0
  %v2484 = vpop.f32.mrf.mxu0
  %v2485 = vadd.f32 0.0, %v2484
  %v2486 = vpop.f32.mrf.mxu0
  %2487 = vmatprep.mubr.bf16.mxu0 0
  %2488 = vmatmul.mubr.bf16.gmra.mxu0 %v2010
  %v2489 = vpop.f32.mrf.mxu0
  %v2490 = vadd.f32 0.0, %v2489
  %v2491 = vpop.f32.mrf.mxu0
  %v2492 = vpop.f32.mrf.mxu0
  %v2493 = vadd.f32 0.0, %v2492
  %v2494 = vpop.f32.mrf.mxu0
  %2495 = vmatprep.mubr.bf16.mxu0 0
  %2496 = vmatmul.mubr.bf16.gmra.mxu0 %v2013
  %v2497 = vpop.f32.mrf.mxu0
  %v2498 = vadd.f32 0.0, %v2497
  %v2499 = vpop.f32.mrf.mxu0
  %v2500 = vpop.f32.mrf.mxu0
  %v2501 = vadd.f32 0.0, %v2500
  %v2502 = vpop.f32.mrf.mxu0
  %2503 = vmatprep.mubr.bf16.mxu0 0
  %2504 = vmatmul.mubr.bf16.gmra.mxu0 %v2016
  %v2505 = vpop.f32.mrf.mxu0
  %v2506 = vadd.f32 0.0, %v2505
  %v2507 = vpop.f32.mrf.mxu0
  %v2508 = vpop.f32.mrf.mxu0
  %v2509 = vadd.f32 0.0, %v2508
  %v2510 = vpop.f32.mrf.mxu0
  %2511 = vmatprep.mubr.bf16.mxu0 0
  %2512 = vmatmul.mubr.bf16.gmra.mxu0 %v2019
  %v2513 = vpop.f32.mrf.mxu0
  %v2514 = vadd.f32 0.0, %v2513
  %v2515 = vpop.f32.mrf.mxu0
  %v2516 = vpop.f32.mrf.mxu0
  %v2517 = vadd.f32 0.0, %v2516
  %v2518 = vpop.f32.mrf.mxu0
  %2519 = vmatprep.mubr.bf16.mxu0 0
  %2520 = vmatmul.mubr.bf16.gmra.mxu0 %v2022
  %v2521 = vpop.f32.mrf.mxu0
  %v2522 = vadd.f32 0.0, %v2521
  %v2523 = vpop.f32.mrf.mxu0
  %v2524 = vpop.f32.mrf.mxu0
  %v2525 = vadd.f32 0.0, %v2524
  %v2526 = vpop.f32.mrf.mxu0
  %2527 = vmatprep.mubr.bf16.mxu0 0
  %2528 = vmatmul.mubr.bf16.gmra.mxu0 %v2025
  %v2529 = vpop.f32.mrf.mxu0
  %v2530 = vadd.f32 0.0, %v2529
  %v2531 = vpop.f32.mrf.mxu0
  %v2532 = vpop.f32.mrf.mxu0
  %v2533 = vadd.f32 0.0, %v2532
  %v2534 = vpop.f32.mrf.mxu0
  %2535 = vmatprep.mubr.bf16.mxu0 0
  %2536 = vmatmul.mubr.bf16.gmra.mxu0 %v2028
  %v2537 = vpop.f32.mrf.mxu0
  %v2538 = vadd.f32 0.0, %v2537
  %v2539 = vpop.f32.mrf.mxu0
  %v2540 = vpop.f32.mrf.mxu0
  %v2541 = vadd.f32 0.0, %v2540
  %v2542 = vpop.f32.mrf.mxu0
  %2543 = vmatprep.mubr.bf16.mxu0 0
  %2544 = vmatmul.mubr.bf16.gmra.mxu0 %v2031
  %v2545 = vpop.f32.mrf.mxu0
  %v2546 = vadd.f32 0.0, %v2545
  %v2547 = vpop.f32.mrf.mxu0
  %v2548 = vpop.f32.mrf.mxu0
  %v2549 = vadd.f32 0.0, %v2548
  %v2550 = vpop.f32.mrf.mxu0
  %2551 = vmatprep.mubr.bf16.mxu0 0
  %2552 = vmatmul.mubr.bf16.gmra.mxu0 %v2034
  %v2553 = vpop.f32.mrf.mxu0
  %v2554 = vadd.f32 0.0, %v2553
  %v2555 = vpop.f32.mrf.mxu0
  %v2556 = vpop.f32.mrf.mxu0
  %v2557 = vadd.f32 0.0, %v2556
  %v2558 = vpop.f32.mrf.mxu0
  %2559 = vmatprep.mubr.bf16.mxu0 0
  %2560 = vmatmul.mubr.bf16.gmra.mxu0 %v2037
  %v2561 = vpop.f32.mrf.mxu0
  %v2562 = vadd.f32 0.0, %v2561
  %v2563 = vpop.f32.mrf.mxu0
  %v2564 = vpop.f32.mrf.mxu0
  %v2565 = vadd.f32 0.0, %v2564
  %v2566 = vpop.f32.mrf.mxu0
  %2567 = vmatprep.mubr.bf16.mxu0 0
  %2568 = vmatmul.mubr.bf16.gmra.mxu0 %v2040
  %v2569 = vpop.f32.mrf.mxu0
  %v2570 = vadd.f32 0.0, %v2569
  %v2571 = vpop.f32.mrf.mxu0
  %v2572 = vpop.f32.mrf.mxu0
  %v2573 = vadd.f32 0.0, %v2572
  %v2574 = vpop.f32.mrf.mxu0
  %2575 = vmatprep.mubr.bf16.mxu0 0
  %2576 = vmatmul.mubr.bf16.gmra.mxu0 %v2043
  %v2577 = vpop.f32.mrf.mxu0
  %v2578 = vadd.f32 0.0, %v2577
  %v2579 = vpop.f32.mrf.mxu0
  %v2580 = vpop.f32.mrf.mxu0
  %v2581 = vadd.f32 0.0, %v2580
  %v2582 = vpop.f32.mrf.mxu0
  %2583 = vmatprep.mubr.bf16.mxu0 0
  %2584 = vmatmul.mubr.bf16.gmra.mxu0 %v2046
  %v2585 = vpop.f32.mrf.mxu0
  %v2586 = vadd.f32 0.0, %v2585
  %v2587 = vpop.f32.mrf.mxu0
  %v2588 = vpop.f32.mrf.mxu0
  %v2589 = vadd.f32 0.0, %v2588
  %v2590 = vpop.f32.mrf.mxu0
  %2591 = vmatprep.mubr.bf16.mxu0 0
  %2592 = vmatmul.mubr.bf16.gmra.mxu0 %v2049
  %v2593 = vpop.f32.mrf.mxu0
  %v2594 = vadd.f32 0.0, %v2593
  %v2595 = vpop.f32.mrf.mxu0
  %v2596 = vpop.f32.mrf.mxu0
  %v2597 = vadd.f32 0.0, %v2596
  %v2598 = vpop.f32.mrf.mxu0
  %2599 = vmatprep.mubr.bf16.mxu0 0
  %2600 = vmatmul.mubr.bf16.gmra.mxu0 %v2052
  %v2601 = vpop.f32.mrf.mxu0
  %v2602 = vadd.f32 0.0, %v2601
  %v2603 = vpop.f32.mrf.mxu0
  %v2604 = vpop.f32.mrf.mxu0
  %v2605 = vadd.f32 0.0, %v2604
  %v2606 = vpop.f32.mrf.mxu0
  %2607 = vmatprep.mubr.bf16.mxu0 0
  %2608 = vmatmul.mubr.bf16.gmra.mxu0 %v2055
  %v2609 = vpop.f32.mrf.mxu0
  %v2610 = vadd.f32 0.0, %v2609
  %v2611 = vpop.f32.mrf.mxu0
  %v2612 = vpop.f32.mrf.mxu0
  %v2613 = vadd.f32 0.0, %v2612
  %v2614 = vpop.f32.mrf.mxu0
  %2615 = vmatprep.mubr.bf16.mxu0 0
  %2616 = vmatmul.mubr.bf16.gmra.mxu0 %v2058
  %v2617 = vpop.f32.mrf.mxu0
  %v2618 = vadd.f32 0.0, %v2617
  %v2619 = vpop.f32.mrf.mxu0
  %v2620 = vpop.f32.mrf.mxu0
  %v2621 = vadd.f32 0.0, %v2620
  %v2622 = vpop.f32.mrf.mxu0
  %2623 = vmatprep.mubr.bf16.mxu0 0
  %2624 = vmatmul.mubr.bf16.gmra.mxu0 %v2061
  %v2625 = vpop.f32.mrf.mxu0
  %v2626 = vadd.f32 0.0, %v2625
  %v2627 = vpop.f32.mrf.mxu0
  %v2628 = vpop.f32.mrf.mxu0
  %v2629 = vadd.f32 0.0, %v2628
  %v2630 = vpop.f32.mrf.mxu0
  %2631 = vmatprep.mubr.bf16.mxu0 0
  %2632 = vmatmul.mubr.bf16.gmra.mxu0 %v2064
  %v2633 = vpop.f32.mrf.mxu0
  %v2634 = vadd.f32 0.0, %v2633
  %v2635 = vpop.f32.mrf.mxu0
  %v2636 = vpop.f32.mrf.mxu0
  %v2637 = vadd.f32 0.0, %v2636
  %v2638 = vpop.f32.mrf.mxu0
  %2639 = vmatprep.mubr.bf16.mxu0 0
  %2640 = vmatmul.mubr.bf16.gmra.mxu0 %v2067
  %v2641 = vpop.f32.mrf.mxu0
  %v2642 = vadd.f32 0.0, %v2641
  %v2643 = vpop.f32.mrf.mxu0
  %v2644 = vpop.f32.mrf.mxu0
  %v2645 = vadd.f32 0.0, %v2644
  %v2646 = vpop.f32.mrf.mxu0
  %2647 = vmatprep.mubr.bf16.mxu0 0
  %2648 = vmatmul.mubr.bf16.gmra.mxu0 %v2070
  %v2649 = vpop.f32.mrf.mxu0
  %v2650 = vadd.f32 0.0, %v2649
  %v2651 = vpop.f32.mrf.mxu0
  %v2652 = vpop.f32.mrf.mxu0
  %v2653 = vadd.f32 0.0, %v2652
  %v2654 = vpop.f32.mrf.mxu0
  %2655 = vmatprep.mubr.bf16.mxu0 0
  %2656 = vmatmul.mubr.bf16.gmra.mxu0 %v2073
  %v2657 = vpop.f32.mrf.mxu0
  %v2658 = vadd.f32 0.0, %v2657
  %v2659 = vpop.f32.mrf.mxu0
  %v2660 = vpop.f32.mrf.mxu0
  %v2661 = vadd.f32 0.0, %v2660
  %v2662 = vpop.f32.mrf.mxu0
  %2663 = vmatprep.mubr.bf16.mxu0 0
  %2664 = vmatmul.mubr.bf16.gmra.mxu0 %v2076
  %v2665 = vpop.f32.mrf.mxu0
  %v2666 = vadd.f32 0.0, %v2665
  %v2667 = vpop.f32.mrf.mxu0
  %v2668 = vpop.f32.mrf.mxu0
  %v2669 = vadd.f32 0.0, %v2668
  %v2670 = vpop.f32.mrf.mxu0
  %2671 = vmatprep.mubr.bf16.mxu0 0
  %2672 = vmatmul.mubr.bf16.gmra.mxu0 %v2079
  %v2673 = vpop.f32.mrf.mxu0
  %v2674 = vadd.f32 0.0, %v2673
  %v2675 = vpop.f32.mrf.mxu0
  %v2676 = vpop.f32.mrf.mxu0
  %v2677 = vadd.f32 0.0, %v2676
  %v2678 = vpop.f32.mrf.mxu0
  %2679 = vmatprep.mubr.bf16.mxu0 0
  %2680 = vmatmul.mubr.bf16.gmra.mxu0 %v2082
  %v2681 = vpop.f32.mrf.mxu0
  %v2682 = vadd.f32 0.0, %v2681
  %v2683 = vpop.f32.mrf.mxu0
  %v2684 = vpop.f32.mrf.mxu0
  %v2685 = vadd.f32 0.0, %v2684
  %v2686 = vpop.f32.mrf.mxu0
  %2687 = vmatprep.mubr.bf16.mxu0 0
  %2688 = vmatmul.mubr.bf16.gmra.mxu0 %v2085
  %v2689 = vpop.f32.mrf.mxu0
  %v2690 = vadd.f32 0.0, %v2689
  %v2691 = vpop.f32.mrf.mxu0
  %v2692 = vpop.f32.mrf.mxu0
  %v2693 = vadd.f32 0.0, %v2692
  %v2694 = vpop.f32.mrf.mxu0
  %2695 = vdwg.mxu0
  %v2696 = vmax.f32 %v793, %v2122
  %v2697 = vmax.f32 %v796, %v2125
  %v2698 = vmax.f32 %v801, %v2130
  %v2699 = vmax.f32 %v804, %v2133
  %v2700 = vmax.f32 %v809, %v2138
  %v2701 = vmax.f32 %v812, %v2141
  %v2702 = vmax.f32 %v817, %v2146
  %v2703 = vmax.f32 %v820, %v2149
  %v2704 = vmax.f32 %v825, %v2154
  %v2705 = vmax.f32 %v828, %v2157
  %v2706 = vmax.f32 %v833, %v2162
  %v2707 = vmax.f32 %v836, %v2165
  %v2708 = vmax.f32 %v841, %v2170
  %v2709 = vmax.f32 %v844, %v2173
  %v2710 = vmax.f32 %v849, %v2178
  %v2711 = vmax.f32 %v852, %v2181
  %v2712 = vmax.f32 %v857, %v2186
  %v2713 = vmax.f32 %v860, %v2189
  %v2714 = vmax.f32 %v865, %v2194
  %v2715 = vmax.f32 %v868, %v2197
  %v2716 = vmax.f32 %v873, %v2202
  %v2717 = vmax.f32 %v876, %v2205
  %v2718 = vmax.f32 %v881, %v2210
  %v2719 = vmax.f32 %v884, %v2213
  %v2720 = vmax.f32 %v889, %v2218
  %v2721 = vmax.f32 %v892, %v2221
  %v2722 = vmax.f32 %v897, %v2226
  %v2723 = vmax.f32 %v900, %v2229
  %v2724 = vmax.f32 %v905, %v2234
  %v2725 = vmax.f32 %v908, %v2237
  %v2726 = vmax.f32 %v913, %v2242
  %v2727 = vmax.f32 %v916, %v2245
  %v2728 = vmax.f32 %v921, %v2250
  %v2729 = vmax.f32 %v924, %v2253
  %v2730 = vmax.f32 %v929, %v2258
  %v2731 = vmax.f32 %v932, %v2261
  %v2732 = vmax.f32 %v937, %v2266
  %v2733 = vmax.f32 %v940, %v2269
  %v2734 = vmax.f32 %v945, %v2274
  %v2735 = vmax.f32 %v948, %v2277
  %v2736 = vmax.f32 %v953, %v2282
  %v2737 = vmax.f32 %v956, %v2285
  %v2738 = vmax.f32 %v961, %v2290
  %v2739 = vmax.f32 %v964, %v2293
  %v2740 = vmax.f32 %v969, %v2298
  %v2741 = vmax.f32 %v972, %v2301
  %v2742 = vmax.f32 %v977, %v2306
  %v2743 = vmax.f32 %v980, %v2309
  %v2744 = vmax.f32 %v985, %v2314
  %v2745 = vmax.f32 %v988, %v2317
  %v2746 = vmax.f32 %v993, %v2322
  %v2747 = vmax.f32 %v996, %v2325
  %v2748 = vmax.f32 %v1001, %v2330
  %v2749 = vmax.f32 %v1004, %v2333
  %v2750 = vmax.f32 %v1009, %v2338
  %v2751 = vmax.f32 %v1012, %v2341
  %v2752 = vmax.f32 %v1017, %v2346
  %v2753 = vmax.f32 %v1020, %v2349
  %v2754 = vmax.f32 %v1025, %v2354
  %v2755 = vmax.f32 %v1028, %v2357
  %v2756 = vmax.f32 %v1033, %v2362
  %v2757 = vmax.f32 %v1036, %v2365
  %v2758 = vmax.f32 %v1041, %v2370
  %v2759 = vmax.f32 %v1044, %v2373
  %v2760 = vmax.f32 %v1049, %v2378
  %v2761 = vmax.f32 %v1052, %v2381
  %v2762 = vmax.f32 %v1057, %v2386
  %v2763 = vmax.f32 %v1060, %v2389
  %v2764 = vmax.f32 %v1065, %v2394
  %v2765 = vmax.f32 %v1068, %v2397
  %v2766 = vmax.f32 %v1073, %v2402
  %v2767 = vmax.f32 %v1076, %v2405
  %v2768 = vmax.f32 %v1081, %v2410
  %v2769 = vmax.f32 %v1084, %v2413
  %v2770 = vmax.f32 %v1089, %v2418
  %v2771 = vmax.f32 %v1092, %v2421
  %v2772 = vmax.f32 %v1097, %v2426
  %v2773 = vmax.f32 %v1100, %v2429
  %v2774 = vmax.f32 %v1105, %v2434
  %v2775 = vmax.f32 %v1108, %v2437
  %v2776 = vmax.f32 %v1113, %v2442
  %v2777 = vmax.f32 %v1116, %v2445
  %v2778 = vmax.f32 %v1121, %v2450
  %v2779 = vmax.f32 %v1124, %v2453
  %v2780 = vmax.f32 %v1129, %v2458
  %v2781 = vmax.f32 %v1132, %v2461
  %v2782 = vmax.f32 %v1137, %v2466
  %v2783 = vmax.f32 %v1140, %v2469
  %v2784 = vmax.f32 %v1145, %v2474
  %v2785 = vmax.f32 %v1148, %v2477
  %v2786 = vmax.f32 %v1153, %v2482
  %v2787 = vmax.f32 %v1156, %v2485
  %v2788 = vmax.f32 %v1161, %v2490
  %v2789 = vmax.f32 %v1164, %v2493
  %v2790 = vmax.f32 %v1169, %v2498
  %v2791 = vmax.f32 %v1172, %v2501
  %v2792 = vmax.f32 %v1177, %v2506
  %v2793 = vmax.f32 %v1180, %v2509
  %v2794 = vmax.f32 %v1185, %v2514
  %v2795 = vmax.f32 %v1188, %v2517
  %v2796 = vmax.f32 %v1193, %v2522
  %v2797 = vmax.f32 %v1196, %v2525
  %v2798 = vmax.f32 %v1201, %v2530
  %v2799 = vmax.f32 %v1204, %v2533
  %v2800 = vmax.f32 %v1209, %v2538
  %v2801 = vmax.f32 %v1212, %v2541
  %v2802 = vmax.f32 %v1217, %v2546
  %v2803 = vmax.f32 %v1220, %v2549
  %v2804 = vmax.f32 %v1225, %v2554
  %v2805 = vmax.f32 %v1228, %v2557
  %v2806 = vmax.f32 %v1233, %v2562
  %v2807 = vmax.f32 %v1236, %v2565
  %v2808 = vmax.f32 %v1241, %v2570
  %v2809 = vmax.f32 %v1244, %v2573
  %v2810 = vmax.f32 %v1249, %v2578
  %v2811 = vmax.f32 %v1252, %v2581
  %v2812 = vmax.f32 %v1257, %v2586
  %v2813 = vmax.f32 %v1260, %v2589
  %v2814 = vmax.f32 %v1265, %v2594
  %v2815 = vmax.f32 %v1268, %v2597
  %v2816 = vmax.f32 %v1273, %v2602
  %v2817 = vmax.f32 %v1276, %v2605
  %v2818 = vmax.f32 %v1281, %v2610
  %v2819 = vmax.f32 %v1284, %v2613
  %v2820 = vmax.f32 %v1289, %v2618
  %v2821 = vmax.f32 %v1292, %v2621
  %v2822 = vmax.f32 %v1297, %v2626
  %v2823 = vmax.f32 %v1300, %v2629
  %v2824 = vmax.f32 %v1305, %v2634
  %v2825 = vmax.f32 %v1308, %v2637
  %v2826 = vmax.f32 %v1313, %v2642
  %v2827 = vmax.f32 %v1316, %v2645
  %v2828 = vmax.f32 %v1321, %v2650
  %v2829 = vmax.f32 %v1324, %v2653
  %v2830 = vmax.f32 %v1329, %v2658
  %v2831 = vmax.f32 %v1332, %v2661
  %v2832 = vmax.f32 %v1337, %v2666
  %v2833 = vmax.f32 %v1340, %v2669
  %v2834 = vmax.f32 %v1345, %v2674
  %v2835 = vmax.f32 %v1348, %v2677
  %v2836 = vmax.f32 %v1353, %v2682
  %v2837 = vmax.f32 %v1356, %v2685
  %v2838 = vmax.f32 %v1361, %v2690
  %v2839 = vmax.f32 %v1364, %v2693
  %v2840 = vld [vmem:[%s0 + $0x90] sm:$0xf]
  %v2841 = vld [vmem:[%s0 + $0x94] sm:$0xf]
  %v2842 = vld [vmem:[%s0 + $0x98] sm:$0xf]
  %v2843 = vld [vmem:[%s0 + $0x9c] sm:$0xf]
  %v2844 = vld [vmem:[%s0 + $0xa0] sm:$0xf]
  %v2845 = vld [vmem:[%s0 + $0xa4] sm:$0xf]
  %v2846 = vld [vmem:[%s0 + $0xa8] sm:$0xf]
  %v2847 = vld [vmem:[%s0 + $0xac] sm:$0xf]
  %v2848 = vld [vmem:[%s0 + $0xb0] sm:$0xf]
  %v2849 = vld [vmem:[%s0 + $0xb4] sm:$0xf]
  %v2850 = vld [vmem:[%s0 + $0xb8] sm:$0xf]
  %v2851 = vld [vmem:[%s0 + $0xbc] sm:$0xf]
  %v2852 = vld [vmem:[%s0 + $0xc0] sm:$0xf]
  %v2853 = vld [vmem:[%s0 + $0xc4] sm:$0xf]
  %v2854 = vld [vmem:[%s0 + $0xc8] sm:$0xf]
  %v2855 = vld [vmem:[%s0 + $0xcc] sm:$0xf]
  %v2856 = vld [vmem:[%s0 + $0xd0] sm:$0xf]
  %v2857 = vld [vmem:[%s0 + $0xd4] sm:$0xf]
  %v2858 = vld [vmem:[%s0 + $0x1b0] sm:$0xf]
  %v2859 = vld [vmem:[%s0 + $0x1b4] sm:$0xf]
  %v2860 = vld [vmem:[%s0 + $0x1b8] sm:$0xf]
  %v2861 = vld [vmem:[%s0 + $0x1bc] sm:$0xf]
  %v2862 = vld [vmem:[%s0 + $0x1c0] sm:$0xf]
  %v2863 = vld [vmem:[%s0 + $0x1c4] sm:$0xf]
  %v2864 = vld [vmem:[%s0 + $0x1c8] sm:$0xf]
  %v2865 = vld [vmem:[%s0 + $0x1cc] sm:$0xf]
  %v2866 = vld [vmem:[%s0 + $0x1d0] sm:$0xf]
  %v2867 = vld [vmem:[%s0 + $0x1d4] sm:$0xf]
  %v2868 = vld [vmem:[%s0 + $0x1d8] sm:$0xf]
  %v2869 = vld [vmem:[%s0 + $0x1dc] sm:$0xf]
  %v2870 = vld [vmem:[%s0 + $0x1e0] sm:$0xf]
  %v2871 = vld [vmem:[%s0 + $0x1e4] sm:$0xf]
  %v2872 = vld [vmem:[%s0 + $0x1e8] sm:$0xf]
  %v2873 = vld [vmem:[%s0 + $0x1ec] sm:$0xf]
  %v2874 = vld [vmem:[%s0 + $0x1f0] sm:$0xf]
  %v2875 = vld [vmem:[%s0 + $0x1f4] sm:$0xf]
  %v2876 = vld [vmem:[%s0 + $0x2d0] sm:$0xf]
  %v2877 = vld [vmem:[%s0 + $0x2d4] sm:$0xf]
  %v2878 = vld [vmem:[%s0 + $0x2d8] sm:$0xf]
  %v2879 = vld [vmem:[%s0 + $0x2dc] sm:$0xf]
  %v2880 = vld [vmem:[%s0 + $0x2e0] sm:$0xf]
  %v2881 = vld [vmem:[%s0 + $0x2e4] sm:$0xf]
  %v2882 = vld [vmem:[%s0 + $0x2e8] sm:$0xf]
  %v2883 = vld [vmem:[%s0 + $0x2ec] sm:$0xf]
  %v2884 = vld [vmem:[%s0 + $0x2f0] sm:$0xf]
  %v2885 = vld [vmem:[%s0 + $0x2f4] sm:$0xf]
  %v2886 = vld [vmem:[%s0 + $0x2f8] sm:$0xf]
  %v2887 = vld [vmem:[%s0 + $0x2fc] sm:$0xf]
  %v2888 = vld [vmem:[%s0 + $0x300] sm:$0xf]
  %v2889 = vld [vmem:[%s0 + $0x304] sm:$0xf]
  %v2890 = vld [vmem:[%s0 + $0x308] sm:$0xf]
  %v2891 = vld [vmem:[%s0 + $0x30c] sm:$0xf]
  %v2892 = vld [vmem:[%s0 + $0x310] sm:$0xf]
  %v2893 = vld [vmem:[%s0 + $0x314] sm:$0xf]
  %v2894 = vld [vmem:[%s0 + $0x3f0] sm:$0xf]
  %v2895 = vld [vmem:[%s0 + $0x3f4] sm:$0xf]
  %v2896 = vld [vmem:[%s0 + $0x3f8] sm:$0xf]
  %v2897 = vld [vmem:[%s0 + $0x3fc] sm:$0xf]
  %v2898 = vld [vmem:[%s0 + $0x400] sm:$0xf]
  %v2899 = vld [vmem:[%s0 + $0x404] sm:$0xf]
  %v2900 = vld [vmem:[%s0 + $0x408] sm:$0xf]
  %v2901 = vld [vmem:[%s0 + $0x40c] sm:$0xf]
  %v2902 = vld [vmem:[%s0 + $0x410] sm:$0xf]
  %v2903 = vld [vmem:[%s0 + $0x414] sm:$0xf]
  %v2904 = vld [vmem:[%s0 + $0x418] sm:$0xf]
  %v2905 = vld [vmem:[%s0 + $0x41c] sm:$0xf]
  %v2906 = vld [vmem:[%s0 + $0x420] sm:$0xf]
  %v2907 = vld [vmem:[%s0 + $0x424] sm:$0xf]
  %v2908 = vld [vmem:[%s0 + $0x428] sm:$0xf]
  %v2909 = vld [vmem:[%s0 + $0x42c] sm:$0xf]
  %v2910 = vld [vmem:[%s0 + $0x430] sm:$0xf]
  %v2911 = vld [vmem:[%s0 + $0x434] sm:$0xf]
  %v2912 = vld [vmem:[%s0 + $0x510] sm:$0xf]
  %v2913 = vld [vmem:[%s0 + $0x514] sm:$0xf]
  %v2914 = vld [vmem:[%s0 + $0x518] sm:$0xf]
  %v2915 = vld [vmem:[%s0 + $0x51c] sm:$0xf]
  %v2916 = vld [vmem:[%s0 + $0x520] sm:$0xf]
  %v2917 = vld [vmem:[%s0 + $0x524] sm:$0xf]
  %v2918 = vld [vmem:[%s0 + $0x528] sm:$0xf]
  %v2919 = vld [vmem:[%s0 + $0x52c] sm:$0xf]
  %v2920 = vld [vmem:[%s0 + $0x530] sm:$0xf]
  %v2921 = vld [vmem:[%s0 + $0x534] sm:$0xf]
  %v2922 = vld [vmem:[%s0 + $0x538] sm:$0xf]
  %v2923 = vld [vmem:[%s0 + $0x53c] sm:$0xf]
  %v2924 = vld [vmem:[%s0 + $0x540] sm:$0xf]
  %v2925 = vld [vmem:[%s0 + $0x544] sm:$0xf]
  %v2926 = vld [vmem:[%s0 + $0x548] sm:$0xf]
  %v2927 = vld [vmem:[%s0 + $0x54c] sm:$0xf]
  %v2928 = vld [vmem:[%s0 + $0x550] sm:$0xf]
  %v2929 = vld [vmem:[%s0 + $0x554] sm:$0xf]
  %v2930 = vld [vmem:[%s0 + $0x630] sm:$0xf]
  %v2931 = vld [vmem:[%s0 + $0x634] sm:$0xf]
  %v2932 = vld [vmem:[%s0 + $0x638] sm:$0xf]
  %v2933 = vld [vmem:[%s0 + $0x63c] sm:$0xf]
  %v2934 = vld [vmem:[%s0 + $0x640] sm:$0xf]
  %v2935 = vld [vmem:[%s0 + $0x644] sm:$0xf]
  %v2936 = vld [vmem:[%s0 + $0x648] sm:$0xf]
  %v2937 = vld [vmem:[%s0 + $0x64c] sm:$0xf]
  %v2938 = vld [vmem:[%s0 + $0x650] sm:$0xf]
  %v2939 = vld [vmem:[%s0 + $0x654] sm:$0xf]
  %v2940 = vld [vmem:[%s0 + $0x658] sm:$0xf]
  %v2941 = vld [vmem:[%s0 + $0x65c] sm:$0xf]
  %v2942 = vld [vmem:[%s0 + $0x660] sm:$0xf]
  %v2943 = vld [vmem:[%s0 + $0x664] sm:$0xf]
  %v2944 = vld [vmem:[%s0 + $0x668] sm:$0xf]
  %v2945 = vld [vmem:[%s0 + $0x66c] sm:$0xf]
  %v2946 = vld [vmem:[%s0 + $0x670] sm:$0xf]
  %v2947 = vld [vmem:[%s0 + $0x674] sm:$0xf]
  %v2948 = vld [vmem:[%s0 + $0x750] sm:$0xf]
  %v2949 = vld [vmem:[%s0 + $0x754] sm:$0xf]
  %v2950 = vld [vmem:[%s0 + $0x758] sm:$0xf]
  %v2951 = vld [vmem:[%s0 + $0x75c] sm:$0xf]
  %v2952 = vld [vmem:[%s0 + $0x760] sm:$0xf]
  %v2953 = vld [vmem:[%s0 + $0x764] sm:$0xf]
  %v2954 = vld [vmem:[%s0 + $0x768] sm:$0xf]
  %v2955 = vld [vmem:[%s0 + $0x76c] sm:$0xf]
  %v2956 = vld [vmem:[%s0 + $0x770] sm:$0xf]
  %v2957 = vld [vmem:[%s0 + $0x774] sm:$0xf]
  %v2958 = vld [vmem:[%s0 + $0x778] sm:$0xf]
  %v2959 = vld [vmem:[%s0 + $0x77c] sm:$0xf]
  %v2960 = vld [vmem:[%s0 + $0x780] sm:$0xf]
  %v2961 = vld [vmem:[%s0 + $0x784] sm:$0xf]
  %v2962 = vld [vmem:[%s0 + $0x788] sm:$0xf]
  %v2963 = vld [vmem:[%s0 + $0x78c] sm:$0xf]
  %v2964 = vld [vmem:[%s0 + $0x790] sm:$0xf]
  %v2965 = vld [vmem:[%s0 + $0x794] sm:$0xf]
  %v2966 = vld [vmem:[%s0 + $0x870] sm:$0xf]
  %v2967 = vld [vmem:[%s0 + $0x874] sm:$0xf]
  %v2968 = vld [vmem:[%s0 + $0x878] sm:$0xf]
  %v2969 = vld [vmem:[%s0 + $0x87c] sm:$0xf]
  %v2970 = vld [vmem:[%s0 + $0x880] sm:$0xf]
  %v2971 = vld [vmem:[%s0 + $0x884] sm:$0xf]
  %v2972 = vld [vmem:[%s0 + $0x888] sm:$0xf]
  %v2973 = vld [vmem:[%s0 + $0x88c] sm:$0xf]
  %v2974 = vld [vmem:[%s0 + $0x890] sm:$0xf]
  %v2975 = vld [vmem:[%s0 + $0x894] sm:$0xf]
  %v2976 = vld [vmem:[%s0 + $0x898] sm:$0xf]
  %v2977 = vld [vmem:[%s0 + $0x89c] sm:$0xf]
  %v2978 = vld [vmem:[%s0 + $0x8a0] sm:$0xf]
  %v2979 = vld [vmem:[%s0 + $0x8a4] sm:$0xf]
  %v2980 = vld [vmem:[%s0 + $0x8a8] sm:$0xf]
  %v2981 = vld [vmem:[%s0 + $0x8ac] sm:$0xf]
  %v2982 = vld [vmem:[%s0 + $0x8b0] sm:$0xf]
  %v2983 = vld [vmem:[%s0 + $0x8b4] sm:$0xf]
  %v3128 = vunpack.c.l.b16 %v2840
  %v3129 = vunpack.c.l.b16 %v2841
  %v3130 = vunpack.c.l.b16 %v2842
  %v3131 = vunpack.c.l.b16 %v2843
  %v3132 = vunpack.c.l.b16 %v2844
  %v3133 = vunpack.c.l.b16 %v2845
  %v3134 = vunpack.c.l.b16 %v2846
  %v3135 = vunpack.c.l.b16 %v2847
  %v3136 = vunpack.c.l.b16 %v2848
  %v3137 = vunpack.c.l.b16 %v2849
  %v3138 = vunpack.c.l.b16 %v2850
  %v3139 = vunpack.c.l.b16 %v2851
  %v3140 = vunpack.c.l.b16 %v2852
  %v3141 = vunpack.c.l.b16 %v2853
  %v3142 = vunpack.c.l.b16 %v2854
  %v3143 = vunpack.c.l.b16 %v2855
  %v3144 = vunpack.c.l.b16 %v2856
  %v3145 = vunpack.c.l.b16 %v2857
  %v3146 = vunpack.c.l.b16 %v2858
  %v3147 = vunpack.c.l.b16 %v2859
  %v3148 = vunpack.c.l.b16 %v2860
  %v3149 = vunpack.c.l.b16 %v2861
  %v3150 = vunpack.c.l.b16 %v2862
  %v3151 = vunpack.c.l.b16 %v2863
  %v3152 = vunpack.c.l.b16 %v2864
  %v3153 = vunpack.c.l.b16 %v2865
  %v3154 = vunpack.c.l.b16 %v2866
  %v3155 = vunpack.c.l.b16 %v2867
  %v3156 = vunpack.c.l.b16 %v2868
  %v3157 = vunpack.c.l.b16 %v2869
  %v3158 = vunpack.c.l.b16 %v2870
  %v3159 = vunpack.c.l.b16 %v2871
  %v3160 = vunpack.c.l.b16 %v2872
  %v3161 = vunpack.c.l.b16 %v2873
  %v3162 = vunpack.c.l.b16 %v2874
  %v3163 = vunpack.c.l.b16 %v2875
  %v3164 = vunpack.c.l.b16 %v2876
  %v3165 = vunpack.c.l.b16 %v2877
  %v3166 = vunpack.c.l.b16 %v2878
  %v3167 = vunpack.c.l.b16 %v2879
  %v3168 = vunpack.c.l.b16 %v2880
  %v3169 = vunpack.c.l.b16 %v2881
  %v3170 = vunpack.c.l.b16 %v2882
  %v3171 = vunpack.c.l.b16 %v2883
  %v3172 = vunpack.c.l.b16 %v2884
  %v3173 = vunpack.c.l.b16 %v2885
  %v3174 = vunpack.c.l.b16 %v2886
  %v3175 = vunpack.c.l.b16 %v2887
  %v3176 = vunpack.c.l.b16 %v2888
  %v3177 = vunpack.c.l.b16 %v2889
  %v3178 = vunpack.c.l.b16 %v2890
  %v3179 = vunpack.c.l.b16 %v2891
  %v3180 = vunpack.c.l.b16 %v2892
  %v3181 = vunpack.c.l.b16 %v2893
  %v3182 = vunpack.c.l.b16 %v2894
  %v3183 = vunpack.c.l.b16 %v2895
  %v3184 = vunpack.c.l.b16 %v2896
  %v3185 = vunpack.c.l.b16 %v2897
  %v3186 = vunpack.c.l.b16 %v2898
  %v3187 = vunpack.c.l.b16 %v2899
  %v3188 = vunpack.c.l.b16 %v2900
  %v3189 = vunpack.c.l.b16 %v2901
  %v3190 = vunpack.c.l.b16 %v2902
  %v3191 = vunpack.c.l.b16 %v2903
  %v3192 = vunpack.c.l.b16 %v2904
  %v3193 = vunpack.c.l.b16 %v2905
  %v3194 = vunpack.c.l.b16 %v2906
  %v3195 = vunpack.c.l.b16 %v2907
  %v3196 = vunpack.c.l.b16 %v2908
  %v3197 = vunpack.c.l.b16 %v2909
  %v3198 = vunpack.c.l.b16 %v2910
  %v3199 = vunpack.c.l.b16 %v2911
  %v3200 = vunpack.c.l.b16 %v2912
  %v3201 = vunpack.c.l.b16 %v2913
  %v3202 = vunpack.c.l.b16 %v2914
  %v3203 = vunpack.c.l.b16 %v2915
  %v3204 = vunpack.c.l.b16 %v2916
  %v3205 = vunpack.c.l.b16 %v2917
  %v3206 = vunpack.c.l.b16 %v2918
  %v3207 = vunpack.c.l.b16 %v2919
  %v3208 = vunpack.c.l.b16 %v2920
  %v3209 = vunpack.c.l.b16 %v2921
  %v3210 = vunpack.c.l.b16 %v2922
  %v3211 = vunpack.c.l.b16 %v2923
  %v3212 = vunpack.c.l.b16 %v2924
  %v3213 = vunpack.c.l.b16 %v2925
  %v3214 = vunpack.c.l.b16 %v2926
  %v3215 = vunpack.c.l.b16 %v2927
  %v3216 = vunpack.c.l.b16 %v2928
  %v3217 = vunpack.c.l.b16 %v2929
  %v3218 = vunpack.c.l.b16 %v2930
  %v3219 = vunpack.c.l.b16 %v2931
  %v3220 = vunpack.c.l.b16 %v2932
  %v3221 = vunpack.c.l.b16 %v2933
  %v3222 = vunpack.c.l.b16 %v2934
  %v3223 = vunpack.c.l.b16 %v2935
  %v3224 = vunpack.c.l.b16 %v2936
  %v3225 = vunpack.c.l.b16 %v2937
  %v3226 = vunpack.c.l.b16 %v2938
  %v3227 = vunpack.c.l.b16 %v2939
  %v3228 = vunpack.c.l.b16 %v2940
  %v3229 = vunpack.c.l.b16 %v2941
  %v3230 = vunpack.c.l.b16 %v2942
  %v3231 = vunpack.c.l.b16 %v2943
  %v3232 = vunpack.c.l.b16 %v2944
  %v3233 = vunpack.c.l.b16 %v2945
  %v3234 = vunpack.c.l.b16 %v2946
  %v3235 = vunpack.c.l.b16 %v2947
  %v3236 = vunpack.c.l.b16 %v2948
  %v3237 = vunpack.c.l.b16 %v2949
  %v3238 = vunpack.c.l.b16 %v2950
  %v3239 = vunpack.c.l.b16 %v2951
  %v3240 = vunpack.c.l.b16 %v2952
  %v3241 = vunpack.c.l.b16 %v2953
  %v3242 = vunpack.c.l.b16 %v2954
  %v3243 = vunpack.c.l.b16 %v2955
  %v3244 = vunpack.c.l.b16 %v2956
  %v3245 = vunpack.c.l.b16 %v2957
  %v3246 = vunpack.c.l.b16 %v2958
  %v3247 = vunpack.c.l.b16 %v2959
  %v3248 = vunpack.c.l.b16 %v2960
  %v3249 = vunpack.c.l.b16 %v2961
  %v3250 = vunpack.c.l.b16 %v2962
  %v3251 = vunpack.c.l.b16 %v2963
  %v3252 = vunpack.c.l.b16 %v2964
  %v3253 = vunpack.c.l.b16 %v2965
  %v3254 = vunpack.c.l.b16 %v2966
  %v3255 = vunpack.c.l.b16 %v2967
  %v3256 = vunpack.c.l.b16 %v2968
  %v3257 = vunpack.c.l.b16 %v2969
  %v3258 = vunpack.c.l.b16 %v2970
  %v3259 = vunpack.c.l.b16 %v2971
  %v3260 = vunpack.c.l.b16 %v2972
  %v3261 = vunpack.c.l.b16 %v2973
  %v3262 = vunpack.c.l.b16 %v2974
  %v3263 = vunpack.c.l.b16 %v2975
  %v3264 = vunpack.c.l.b16 %v2976
  %v3265 = vunpack.c.l.b16 %v2977
  %v3266 = vunpack.c.l.b16 %v2978
  %v3267 = vunpack.c.l.b16 %v2979
  %v3268 = vunpack.c.l.b16 %v2980
  %v3269 = vunpack.c.l.b16 %v2981
  %v3270 = vunpack.c.l.b16 %v2982
  %v3271 = vunpack.c.l.b16 %v2983
  %v3272 = vpack.c.b16 %v3129, %v3128
  %v3273 = vpack.c.b16 %v3131, %v3130
  %v3274 = vpack.c.b16 %v3133, %v3132
  %v3275 = vpack.c.b16 %v3135, %v3134
  %v3276 = vpack.c.b16 %v3137, %v3136
  %v3277 = vpack.c.b16 %v3139, %v3138
  %v3278 = vpack.c.b16 %v3141, %v3140
  %v3279 = vpack.c.b16 %v3143, %v3142
  %v3280 = vpack.c.b16 %v3145, %v3144
  %v3281 = vpack.c.b16 %v3147, %v3146
  %v3282 = vpack.c.b16 %v3149, %v3148
  %v3283 = vpack.c.b16 %v3151, %v3150
  %v3284 = vpack.c.b16 %v3153, %v3152
  %v3285 = vpack.c.b16 %v3155, %v3154
  %v3286 = vpack.c.b16 %v3157, %v3156
  %v3287 = vpack.c.b16 %v3159, %v3158
  %v3288 = vpack.c.b16 %v3161, %v3160
  %v3289 = vpack.c.b16 %v3163, %v3162
  %v3290 = vpack.c.b16 %v3165, %v3164
  %v3291 = vpack.c.b16 %v3167, %v3166
  %v3292 = vpack.c.b16 %v3169, %v3168
  %v3293 = vpack.c.b16 %v3171, %v3170
  %v3294 = vpack.c.b16 %v3173, %v3172
  %v3295 = vpack.c.b16 %v3175, %v3174
  %v3296 = vpack.c.b16 %v3177, %v3176
  %v3297 = vpack.c.b16 %v3179, %v3178
  %v3298 = vpack.c.b16 %v3181, %v3180
  %v3299 = vpack.c.b16 %v3183, %v3182
  %v3300 = vpack.c.b16 %v3185, %v3184
  %v3301 = vpack.c.b16 %v3187, %v3186
  %v3302 = vpack.c.b16 %v3189, %v3188
  %v3303 = vpack.c.b16 %v3191, %v3190
  %v3304 = vpack.c.b16 %v3193, %v3192
  %v3305 = vpack.c.b16 %v3195, %v3194
  %v3306 = vpack.c.b16 %v3197, %v3196
  %v3307 = vpack.c.b16 %v3199, %v3198
  %v3308 = vpack.c.b16 %v3201, %v3200
  %v3309 = vpack.c.b16 %v3203, %v3202
  %v3310 = vpack.c.b16 %v3205, %v3204
  %v3311 = vpack.c.b16 %v3207, %v3206
  %v3312 = vpack.c.b16 %v3209, %v3208
  %v3313 = vpack.c.b16 %v3211, %v3210
  %v3314 = vpack.c.b16 %v3213, %v3212
  %v3315 = vpack.c.b16 %v3215, %v3214
  %v3316 = vpack.c.b16 %v3217, %v3216
  %v3317 = vpack.c.b16 %v3219, %v3218
  %v3318 = vpack.c.b16 %v3221, %v3220
  %v3319 = vpack.c.b16 %v3223, %v3222
  %v3320 = vpack.c.b16 %v3225, %v3224
  %v3321 = vpack.c.b16 %v3227, %v3226
  %v3322 = vpack.c.b16 %v3229, %v3228
  %v3323 = vpack.c.b16 %v3231, %v3230
  %v3324 = vpack.c.b16 %v3233, %v3232
  %v3325 = vpack.c.b16 %v3235, %v3234
  %v3326 = vpack.c.b16 %v3237, %v3236
  %v3327 = vpack.c.b16 %v3239, %v3238
  %v3328 = vpack.c.b16 %v3241, %v3240
  %v3329 = vpack.c.b16 %v3243, %v3242
  %v3330 = vpack.c.b16 %v3245, %v3244
  %v3331 = vpack.c.b16 %v3247, %v3246
  %v3332 = vpack.c.b16 %v3249, %v3248
  %v3333 = vpack.c.b16 %v3251, %v3250
  %v3334 = vpack.c.b16 %v3253, %v3252
  %v3335 = vpack.c.b16 %v3255, %v3254
  %v3336 = vpack.c.b16 %v3257, %v3256
  %v3337 = vpack.c.b16 %v3259, %v3258
  %v3338 = vpack.c.b16 %v3261, %v3260
  %v3339 = vpack.c.b16 %v3263, %v3262
  %v3340 = vpack.c.b16 %v3265, %v3264
  %v3341 = vpack.c.b16 %v3267, %v3266
  %v3342 = vpack.c.b16 %v3269, %v3268
  %v3343 = vpack.c.b16 %v3271, %v3270
  %v3345 = vsel %vm534, %v3272, 0
  %v3348 = vsel %vm534, %v3273, 0
  %v3351 = vsel %vm534, %v3274, 0
  %v3354 = vsel %vm534, %v3275, 0
  %v3357 = vsel %vm534, %v3276, 0
  %v3360 = vsel %vm534, %v3277, 0
  %v3363 = vsel %vm534, %v3278, 0
  %v3366 = vsel %vm534, %v3279, 0
  %v3369 = vsel %vm534, %v3280, 0
  %v3372 = vsel %vm534, %v3281, 0
  %v3375 = vsel %vm534, %v3282, 0
  %v3378 = vsel %vm534, %v3283, 0
  %v3381 = vsel %vm534, %v3284, 0
  %v3384 = vsel %vm534, %v3285, 0
  %v3387 = vsel %vm534, %v3286, 0
  %v3390 = vsel %vm534, %v3287, 0
  %v3393 = vsel %vm534, %v3288, 0
  %v3396 = vsel %vm534, %v3289, 0
  %v3399 = vsel %vm534, %v3290, 0
  %v3402 = vsel %vm534, %v3291, 0
  %v3405 = vsel %vm534, %v3292, 0
  %v3408 = vsel %vm534, %v3293, 0
  %v3411 = vsel %vm534, %v3294, 0
  %v3414 = vsel %vm534, %v3295, 0
  %v3417 = vsel %vm534, %v3296, 0
  %v3420 = vsel %vm534, %v3297, 0
  %v3423 = vsel %vm534, %v3298, 0
  %v3426 = vsel %vm534, %v3299, 0
  %v3429 = vsel %vm534, %v3300, 0
  %v3432 = vsel %vm534, %v3301, 0
  %v3435 = vsel %vm534, %v3302, 0
  %v3438 = vsel %vm534, %v3303, 0
  %v3441 = vsel %vm534, %v3304, 0
  %v3444 = vsel %vm534, %v3305, 0
  %v3447 = vsel %vm534, %v3306, 0
  %v3450 = vsel %vm534, %v3307, 0
  %v3453 = vsel %vm534, %v3308, 0
  %v3456 = vsel %vm534, %v3309, 0
  %v3459 = vsel %vm534, %v3310, 0
  %v3462 = vsel %vm534, %v3311, 0
  %v3465 = vsel %vm534, %v3312, 0
  %v3468 = vsel %vm534, %v3313, 0
  %v3471 = vsel %vm534, %v3314, 0
  %v3474 = vsel %vm534, %v3315, 0
  %v3477 = vsel %vm534, %v3316, 0
  %v3480 = vsel %vm534, %v3317, 0
  %v3483 = vsel %vm534, %v3318, 0
  %v3486 = vsel %vm534, %v3319, 0
  %v3489 = vsel %vm534, %v3320, 0
  %v3492 = vsel %vm534, %v3321, 0
  %v3495 = vsel %vm534, %v3322, 0
  %v3498 = vsel %vm534, %v3323, 0
  %v3501 = vsel %vm534, %v3324, 0
  %v3504 = vsel %vm534, %v3325, 0
  %v3507 = vsel %vm534, %v3326, 0
  %v3510 = vsel %vm534, %v3327, 0
  %v3513 = vsel %vm534, %v3328, 0
  %v3516 = vsel %vm534, %v3329, 0
  %v3519 = vsel %vm534, %v3330, 0
  %v3522 = vsel %vm534, %v3331, 0
  %v3525 = vsel %vm534, %v3332, 0
  %v3528 = vsel %vm534, %v3333, 0
  %v3531 = vsel %vm534, %v3334, 0
  %v3534 = vsel %vm534, %v3335, 0
  %v3537 = vsel %vm534, %v3336, 0
  %v3540 = vsel %vm534, %v3337, 0
  %v3543 = vsel %vm534, %v3338, 0
  %v3546 = vsel %vm534, %v3339, 0
  %v3549 = vsel %vm534, %v3340, 0
  %v3552 = vsel %vm534, %v3341, 0
  %v3555 = vsel %vm534, %v3342, 0
  %v3558 = vsel %vm534, %v3343, 0
  %3560 = vmatprep.subr.bf16.mxu0 0
  %3561 = vmatpush1.bf16.msra.mxu0 0
  %3562 = vmatprep.subr.bf16.mxu0 0
  %3563 = vmatpush1.bf16.msra.mxu0 0
  %3564 = vmatprep.subr.bf16.mxu0 0
  %3565 = vmatpush1.bf16.msra.mxu0 0
  %3566 = vmatprep.subr.bf16.mxu0 0
  %3567 = vmatpush1.bf16.msra.mxu0 0
  %3568 = vmatprep.subr.bf16.mxu0 0
  %3569 = vmatpush1.bf16.msra.mxu0 0
  %3570 = vmatprep.subr.bf16.mxu0 0
  %3571 = vmatpush1.bf16.msra.mxu0 0
  %3572 = vmatprep.subr.bf16.mxu0 0
  %3573 = vmatpush1.bf16.msra.mxu0 %v756
  %3574 = vmatprep.subr.bf16.mxu0 0
  %3575 = vmatpush1.bf16.msra.mxu0 %v531
  %3576 = vmatprep.subr.bf16.mxu0 0
  %3577 = vmatpush2.bf16.msra.mxu0 0
  %3578 = vmatprep.subr.bf16.mxu0 0
  %3579 = vmatpush2.bf16.msra.mxu0 0
  %3580 = vmatprep.subr.bf16.mxu0 0
  %3581 = vmatpush2.bf16.msra.mxu0 0
  %3582 = vmatprep.subr.bf16.mxu0 0
  %3583 = vmatpush2.bf16.msra.mxu0 0
  %3584 = vmatprep.subr.bf16.mxu0 0
  %3585 = vmatpush2.bf16.msra.mxu0 0
  %3586 = vmatprep.subr.bf16.mxu0 0
  %3587 = vmatpush2.bf16.msra.mxu0 0
  %3588 = vmatprep.subr.bf16.mxu0 0
  %3589 = vmatpush2.bf16.msra.mxu0 0
  %3590 = vmatprep.subr.bf16.mxu0 0
  %3591 = vmatpush2.bf16.msra.mxu0 0
  %3592 = vmatprep.mubr.bf16.mxu0 0
  %3593 = vmatmul.mubr.bf16.gmra.mxu0 %v3345
  %v3594 = vpop.f32.mrf.mxu0
  %v3595 = vadd.f32 0.0, %v3594
  %v3596 = vpop.f32.mrf.mxu0
  %v3597 = vpop.f32.mrf.mxu0
  %v3598 = vadd.f32 0.0, %v3597
  %v3599 = vpop.f32.mrf.mxu0
  %3600 = vmatprep.mubr.bf16.mxu0 0
  %3601 = vmatmul.mubr.bf16.gmra.mxu0 %v3348
  %v3602 = vpop.f32.mrf.mxu0
  %v3603 = vadd.f32 0.0, %v3602
  %v3604 = vpop.f32.mrf.mxu0
  %v3605 = vpop.f32.mrf.mxu0
  %v3606 = vadd.f32 0.0, %v3605
  %v3607 = vpop.f32.mrf.mxu0
  %3608 = vmatprep.mubr.bf16.mxu0 0
  %3609 = vmatmul.mubr.bf16.gmra.mxu0 %v3351
  %v3610 = vpop.f32.mrf.mxu0
  %v3611 = vadd.f32 0.0, %v3610
  %v3612 = vpop.f32.mrf.mxu0
  %v3613 = vpop.f32.mrf.mxu0
  %v3614 = vadd.f32 0.0, %v3613
  %v3615 = vpop.f32.mrf.mxu0
  %3616 = vmatprep.mubr.bf16.mxu0 0
  %3617 = vmatmul.mubr.bf16.gmra.mxu0 %v3354
  %v3618 = vpop.f32.mrf.mxu0
  %v3619 = vadd.f32 0.0, %v3618
  %v3620 = vpop.f32.mrf.mxu0
  %v3621 = vpop.f32.mrf.mxu0
  %v3622 = vadd.f32 0.0, %v3621
  %v3623 = vpop.f32.mrf.mxu0
  %3624 = vmatprep.mubr.bf16.mxu0 0
  %3625 = vmatmul.mubr.bf16.gmra.mxu0 %v3357
  %v3626 = vpop.f32.mrf.mxu0
  %v3627 = vadd.f32 0.0, %v3626
  %v3628 = vpop.f32.mrf.mxu0
  %v3629 = vpop.f32.mrf.mxu0
  %v3630 = vadd.f32 0.0, %v3629
  %v3631 = vpop.f32.mrf.mxu0
  %3632 = vmatprep.mubr.bf16.mxu0 0
  %3633 = vmatmul.mubr.bf16.gmra.mxu0 %v3360
  %v3634 = vpop.f32.mrf.mxu0
  %v3635 = vadd.f32 0.0, %v3634
  %v3636 = vpop.f32.mrf.mxu0
  %v3637 = vpop.f32.mrf.mxu0
  %v3638 = vadd.f32 0.0, %v3637
  %v3639 = vpop.f32.mrf.mxu0
  %3640 = vmatprep.mubr.bf16.mxu0 0
  %3641 = vmatmul.mubr.bf16.gmra.mxu0 %v3363
  %v3642 = vpop.f32.mrf.mxu0
  %v3643 = vadd.f32 0.0, %v3642
  %v3644 = vpop.f32.mrf.mxu0
  %v3645 = vpop.f32.mrf.mxu0
  %v3646 = vadd.f32 0.0, %v3645
  %v3647 = vpop.f32.mrf.mxu0
  %3648 = vmatprep.mubr.bf16.mxu0 0
  %3649 = vmatmul.mubr.bf16.gmra.mxu0 %v3366
  %v3650 = vpop.f32.mrf.mxu0
  %v3651 = vadd.f32 0.0, %v3650
  %v3652 = vpop.f32.mrf.mxu0
  %v3653 = vpop.f32.mrf.mxu0
  %v3654 = vadd.f32 0.0, %v3653
  %v3655 = vpop.f32.mrf.mxu0
  %3656 = vmatprep.mubr.bf16.mxu0 0
  %3657 = vmatmul.mubr.bf16.gmra.mxu0 %v3369
  %v3658 = vpop.f32.mrf.mxu0
  %v3659 = vadd.f32 0.0, %v3658
  %v3660 = vpop.f32.mrf.mxu0
  %v3661 = vpop.f32.mrf.mxu0
  %v3662 = vadd.f32 0.0, %v3661
  %v3663 = vpop.f32.mrf.mxu0
  %3664 = vmatprep.mubr.bf16.mxu0 0
  %3665 = vmatmul.mubr.bf16.gmra.mxu0 %v3372
  %v3666 = vpop.f32.mrf.mxu0
  %v3667 = vadd.f32 0.0, %v3666
  %v3668 = vpop.f32.mrf.mxu0
  %v3669 = vpop.f32.mrf.mxu0
  %v3670 = vadd.f32 0.0, %v3669
  %v3671 = vpop.f32.mrf.mxu0
  %3672 = vmatprep.mubr.bf16.mxu0 0
  %3673 = vmatmul.mubr.bf16.gmra.mxu0 %v3375
  %v3674 = vpop.f32.mrf.mxu0
  %v3675 = vadd.f32 0.0, %v3674
  %v3676 = vpop.f32.mrf.mxu0
  %v3677 = vpop.f32.mrf.mxu0
  %v3678 = vadd.f32 0.0, %v3677
  %v3679 = vpop.f32.mrf.mxu0
  %3680 = vmatprep.mubr.bf16.mxu0 0
  %3681 = vmatmul.mubr.bf16.gmra.mxu0 %v3378
  %v3682 = vpop.f32.mrf.mxu0
  %v3683 = vadd.f32 0.0, %v3682
  %v3684 = vpop.f32.mrf.mxu0
  %v3685 = vpop.f32.mrf.mxu0
  %v3686 = vadd.f32 0.0, %v3685
  %v3687 = vpop.f32.mrf.mxu0
  %3688 = vmatprep.mubr.bf16.mxu0 0
  %3689 = vmatmul.mubr.bf16.gmra.mxu0 %v3381
  %v3690 = vpop.f32.mrf.mxu0
  %v3691 = vadd.f32 0.0, %v3690
  %v3692 = vpop.f32.mrf.mxu0
  %v3693 = vpop.f32.mrf.mxu0
  %v3694 = vadd.f32 0.0, %v3693
  %v3695 = vpop.f32.mrf.mxu0
  %3696 = vmatprep.mubr.bf16.mxu0 0
  %3697 = vmatmul.mubr.bf16.gmra.mxu0 %v3384
  %v3698 = vpop.f32.mrf.mxu0
  %v3699 = vadd.f32 0.0, %v3698
  %v3700 = vpop.f32.mrf.mxu0
  %v3701 = vpop.f32.mrf.mxu0
  %v3702 = vadd.f32 0.0, %v3701
  %v3703 = vpop.f32.mrf.mxu0
  %3704 = vmatprep.mubr.bf16.mxu0 0
  %3705 = vmatmul.mubr.bf16.gmra.mxu0 %v3387
  %v3706 = vpop.f32.mrf.mxu0
  %v3707 = vadd.f32 0.0, %v3706
  %v3708 = vpop.f32.mrf.mxu0
  %v3709 = vpop.f32.mrf.mxu0
  %v3710 = vadd.f32 0.0, %v3709
  %v3711 = vpop.f32.mrf.mxu0
  %3712 = vmatprep.mubr.bf16.mxu0 0
  %3713 = vmatmul.mubr.bf16.gmra.mxu0 %v3390
  %v3714 = vpop.f32.mrf.mxu0
  %v3715 = vadd.f32 0.0, %v3714
  %v3716 = vpop.f32.mrf.mxu0
  %v3717 = vpop.f32.mrf.mxu0
  %v3718 = vadd.f32 0.0, %v3717
  %v3719 = vpop.f32.mrf.mxu0
  %3720 = vmatprep.mubr.bf16.mxu0 0
  %3721 = vmatmul.mubr.bf16.gmra.mxu0 %v3393
  %v3722 = vpop.f32.mrf.mxu0
  %v3723 = vadd.f32 0.0, %v3722
  %v3724 = vpop.f32.mrf.mxu0
  %v3725 = vpop.f32.mrf.mxu0
  %v3726 = vadd.f32 0.0, %v3725
  %v3727 = vpop.f32.mrf.mxu0
  %3728 = vmatprep.mubr.bf16.mxu0 0
  %3729 = vmatmul.mubr.bf16.gmra.mxu0 %v3396
  %v3730 = vpop.f32.mrf.mxu0
  %v3731 = vadd.f32 0.0, %v3730
  %v3732 = vpop.f32.mrf.mxu0
  %v3733 = vpop.f32.mrf.mxu0
  %v3734 = vadd.f32 0.0, %v3733
  %v3735 = vpop.f32.mrf.mxu0
  %3736 = vmatprep.mubr.bf16.mxu0 0
  %3737 = vmatmul.mubr.bf16.gmra.mxu0 %v3399
  %v3738 = vpop.f32.mrf.mxu0
  %v3739 = vadd.f32 0.0, %v3738
  %v3740 = vpop.f32.mrf.mxu0
  %v3741 = vpop.f32.mrf.mxu0
  %v3742 = vadd.f32 0.0, %v3741
  %v3743 = vpop.f32.mrf.mxu0
  %3744 = vmatprep.mubr.bf16.mxu0 0
  %3745 = vmatmul.mubr.bf16.gmra.mxu0 %v3402
  %v3746 = vpop.f32.mrf.mxu0
  %v3747 = vadd.f32 0.0, %v3746
  %v3748 = vpop.f32.mrf.mxu0
  %v3749 = vpop.f32.mrf.mxu0
  %v3750 = vadd.f32 0.0, %v3749
  %v3751 = vpop.f32.mrf.mxu0
  %3752 = vmatprep.mubr.bf16.mxu0 0
  %3753 = vmatmul.mubr.bf16.gmra.mxu0 %v3405
  %v3754 = vpop.f32.mrf.mxu0
  %v3755 = vadd.f32 0.0, %v3754
  %v3756 = vpop.f32.mrf.mxu0
  %v3757 = vpop.f32.mrf.mxu0
  %v3758 = vadd.f32 0.0, %v3757
  %v3759 = vpop.f32.mrf.mxu0
  %3760 = vmatprep.mubr.bf16.mxu0 0
  %3761 = vmatmul.mubr.bf16.gmra.mxu0 %v3408
  %v3762 = vpop.f32.mrf.mxu0
  %v3763 = vadd.f32 0.0, %v3762
  %v3764 = vpop.f32.mrf.mxu0
  %v3765 = vpop.f32.mrf.mxu0
  %v3766 = vadd.f32 0.0, %v3765
  %v3767 = vpop.f32.mrf.mxu0
  %3768 = vmatprep.mubr.bf16.mxu0 0
  %3769 = vmatmul.mubr.bf16.gmra.mxu0 %v3411
  %v3770 = vpop.f32.mrf.mxu0
  %v3771 = vadd.f32 0.0, %v3770
  %v3772 = vpop.f32.mrf.mxu0
  %v3773 = vpop.f32.mrf.mxu0
  %v3774 = vadd.f32 0.0, %v3773
  %v3775 = vpop.f32.mrf.mxu0
  %3776 = vmatprep.mubr.bf16.mxu0 0
  %3777 = vmatmul.mubr.bf16.gmra.mxu0 %v3414
  %v3778 = vpop.f32.mrf.mxu0
  %v3779 = vadd.f32 0.0, %v3778
  %v3780 = vpop.f32.mrf.mxu0
  %v3781 = vpop.f32.mrf.mxu0
  %v3782 = vadd.f32 0.0, %v3781
  %v3783 = vpop.f32.mrf.mxu0
  %3784 = vmatprep.mubr.bf16.mxu0 0
  %3785 = vmatmul.mubr.bf16.gmra.mxu0 %v3417
  %v3786 = vpop.f32.mrf.mxu0
  %v3787 = vadd.f32 0.0, %v3786
  %v3788 = vpop.f32.mrf.mxu0
  %v3789 = vpop.f32.mrf.mxu0
  %v3790 = vadd.f32 0.0, %v3789
  %v3791 = vpop.f32.mrf.mxu0
  %3792 = vmatprep.mubr.bf16.mxu0 0
  %3793 = vmatmul.mubr.bf16.gmra.mxu0 %v3420
  %v3794 = vpop.f32.mrf.mxu0
  %v3795 = vadd.f32 0.0, %v3794
  %v3796 = vpop.f32.mrf.mxu0
  %v3797 = vpop.f32.mrf.mxu0
  %v3798 = vadd.f32 0.0, %v3797
  %v3799 = vpop.f32.mrf.mxu0
  %3800 = vmatprep.mubr.bf16.mxu0 0
  %3801 = vmatmul.mubr.bf16.gmra.mxu0 %v3423
  %v3802 = vpop.f32.mrf.mxu0
  %v3803 = vadd.f32 0.0, %v3802
  %v3804 = vpop.f32.mrf.mxu0
  %v3805 = vpop.f32.mrf.mxu0
  %v3806 = vadd.f32 0.0, %v3805
  %v3807 = vpop.f32.mrf.mxu0
  %3808 = vmatprep.mubr.bf16.mxu0 0
  %3809 = vmatmul.mubr.bf16.gmra.mxu0 %v3426
  %v3810 = vpop.f32.mrf.mxu0
  %v3811 = vadd.f32 0.0, %v3810
  %v3812 = vpop.f32.mrf.mxu0
  %v3813 = vpop.f32.mrf.mxu0
  %v3814 = vadd.f32 0.0, %v3813
  %v3815 = vpop.f32.mrf.mxu0
  %3816 = vmatprep.mubr.bf16.mxu0 0
  %3817 = vmatmul.mubr.bf16.gmra.mxu0 %v3429
  %v3818 = vpop.f32.mrf.mxu0
  %v3819 = vadd.f32 0.0, %v3818
  %v3820 = vpop.f32.mrf.mxu0
  %v3821 = vpop.f32.mrf.mxu0
  %v3822 = vadd.f32 0.0, %v3821
  %v3823 = vpop.f32.mrf.mxu0
  %3824 = vmatprep.mubr.bf16.mxu0 0
  %3825 = vmatmul.mubr.bf16.gmra.mxu0 %v3432
  %v3826 = vpop.f32.mrf.mxu0
  %v3827 = vadd.f32 0.0, %v3826
  %v3828 = vpop.f32.mrf.mxu0
  %v3829 = vpop.f32.mrf.mxu0
  %v3830 = vadd.f32 0.0, %v3829
  %v3831 = vpop.f32.mrf.mxu0
  %3832 = vmatprep.mubr.bf16.mxu0 0
  %3833 = vmatmul.mubr.bf16.gmra.mxu0 %v3435
  %v3834 = vpop.f32.mrf.mxu0
  %v3835 = vadd.f32 0.0, %v3834
  %v3836 = vpop.f32.mrf.mxu0
  %v3837 = vpop.f32.mrf.mxu0
  %v3838 = vadd.f32 0.0, %v3837
  %v3839 = vpop.f32.mrf.mxu0
  %3840 = vmatprep.mubr.bf16.mxu0 0
  %3841 = vmatmul.mubr.bf16.gmra.mxu0 %v3438
  %v3842 = vpop.f32.mrf.mxu0
  %v3843 = vadd.f32 0.0, %v3842
  %v3844 = vpop.f32.mrf.mxu0
  %v3845 = vpop.f32.mrf.mxu0
  %v3846 = vadd.f32 0.0, %v3845
  %v3847 = vpop.f32.mrf.mxu0
  %3848 = vmatprep.mubr.bf16.mxu0 0
  %3849 = vmatmul.mubr.bf16.gmra.mxu0 %v3441
  %v3850 = vpop.f32.mrf.mxu0
  %v3851 = vadd.f32 0.0, %v3850
  %v3852 = vpop.f32.mrf.mxu0
  %v3853 = vpop.f32.mrf.mxu0
  %v3854 = vadd.f32 0.0, %v3853
  %v3855 = vpop.f32.mrf.mxu0
  %3856 = vmatprep.mubr.bf16.mxu0 0
  %3857 = vmatmul.mubr.bf16.gmra.mxu0 %v3444
  %v3858 = vpop.f32.mrf.mxu0
  %v3859 = vadd.f32 0.0, %v3858
  %v3860 = vpop.f32.mrf.mxu0
  %v3861 = vpop.f32.mrf.mxu0
  %v3862 = vadd.f32 0.0, %v3861
  %v3863 = vpop.f32.mrf.mxu0
  %3864 = vmatprep.mubr.bf16.mxu0 0
  %3865 = vmatmul.mubr.bf16.gmra.mxu0 %v3447
  %v3866 = vpop.f32.mrf.mxu0
  %v3867 = vadd.f32 0.0, %v3866
  %v3868 = vpop.f32.mrf.mxu0
  %v3869 = vpop.f32.mrf.mxu0
  %v3870 = vadd.f32 0.0, %v3869
  %v3871 = vpop.f32.mrf.mxu0
  %3872 = vmatprep.mubr.bf16.mxu0 0
  %3873 = vmatmul.mubr.bf16.gmra.mxu0 %v3450
  %v3874 = vpop.f32.mrf.mxu0
  %v3875 = vadd.f32 0.0, %v3874
  %v3876 = vpop.f32.mrf.mxu0
  %v3877 = vpop.f32.mrf.mxu0
  %v3878 = vadd.f32 0.0, %v3877
  %v3879 = vpop.f32.mrf.mxu0
  %3880 = vmatprep.mubr.bf16.mxu0 0
  %3881 = vmatmul.mubr.bf16.gmra.mxu0 %v3453
  %v3882 = vpop.f32.mrf.mxu0
  %v3883 = vadd.f32 0.0, %v3882
  %v3884 = vpop.f32.mrf.mxu0
  %v3885 = vpop.f32.mrf.mxu0
  %v3886 = vadd.f32 0.0, %v3885
  %v3887 = vpop.f32.mrf.mxu0
  %3888 = vmatprep.mubr.bf16.mxu0 0
  %3889 = vmatmul.mubr.bf16.gmra.mxu0 %v3456
  %v3890 = vpop.f32.mrf.mxu0
  %v3891 = vadd.f32 0.0, %v3890
  %v3892 = vpop.f32.mrf.mxu0
  %v3893 = vpop.f32.mrf.mxu0
  %v3894 = vadd.f32 0.0, %v3893
  %v3895 = vpop.f32.mrf.mxu0
  %3896 = vmatprep.mubr.bf16.mxu0 0
  %3897 = vmatmul.mubr.bf16.gmra.mxu0 %v3459
  %v3898 = vpop.f32.mrf.mxu0
  %v3899 = vadd.f32 0.0, %v3898
  %v3900 = vpop.f32.mrf.mxu0
  %v3901 = vpop.f32.mrf.mxu0
  %v3902 = vadd.f32 0.0, %v3901
  %v3903 = vpop.f32.mrf.mxu0
  %3904 = vmatprep.mubr.bf16.mxu0 0
  %3905 = vmatmul.mubr.bf16.gmra.mxu0 %v3462
  %v3906 = vpop.f32.mrf.mxu0
  %v3907 = vadd.f32 0.0, %v3906
  %v3908 = vpop.f32.mrf.mxu0
  %v3909 = vpop.f32.mrf.mxu0
  %v3910 = vadd.f32 0.0, %v3909
  %v3911 = vpop.f32.mrf.mxu0
  %3912 = vmatprep.mubr.bf16.mxu0 0
  %3913 = vmatmul.mubr.bf16.gmra.mxu0 %v3465
  %v3914 = vpop.f32.mrf.mxu0
  %v3915 = vadd.f32 0.0, %v3914
  %v3916 = vpop.f32.mrf.mxu0
  %v3917 = vpop.f32.mrf.mxu0
  %v3918 = vadd.f32 0.0, %v3917
  %v3919 = vpop.f32.mrf.mxu0
  %3920 = vmatprep.mubr.bf16.mxu0 0
  %3921 = vmatmul.mubr.bf16.gmra.mxu0 %v3468
  %v3922 = vpop.f32.mrf.mxu0
  %v3923 = vadd.f32 0.0, %v3922
  %v3924 = vpop.f32.mrf.mxu0
  %v3925 = vpop.f32.mrf.mxu0
  %v3926 = vadd.f32 0.0, %v3925
  %v3927 = vpop.f32.mrf.mxu0
  %3928 = vmatprep.mubr.bf16.mxu0 0
  %3929 = vmatmul.mubr.bf16.gmra.mxu0 %v3471
  %v3930 = vpop.f32.mrf.mxu0
  %v3931 = vadd.f32 0.0, %v3930
  %v3932 = vpop.f32.mrf.mxu0
  %v3933 = vpop.f32.mrf.mxu0
  %v3934 = vadd.f32 0.0, %v3933
  %v3935 = vpop.f32.mrf.mxu0
  %3936 = vmatprep.mubr.bf16.mxu0 0
  %3937 = vmatmul.mubr.bf16.gmra.mxu0 %v3474
  %v3938 = vpop.f32.mrf.mxu0
  %v3939 = vadd.f32 0.0, %v3938
  %v3940 = vpop.f32.mrf.mxu0
  %v3941 = vpop.f32.mrf.mxu0
  %v3942 = vadd.f32 0.0, %v3941
  %v3943 = vpop.f32.mrf.mxu0
  %3944 = vmatprep.mubr.bf16.mxu0 0
  %3945 = vmatmul.mubr.bf16.gmra.mxu0 %v3477
  %v3946 = vpop.f32.mrf.mxu0
  %v3947 = vadd.f32 0.0, %v3946
  %v3948 = vpop.f32.mrf.mxu0
  %v3949 = vpop.f32.mrf.mxu0
  %v3950 = vadd.f32 0.0, %v3949
  %v3951 = vpop.f32.mrf.mxu0
  %3952 = vmatprep.mubr.bf16.mxu0 0
  %3953 = vmatmul.mubr.bf16.gmra.mxu0 %v3480
  %v3954 = vpop.f32.mrf.mxu0
  %v3955 = vadd.f32 0.0, %v3954
  %v3956 = vpop.f32.mrf.mxu0
  %v3957 = vpop.f32.mrf.mxu0
  %v3958 = vadd.f32 0.0, %v3957
  %v3959 = vpop.f32.mrf.mxu0
  %3960 = vmatprep.mubr.bf16.mxu0 0
  %3961 = vmatmul.mubr.bf16.gmra.mxu0 %v3483
  %v3962 = vpop.f32.mrf.mxu0
  %v3963 = vadd.f32 0.0, %v3962
  %v3964 = vpop.f32.mrf.mxu0
  %v3965 = vpop.f32.mrf.mxu0
  %v3966 = vadd.f32 0.0, %v3965
  %v3967 = vpop.f32.mrf.mxu0
  %3968 = vmatprep.mubr.bf16.mxu0 0
  %3969 = vmatmul.mubr.bf16.gmra.mxu0 %v3486
  %v3970 = vpop.f32.mrf.mxu0
  %v3971 = vadd.f32 0.0, %v3970
  %v3972 = vpop.f32.mrf.mxu0
  %v3973 = vpop.f32.mrf.mxu0
  %v3974 = vadd.f32 0.0, %v3973
  %v3975 = vpop.f32.mrf.mxu0
  %3976 = vmatprep.mubr.bf16.mxu0 0
  %3977 = vmatmul.mubr.bf16.gmra.mxu0 %v3489
  %v3978 = vpop.f32.mrf.mxu0
  %v3979 = vadd.f32 0.0, %v3978
  %v3980 = vpop.f32.mrf.mxu0
  %v3981 = vpop.f32.mrf.mxu0
  %v3982 = vadd.f32 0.0, %v3981
  %v3983 = vpop.f32.mrf.mxu0
  %3984 = vmatprep.mubr.bf16.mxu0 0
  %3985 = vmatmul.mubr.bf16.gmra.mxu0 %v3492
  %v3986 = vpop.f32.mrf.mxu0
  %v3987 = vadd.f32 0.0, %v3986
  %v3988 = vpop.f32.mrf.mxu0
  %v3989 = vpop.f32.mrf.mxu0
  %v3990 = vadd.f32 0.0, %v3989
  %v3991 = vpop.f32.mrf.mxu0
  %3992 = vmatprep.mubr.bf16.mxu0 0
  %3993 = vmatmul.mubr.bf16.gmra.mxu0 %v3495
  %v3994 = vpop.f32.mrf.mxu0
  %v3995 = vadd.f32 0.0, %v3994
  %v3996 = vpop.f32.mrf.mxu0
  %v3997 = vpop.f32.mrf.mxu0
  %v3998 = vadd.f32 0.0, %v3997
  %v3999 = vpop.f32.mrf.mxu0
  %4000 = vmatprep.mubr.bf16.mxu0 0
  %4001 = vmatmul.mubr.bf16.gmra.mxu0 %v3498
  %v4002 = vpop.f32.mrf.mxu0
  %v4003 = vadd.f32 0.0, %v4002
  %v4004 = vpop.f32.mrf.mxu0
  %v4005 = vpop.f32.mrf.mxu0
  %v4006 = vadd.f32 0.0, %v4005
  %v4007 = vpop.f32.mrf.mxu0
  %4008 = vmatprep.mubr.bf16.mxu0 0
  %4009 = vmatmul.mubr.bf16.gmra.mxu0 %v3501
  %v4010 = vpop.f32.mrf.mxu0
  %v4011 = vadd.f32 0.0, %v4010
  %v4012 = vpop.f32.mrf.mxu0
  %v4013 = vpop.f32.mrf.mxu0
  %v4014 = vadd.f32 0.0, %v4013
  %v4015 = vpop.f32.mrf.mxu0
  %4016 = vmatprep.mubr.bf16.mxu0 0
  %4017 = vmatmul.mubr.bf16.gmra.mxu0 %v3504
  %v4018 = vpop.f32.mrf.mxu0
  %v4019 = vadd.f32 0.0, %v4018
  %v4020 = vpop.f32.mrf.mxu0
  %v4021 = vpop.f32.mrf.mxu0
  %v4022 = vadd.f32 0.0, %v4021
  %v4023 = vpop.f32.mrf.mxu0
  %4024 = vmatprep.mubr.bf16.mxu0 0
  %4025 = vmatmul.mubr.bf16.gmra.mxu0 %v3507
  %v4026 = vpop.f32.mrf.mxu0
  %v4027 = vadd.f32 0.0, %v4026
  %v4028 = vpop.f32.mrf.mxu0
  %v4029 = vpop.f32.mrf.mxu0
  %v4030 = vadd.f32 0.0, %v4029
  %v4031 = vpop.f32.mrf.mxu0
  %4032 = vmatprep.mubr.bf16.mxu0 0
  %4033 = vmatmul.mubr.bf16.gmra.mxu0 %v3510
  %v4034 = vpop.f32.mrf.mxu0
  %v4035 = vadd.f32 0.0, %v4034
  %v4036 = vpop.f32.mrf.mxu0
  %v4037 = vpop.f32.mrf.mxu0
  %v4038 = vadd.f32 0.0, %v4037
  %v4039 = vpop.f32.mrf.mxu0
  %4040 = vmatprep.mubr.bf16.mxu0 0
  %4041 = vmatmul.mubr.bf16.gmra.mxu0 %v3513
  %v4042 = vpop.f32.mrf.mxu0
  %v4043 = vadd.f32 0.0, %v4042
  %v4044 = vpop.f32.mrf.mxu0
  %v4045 = vpop.f32.mrf.mxu0
  %v4046 = vadd.f32 0.0, %v4045
  %v4047 = vpop.f32.mrf.mxu0
  %4048 = vmatprep.mubr.bf16.mxu0 0
  %4049 = vmatmul.mubr.bf16.gmra.mxu0 %v3516
  %v4050 = vpop.f32.mrf.mxu0
  %v4051 = vadd.f32 0.0, %v4050
  %v4052 = vpop.f32.mrf.mxu0
  %v4053 = vpop.f32.mrf.mxu0
  %v4054 = vadd.f32 0.0, %v4053
  %v4055 = vpop.f32.mrf.mxu0
  %4056 = vmatprep.mubr.bf16.mxu0 0
  %4057 = vmatmul.mubr.bf16.gmra.mxu0 %v3519
  %v4058 = vpop.f32.mrf.mxu0
  %v4059 = vadd.f32 0.0, %v4058
  %v4060 = vpop.f32.mrf.mxu0
  %v4061 = vpop.f32.mrf.mxu0
  %v4062 = vadd.f32 0.0, %v4061
  %v4063 = vpop.f32.mrf.mxu0
  %4064 = vmatprep.mubr.bf16.mxu0 0
  %4065 = vmatmul.mubr.bf16.gmra.mxu0 %v3522
  %v4066 = vpop.f32.mrf.mxu0
  %v4067 = vadd.f32 0.0, %v4066
  %v4068 = vpop.f32.mrf.mxu0
  %v4069 = vpop.f32.mrf.mxu0
  %v4070 = vadd.f32 0.0, %v4069
  %v4071 = vpop.f32.mrf.mxu0
  %4072 = vmatprep.mubr.bf16.mxu0 0
  %4073 = vmatmul.mubr.bf16.gmra.mxu0 %v3525
  %v4074 = vpop.f32.mrf.mxu0
  %v4075 = vadd.f32 0.0, %v4074
  %v4076 = vpop.f32.mrf.mxu0
  %v4077 = vpop.f32.mrf.mxu0
  %v4078 = vadd.f32 0.0, %v4077
  %v4079 = vpop.f32.mrf.mxu0
  %4080 = vmatprep.mubr.bf16.mxu0 0
  %4081 = vmatmul.mubr.bf16.gmra.mxu0 %v3528
  %v4082 = vpop.f32.mrf.mxu0
  %v4083 = vadd.f32 0.0, %v4082
  %v4084 = vpop.f32.mrf.mxu0
  %v4085 = vpop.f32.mrf.mxu0
  %v4086 = vadd.f32 0.0, %v4085
  %v4087 = vpop.f32.mrf.mxu0
  %4088 = vmatprep.mubr.bf16.mxu0 0
  %4089 = vmatmul.mubr.bf16.gmra.mxu0 %v3531
  %v4090 = vpop.f32.mrf.mxu0
  %v4091 = vadd.f32 0.0, %v4090
  %v4092 = vpop.f32.mrf.mxu0
  %v4093 = vpop.f32.mrf.mxu0
  %v4094 = vadd.f32 0.0, %v4093
  %v4095 = vpop.f32.mrf.mxu0
  %4096 = vmatprep.mubr.bf16.mxu0 0
  %4097 = vmatmul.mubr.bf16.gmra.mxu0 %v3534
  %v4098 = vpop.f32.mrf.mxu0
  %v4099 = vadd.f32 0.0, %v4098
  %v4100 = vpop.f32.mrf.mxu0
  %v4101 = vpop.f32.mrf.mxu0
  %v4102 = vadd.f32 0.0, %v4101
  %v4103 = vpop.f32.mrf.mxu0
  %4104 = vmatprep.mubr.bf16.mxu0 0
  %4105 = vmatmul.mubr.bf16.gmra.mxu0 %v3537
  %v4106 = vpop.f32.mrf.mxu0
  %v4107 = vadd.f32 0.0, %v4106
  %v4108 = vpop.f32.mrf.mxu0
  %v4109 = vpop.f32.mrf.mxu0
  %v4110 = vadd.f32 0.0, %v4109
  %v4111 = vpop.f32.mrf.mxu0
  %4112 = vmatprep.mubr.bf16.mxu0 0
  %4113 = vmatmul.mubr.bf16.gmra.mxu0 %v3540
  %v4114 = vpop.f32.mrf.mxu0
  %v4115 = vadd.f32 0.0, %v4114
  %v4116 = vpop.f32.mrf.mxu0
  %v4117 = vpop.f32.mrf.mxu0
  %v4118 = vadd.f32 0.0, %v4117
  %v4119 = vpop.f32.mrf.mxu0
  %4120 = vmatprep.mubr.bf16.mxu0 0
  %4121 = vmatmul.mubr.bf16.gmra.mxu0 %v3543
  %v4122 = vpop.f32.mrf.mxu0
  %v4123 = vadd.f32 0.0, %v4122
  %v4124 = vpop.f32.mrf.mxu0
  %v4125 = vpop.f32.mrf.mxu0
  %v4126 = vadd.f32 0.0, %v4125
  %v4127 = vpop.f32.mrf.mxu0
  %4128 = vmatprep.mubr.bf16.mxu0 0
  %4129 = vmatmul.mubr.bf16.gmra.mxu0 %v3546
  %v4130 = vpop.f32.mrf.mxu0
  %v4131 = vadd.f32 0.0, %v4130
  %v4132 = vpop.f32.mrf.mxu0
  %v4133 = vpop.f32.mrf.mxu0
  %v4134 = vadd.f32 0.0, %v4133
  %v4135 = vpop.f32.mrf.mxu0
  %4136 = vmatprep.mubr.bf16.mxu0 0
  %4137 = vmatmul.mubr.bf16.gmra.mxu0 %v3549
  %v4138 = vpop.f32.mrf.mxu0
  %v4139 = vadd.f32 0.0, %v4138
  %v4140 = vpop.f32.mrf.mxu0
  %v4141 = vpop.f32.mrf.mxu0
  %v4142 = vadd.f32 0.0, %v4141
  %v4143 = vpop.f32.mrf.mxu0
  %4144 = vmatprep.mubr.bf16.mxu0 0
  %4145 = vmatmul.mubr.bf16.gmra.mxu0 %v3552
  %v4146 = vpop.f32.mrf.mxu0
  %v4147 = vadd.f32 0.0, %v4146
  %v4148 = vpop.f32.mrf.mxu0
  %v4149 = vpop.f32.mrf.mxu0
  %v4150 = vadd.f32 0.0, %v4149
  %v4151 = vpop.f32.mrf.mxu0
  %4152 = vmatprep.mubr.bf16.mxu0 0
  %4153 = vmatmul.mubr.bf16.gmra.mxu0 %v3555
  %v4154 = vpop.f32.mrf.mxu0
  %v4155 = vadd.f32 0.0, %v4154
  %v4156 = vpop.f32.mrf.mxu0
  %v4157 = vpop.f32.mrf.mxu0
  %v4158 = vadd.f32 0.0, %v4157
  %v4159 = vpop.f32.mrf.mxu0
  %4160 = vmatprep.mubr.bf16.mxu0 0
  %4161 = vmatmul.mubr.bf16.gmra.mxu0 %v3558
  %v4162 = vpop.f32.mrf.mxu0
  %v4163 = vadd.f32 0.0, %v4162
  %v4164 = vpop.f32.mrf.mxu0
  %v4165 = vpop.f32.mrf.mxu0
  %v4166 = vadd.f32 0.0, %v4165
  %v4167 = vpop.f32.mrf.mxu0
  %4168 = vdwg.mxu0
  %v4169 = vmax.f32 %v2696, %v3595
  %v4170 = vmax.f32 %v2697, %v3598
  %v4171 = vmax.f32 %v2698, %v3603
  %v4172 = vmax.f32 %v2699, %v3606
  %v4173 = vmax.f32 %v2700, %v3611
  %v4174 = vmax.f32 %v2701, %v3614
  %v4175 = vmax.f32 %v2702, %v3619
  %v4176 = vmax.f32 %v2703, %v3622
  %v4177 = vmax.f32 %v2704, %v3627
  %v4178 = vmax.f32 %v2705, %v3630
  %v4179 = vmax.f32 %v2706, %v3635
  %v4180 = vmax.f32 %v2707, %v3638
  %v4181 = vmax.f32 %v2708, %v3643
  %v4182 = vmax.f32 %v2709, %v3646
  %v4183 = vmax.f32 %v2710, %v3651
  %v4184 = vmax.f32 %v2711, %v3654
  %v4185 = vmax.f32 %v2712, %v3659
  %v4186 = vmax.f32 %v2713, %v3662
  %v4187 = vmax.f32 %v2714, %v3667
  %v4188 = vmax.f32 %v2715, %v3670
  %v4189 = vmax.f32 %v2716, %v3675
  %v4190 = vmax.f32 %v2717, %v3678
  %v4191 = vmax.f32 %v2718, %v3683
  %v4192 = vmax.f32 %v2719, %v3686
  %v4193 = vmax.f32 %v2720, %v3691
  %v4194 = vmax.f32 %v2721, %v3694
  %v4195 = vmax.f32 %v2722, %v3699
  %v4196 = vmax.f32 %v2723, %v3702
  %v4197 = vmax.f32 %v2724, %v3707
  %v4198 = vmax.f32 %v2725, %v3710
  %v4199 = vmax.f32 %v2726, %v3715
  %v4200 = vmax.f32 %v2727, %v3718
  %v4201 = vmax.f32 %v2728, %v3723
  %v4202 = vmax.f32 %v2729, %v3726
  %v4203 = vmax.f32 %v2730, %v3731
  %v4204 = vmax.f32 %v2731, %v3734
  %v4205 = vmax.f32 %v2732, %v3739
  %v4206 = vmax.f32 %v2733, %v3742
  %v4207 = vmax.f32 %v2734, %v3747
  %v4208 = vmax.f32 %v2735, %v3750
  %v4209 = vmax.f32 %v2736, %v3755
  %v4210 = vmax.f32 %v2737, %v3758
  %v4211 = vmax.f32 %v2738, %v3763
  %v4212 = vmax.f32 %v2739, %v3766
  %v4213 = vmax.f32 %v2740, %v3771
  %v4214 = vmax.f32 %v2741, %v3774
  %v4215 = vmax.f32 %v2742, %v3779
  %v4216 = vmax.f32 %v2743, %v3782
  %v4217 = vmax.f32 %v2744, %v3787
  %v4218 = vmax.f32 %v2745, %v3790
  %v4219 = vmax.f32 %v2746, %v3795
  %v4220 = vmax.f32 %v2747, %v3798
  %v4221 = vmax.f32 %v2748, %v3803
  %v4222 = vmax.f32 %v2749, %v3806
  %v4223 = vmax.f32 %v2750, %v3811
  %v4224 = vmax.f32 %v2751, %v3814
  %v4225 = vmax.f32 %v2752, %v3819
  %v4226 = vmax.f32 %v2753, %v3822
  %v4227 = vmax.f32 %v2754, %v3827
  %v4228 = vmax.f32 %v2755, %v3830
  %v4229 = vmax.f32 %v2756, %v3835
  %v4230 = vmax.f32 %v2757, %v3838
  %v4231 = vmax.f32 %v2758, %v3843
  %v4232 = vmax.f32 %v2759, %v3846
  %v4233 = vmax.f32 %v2760, %v3851
  %v4234 = vmax.f32 %v2761, %v3854
  %v4235 = vmax.f32 %v2762, %v3859
  %v4236 = vmax.f32 %v2763, %v3862
  %v4237 = vmax.f32 %v2764, %v3867
  %v4238 = vmax.f32 %v2765, %v3870
  %v4239 = vmax.f32 %v2766, %v3875
  %v4240 = vmax.f32 %v2767, %v3878
  %v4241 = vmax.f32 %v2768, %v3883
  %v4242 = vmax.f32 %v2769, %v3886
  %v4243 = vmax.f32 %v2770, %v3891
  %v4244 = vmax.f32 %v2771, %v3894
  %v4245 = vmax.f32 %v2772, %v3899
  %v4246 = vmax.f32 %v2773, %v3902
  %v4247 = vmax.f32 %v2774, %v3907
  %v4248 = vmax.f32 %v2775, %v3910
  %v4249 = vmax.f32 %v2776, %v3915
  %v4250 = vmax.f32 %v2777, %v3918
  %v4251 = vmax.f32 %v2778, %v3923
  %v4252 = vmax.f32 %v2779, %v3926
  %v4253 = vmax.f32 %v2780, %v3931
  %v4254 = vmax.f32 %v2781, %v3934
  %v4255 = vmax.f32 %v2782, %v3939
  %v4256 = vmax.f32 %v2783, %v3942
  %v4257 = vmax.f32 %v2784, %v3947
  %v4258 = vmax.f32 %v2785, %v3950
  %v4259 = vmax.f32 %v2786, %v3955
  %v4260 = vmax.f32 %v2787, %v3958
  %v4261 = vmax.f32 %v2788, %v3963
  %v4262 = vmax.f32 %v2789, %v3966
  %v4263 = vmax.f32 %v2790, %v3971
  %v4264 = vmax.f32 %v2791, %v3974
  %v4265 = vmax.f32 %v2792, %v3979
  %v4266 = vmax.f32 %v2793, %v3982
  %v4267 = vmax.f32 %v2794, %v3987
  %v4268 = vmax.f32 %v2795, %v3990
  %v4269 = vmax.f32 %v2796, %v3995
  %v4270 = vmax.f32 %v2797, %v3998
  %v4271 = vmax.f32 %v2798, %v4003
  %v4272 = vmax.f32 %v2799, %v4006
  %v4273 = vmax.f32 %v2800, %v4011
  %v4274 = vmax.f32 %v2801, %v4014
  %v4275 = vmax.f32 %v2802, %v4019
  %v4276 = vmax.f32 %v2803, %v4022
  %v4277 = vmax.f32 %v2804, %v4027
  %v4278 = vmax.f32 %v2805, %v4030
  %v4279 = vmax.f32 %v2806, %v4035
  %v4280 = vmax.f32 %v2807, %v4038
  %v4281 = vmax.f32 %v2808, %v4043
  %v4282 = vmax.f32 %v2809, %v4046
  %v4283 = vmax.f32 %v2810, %v4051
  %v4284 = vmax.f32 %v2811, %v4054
  %v4285 = vmax.f32 %v2812, %v4059
  %v4286 = vmax.f32 %v2813, %v4062
  %v4287 = vmax.f32 %v2814, %v4067
  %v4288 = vmax.f32 %v2815, %v4070
  %v4289 = vmax.f32 %v2816, %v4075
  %v4290 = vmax.f32 %v2817, %v4078
  %v4291 = vmax.f32 %v2818, %v4083
  %v4292 = vmax.f32 %v2819, %v4086
  %v4293 = vmax.f32 %v2820, %v4091
  %v4294 = vmax.f32 %v2821, %v4094
  %v4295 = vmax.f32 %v2822, %v4099
  %v4296 = vmax.f32 %v2823, %v4102
  %v4297 = vmax.f32 %v2824, %v4107
  %v4298 = vmax.f32 %v2825, %v4110
  %v4299 = vmax.f32 %v2826, %v4115
  %v4300 = vmax.f32 %v2827, %v4118
  %v4301 = vmax.f32 %v2828, %v4123
  %v4302 = vmax.f32 %v2829, %v4126
  %v4303 = vmax.f32 %v2830, %v4131
  %v4304 = vmax.f32 %v2831, %v4134
  %v4305 = vmax.f32 %v2832, %v4139
  %v4306 = vmax.f32 %v2833, %v4142
  %v4307 = vmax.f32 %v2834, %v4147
  %v4308 = vmax.f32 %v2835, %v4150
  %v4309 = vmax.f32 %v2836, %v4155
  %v4310 = vmax.f32 %v2837, %v4158
  %v4311 = vmax.f32 %v2838, %v4163
  %v4312 = vmax.f32 %v2839, %v4166
  %v4313 = vld [vmem:[%s0 + $0xd8] sm:$0xf]
  %v4314 = vld [vmem:[%s0 + $0xdc] sm:$0xf]
  %v4315 = vld [vmem:[%s0 + $0xe0] sm:$0xf]
  %v4316 = vld [vmem:[%s0 + $0xe4] sm:$0xf]
  %v4317 = vld [vmem:[%s0 + $0xe8] sm:$0xf]
  %v4318 = vld [vmem:[%s0 + $0xec] sm:$0xf]
  %v4319 = vld [vmem:[%s0 + $0xf0] sm:$0xf]
  %v4320 = vld [vmem:[%s0 + $0xf4] sm:$0xf]
  %v4321 = vld [vmem:[%s0 + $0xf8] sm:$0xf]
  %v4322 = vld [vmem:[%s0 + $0xfc] sm:$0xf]
  %v4323 = vld [vmem:[%s0 + $0x100] sm:$0xf]
  %v4324 = vld [vmem:[%s0 + $0x104] sm:$0xf]
  %v4325 = vld [vmem:[%s0 + $0x108] sm:$0xf]
  %v4326 = vld [vmem:[%s0 + $0x10c] sm:$0xf]
  %v4327 = vld [vmem:[%s0 + $0x110] sm:$0xf]
  %v4328 = vld [vmem:[%s0 + $0x114] sm:$0xf]
  %v4329 = vld [vmem:[%s0 + $0x118] sm:$0xf]
  %v4330 = vld [vmem:[%s0 + $0x11c] sm:$0xf]
  %v4331 = vld [vmem:[%s0 + $0x1f8] sm:$0xf]
  %v4332 = vld [vmem:[%s0 + $0x1fc] sm:$0xf]
  %v4333 = vld [vmem:[%s0 + $0x200] sm:$0xf]
  %v4334 = vld [vmem:[%s0 + $0x204] sm:$0xf]
  %v4335 = vld [vmem:[%s0 + $0x208] sm:$0xf]
  %v4336 = vld [vmem:[%s0 + $0x20c] sm:$0xf]
  %v4337 = vld [vmem:[%s0 + $0x210] sm:$0xf]
  %v4338 = vld [vmem:[%s0 + $0x214] sm:$0xf]
  %v4339 = vld [vmem:[%s0 + $0x218] sm:$0xf]
  %v4340 = vld [vmem:[%s0 + $0x21c] sm:$0xf]
  %v4341 = vld [vmem:[%s0 + $0x220] sm:$0xf]
  %v4342 = vld [vmem:[%s0 + $0x224] sm:$0xf]
  %v4343 = vld [vmem:[%s0 + $0x228] sm:$0xf]
  %v4344 = vld [vmem:[%s0 + $0x22c] sm:$0xf]
  %v4345 = vld [vmem:[%s0 + $0x230] sm:$0xf]
  %v4346 = vld [vmem:[%s0 + $0x234] sm:$0xf]
  %v4347 = vld [vmem:[%s0 + $0x238] sm:$0xf]
  %v4348 = vld [vmem:[%s0 + $0x23c] sm:$0xf]
  %v4349 = vld [vmem:[%s0 + $0x318] sm:$0xf]
  %v4350 = vld [vmem:[%s0 + $0x31c] sm:$0xf]
  %v4351 = vld [vmem:[%s0 + $0x320] sm:$0xf]
  %v4352 = vld [vmem:[%s0 + $0x324] sm:$0xf]
  %v4353 = vld [vmem:[%s0 + $0x328] sm:$0xf]
  %v4354 = vld [vmem:[%s0 + $0x32c] sm:$0xf]
  %v4355 = vld [vmem:[%s0 + $0x330] sm:$0xf]
  %v4356 = vld [vmem:[%s0 + $0x334] sm:$0xf]
  %v4357 = vld [vmem:[%s0 + $0x338] sm:$0xf]
  %v4358 = vld [vmem:[%s0 + $0x33c] sm:$0xf]
  %v4359 = vld [vmem:[%s0 + $0x340] sm:$0xf]
  %v4360 = vld [vmem:[%s0 + $0x344] sm:$0xf]
  %v4361 = vld [vmem:[%s0 + $0x348] sm:$0xf]
  %v4362 = vld [vmem:[%s0 + $0x34c] sm:$0xf]
  %v4363 = vld [vmem:[%s0 + $0x350] sm:$0xf]
  %v4364 = vld [vmem:[%s0 + $0x354] sm:$0xf]
  %v4365 = vld [vmem:[%s0 + $0x358] sm:$0xf]
  %v4366 = vld [vmem:[%s0 + $0x35c] sm:$0xf]
  %v4367 = vld [vmem:[%s0 + $0x438] sm:$0xf]
  %v4368 = vld [vmem:[%s0 + $0x43c] sm:$0xf]
  %v4369 = vld [vmem:[%s0 + $0x440] sm:$0xf]
  %v4370 = vld [vmem:[%s0 + $0x444] sm:$0xf]
  %v4371 = vld [vmem:[%s0 + $0x448] sm:$0xf]
  %v4372 = vld [vmem:[%s0 + $0x44c] sm:$0xf]
  %v4373 = vld [vmem:[%s0 + $0x450] sm:$0xf]
  %v4374 = vld [vmem:[%s0 + $0x454] sm:$0xf]
  %v4375 = vld [vmem:[%s0 + $0x458] sm:$0xf]
  %v4376 = vld [vmem:[%s0 + $0x45c] sm:$0xf]
  %v4377 = vld [vmem:[%s0 + $0x460] sm:$0xf]
  %v4378 = vld [vmem:[%s0 + $0x464] sm:$0xf]
  %v4379 = vld [vmem:[%s0 + $0x468] sm:$0xf]
  %v4380 = vld [vmem:[%s0 + $0x46c] sm:$0xf]
  %v4381 = vld [vmem:[%s0 + $0x470] sm:$0xf]
  %v4382 = vld [vmem:[%s0 + $0x474] sm:$0xf]
  %v4383 = vld [vmem:[%s0 + $0x478] sm:$0xf]
  %v4384 = vld [vmem:[%s0 + $0x47c] sm:$0xf]
  %v4385 = vld [vmem:[%s0 + $0x558] sm:$0xf]
  %v4386 = vld [vmem:[%s0 + $0x55c] sm:$0xf]
  %v4387 = vld [vmem:[%s0 + $0x560] sm:$0xf]
  %v4388 = vld [vmem:[%s0 + $0x564] sm:$0xf]
  %v4389 = vld [vmem:[%s0 + $0x568] sm:$0xf]
  %v4390 = vld [vmem:[%s0 + $0x56c] sm:$0xf]
  %v4391 = vld [vmem:[%s0 + $0x570] sm:$0xf]
  %v4392 = vld [vmem:[%s0 + $0x574] sm:$0xf]
  %v4393 = vld [vmem:[%s0 + $0x578] sm:$0xf]
  %v4394 = vld [vmem:[%s0 + $0x57c] sm:$0xf]
  %v4395 = vld [vmem:[%s0 + $0x580] sm:$0xf]
  %v4396 = vld [vmem:[%s0 + $0x584] sm:$0xf]
  %v4397 = vld [vmem:[%s0 + $0x588] sm:$0xf]
  %v4398 = vld [vmem:[%s0 + $0x58c] sm:$0xf]
  %v4399 = vld [vmem:[%s0 + $0x590] sm:$0xf]
  %v4400 = vld [vmem:[%s0 + $0x594] sm:$0xf]
  %v4401 = vld [vmem:[%s0 + $0x598] sm:$0xf]
  %v4402 = vld [vmem:[%s0 + $0x59c] sm:$0xf]
  %v4403 = vld [vmem:[%s0 + $0x678] sm:$0xf]
  %v4404 = vld [vmem:[%s0 + $0x67c] sm:$0xf]
  %v4405 = vld [vmem:[%s0 + $0x680] sm:$0xf]
  %v4406 = vld [vmem:[%s0 + $0x684] sm:$0xf]
  %v4407 = vld [vmem:[%s0 + $0x688] sm:$0xf]
  %v4408 = vld [vmem:[%s0 + $0x68c] sm:$0xf]
  %v4409 = vld [vmem:[%s0 + $0x690] sm:$0xf]
  %v4410 = vld [vmem:[%s0 + $0x694] sm:$0xf]
  %v4411 = vld [vmem:[%s0 + $0x698] sm:$0xf]
  %v4412 = vld [vmem:[%s0 + $0x69c] sm:$0xf]
  %v4413 = vld [vmem:[%s0 + $0x6a0] sm:$0xf]
  %v4414 = vld [vmem:[%s0 + $0x6a4] sm:$0xf]
  %v4415 = vld [vmem:[%s0 + $0x6a8] sm:$0xf]
  %v4416 = vld [vmem:[%s0 + $0x6ac] sm:$0xf]
  %v4417 = vld [vmem:[%s0 + $0x6b0] sm:$0xf]
  %v4418 = vld [vmem:[%s0 + $0x6b4] sm:$0xf]
  %v4419 = vld [vmem:[%s0 + $0x6b8] sm:$0xf]
  %v4420 = vld [vmem:[%s0 + $0x6bc] sm:$0xf]
  %v4421 = vld [vmem:[%s0 + $0x798] sm:$0xf]
  %v4422 = vld [vmem:[%s0 + $0x79c] sm:$0xf]
  %v4423 = vld [vmem:[%s0 + $0x7a0] sm:$0xf]
  %v4424 = vld [vmem:[%s0 + $0x7a4] sm:$0xf]
  %v4425 = vld [vmem:[%s0 + $0x7a8] sm:$0xf]
  %v4426 = vld [vmem:[%s0 + $0x7ac] sm:$0xf]
  %v4427 = vld [vmem:[%s0 + $0x7b0] sm:$0xf]
  %v4428 = vld [vmem:[%s0 + $0x7b4] sm:$0xf]
  %v4429 = vld [vmem:[%s0 + $0x7b8] sm:$0xf]
  %v4430 = vld [vmem:[%s0 + $0x7bc] sm:$0xf]
  %v4431 = vld [vmem:[%s0 + $0x7c0] sm:$0xf]
  %v4432 = vld [vmem:[%s0 + $0x7c4] sm:$0xf]
  %v4433 = vld [vmem:[%s0 + $0x7c8] sm:$0xf]
  %v4434 = vld [vmem:[%s0 + $0x7cc] sm:$0xf]
  %v4435 = vld [vmem:[%s0 + $0x7d0] sm:$0xf]
  %v4436 = vld [vmem:[%s0 + $0x7d4] sm:$0xf]
  %v4437 = vld [vmem:[%s0 + $0x7d8] sm:$0xf]
  %v4438 = vld [vmem:[%s0 + $0x7dc] sm:$0xf]
  %v4439 = vld [vmem:[%s0 + $0x8b8] sm:$0xf]
  %v4440 = vld [vmem:[%s0 + $0x8bc] sm:$0xf]
  %v4441 = vld [vmem:[%s0 + $0x8c0] sm:$0xf]
  %v4442 = vld [vmem:[%s0 + $0x8c4] sm:$0xf]
  %v4443 = vld [vmem:[%s0 + $0x8c8] sm:$0xf]
  %v4444 = vld [vmem:[%s0 + $0x8cc] sm:$0xf]
  %v4445 = vld [vmem:[%s0 + $0x8d0] sm:$0xf]
  %v4446 = vld [vmem:[%s0 + $0x8d4] sm:$0xf]
  %v4447 = vld [vmem:[%s0 + $0x8d8] sm:$0xf]
  %v4448 = vld [vmem:[%s0 + $0x8dc] sm:$0xf]
  %v4449 = vld [vmem:[%s0 + $0x8e0] sm:$0xf]
  %v4450 = vld [vmem:[%s0 + $0x8e4] sm:$0xf]
  %v4451 = vld [vmem:[%s0 + $0x8e8] sm:$0xf]
  %v4452 = vld [vmem:[%s0 + $0x8ec] sm:$0xf]
  %v4453 = vld [vmem:[%s0 + $0x8f0] sm:$0xf]
  %v4454 = vld [vmem:[%s0 + $0x8f4] sm:$0xf]
  %v4455 = vld [vmem:[%s0 + $0x8f8] sm:$0xf]
  %v4456 = vld [vmem:[%s0 + $0x8fc] sm:$0xf]
  %v4601 = vunpack.c.l.b16 %v4313
  %v4602 = vunpack.c.l.b16 %v4314
  %v4603 = vunpack.c.l.b16 %v4315
  %v4604 = vunpack.c.l.b16 %v4316
  %v4605 = vunpack.c.l.b16 %v4317
  %v4606 = vunpack.c.l.b16 %v4318
  %v4607 = vunpack.c.l.b16 %v4319
  %v4608 = vunpack.c.l.b16 %v4320
  %v4609 = vunpack.c.l.b16 %v4321
  %v4610 = vunpack.c.l.b16 %v4322
  %v4611 = vunpack.c.l.b16 %v4323
  %v4612 = vunpack.c.l.b16 %v4324
  %v4613 = vunpack.c.l.b16 %v4325
  %v4614 = vunpack.c.l.b16 %v4326
  %v4615 = vunpack.c.l.b16 %v4327
  %v4616 = vunpack.c.l.b16 %v4328
  %v4617 = vunpack.c.l.b16 %v4329
  %v4618 = vunpack.c.l.b16 %v4330
  %v4619 = vunpack.c.l.b16 %v4331
  %v4620 = vunpack.c.l.b16 %v4332
  %v4621 = vunpack.c.l.b16 %v4333
  %v4622 = vunpack.c.l.b16 %v4334
  %v4623 = vunpack.c.l.b16 %v4335
  %v4624 = vunpack.c.l.b16 %v4336
  %v4625 = vunpack.c.l.b16 %v4337
  %v4626 = vunpack.c.l.b16 %v4338
  %v4627 = vunpack.c.l.b16 %v4339
  %v4628 = vunpack.c.l.b16 %v4340
  %v4629 = vunpack.c.l.b16 %v4341
  %v4630 = vunpack.c.l.b16 %v4342
  %v4631 = vunpack.c.l.b16 %v4343
  %v4632 = vunpack.c.l.b16 %v4344
  %v4633 = vunpack.c.l.b16 %v4345
  %v4634 = vunpack.c.l.b16 %v4346
  %v4635 = vunpack.c.l.b16 %v4347
  %v4636 = vunpack.c.l.b16 %v4348
  %v4637 = vunpack.c.l.b16 %v4349
  %v4638 = vunpack.c.l.b16 %v4350
  %v4639 = vunpack.c.l.b16 %v4351
  %v4640 = vunpack.c.l.b16 %v4352
  %v4641 = vunpack.c.l.b16 %v4353
  %v4642 = vunpack.c.l.b16 %v4354
  %v4643 = vunpack.c.l.b16 %v4355
  %v4644 = vunpack.c.l.b16 %v4356
  %v4645 = vunpack.c.l.b16 %v4357
  %v4646 = vunpack.c.l.b16 %v4358
  %v4647 = vunpack.c.l.b16 %v4359
  %v4648 = vunpack.c.l.b16 %v4360
  %v4649 = vunpack.c.l.b16 %v4361
  %v4650 = vunpack.c.l.b16 %v4362
  %v4651 = vunpack.c.l.b16 %v4363
  %v4652 = vunpack.c.l.b16 %v4364
  %v4653 = vunpack.c.l.b16 %v4365
  %v4654 = vunpack.c.l.b16 %v4366
  %v4655 = vunpack.c.l.b16 %v4367
  %v4656 = vunpack.c.l.b16 %v4368
  %v4657 = vunpack.c.l.b16 %v4369
  %v4658 = vunpack.c.l.b16 %v4370
  %v4659 = vunpack.c.l.b16 %v4371
  %v4660 = vunpack.c.l.b16 %v4372
  %v4661 = vunpack.c.l.b16 %v4373
  %v4662 = vunpack.c.l.b16 %v4374
  %v4663 = vunpack.c.l.b16 %v4375
  %v4664 = vunpack.c.l.b16 %v4376
  %v4665 = vunpack.c.l.b16 %v4377
  %v4666 = vunpack.c.l.b16 %v4378
  %v4667 = vunpack.c.l.b16 %v4379
  %v4668 = vunpack.c.l.b16 %v4380
  %v4669 = vunpack.c.l.b16 %v4381
  %v4670 = vunpack.c.l.b16 %v4382
  %v4671 = vunpack.c.l.b16 %v4383
  %v4672 = vunpack.c.l.b16 %v4384
  %v4673 = vunpack.c.l.b16 %v4385
  %v4674 = vunpack.c.l.b16 %v4386
  %v4675 = vunpack.c.l.b16 %v4387
  %v4676 = vunpack.c.l.b16 %v4388
  %v4677 = vunpack.c.l.b16 %v4389
  %v4678 = vunpack.c.l.b16 %v4390
  %v4679 = vunpack.c.l.b16 %v4391
  %v4680 = vunpack.c.l.b16 %v4392
  %v4681 = vunpack.c.l.b16 %v4393
  %v4682 = vunpack.c.l.b16 %v4394
  %v4683 = vunpack.c.l.b16 %v4395
  %v4684 = vunpack.c.l.b16 %v4396
  %v4685 = vunpack.c.l.b16 %v4397
  %v4686 = vunpack.c.l.b16 %v4398
  %v4687 = vunpack.c.l.b16 %v4399
  %v4688 = vunpack.c.l.b16 %v4400
  %v4689 = vunpack.c.l.b16 %v4401
  %v4690 = vunpack.c.l.b16 %v4402
  %v4691 = vunpack.c.l.b16 %v4403
  %v4692 = vunpack.c.l.b16 %v4404
  %v4693 = vunpack.c.l.b16 %v4405
  %v4694 = vunpack.c.l.b16 %v4406
  %v4695 = vunpack.c.l.b16 %v4407
  %v4696 = vunpack.c.l.b16 %v4408
  %v4697 = vunpack.c.l.b16 %v4409
  %v4698 = vunpack.c.l.b16 %v4410
  %v4699 = vunpack.c.l.b16 %v4411
  %v4700 = vunpack.c.l.b16 %v4412
  %v4701 = vunpack.c.l.b16 %v4413
  %v4702 = vunpack.c.l.b16 %v4414
  %v4703 = vunpack.c.l.b16 %v4415
  %v4704 = vunpack.c.l.b16 %v4416
  %v4705 = vunpack.c.l.b16 %v4417
  %v4706 = vunpack.c.l.b16 %v4418
  %v4707 = vunpack.c.l.b16 %v4419
  %v4708 = vunpack.c.l.b16 %v4420
  %v4709 = vunpack.c.l.b16 %v4421
  %v4710 = vunpack.c.l.b16 %v4422
  %v4711 = vunpack.c.l.b16 %v4423
  %v4712 = vunpack.c.l.b16 %v4424
  %v4713 = vunpack.c.l.b16 %v4425
  %v4714 = vunpack.c.l.b16 %v4426
  %v4715 = vunpack.c.l.b16 %v4427
  %v4716 = vunpack.c.l.b16 %v4428
  %v4717 = vunpack.c.l.b16 %v4429
  %v4718 = vunpack.c.l.b16 %v4430
  %v4719 = vunpack.c.l.b16 %v4431
  %v4720 = vunpack.c.l.b16 %v4432
  %v4721 = vunpack.c.l.b16 %v4433
  %v4722 = vunpack.c.l.b16 %v4434
  %v4723 = vunpack.c.l.b16 %v4435
  %v4724 = vunpack.c.l.b16 %v4436
  %v4725 = vunpack.c.l.b16 %v4437
  %v4726 = vunpack.c.l.b16 %v4438
  %v4727 = vunpack.c.l.b16 %v4439
  %v4728 = vunpack.c.l.b16 %v4440
  %v4729 = vunpack.c.l.b16 %v4441
  %v4730 = vunpack.c.l.b16 %v4442
  %v4731 = vunpack.c.l.b16 %v4443
  %v4732 = vunpack.c.l.b16 %v4444
  %v4733 = vunpack.c.l.b16 %v4445
  %v4734 = vunpack.c.l.b16 %v4446
  %v4735 = vunpack.c.l.b16 %v4447
  %v4736 = vunpack.c.l.b16 %v4448
  %v4737 = vunpack.c.l.b16 %v4449
  %v4738 = vunpack.c.l.b16 %v4450
  %v4739 = vunpack.c.l.b16 %v4451
  %v4740 = vunpack.c.l.b16 %v4452
  %v4741 = vunpack.c.l.b16 %v4453
  %v4742 = vunpack.c.l.b16 %v4454
  %v4743 = vunpack.c.l.b16 %v4455
  %v4744 = vunpack.c.l.b16 %v4456
  %v4745 = vpack.c.b16 %v4602, %v4601
  %v4746 = vpack.c.b16 %v4604, %v4603
  %v4747 = vpack.c.b16 %v4606, %v4605
  %v4748 = vpack.c.b16 %v4608, %v4607
  %v4749 = vpack.c.b16 %v4610, %v4609
  %v4750 = vpack.c.b16 %v4612, %v4611
  %v4751 = vpack.c.b16 %v4614, %v4613
  %v4752 = vpack.c.b16 %v4616, %v4615
  %v4753 = vpack.c.b16 %v4618, %v4617
  %v4754 = vpack.c.b16 %v4620, %v4619
  %v4755 = vpack.c.b16 %v4622, %v4621
  %v4756 = vpack.c.b16 %v4624, %v4623
  %v4757 = vpack.c.b16 %v4626, %v4625
  %v4758 = vpack.c.b16 %v4628, %v4627
  %v4759 = vpack.c.b16 %v4630, %v4629
  %v4760 = vpack.c.b16 %v4632, %v4631
  %v4761 = vpack.c.b16 %v4634, %v4633
  %v4762 = vpack.c.b16 %v4636, %v4635
  %v4763 = vpack.c.b16 %v4638, %v4637
  %v4764 = vpack.c.b16 %v4640, %v4639
  %v4765 = vpack.c.b16 %v4642, %v4641
  %v4766 = vpack.c.b16 %v4644, %v4643
  %v4767 = vpack.c.b16 %v4646, %v4645
  %v4768 = vpack.c.b16 %v4648, %v4647
  %v4769 = vpack.c.b16 %v4650, %v4649
  %v4770 = vpack.c.b16 %v4652, %v4651
  %v4771 = vpack.c.b16 %v4654, %v4653
  %v4772 = vpack.c.b16 %v4656, %v4655
  %v4773 = vpack.c.b16 %v4658, %v4657
  %v4774 = vpack.c.b16 %v4660, %v4659
  %v4775 = vpack.c.b16 %v4662, %v4661
  %v4776 = vpack.c.b16 %v4664, %v4663
  %v4777 = vpack.c.b16 %v4666, %v4665
  %v4778 = vpack.c.b16 %v4668, %v4667
  %v4779 = vpack.c.b16 %v4670, %v4669
  %v4780 = vpack.c.b16 %v4672, %v4671
  %v4781 = vpack.c.b16 %v4674, %v4673
  %v4782 = vpack.c.b16 %v4676, %v4675
  %v4783 = vpack.c.b16 %v4678, %v4677
  %v4784 = vpack.c.b16 %v4680, %v4679
  %v4785 = vpack.c.b16 %v4682, %v4681
  %v4786 = vpack.c.b16 %v4684, %v4683
  %v4787 = vpack.c.b16 %v4686, %v4685
  %v4788 = vpack.c.b16 %v4688, %v4687
  %v4789 = vpack.c.b16 %v4690, %v4689
  %v4790 = vpack.c.b16 %v4692, %v4691
  %v4791 = vpack.c.b16 %v4694, %v4693
  %v4792 = vpack.c.b16 %v4696, %v4695
  %v4793 = vpack.c.b16 %v4698, %v4697
  %v4794 = vpack.c.b16 %v4700, %v4699
  %v4795 = vpack.c.b16 %v4702, %v4701
  %v4796 = vpack.c.b16 %v4704, %v4703
  %v4797 = vpack.c.b16 %v4706, %v4705
  %v4798 = vpack.c.b16 %v4708, %v4707
  %v4799 = vpack.c.b16 %v4710, %v4709
  %v4800 = vpack.c.b16 %v4712, %v4711
  %v4801 = vpack.c.b16 %v4714, %v4713
  %v4802 = vpack.c.b16 %v4716, %v4715
  %v4803 = vpack.c.b16 %v4718, %v4717
  %v4804 = vpack.c.b16 %v4720, %v4719
  %v4805 = vpack.c.b16 %v4722, %v4721
  %v4806 = vpack.c.b16 %v4724, %v4723
  %v4807 = vpack.c.b16 %v4726, %v4725
  %v4808 = vpack.c.b16 %v4728, %v4727
  %v4809 = vpack.c.b16 %v4730, %v4729
  %v4810 = vpack.c.b16 %v4732, %v4731
  %v4811 = vpack.c.b16 %v4734, %v4733
  %v4812 = vpack.c.b16 %v4736, %v4735
  %v4813 = vpack.c.b16 %v4738, %v4737
  %v4814 = vpack.c.b16 %v4740, %v4739
  %v4815 = vpack.c.b16 %v4742, %v4741
  %v4816 = vpack.c.b16 %v4744, %v4743
  %v4818 = vsel %vm534, %v4745, 0
  %v4821 = vsel %vm534, %v4746, 0
  %v4824 = vsel %vm534, %v4747, 0
  %v4827 = vsel %vm534, %v4748, 0
  %v4830 = vsel %vm534, %v4749, 0
  %v4833 = vsel %vm534, %v4750, 0
  %v4836 = vsel %vm534, %v4751, 0
  %v4839 = vsel %vm534, %v4752, 0
  %v4842 = vsel %vm534, %v4753, 0
  %v4845 = vsel %vm534, %v4754, 0
  %v4848 = vsel %vm534, %v4755, 0
  %v4851 = vsel %vm534, %v4756, 0
  %v4854 = vsel %vm534, %v4757, 0
  %v4857 = vsel %vm534, %v4758, 0
  %v4860 = vsel %vm534, %v4759, 0
  %v4863 = vsel %vm534, %v4760, 0
  %v4866 = vsel %vm534, %v4761, 0
  %v4869 = vsel %vm534, %v4762, 0
  %v4872 = vsel %vm534, %v4763, 0
  %v4875 = vsel %vm534, %v4764, 0
  %v4878 = vsel %vm534, %v4765, 0
  %v4881 = vsel %vm534, %v4766, 0
  %v4884 = vsel %vm534, %v4767, 0
  %v4887 = vsel %vm534, %v4768, 0
  %v4890 = vsel %vm534, %v4769, 0
  %v4893 = vsel %vm534, %v4770, 0
  %v4896 = vsel %vm534, %v4771, 0
  %v4899 = vsel %vm534, %v4772, 0
  %v4902 = vsel %vm534, %v4773, 0
  %v4905 = vsel %vm534, %v4774, 0
  %v4908 = vsel %vm534, %v4775, 0
  %v4911 = vsel %vm534, %v4776, 0
  %v4914 = vsel %vm534, %v4777, 0
  %v4917 = vsel %vm534, %v4778, 0
  %v4920 = vsel %vm534, %v4779, 0
  %v4923 = vsel %vm534, %v4780, 0
  %v4926 = vsel %vm534, %v4781, 0
  %v4929 = vsel %vm534, %v4782, 0
  %v4932 = vsel %vm534, %v4783, 0
  %v4935 = vsel %vm534, %v4784, 0
  %v4938 = vsel %vm534, %v4785, 0
  %v4941 = vsel %vm534, %v4786, 0
  %v4944 = vsel %vm534, %v4787, 0
  %v4947 = vsel %vm534, %v4788, 0
  %v4950 = vsel %vm534, %v4789, 0
  %v4953 = vsel %vm534, %v4790, 0
  %v4956 = vsel %vm534, %v4791, 0
  %v4959 = vsel %vm534, %v4792, 0
  %v4962 = vsel %vm534, %v4793, 0
  %v4965 = vsel %vm534, %v4794, 0
  %v4968 = vsel %vm534, %v4795, 0
  %v4971 = vsel %vm534, %v4796, 0
  %v4974 = vsel %vm534, %v4797, 0
  %v4977 = vsel %vm534, %v4798, 0
  %v4980 = vsel %vm534, %v4799, 0
  %v4983 = vsel %vm534, %v4800, 0
  %v4986 = vsel %vm534, %v4801, 0
  %v4989 = vsel %vm534, %v4802, 0
  %v4992 = vsel %vm534, %v4803, 0
  %v4995 = vsel %vm534, %v4804, 0
  %v4998 = vsel %vm534, %v4805, 0
  %v5001 = vsel %vm534, %v4806, 0
  %v5004 = vsel %vm534, %v4807, 0
  %v5007 = vsel %vm534, %v4808, 0
  %v5010 = vsel %vm534, %v4809, 0
  %v5013 = vsel %vm534, %v4810, 0
  %v5016 = vsel %vm534, %v4811, 0
  %v5019 = vsel %vm534, %v4812, 0
  %v5022 = vsel %vm534, %v4813, 0
  %v5025 = vsel %vm534, %v4814, 0
  %v5028 = vsel %vm534, %v4815, 0
  %v5031 = vsel %vm534, %v4816, 0
  %5033 = vmatprep.subr.bf16.mxu0 0
  %5034 = vmatpush1.bf16.msra.mxu0 0
  %5035 = vmatprep.subr.bf16.mxu0 0
  %5036 = vmatpush1.bf16.msra.mxu0 0
  %5037 = vmatprep.subr.bf16.mxu0 0
  %5038 = vmatpush1.bf16.msra.mxu0 0
  %5039 = vmatprep.subr.bf16.mxu0 0
  %5040 = vmatpush1.bf16.msra.mxu0 0
  %5041 = vmatprep.subr.bf16.mxu0 0
  %5042 = vmatpush1.bf16.msra.mxu0 0
  %5043 = vmatprep.subr.bf16.mxu0 0
  %5044 = vmatpush1.bf16.msra.mxu0 0
  %5045 = vmatprep.subr.bf16.mxu0 0
  %5046 = vmatpush1.bf16.msra.mxu0 %v756
  %5047 = vmatprep.subr.bf16.mxu0 0
  %5048 = vmatpush1.bf16.msra.mxu0 %v531
  %5049 = vmatprep.subr.bf16.mxu0 0
  %5050 = vmatpush2.bf16.msra.mxu0 0
  %5051 = vmatprep.subr.bf16.mxu0 0
  %5052 = vmatpush2.bf16.msra.mxu0 0
  %5053 = vmatprep.subr.bf16.mxu0 0
  %5054 = vmatpush2.bf16.msra.mxu0 0
  %5055 = vmatprep.subr.bf16.mxu0 0
  %5056 = vmatpush2.bf16.msra.mxu0 0
  %5057 = vmatprep.subr.bf16.mxu0 0
  %5058 = vmatpush2.bf16.msra.mxu0 0
  %5059 = vmatprep.subr.bf16.mxu0 0
  %5060 = vmatpush2.bf16.msra.mxu0 0
  %5061 = vmatprep.subr.bf16.mxu0 0
  %5062 = vmatpush2.bf16.msra.mxu0 0
  %5063 = vmatprep.subr.bf16.mxu0 0
  %5064 = vmatpush2.bf16.msra.mxu0 0
  %5065 = vmatprep.mubr.bf16.mxu0 0
  %5066 = vmatmul.mubr.bf16.gmra.mxu0 %v4818
  %v5067 = vpop.f32.mrf.mxu0
  %v5068 = vadd.f32 0.0, %v5067
  %v5069 = vpop.f32.mrf.mxu0
  %v5070 = vpop.f32.mrf.mxu0
  %v5071 = vadd.f32 0.0, %v5070
  %v5072 = vpop.f32.mrf.mxu0
  %5073 = vmatprep.mubr.bf16.mxu0 0
  %5074 = vmatmul.mubr.bf16.gmra.mxu0 %v4821
  %v5075 = vpop.f32.mrf.mxu0
  %v5076 = vadd.f32 0.0, %v5075
  %v5077 = vpop.f32.mrf.mxu0
  %v5078 = vpop.f32.mrf.mxu0
  %v5079 = vadd.f32 0.0, %v5078
  %v5080 = vpop.f32.mrf.mxu0
  %5081 = vmatprep.mubr.bf16.mxu0 0
  %5082 = vmatmul.mubr.bf16.gmra.mxu0 %v4824
  %v5083 = vpop.f32.mrf.mxu0
  %v5084 = vadd.f32 0.0, %v5083
  %v5085 = vpop.f32.mrf.mxu0
  %v5086 = vpop.f32.mrf.mxu0
  %v5087 = vadd.f32 0.0, %v5086
  %v5088 = vpop.f32.mrf.mxu0
  %5089 = vmatprep.mubr.bf16.mxu0 0
  %5090 = vmatmul.mubr.bf16.gmra.mxu0 %v4827
  %v5091 = vpop.f32.mrf.mxu0
  %v5092 = vadd.f32 0.0, %v5091
  %v5093 = vpop.f32.mrf.mxu0
  %v5094 = vpop.f32.mrf.mxu0
  %v5095 = vadd.f32 0.0, %v5094
  %v5096 = vpop.f32.mrf.mxu0
  %5097 = vmatprep.mubr.bf16.mxu0 0
  %5098 = vmatmul.mubr.bf16.gmra.mxu0 %v4830
  %v5099 = vpop.f32.mrf.mxu0
  %v5100 = vadd.f32 0.0, %v5099
  %v5101 = vpop.f32.mrf.mxu0
  %v5102 = vpop.f32.mrf.mxu0
  %v5103 = vadd.f32 0.0, %v5102
  %v5104 = vpop.f32.mrf.mxu0
  %5105 = vmatprep.mubr.bf16.mxu0 0
  %5106 = vmatmul.mubr.bf16.gmra.mxu0 %v4833
  %v5107 = vpop.f32.mrf.mxu0
  %v5108 = vadd.f32 0.0, %v5107
  %v5109 = vpop.f32.mrf.mxu0
  %v5110 = vpop.f32.mrf.mxu0
  %v5111 = vadd.f32 0.0, %v5110
  %v5112 = vpop.f32.mrf.mxu0
  %5113 = vmatprep.mubr.bf16.mxu0 0
  %5114 = vmatmul.mubr.bf16.gmra.mxu0 %v4836
  %v5115 = vpop.f32.mrf.mxu0
  %v5116 = vadd.f32 0.0, %v5115
  %v5117 = vpop.f32.mrf.mxu0
  %v5118 = vpop.f32.mrf.mxu0
  %v5119 = vadd.f32 0.0, %v5118
  %v5120 = vpop.f32.mrf.mxu0
  %5121 = vmatprep.mubr.bf16.mxu0 0
  %5122 = vmatmul.mubr.bf16.gmra.mxu0 %v4839
  %v5123 = vpop.f32.mrf.mxu0
  %v5124 = vadd.f32 0.0, %v5123
  %v5125 = vpop.f32.mrf.mxu0
  %v5126 = vpop.f32.mrf.mxu0
  %v5127 = vadd.f32 0.0, %v5126
  %v5128 = vpop.f32.mrf.mxu0
  %5129 = vmatprep.mubr.bf16.mxu0 0
  %5130 = vmatmul.mubr.bf16.gmra.mxu0 %v4842
  %v5131 = vpop.f32.mrf.mxu0
  %v5132 = vadd.f32 0.0, %v5131
  %v5133 = vpop.f32.mrf.mxu0
  %v5134 = vpop.f32.mrf.mxu0
  %v5135 = vadd.f32 0.0, %v5134
  %v5136 = vpop.f32.mrf.mxu0
  %5137 = vmatprep.mubr.bf16.mxu0 0
  %5138 = vmatmul.mubr.bf16.gmra.mxu0 %v4845
  %v5139 = vpop.f32.mrf.mxu0
  %v5140 = vadd.f32 0.0, %v5139
  %v5141 = vpop.f32.mrf.mxu0
  %v5142 = vpop.f32.mrf.mxu0
  %v5143 = vadd.f32 0.0, %v5142
  %v5144 = vpop.f32.mrf.mxu0
  %5145 = vmatprep.mubr.bf16.mxu0 0
  %5146 = vmatmul.mubr.bf16.gmra.mxu0 %v4848
  %v5147 = vpop.f32.mrf.mxu0
  %v5148 = vadd.f32 0.0, %v5147
  %v5149 = vpop.f32.mrf.mxu0
  %v5150 = vpop.f32.mrf.mxu0
  %v5151 = vadd.f32 0.0, %v5150
  %v5152 = vpop.f32.mrf.mxu0
  %5153 = vmatprep.mubr.bf16.mxu0 0
  %5154 = vmatmul.mubr.bf16.gmra.mxu0 %v4851
  %v5155 = vpop.f32.mrf.mxu0
  %v5156 = vadd.f32 0.0, %v5155
  %v5157 = vpop.f32.mrf.mxu0
  %v5158 = vpop.f32.mrf.mxu0
  %v5159 = vadd.f32 0.0, %v5158
  %v5160 = vpop.f32.mrf.mxu0
  %5161 = vmatprep.mubr.bf16.mxu0 0
  %5162 = vmatmul.mubr.bf16.gmra.mxu0 %v4854
  %v5163 = vpop.f32.mrf.mxu0
  %v5164 = vadd.f32 0.0, %v5163
  %v5165 = vpop.f32.mrf.mxu0
  %v5166 = vpop.f32.mrf.mxu0
  %v5167 = vadd.f32 0.0, %v5166
  %v5168 = vpop.f32.mrf.mxu0
  %5169 = vmatprep.mubr.bf16.mxu0 0
  %5170 = vmatmul.mubr.bf16.gmra.mxu0 %v4857
  %v5171 = vpop.f32.mrf.mxu0
  %v5172 = vadd.f32 0.0, %v5171
  %v5173 = vpop.f32.mrf.mxu0
  %v5174 = vpop.f32.mrf.mxu0
  %v5175 = vadd.f32 0.0, %v5174
  %v5176 = vpop.f32.mrf.mxu0
  %5177 = vmatprep.mubr.bf16.mxu0 0
  %5178 = vmatmul.mubr.bf16.gmra.mxu0 %v4860
  %v5179 = vpop.f32.mrf.mxu0
  %v5180 = vadd.f32 0.0, %v5179
  %v5181 = vpop.f32.mrf.mxu0
  %v5182 = vpop.f32.mrf.mxu0
  %v5183 = vadd.f32 0.0, %v5182
  %v5184 = vpop.f32.mrf.mxu0
  %5185 = vmatprep.mubr.bf16.mxu0 0
  %5186 = vmatmul.mubr.bf16.gmra.mxu0 %v4863
  %v5187 = vpop.f32.mrf.mxu0
  %v5188 = vadd.f32 0.0, %v5187
  %v5189 = vpop.f32.mrf.mxu0
  %v5190 = vpop.f32.mrf.mxu0
  %v5191 = vadd.f32 0.0, %v5190
  %v5192 = vpop.f32.mrf.mxu0
  %5193 = vmatprep.mubr.bf16.mxu0 0
  %5194 = vmatmul.mubr.bf16.gmra.mxu0 %v4866
  %v5195 = vpop.f32.mrf.mxu0
  %v5196 = vadd.f32 0.0, %v5195
  %v5197 = vpop.f32.mrf.mxu0
  %v5198 = vpop.f32.mrf.mxu0
  %v5199 = vadd.f32 0.0, %v5198
  %v5200 = vpop.f32.mrf.mxu0
  %5201 = vmatprep.mubr.bf16.mxu0 0
  %5202 = vmatmul.mubr.bf16.gmra.mxu0 %v4869
  %v5203 = vpop.f32.mrf.mxu0
  %v5204 = vadd.f32 0.0, %v5203
  %v5205 = vpop.f32.mrf.mxu0
  %v5206 = vpop.f32.mrf.mxu0
  %v5207 = vadd.f32 0.0, %v5206
  %v5208 = vpop.f32.mrf.mxu0
  %5209 = vmatprep.mubr.bf16.mxu0 0
  %5210 = vmatmul.mubr.bf16.gmra.mxu0 %v4872
  %v5211 = vpop.f32.mrf.mxu0
  %v5212 = vadd.f32 0.0, %v5211
  %v5213 = vpop.f32.mrf.mxu0
  %v5214 = vpop.f32.mrf.mxu0
  %v5215 = vadd.f32 0.0, %v5214
  %v5216 = vpop.f32.mrf.mxu0
  %5217 = vmatprep.mubr.bf16.mxu0 0
  %5218 = vmatmul.mubr.bf16.gmra.mxu0 %v4875
  %v5219 = vpop.f32.mrf.mxu0
  %v5220 = vadd.f32 0.0, %v5219
  %v5221 = vpop.f32.mrf.mxu0
  %v5222 = vpop.f32.mrf.mxu0
  %v5223 = vadd.f32 0.0, %v5222
  %v5224 = vpop.f32.mrf.mxu0
  %5225 = vmatprep.mubr.bf16.mxu0 0
  %5226 = vmatmul.mubr.bf16.gmra.mxu0 %v4878
  %v5227 = vpop.f32.mrf.mxu0
  %v5228 = vadd.f32 0.0, %v5227
  %v5229 = vpop.f32.mrf.mxu0
  %v5230 = vpop.f32.mrf.mxu0
  %v5231 = vadd.f32 0.0, %v5230
  %v5232 = vpop.f32.mrf.mxu0
  %5233 = vmatprep.mubr.bf16.mxu0 0
  %5234 = vmatmul.mubr.bf16.gmra.mxu0 %v4881
  %v5235 = vpop.f32.mrf.mxu0
  %v5236 = vadd.f32 0.0, %v5235
  %v5237 = vpop.f32.mrf.mxu0
  %v5238 = vpop.f32.mrf.mxu0
  %v5239 = vadd.f32 0.0, %v5238
  %v5240 = vpop.f32.mrf.mxu0
  %5241 = vmatprep.mubr.bf16.mxu0 0
  %5242 = vmatmul.mubr.bf16.gmra.mxu0 %v4884
  %v5243 = vpop.f32.mrf.mxu0
  %v5244 = vadd.f32 0.0, %v5243
  %v5245 = vpop.f32.mrf.mxu0
  %v5246 = vpop.f32.mrf.mxu0
  %v5247 = vadd.f32 0.0, %v5246
  %v5248 = vpop.f32.mrf.mxu0
  %5249 = vmatprep.mubr.bf16.mxu0 0
  %5250 = vmatmul.mubr.bf16.gmra.mxu0 %v4887
  %v5251 = vpop.f32.mrf.mxu0
  %v5252 = vadd.f32 0.0, %v5251
  %v5253 = vpop.f32.mrf.mxu0
  %v5254 = vpop.f32.mrf.mxu0
  %v5255 = vadd.f32 0.0, %v5254
  %v5256 = vpop.f32.mrf.mxu0
  %5257 = vmatprep.mubr.bf16.mxu0 0
  %5258 = vmatmul.mubr.bf16.gmra.mxu0 %v4890
  %v5259 = vpop.f32.mrf.mxu0
  %v5260 = vadd.f32 0.0, %v5259
  %v5261 = vpop.f32.mrf.mxu0
  %v5262 = vpop.f32.mrf.mxu0
  %v5263 = vadd.f32 0.0, %v5262
  %v5264 = vpop.f32.mrf.mxu0
  %5265 = vmatprep.mubr.bf16.mxu0 0
  %5266 = vmatmul.mubr.bf16.gmra.mxu0 %v4893
  %v5267 = vpop.f32.mrf.mxu0
  %v5268 = vadd.f32 0.0, %v5267
  %v5269 = vpop.f32.mrf.mxu0
  %v5270 = vpop.f32.mrf.mxu0
  %v5271 = vadd.f32 0.0, %v5270
  %v5272 = vpop.f32.mrf.mxu0
  %5273 = vmatprep.mubr.bf16.mxu0 0
  %5274 = vmatmul.mubr.bf16.gmra.mxu0 %v4896
  %v5275 = vpop.f32.mrf.mxu0
  %v5276 = vadd.f32 0.0, %v5275
  %v5277 = vpop.f32.mrf.mxu0
  %v5278 = vpop.f32.mrf.mxu0
  %v5279 = vadd.f32 0.0, %v5278
  %v5280 = vpop.f32.mrf.mxu0
  %5281 = vmatprep.mubr.bf16.mxu0 0
  %5282 = vmatmul.mubr.bf16.gmra.mxu0 %v4899
  %v5283 = vpop.f32.mrf.mxu0
  %v5284 = vadd.f32 0.0, %v5283
  %v5285 = vpop.f32.mrf.mxu0
  %v5286 = vpop.f32.mrf.mxu0
  %v5287 = vadd.f32 0.0, %v5286
  %v5288 = vpop.f32.mrf.mxu0
  %5289 = vmatprep.mubr.bf16.mxu0 0
  %5290 = vmatmul.mubr.bf16.gmra.mxu0 %v4902
  %v5291 = vpop.f32.mrf.mxu0
  %v5292 = vadd.f32 0.0, %v5291
  %v5293 = vpop.f32.mrf.mxu0
  %v5294 = vpop.f32.mrf.mxu0
  %v5295 = vadd.f32 0.0, %v5294
  %v5296 = vpop.f32.mrf.mxu0
  %5297 = vmatprep.mubr.bf16.mxu0 0
  %5298 = vmatmul.mubr.bf16.gmra.mxu0 %v4905
  %v5299 = vpop.f32.mrf.mxu0
  %v5300 = vadd.f32 0.0, %v5299
  %v5301 = vpop.f32.mrf.mxu0
  %v5302 = vpop.f32.mrf.mxu0
  %v5303 = vadd.f32 0.0, %v5302
  %v5304 = vpop.f32.mrf.mxu0
  %5305 = vmatprep.mubr.bf16.mxu0 0
  %5306 = vmatmul.mubr.bf16.gmra.mxu0 %v4908
  %v5307 = vpop.f32.mrf.mxu0
  %v5308 = vadd.f32 0.0, %v5307
  %v5309 = vpop.f32.mrf.mxu0
  %v5310 = vpop.f32.mrf.mxu0
  %v5311 = vadd.f32 0.0, %v5310
  %v5312 = vpop.f32.mrf.mxu0
  %5313 = vmatprep.mubr.bf16.mxu0 0
  %5314 = vmatmul.mubr.bf16.gmra.mxu0 %v4911
  %v5315 = vpop.f32.mrf.mxu0
  %v5316 = vadd.f32 0.0, %v5315
  %v5317 = vpop.f32.mrf.mxu0
  %v5318 = vpop.f32.mrf.mxu0
  %v5319 = vadd.f32 0.0, %v5318
  %v5320 = vpop.f32.mrf.mxu0
  %5321 = vmatprep.mubr.bf16.mxu0 0
  %5322 = vmatmul.mubr.bf16.gmra.mxu0 %v4914
  %v5323 = vpop.f32.mrf.mxu0
  %v5324 = vadd.f32 0.0, %v5323
  %v5325 = vpop.f32.mrf.mxu0
  %v5326 = vpop.f32.mrf.mxu0
  %v5327 = vadd.f32 0.0, %v5326
  %v5328 = vpop.f32.mrf.mxu0
  %5329 = vmatprep.mubr.bf16.mxu0 0
  %5330 = vmatmul.mubr.bf16.gmra.mxu0 %v4917
  %v5331 = vpop.f32.mrf.mxu0
  %v5332 = vadd.f32 0.0, %v5331
  %v5333 = vpop.f32.mrf.mxu0
  %v5334 = vpop.f32.mrf.mxu0
  %v5335 = vadd.f32 0.0, %v5334
  %v5336 = vpop.f32.mrf.mxu0
  %5337 = vmatprep.mubr.bf16.mxu0 0
  %5338 = vmatmul.mubr.bf16.gmra.mxu0 %v4920
  %v5339 = vpop.f32.mrf.mxu0
  %v5340 = vadd.f32 0.0, %v5339
  %v5341 = vpop.f32.mrf.mxu0
  %v5342 = vpop.f32.mrf.mxu0
  %v5343 = vadd.f32 0.0, %v5342
  %v5344 = vpop.f32.mrf.mxu0
  %5345 = vmatprep.mubr.bf16.mxu0 0
  %5346 = vmatmul.mubr.bf16.gmra.mxu0 %v4923
  %v5347 = vpop.f32.mrf.mxu0
  %v5348 = vadd.f32 0.0, %v5347
  %v5349 = vpop.f32.mrf.mxu0
  %v5350 = vpop.f32.mrf.mxu0
  %v5351 = vadd.f32 0.0, %v5350
  %v5352 = vpop.f32.mrf.mxu0
  %5353 = vmatprep.mubr.bf16.mxu0 0
  %5354 = vmatmul.mubr.bf16.gmra.mxu0 %v4926
  %v5355 = vpop.f32.mrf.mxu0
  %v5356 = vadd.f32 0.0, %v5355
  %v5357 = vpop.f32.mrf.mxu0
  %v5358 = vpop.f32.mrf.mxu0
  %v5359 = vadd.f32 0.0, %v5358
  %v5360 = vpop.f32.mrf.mxu0
  %5361 = vmatprep.mubr.bf16.mxu0 0
  %5362 = vmatmul.mubr.bf16.gmra.mxu0 %v4929
  %v5363 = vpop.f32.mrf.mxu0
  %v5364 = vadd.f32 0.0, %v5363
  %v5365 = vpop.f32.mrf.mxu0
  %v5366 = vpop.f32.mrf.mxu0
  %v5367 = vadd.f32 0.0, %v5366
  %v5368 = vpop.f32.mrf.mxu0
  %5369 = vmatprep.mubr.bf16.mxu0 0
  %5370 = vmatmul.mubr.bf16.gmra.mxu0 %v4932
  %v5371 = vpop.f32.mrf.mxu0
  %v5372 = vadd.f32 0.0, %v5371
  %v5373 = vpop.f32.mrf.mxu0
  %v5374 = vpop.f32.mrf.mxu0
  %v5375 = vadd.f32 0.0, %v5374
  %v5376 = vpop.f32.mrf.mxu0
  %5377 = vmatprep.mubr.bf16.mxu0 0
  %5378 = vmatmul.mubr.bf16.gmra.mxu0 %v4935
  %v5379 = vpop.f32.mrf.mxu0
  %v5380 = vadd.f32 0.0, %v5379
  %v5381 = vpop.f32.mrf.mxu0
  %v5382 = vpop.f32.mrf.mxu0
  %v5383 = vadd.f32 0.0, %v5382
  %v5384 = vpop.f32.mrf.mxu0
  %5385 = vmatprep.mubr.bf16.mxu0 0
  %5386 = vmatmul.mubr.bf16.gmra.mxu0 %v4938
  %v5387 = vpop.f32.mrf.mxu0
  %v5388 = vadd.f32 0.0, %v5387
  %v5389 = vpop.f32.mrf.mxu0
  %v5390 = vpop.f32.mrf.mxu0
  %v5391 = vadd.f32 0.0, %v5390
  %v5392 = vpop.f32.mrf.mxu0
  %5393 = vmatprep.mubr.bf16.mxu0 0
  %5394 = vmatmul.mubr.bf16.gmra.mxu0 %v4941
  %v5395 = vpop.f32.mrf.mxu0
  %v5396 = vadd.f32 0.0, %v5395
  %v5397 = vpop.f32.mrf.mxu0
  %v5398 = vpop.f32.mrf.mxu0
  %v5399 = vadd.f32 0.0, %v5398
  %v5400 = vpop.f32.mrf.mxu0
  %5401 = vmatprep.mubr.bf16.mxu0 0
  %5402 = vmatmul.mubr.bf16.gmra.mxu0 %v4944
  %v5403 = vpop.f32.mrf.mxu0
  %v5404 = vadd.f32 0.0, %v5403
  %v5405 = vpop.f32.mrf.mxu0
  %v5406 = vpop.f32.mrf.mxu0
  %v5407 = vadd.f32 0.0, %v5406
  %v5408 = vpop.f32.mrf.mxu0
  %5409 = vmatprep.mubr.bf16.mxu0 0
  %5410 = vmatmul.mubr.bf16.gmra.mxu0 %v4947
  %v5411 = vpop.f32.mrf.mxu0
  %v5412 = vadd.f32 0.0, %v5411
  %v5413 = vpop.f32.mrf.mxu0
  %v5414 = vpop.f32.mrf.mxu0
  %v5415 = vadd.f32 0.0, %v5414
  %v5416 = vpop.f32.mrf.mxu0
  %5417 = vmatprep.mubr.bf16.mxu0 0
  %5418 = vmatmul.mubr.bf16.gmra.mxu0 %v4950
  %v5419 = vpop.f32.mrf.mxu0
  %v5420 = vadd.f32 0.0, %v5419
  %v5421 = vpop.f32.mrf.mxu0
  %v5422 = vpop.f32.mrf.mxu0
  %v5423 = vadd.f32 0.0, %v5422
  %v5424 = vpop.f32.mrf.mxu0
  %5425 = vmatprep.mubr.bf16.mxu0 0
  %5426 = vmatmul.mubr.bf16.gmra.mxu0 %v4953
  %v5427 = vpop.f32.mrf.mxu0
  %v5428 = vadd.f32 0.0, %v5427
  %v5429 = vpop.f32.mrf.mxu0
  %v5430 = vpop.f32.mrf.mxu0
  %v5431 = vadd.f32 0.0, %v5430
  %v5432 = vpop.f32.mrf.mxu0
  %5433 = vmatprep.mubr.bf16.mxu0 0
  %5434 = vmatmul.mubr.bf16.gmra.mxu0 %v4956
  %v5435 = vpop.f32.mrf.mxu0
  %v5436 = vadd.f32 0.0, %v5435
  %v5437 = vpop.f32.mrf.mxu0
  %v5438 = vpop.f32.mrf.mxu0
  %v5439 = vadd.f32 0.0, %v5438
  %v5440 = vpop.f32.mrf.mxu0
  %5441 = vmatprep.mubr.bf16.mxu0 0
  %5442 = vmatmul.mubr.bf16.gmra.mxu0 %v4959
  %v5443 = vpop.f32.mrf.mxu0
  %v5444 = vadd.f32 0.0, %v5443
  %v5445 = vpop.f32.mrf.mxu0
  %v5446 = vpop.f32.mrf.mxu0
  %v5447 = vadd.f32 0.0, %v5446
  %v5448 = vpop.f32.mrf.mxu0
  %5449 = vmatprep.mubr.bf16.mxu0 0
  %5450 = vmatmul.mubr.bf16.gmra.mxu0 %v4962
  %v5451 = vpop.f32.mrf.mxu0
  %v5452 = vadd.f32 0.0, %v5451
  %v5453 = vpop.f32.mrf.mxu0
  %v5454 = vpop.f32.mrf.mxu0
  %v5455 = vadd.f32 0.0, %v5454
  %v5456 = vpop.f32.mrf.mxu0
  %5457 = vmatprep.mubr.bf16.mxu0 0
  %5458 = vmatmul.mubr.bf16.gmra.mxu0 %v4965
  %v5459 = vpop.f32.mrf.mxu0
  %v5460 = vadd.f32 0.0, %v5459
  %v5461 = vpop.f32.mrf.mxu0
  %v5462 = vpop.f32.mrf.mxu0
  %v5463 = vadd.f32 0.0, %v5462
  %v5464 = vpop.f32.mrf.mxu0
  %5465 = vmatprep.mubr.bf16.mxu0 0
  %5466 = vmatmul.mubr.bf16.gmra.mxu0 %v4968
  %v5467 = vpop.f32.mrf.mxu0
  %v5468 = vadd.f32 0.0, %v5467
  %v5469 = vpop.f32.mrf.mxu0
  %v5470 = vpop.f32.mrf.mxu0
  %v5471 = vadd.f32 0.0, %v5470
  %v5472 = vpop.f32.mrf.mxu0
  %5473 = vmatprep.mubr.bf16.mxu0 0
  %5474 = vmatmul.mubr.bf16.gmra.mxu0 %v4971
  %v5475 = vpop.f32.mrf.mxu0
  %v5476 = vadd.f32 0.0, %v5475
  %v5477 = vpop.f32.mrf.mxu0
  %v5478 = vpop.f32.mrf.mxu0
  %v5479 = vadd.f32 0.0, %v5478
  %v5480 = vpop.f32.mrf.mxu0
  %5481 = vmatprep.mubr.bf16.mxu0 0
  %5482 = vmatmul.mubr.bf16.gmra.mxu0 %v4974
  %v5483 = vpop.f32.mrf.mxu0
  %v5484 = vadd.f32 0.0, %v5483
  %v5485 = vpop.f32.mrf.mxu0
  %v5486 = vpop.f32.mrf.mxu0
  %v5487 = vadd.f32 0.0, %v5486
  %v5488 = vpop.f32.mrf.mxu0
  %5489 = vmatprep.mubr.bf16.mxu0 0
  %5490 = vmatmul.mubr.bf16.gmra.mxu0 %v4977
  %v5491 = vpop.f32.mrf.mxu0
  %v5492 = vadd.f32 0.0, %v5491
  %v5493 = vpop.f32.mrf.mxu0
  %v5494 = vpop.f32.mrf.mxu0
  %v5495 = vadd.f32 0.0, %v5494
  %v5496 = vpop.f32.mrf.mxu0
  %5497 = vmatprep.mubr.bf16.mxu0 0
  %5498 = vmatmul.mubr.bf16.gmra.mxu0 %v4980
  %v5499 = vpop.f32.mrf.mxu0
  %v5500 = vadd.f32 0.0, %v5499
  %v5501 = vpop.f32.mrf.mxu0
  %v5502 = vpop.f32.mrf.mxu0
  %v5503 = vadd.f32 0.0, %v5502
  %v5504 = vpop.f32.mrf.mxu0
  %5505 = vmatprep.mubr.bf16.mxu0 0
  %5506 = vmatmul.mubr.bf16.gmra.mxu0 %v4983
  %v5507 = vpop.f32.mrf.mxu0
  %v5508 = vadd.f32 0.0, %v5507
  %v5509 = vpop.f32.mrf.mxu0
  %v5510 = vpop.f32.mrf.mxu0
  %v5511 = vadd.f32 0.0, %v5510
  %v5512 = vpop.f32.mrf.mxu0
  %5513 = vmatprep.mubr.bf16.mxu0 0
  %5514 = vmatmul.mubr.bf16.gmra.mxu0 %v4986
  %v5515 = vpop.f32.mrf.mxu0
  %v5516 = vadd.f32 0.0, %v5515
  %v5517 = vpop.f32.mrf.mxu0
  %v5518 = vpop.f32.mrf.mxu0
  %v5519 = vadd.f32 0.0, %v5518
  %v5520 = vpop.f32.mrf.mxu0
  %5521 = vmatprep.mubr.bf16.mxu0 0
  %5522 = vmatmul.mubr.bf16.gmra.mxu0 %v4989
  %v5523 = vpop.f32.mrf.mxu0
  %v5524 = vadd.f32 0.0, %v5523
  %v5525 = vpop.f32.mrf.mxu0
  %v5526 = vpop.f32.mrf.mxu0
  %v5527 = vadd.f32 0.0, %v5526
  %v5528 = vpop.f32.mrf.mxu0
  %5529 = vmatprep.mubr.bf16.mxu0 0
  %5530 = vmatmul.mubr.bf16.gmra.mxu0 %v4992
  %v5531 = vpop.f32.mrf.mxu0
  %v5532 = vadd.f32 0.0, %v5531
  %v5533 = vpop.f32.mrf.mxu0
  %v5534 = vpop.f32.mrf.mxu0
  %v5535 = vadd.f32 0.0, %v5534
  %v5536 = vpop.f32.mrf.mxu0
  %5537 = vmatprep.mubr.bf16.mxu0 0
  %5538 = vmatmul.mubr.bf16.gmra.mxu0 %v4995
  %v5539 = vpop.f32.mrf.mxu0
  %v5540 = vadd.f32 0.0, %v5539
  %v5541 = vpop.f32.mrf.mxu0
  %v5542 = vpop.f32.mrf.mxu0
  %v5543 = vadd.f32 0.0, %v5542
  %v5544 = vpop.f32.mrf.mxu0
  %5545 = vmatprep.mubr.bf16.mxu0 0
  %5546 = vmatmul.mubr.bf16.gmra.mxu0 %v4998
  %v5547 = vpop.f32.mrf.mxu0
  %v5548 = vadd.f32 0.0, %v5547
  %v5549 = vpop.f32.mrf.mxu0
  %v5550 = vpop.f32.mrf.mxu0
  %v5551 = vadd.f32 0.0, %v5550
  %v5552 = vpop.f32.mrf.mxu0
  %5553 = vmatprep.mubr.bf16.mxu0 0
  %5554 = vmatmul.mubr.bf16.gmra.mxu0 %v5001
  %v5555 = vpop.f32.mrf.mxu0
  %v5556 = vadd.f32 0.0, %v5555
  %v5557 = vpop.f32.mrf.mxu0
  %v5558 = vpop.f32.mrf.mxu0
  %v5559 = vadd.f32 0.0, %v5558
  %v5560 = vpop.f32.mrf.mxu0
  %5561 = vmatprep.mubr.bf16.mxu0 0
  %5562 = vmatmul.mubr.bf16.gmra.mxu0 %v5004
  %v5563 = vpop.f32.mrf.mxu0
  %v5564 = vadd.f32 0.0, %v5563
  %v5565 = vpop.f32.mrf.mxu0
  %v5566 = vpop.f32.mrf.mxu0
  %v5567 = vadd.f32 0.0, %v5566
  %v5568 = vpop.f32.mrf.mxu0
  %5569 = vmatprep.mubr.bf16.mxu0 0
  %5570 = vmatmul.mubr.bf16.gmra.mxu0 %v5007
  %v5571 = vpop.f32.mrf.mxu0
  %v5572 = vadd.f32 0.0, %v5571
  %v5573 = vpop.f32.mrf.mxu0
  %v5574 = vpop.f32.mrf.mxu0
  %v5575 = vadd.f32 0.0, %v5574
  %v5576 = vpop.f32.mrf.mxu0
  %5577 = vmatprep.mubr.bf16.mxu0 0
  %5578 = vmatmul.mubr.bf16.gmra.mxu0 %v5010
  %v5579 = vpop.f32.mrf.mxu0
  %v5580 = vadd.f32 0.0, %v5579
  %v5581 = vpop.f32.mrf.mxu0
  %v5582 = vpop.f32.mrf.mxu0
  %v5583 = vadd.f32 0.0, %v5582
  %v5584 = vpop.f32.mrf.mxu0
  %5585 = vmatprep.mubr.bf16.mxu0 0
  %5586 = vmatmul.mubr.bf16.gmra.mxu0 %v5013
  %v5587 = vpop.f32.mrf.mxu0
  %v5588 = vadd.f32 0.0, %v5587
  %v5589 = vpop.f32.mrf.mxu0
  %v5590 = vpop.f32.mrf.mxu0
  %v5591 = vadd.f32 0.0, %v5590
  %v5592 = vpop.f32.mrf.mxu0
  %5593 = vmatprep.mubr.bf16.mxu0 0
  %5594 = vmatmul.mubr.bf16.gmra.mxu0 %v5016
  %v5595 = vpop.f32.mrf.mxu0
  %v5596 = vadd.f32 0.0, %v5595
  %v5597 = vpop.f32.mrf.mxu0
  %v5598 = vpop.f32.mrf.mxu0
  %v5599 = vadd.f32 0.0, %v5598
  %v5600 = vpop.f32.mrf.mxu0
  %5601 = vmatprep.mubr.bf16.mxu0 0
  %5602 = vmatmul.mubr.bf16.gmra.mxu0 %v5019
  %v5603 = vpop.f32.mrf.mxu0
  %v5604 = vadd.f32 0.0, %v5603
  %v5605 = vpop.f32.mrf.mxu0
  %v5606 = vpop.f32.mrf.mxu0
  %v5607 = vadd.f32 0.0, %v5606
  %v5608 = vpop.f32.mrf.mxu0
  %5609 = vmatprep.mubr.bf16.mxu0 0
  %5610 = vmatmul.mubr.bf16.gmra.mxu0 %v5022
  %v5611 = vpop.f32.mrf.mxu0
  %v5612 = vadd.f32 0.0, %v5611
  %v5613 = vpop.f32.mrf.mxu0
  %v5614 = vpop.f32.mrf.mxu0
  %v5615 = vadd.f32 0.0, %v5614
  %v5616 = vpop.f32.mrf.mxu0
  %5617 = vmatprep.mubr.bf16.mxu0 0
  %5618 = vmatmul.mubr.bf16.gmra.mxu0 %v5025
  %v5619 = vpop.f32.mrf.mxu0
  %v5620 = vadd.f32 0.0, %v5619
  %v5621 = vpop.f32.mrf.mxu0
  %v5622 = vpop.f32.mrf.mxu0
  %v5623 = vadd.f32 0.0, %v5622
  %v5624 = vpop.f32.mrf.mxu0
  %5625 = vmatprep.mubr.bf16.mxu0 0
  %5626 = vmatmul.mubr.bf16.gmra.mxu0 %v5028
  %v5627 = vpop.f32.mrf.mxu0
  %v5628 = vadd.f32 0.0, %v5627
  %v5629 = vpop.f32.mrf.mxu0
  %v5630 = vpop.f32.mrf.mxu0
  %v5631 = vadd.f32 0.0, %v5630
  %v5632 = vpop.f32.mrf.mxu0
  %5633 = vmatprep.mubr.bf16.mxu0 0
  %5634 = vmatmul.mubr.bf16.gmra.mxu0 %v5031
  %v5635 = vpop.f32.mrf.mxu0
  %v5636 = vadd.f32 0.0, %v5635
  %v5637 = vpop.f32.mrf.mxu0
  %v5638 = vpop.f32.mrf.mxu0
  %v5639 = vadd.f32 0.0, %v5638
  %v5640 = vpop.f32.mrf.mxu0
  %5641 = vdwg.mxu0
  %v5642 = vmax.f32 %v4169, %v5068
  %v5643 = vmax.f32 %v4170, %v5071
  %v5644 = vmax.f32 %v4171, %v5076
  %v5645 = vmax.f32 %v4172, %v5079
  %v5646 = vmax.f32 %v4173, %v5084
  %v5647 = vmax.f32 %v4174, %v5087
  %v5648 = vmax.f32 %v4175, %v5092
  %v5649 = vmax.f32 %v4176, %v5095
  %v5650 = vmax.f32 %v4177, %v5100
  %v5651 = vmax.f32 %v4178, %v5103
  %v5652 = vmax.f32 %v4179, %v5108
  %v5653 = vmax.f32 %v4180, %v5111
  %v5654 = vmax.f32 %v4181, %v5116
  %v5655 = vmax.f32 %v4182, %v5119
  %v5656 = vmax.f32 %v4183, %v5124
  %v5657 = vmax.f32 %v4184, %v5127
  %v5658 = vmax.f32 %v4185, %v5132
  %v5659 = vmax.f32 %v4186, %v5135
  %v5660 = vmax.f32 %v4187, %v5140
  %v5661 = vmax.f32 %v4188, %v5143
  %v5662 = vmax.f32 %v4189, %v5148
  %v5663 = vmax.f32 %v4190, %v5151
  %v5664 = vmax.f32 %v4191, %v5156
  %v5665 = vmax.f32 %v4192, %v5159
  %v5666 = vmax.f32 %v4193, %v5164
  %v5667 = vmax.f32 %v4194, %v5167
  %v5668 = vmax.f32 %v4195, %v5172
  %v5669 = vmax.f32 %v4196, %v5175
  %v5670 = vmax.f32 %v4197, %v5180
  %v5671 = vmax.f32 %v4198, %v5183
  %v5672 = vmax.f32 %v4199, %v5188
  %v5673 = vmax.f32 %v4200, %v5191
  %v5674 = vmax.f32 %v4201, %v5196
  %v5675 = vmax.f32 %v4202, %v5199
  %v5676 = vmax.f32 %v4203, %v5204
  %v5677 = vmax.f32 %v4204, %v5207
  %v5678 = vmax.f32 %v4205, %v5212
  %v5679 = vmax.f32 %v4206, %v5215
  %v5680 = vmax.f32 %v4207, %v5220
  %v5681 = vmax.f32 %v4208, %v5223
  %v5682 = vmax.f32 %v4209, %v5228
  %v5683 = vmax.f32 %v4210, %v5231
  %v5684 = vmax.f32 %v4211, %v5236
  %v5685 = vmax.f32 %v4212, %v5239
  %v5686 = vmax.f32 %v4213, %v5244
  %v5687 = vmax.f32 %v4214, %v5247
  %v5688 = vmax.f32 %v4215, %v5252
  %v5689 = vmax.f32 %v4216, %v5255
  %v5690 = vmax.f32 %v4217, %v5260
  %v5691 = vmax.f32 %v4218, %v5263
  %v5692 = vmax.f32 %v4219, %v5268
  %v5693 = vmax.f32 %v4220, %v5271
  %v5694 = vmax.f32 %v4221, %v5276
  %v5695 = vmax.f32 %v4222, %v5279
  %v5696 = vmax.f32 %v4223, %v5284
  %v5697 = vmax.f32 %v4224, %v5287
  %v5698 = vmax.f32 %v4225, %v5292
  %v5699 = vmax.f32 %v4226, %v5295
  %v5700 = vmax.f32 %v4227, %v5300
  %v5701 = vmax.f32 %v4228, %v5303
  %v5702 = vmax.f32 %v4229, %v5308
  %v5703 = vmax.f32 %v4230, %v5311
  %v5704 = vmax.f32 %v4231, %v5316
  %v5705 = vmax.f32 %v4232, %v5319
  %v5706 = vmax.f32 %v4233, %v5324
  %v5707 = vmax.f32 %v4234, %v5327
  %v5708 = vmax.f32 %v4235, %v5332
  %v5709 = vmax.f32 %v4236, %v5335
  %v5710 = vmax.f32 %v4237, %v5340
  %v5711 = vmax.f32 %v4238, %v5343
  %v5712 = vmax.f32 %v4239, %v5348
  %v5713 = vmax.f32 %v4240, %v5351
  %v5714 = vmax.f32 %v4241, %v5356
  %v5715 = vmax.f32 %v4242, %v5359
  %v5716 = vmax.f32 %v4243, %v5364
  %v5717 = vmax.f32 %v4244, %v5367
  %v5718 = vmax.f32 %v4245, %v5372
  %v5719 = vmax.f32 %v4246, %v5375
  %v5720 = vmax.f32 %v4247, %v5380
  %v5721 = vmax.f32 %v4248, %v5383
  %v5722 = vmax.f32 %v4249, %v5388
  %v5723 = vmax.f32 %v4250, %v5391
  %v5724 = vmax.f32 %v4251, %v5396
  %v5725 = vmax.f32 %v4252, %v5399
  %v5726 = vmax.f32 %v4253, %v5404
  %v5727 = vmax.f32 %v4254, %v5407
  %v5728 = vmax.f32 %v4255, %v5412
  %v5729 = vmax.f32 %v4256, %v5415
  %v5730 = vmax.f32 %v4257, %v5420
  %v5731 = vmax.f32 %v4258, %v5423
  %v5732 = vmax.f32 %v4259, %v5428
  %v5733 = vmax.f32 %v4260, %v5431
  %v5734 = vmax.f32 %v4261, %v5436
  %v5735 = vmax.f32 %v4262, %v5439
  %v5736 = vmax.f32 %v4263, %v5444
  %v5737 = vmax.f32 %v4264, %v5447
  %v5738 = vmax.f32 %v4265, %v5452
  %v5739 = vmax.f32 %v4266, %v5455
  %v5740 = vmax.f32 %v4267, %v5460
  %v5741 = vmax.f32 %v4268, %v5463
  %v5742 = vmax.f32 %v4269, %v5468
  %v5743 = vmax.f32 %v4270, %v5471
  %v5744 = vmax.f32 %v4271, %v5476
  %v5745 = vmax.f32 %v4272, %v5479
  %v5746 = vmax.f32 %v4273, %v5484
  %v5747 = vmax.f32 %v4274, %v5487
  %v5748 = vmax.f32 %v4275, %v5492
  %v5749 = vmax.f32 %v4276, %v5495
  %v5750 = vmax.f32 %v4277, %v5500
  %v5751 = vmax.f32 %v4278, %v5503
  %v5752 = vmax.f32 %v4279, %v5508
  %v5753 = vmax.f32 %v4280, %v5511
  %v5754 = vmax.f32 %v4281, %v5516
  %v5755 = vmax.f32 %v4282, %v5519
  %v5756 = vmax.f32 %v4283, %v5524
  %v5757 = vmax.f32 %v4284, %v5527
  %v5758 = vmax.f32 %v4285, %v5532
  %v5759 = vmax.f32 %v4286, %v5535
  %v5760 = vmax.f32 %v4287, %v5540
  %v5761 = vmax.f32 %v4288, %v5543
  %v5762 = vmax.f32 %v4289, %v5548
  %v5763 = vmax.f32 %v4290, %v5551
  %v5764 = vmax.f32 %v4291, %v5556
  %v5765 = vmax.f32 %v4292, %v5559
  %v5766 = vmax.f32 %v4293, %v5564
  %v5767 = vmax.f32 %v4294, %v5567
  %v5768 = vmax.f32 %v4295, %v5572
  %v5769 = vmax.f32 %v4296, %v5575
  %v5770 = vmax.f32 %v4297, %v5580
  %v5771 = vmax.f32 %v4298, %v5583
  %v5772 = vmax.f32 %v4299, %v5588
  %v5773 = vmax.f32 %v4300, %v5591
  %v5774 = vmax.f32 %v4301, %v5596
  %v5775 = vmax.f32 %v4302, %v5599
  %v5776 = vmax.f32 %v4303, %v5604
  %v5777 = vmax.f32 %v4304, %v5607
  %v5778 = vmax.f32 %v4305, %v5612
  %v5779 = vmax.f32 %v4306, %v5615
  %v5780 = vmax.f32 %v4307, %v5620
  %v5781 = vmax.f32 %v4308, %v5623
  %v5782 = vmax.f32 %v4309, %v5628
  %v5783 = vmax.f32 %v4310, %v5631
  %v5784 = vmax.f32 %v4311, %v5636
  %v5785 = vmax.f32 %v4312, %v5639
  %v5786 = vld [vmem:[%s2] sm:$0x1]
  %v5788 = vlaneseq
  %v5789 = vshrl.u32 %v5788, 7
  %v5790 = vsub.s32 0, %v5789
  %v5791 = vrot.slane %v5786, %v5790
  %v5793 = vadd.f32 %v5642, %v5791
  %v5794 = vadd.f32 %v5643, %v5791
  %v5795 = vadd.f32 %v5644, %v5791
  %v5796 = vadd.f32 %v5645, %v5791
  %v5797 = vadd.f32 %v5646, %v5791
  %v5798 = vadd.f32 %v5647, %v5791
  %v5799 = vadd.f32 %v5648, %v5791
  %v5800 = vadd.f32 %v5649, %v5791
  %v5801 = vadd.f32 %v5650, %v5791
  %v5802 = vadd.f32 %v5651, %v5791
  %v5803 = vadd.f32 %v5652, %v5791
  %v5804 = vadd.f32 %v5653, %v5791
  %v5805 = vadd.f32 %v5654, %v5791
  %v5806 = vadd.f32 %v5655, %v5791
  %v5807 = vadd.f32 %v5656, %v5791
  %v5808 = vadd.f32 %v5657, %v5791
  %v5809 = vadd.f32 %v5658, %v5791
  %v5810 = vadd.f32 %v5659, %v5791
  %v5811 = vadd.f32 %v5660, %v5791
  %v5812 = vadd.f32 %v5661, %v5791
  %v5813 = vadd.f32 %v5662, %v5791
  %v5814 = vadd.f32 %v5663, %v5791
  %v5815 = vadd.f32 %v5664, %v5791
  %v5816 = vadd.f32 %v5665, %v5791
  %v5817 = vadd.f32 %v5666, %v5791
  %v5818 = vadd.f32 %v5667, %v5791
  %v5819 = vadd.f32 %v5668, %v5791
  %v5820 = vadd.f32 %v5669, %v5791
  %v5821 = vadd.f32 %v5670, %v5791
  %v5822 = vadd.f32 %v5671, %v5791
  %v5823 = vadd.f32 %v5672, %v5791
  %v5824 = vadd.f32 %v5673, %v5791
  %v5825 = vadd.f32 %v5674, %v5791
  %v5826 = vadd.f32 %v5675, %v5791
  %v5827 = vadd.f32 %v5676, %v5791
  %v5828 = vadd.f32 %v5677, %v5791
  %v5829 = vadd.f32 %v5678, %v5791
  %v5830 = vadd.f32 %v5679, %v5791
  %v5831 = vadd.f32 %v5680, %v5791
  %v5832 = vadd.f32 %v5681, %v5791
  %v5833 = vadd.f32 %v5682, %v5791
  %v5834 = vadd.f32 %v5683, %v5791
  %v5835 = vadd.f32 %v5684, %v5791
  %v5836 = vadd.f32 %v5685, %v5791
  %v5837 = vadd.f32 %v5686, %v5791
  %v5838 = vadd.f32 %v5687, %v5791
  %v5839 = vadd.f32 %v5688, %v5791
  %v5840 = vadd.f32 %v5689, %v5791
  %v5841 = vadd.f32 %v5690, %v5791
  %v5842 = vadd.f32 %v5691, %v5791
  %v5843 = vadd.f32 %v5692, %v5791
  %v5844 = vadd.f32 %v5693, %v5791
  %v5845 = vadd.f32 %v5694, %v5791
  %v5846 = vadd.f32 %v5695, %v5791
  %v5847 = vadd.f32 %v5696, %v5791
  %v5848 = vadd.f32 %v5697, %v5791
  %v5849 = vadd.f32 %v5698, %v5791
  %v5850 = vadd.f32 %v5699, %v5791
  %v5851 = vadd.f32 %v5700, %v5791
  %v5852 = vadd.f32 %v5701, %v5791
  %v5853 = vadd.f32 %v5702, %v5791
  %v5854 = vadd.f32 %v5703, %v5791
  %v5855 = vadd.f32 %v5704, %v5791
  %v5856 = vadd.f32 %v5705, %v5791
  %v5857 = vadd.f32 %v5706, %v5791
  %v5858 = vadd.f32 %v5707, %v5791
  %v5859 = vadd.f32 %v5708, %v5791
  %v5860 = vadd.f32 %v5709, %v5791
  %v5861 = vadd.f32 %v5710, %v5791
  %v5862 = vadd.f32 %v5711, %v5791
  %v5863 = vadd.f32 %v5712, %v5791
  %v5864 = vadd.f32 %v5713, %v5791
  %v5865 = vadd.f32 %v5714, %v5791
  %v5866 = vadd.f32 %v5715, %v5791
  %v5867 = vadd.f32 %v5716, %v5791
  %v5868 = vadd.f32 %v5717, %v5791
  %v5869 = vadd.f32 %v5718, %v5791
  %v5870 = vadd.f32 %v5719, %v5791
  %v5871 = vadd.f32 %v5720, %v5791
  %v5872 = vadd.f32 %v5721, %v5791
  %v5873 = vadd.f32 %v5722, %v5791
  %v5874 = vadd.f32 %v5723, %v5791
  %v5875 = vadd.f32 %v5724, %v5791
  %v5876 = vadd.f32 %v5725, %v5791
  %v5877 = vadd.f32 %v5726, %v5791
  %v5878 = vadd.f32 %v5727, %v5791
  %v5879 = vadd.f32 %v5728, %v5791
  %v5880 = vadd.f32 %v5729, %v5791
  %v5881 = vadd.f32 %v5730, %v5791
  %v5882 = vadd.f32 %v5731, %v5791
  %v5883 = vadd.f32 %v5732, %v5791
  %v5884 = vadd.f32 %v5733, %v5791
  %v5885 = vadd.f32 %v5734, %v5791
  %v5886 = vadd.f32 %v5735, %v5791
  %v5887 = vadd.f32 %v5736, %v5791
  %v5888 = vadd.f32 %v5737, %v5791
  %v5889 = vadd.f32 %v5738, %v5791
  %v5890 = vadd.f32 %v5739, %v5791
  %v5891 = vadd.f32 %v5740, %v5791
  %v5892 = vadd.f32 %v5741, %v5791
  %v5893 = vadd.f32 %v5742, %v5791
  %v5894 = vadd.f32 %v5743, %v5791
  %v5895 = vadd.f32 %v5744, %v5791
  %v5896 = vadd.f32 %v5745, %v5791
  %v5897 = vadd.f32 %v5746, %v5791
  %v5898 = vadd.f32 %v5747, %v5791
  %v5899 = vadd.f32 %v5748, %v5791
  %v5900 = vadd.f32 %v5749, %v5791
  %v5901 = vadd.f32 %v5750, %v5791
  %v5902 = vadd.f32 %v5751, %v5791
  %v5903 = vadd.f32 %v5752, %v5791
  %v5904 = vadd.f32 %v5753, %v5791
  %v5905 = vadd.f32 %v5754, %v5791
  %v5906 = vadd.f32 %v5755, %v5791
  %v5907 = vadd.f32 %v5756, %v5791
  %v5908 = vadd.f32 %v5757, %v5791
  %v5909 = vadd.f32 %v5758, %v5791
  %v5910 = vadd.f32 %v5759, %v5791
  %v5911 = vadd.f32 %v5760, %v5791
  %v5912 = vadd.f32 %v5761, %v5791
  %v5913 = vadd.f32 %v5762, %v5791
  %v5914 = vadd.f32 %v5763, %v5791
  %v5915 = vadd.f32 %v5764, %v5791
  %v5916 = vadd.f32 %v5765, %v5791
  %v5917 = vadd.f32 %v5766, %v5791
  %v5918 = vadd.f32 %v5767, %v5791
  %v5919 = vadd.f32 %v5768, %v5791
  %v5920 = vadd.f32 %v5769, %v5791
  %v5921 = vadd.f32 %v5770, %v5791
  %v5922 = vadd.f32 %v5771, %v5791
  %v5923 = vadd.f32 %v5772, %v5791
  %v5924 = vadd.f32 %v5773, %v5791
  %v5925 = vadd.f32 %v5774, %v5791
  %v5926 = vadd.f32 %v5775, %v5791
  %v5927 = vadd.f32 %v5776, %v5791
  %v5928 = vadd.f32 %v5777, %v5791
  %v5929 = vadd.f32 %v5778, %v5791
  %v5930 = vadd.f32 %v5779, %v5791
  %v5931 = vadd.f32 %v5780, %v5791
  %v5932 = vadd.f32 %v5781, %v5791
  %v5933 = vadd.f32 %v5782, %v5791
  %v5934 = vadd.f32 %v5783, %v5791
  %v5935 = vadd.f32 %v5784, %v5791
  %v5936 = vadd.f32 %v5785, %v5791
  %v5937 = vmax.f32 %v5793, 0.0
  %v5938 = vmax.f32 %v5794, 0.0
  %v5939 = vmax.f32 %v5795, 0.0
  %v5940 = vmax.f32 %v5796, 0.0
  %v5941 = vmax.f32 %v5797, 0.0
  %v5942 = vmax.f32 %v5798, 0.0
  %v5943 = vmax.f32 %v5799, 0.0
  %v5944 = vmax.f32 %v5800, 0.0
  %v5945 = vmax.f32 %v5801, 0.0
  %v5946 = vmax.f32 %v5802, 0.0
  %v5947 = vmax.f32 %v5803, 0.0
  %v5948 = vmax.f32 %v5804, 0.0
  %v5949 = vmax.f32 %v5805, 0.0
  %v5950 = vmax.f32 %v5806, 0.0
  %v5951 = vmax.f32 %v5807, 0.0
  %v5952 = vmax.f32 %v5808, 0.0
  %v5953 = vmax.f32 %v5809, 0.0
  %v5954 = vmax.f32 %v5810, 0.0
  %v5955 = vmax.f32 %v5811, 0.0
  %v5956 = vmax.f32 %v5812, 0.0
  %v5957 = vmax.f32 %v5813, 0.0
  %v5958 = vmax.f32 %v5814, 0.0
  %v5959 = vmax.f32 %v5815, 0.0
  %v5960 = vmax.f32 %v5816, 0.0
  %v5961 = vmax.f32 %v5817, 0.0
  %v5962 = vmax.f32 %v5818, 0.0
  %v5963 = vmax.f32 %v5819, 0.0
  %v5964 = vmax.f32 %v5820, 0.0
  %v5965 = vmax.f32 %v5821, 0.0
  %v5966 = vmax.f32 %v5822, 0.0
  %v5967 = vmax.f32 %v5823, 0.0
  %v5968 = vmax.f32 %v5824, 0.0
  %v5969 = vmax.f32 %v5825, 0.0
  %v5970 = vmax.f32 %v5826, 0.0
  %v5971 = vmax.f32 %v5827, 0.0
  %v5972 = vmax.f32 %v5828, 0.0
  %v5973 = vmax.f32 %v5829, 0.0
  %v5974 = vmax.f32 %v5830, 0.0
  %v5975 = vmax.f32 %v5831, 0.0
  %v5976 = vmax.f32 %v5832, 0.0
  %v5977 = vmax.f32 %v5833, 0.0
  %v5978 = vmax.f32 %v5834, 0.0
  %v5979 = vmax.f32 %v5835, 0.0
  %v5980 = vmax.f32 %v5836, 0.0
  %v5981 = vmax.f32 %v5837, 0.0
  %v5982 = vmax.f32 %v5838, 0.0
  %v5983 = vmax.f32 %v5839, 0.0
  %v5984 = vmax.f32 %v5840, 0.0
  %v5985 = vmax.f32 %v5841, 0.0
  %v5986 = vmax.f32 %v5842, 0.0
  %v5987 = vmax.f32 %v5843, 0.0
  %v5988 = vmax.f32 %v5844, 0.0
  %v5989 = vmax.f32 %v5845, 0.0
  %v5990 = vmax.f32 %v5846, 0.0
  %v5991 = vmax.f32 %v5847, 0.0
  %v5992 = vmax.f32 %v5848, 0.0
  %v5993 = vmax.f32 %v5849, 0.0
  %v5994 = vmax.f32 %v5850, 0.0
  %v5995 = vmax.f32 %v5851, 0.0
  %v5996 = vmax.f32 %v5852, 0.0
  %v5997 = vmax.f32 %v5853, 0.0
  %v5998 = vmax.f32 %v5854, 0.0
  %v5999 = vmax.f32 %v5855, 0.0
  %v6000 = vmax.f32 %v5856, 0.0
  %v6001 = vmax.f32 %v5857, 0.0
  %v6002 = vmax.f32 %v5858, 0.0
  %v6003 = vmax.f32 %v5859, 0.0
  %v6004 = vmax.f32 %v5860, 0.0
  %v6005 = vmax.f32 %v5861, 0.0
  %v6006 = vmax.f32 %v5862, 0.0
  %v6007 = vmax.f32 %v5863, 0.0
  %v6008 = vmax.f32 %v5864, 0.0
  %v6009 = vmax.f32 %v5865, 0.0
  %v6010 = vmax.f32 %v5866, 0.0
  %v6011 = vmax.f32 %v5867, 0.0
  %v6012 = vmax.f32 %v5868, 0.0
  %v6013 = vmax.f32 %v5869, 0.0
  %v6014 = vmax.f32 %v5870, 0.0
  %v6015 = vmax.f32 %v5871, 0.0
  %v6016 = vmax.f32 %v5872, 0.0
  %v6017 = vmax.f32 %v5873, 0.0
  %v6018 = vmax.f32 %v5874, 0.0
  %v6019 = vmax.f32 %v5875, 0.0
  %v6020 = vmax.f32 %v5876, 0.0
  %v6021 = vmax.f32 %v5877, 0.0
  %v6022 = vmax.f32 %v5878, 0.0
  %v6023 = vmax.f32 %v5879, 0.0
  %v6024 = vmax.f32 %v5880, 0.0
  %v6025 = vmax.f32 %v5881, 0.0
  %v6026 = vmax.f32 %v5882, 0.0
  %v6027 = vmax.f32 %v5883, 0.0
  %v6028 = vmax.f32 %v5884, 0.0
  %v6029 = vmax.f32 %v5885, 0.0
  %v6030 = vmax.f32 %v5886, 0.0
  %v6031 = vmax.f32 %v5887, 0.0
  %v6032 = vmax.f32 %v5888, 0.0
  %v6033 = vmax.f32 %v5889, 0.0
  %v6034 = vmax.f32 %v5890, 0.0
  %v6035 = vmax.f32 %v5891, 0.0
  %v6036 = vmax.f32 %v5892, 0.0
  %v6037 = vmax.f32 %v5893, 0.0
  %v6038 = vmax.f32 %v5894, 0.0
  %v6039 = vmax.f32 %v5895, 0.0
  %v6040 = vmax.f32 %v5896, 0.0
  %v6041 = vmax.f32 %v5897, 0.0
  %v6042 = vmax.f32 %v5898, 0.0
  %v6043 = vmax.f32 %v5899, 0.0
  %v6044 = vmax.f32 %v5900, 0.0
  %v6045 = vmax.f32 %v5901, 0.0
  %v6046 = vmax.f32 %v5902, 0.0
  %v6047 = vmax.f32 %v5903, 0.0
  %v6048 = vmax.f32 %v5904, 0.0
  %v6049 = vmax.f32 %v5905, 0.0
  %v6050 = vmax.f32 %v5906, 0.0
  %v6051 = vmax.f32 %v5907, 0.0
  %v6052 = vmax.f32 %v5908, 0.0
  %v6053 = vmax.f32 %v5909, 0.0
  %v6054 = vmax.f32 %v5910, 0.0
  %v6055 = vmax.f32 %v5911, 0.0
  %v6056 = vmax.f32 %v5912, 0.0
  %v6057 = vmax.f32 %v5913, 0.0
  %v6058 = vmax.f32 %v5914, 0.0
  %v6059 = vmax.f32 %v5915, 0.0
  %v6060 = vmax.f32 %v5916, 0.0
  %v6061 = vmax.f32 %v5917, 0.0
  %v6062 = vmax.f32 %v5918, 0.0
  %v6063 = vmax.f32 %v5919, 0.0
  %v6064 = vmax.f32 %v5920, 0.0
  %v6065 = vmax.f32 %v5921, 0.0
  %v6066 = vmax.f32 %v5922, 0.0
  %v6067 = vmax.f32 %v5923, 0.0
  %v6068 = vmax.f32 %v5924, 0.0
  %v6069 = vmax.f32 %v5925, 0.0
  %v6070 = vmax.f32 %v5926, 0.0
  %v6071 = vmax.f32 %v5927, 0.0
  %v6072 = vmax.f32 %v5928, 0.0
  %v6073 = vmax.f32 %v5929, 0.0
  %v6074 = vmax.f32 %v5930, 0.0
  %v6075 = vmax.f32 %v5931, 0.0
  %v6076 = vmax.f32 %v5932, 0.0
  %v6077 = vmax.f32 %v5933, 0.0
  %v6078 = vmax.f32 %v5934, 0.0
  %v6079 = vmax.f32 %v5935, 0.0
  %v6080 = vmax.f32 %v5936, 0.0
  %v6081 = vpack.c.bf16 %v5938, %v5937
  %v6082 = vpack.c.bf16 %v5940, %v5939
  %v6083 = vpack.c.bf16 %v5942, %v5941
  %v6084 = vpack.c.bf16 %v5944, %v5943
  %v6085 = vpack.c.bf16 %v5946, %v5945
  %v6086 = vpack.c.bf16 %v5948, %v5947
  %v6087 = vpack.c.bf16 %v5950, %v5949
  %v6088 = vpack.c.bf16 %v5952, %v5951
  %v6089 = vpack.c.bf16 %v5954, %v5953
  %v6090 = vpack.c.bf16 %v5956, %v5955
  %v6091 = vpack.c.bf16 %v5958, %v5957
  %v6092 = vpack.c.bf16 %v5960, %v5959
  %v6093 = vpack.c.bf16 %v5962, %v5961
  %v6094 = vpack.c.bf16 %v5964, %v5963
  %v6095 = vpack.c.bf16 %v5966, %v5965
  %v6096 = vpack.c.bf16 %v5968, %v5967
  %v6097 = vpack.c.bf16 %v5970, %v5969
  %v6098 = vpack.c.bf16 %v5972, %v5971
  %v6099 = vpack.c.bf16 %v5974, %v5973
  %v6100 = vpack.c.bf16 %v5976, %v5975
  %v6101 = vpack.c.bf16 %v5978, %v5977
  %v6102 = vpack.c.bf16 %v5980, %v5979
  %v6103 = vpack.c.bf16 %v5982, %v5981
  %v6104 = vpack.c.bf16 %v5984, %v5983
  %v6105 = vpack.c.bf16 %v5986, %v5985
  %v6106 = vpack.c.bf16 %v5988, %v5987
  %v6107 = vpack.c.bf16 %v5990, %v5989
  %v6108 = vpack.c.bf16 %v5992, %v5991
  %v6109 = vpack.c.bf16 %v5994, %v5993
  %v6110 = vpack.c.bf16 %v5996, %v5995
  %v6111 = vpack.c.bf16 %v5998, %v5997
  %v6112 = vpack.c.bf16 %v6000, %v5999
  %v6113 = vpack.c.bf16 %v6002, %v6001
  %v6114 = vpack.c.bf16 %v6004, %v6003
  %v6115 = vpack.c.bf16 %v6006, %v6005
  %v6116 = vpack.c.bf16 %v6008, %v6007
  %v6117 = vpack.c.bf16 %v6010, %v6009
  %v6118 = vpack.c.bf16 %v6012, %v6011
  %v6119 = vpack.c.bf16 %v6014, %v6013
  %v6120 = vpack.c.bf16 %v6016, %v6015
  %v6121 = vpack.c.bf16 %v6018, %v6017
  %v6122 = vpack.c.bf16 %v6020, %v6019
  %v6123 = vpack.c.bf16 %v6022, %v6021
  %v6124 = vpack.c.bf16 %v6024, %v6023
  %v6125 = vpack.c.bf16 %v6026, %v6025
  %v6126 = vpack.c.bf16 %v6028, %v6027
  %v6127 = vpack.c.bf16 %v6030, %v6029
  %v6128 = vpack.c.bf16 %v6032, %v6031
  %v6129 = vpack.c.bf16 %v6034, %v6033
  %v6130 = vpack.c.bf16 %v6036, %v6035
  %v6131 = vpack.c.bf16 %v6038, %v6037
  %v6132 = vpack.c.bf16 %v6040, %v6039
  %v6133 = vpack.c.bf16 %v6042, %v6041
  %v6134 = vpack.c.bf16 %v6044, %v6043
  %v6135 = vpack.c.bf16 %v6046, %v6045
  %v6136 = vpack.c.bf16 %v6048, %v6047
  %v6137 = vpack.c.bf16 %v6050, %v6049
  %v6138 = vpack.c.bf16 %v6052, %v6051
  %v6139 = vpack.c.bf16 %v6054, %v6053
  %v6140 = vpack.c.bf16 %v6056, %v6055
  %v6141 = vpack.c.bf16 %v6058, %v6057
  %v6142 = vpack.c.bf16 %v6060, %v6059
  %v6143 = vpack.c.bf16 %v6062, %v6061
  %v6144 = vpack.c.bf16 %v6064, %v6063
  %v6145 = vpack.c.bf16 %v6066, %v6065
  %v6146 = vpack.c.bf16 %v6068, %v6067
  %v6147 = vpack.c.bf16 %v6070, %v6069
  %v6148 = vpack.c.bf16 %v6072, %v6071
  %v6149 = vpack.c.bf16 %v6074, %v6073
  %v6150 = vpack.c.bf16 %v6076, %v6075
  %v6151 = vpack.c.bf16 %v6078, %v6077
  %v6152 = vpack.c.bf16 %v6080, %v6079
  %v6225 = vunpack.c.l.b16 %v6081
  %v6226 = vunpack.c.h.b16 %v6081
  %v6227 = vunpack.c.l.b16 %v6082
  %v6228 = vunpack.c.h.b16 %v6082
  %v6229 = vunpack.c.l.b16 %v6083
  %v6230 = vunpack.c.h.b16 %v6083
  %v6231 = vunpack.c.l.b16 %v6084
  %v6232 = vunpack.c.h.b16 %v6084
  %v6233 = vunpack.c.l.b16 %v6085
  %v6234 = vunpack.c.h.b16 %v6085
  %v6235 = vunpack.c.l.b16 %v6086
  %v6236 = vunpack.c.h.b16 %v6086
  %v6237 = vunpack.c.l.b16 %v6087
  %v6238 = vunpack.c.h.b16 %v6087
  %v6239 = vunpack.c.l.b16 %v6088
  %v6240 = vunpack.c.h.b16 %v6088
  %v6241 = vunpack.c.l.b16 %v6089
  %v6242 = vunpack.c.h.b16 %v6089
  %v6243 = vunpack.c.l.b16 %v6090
  %v6244 = vunpack.c.h.b16 %v6090
  %v6245 = vunpack.c.l.b16 %v6091
  %v6246 = vunpack.c.h.b16 %v6091
  %v6247 = vunpack.c.l.b16 %v6092
  %v6248 = vunpack.c.h.b16 %v6092
  %v6249 = vunpack.c.l.b16 %v6093
  %v6250 = vunpack.c.h.b16 %v6093
  %v6251 = vunpack.c.l.b16 %v6094
  %v6252 = vunpack.c.h.b16 %v6094
  %v6253 = vunpack.c.l.b16 %v6095
  %v6254 = vunpack.c.h.b16 %v6095
  %v6255 = vunpack.c.l.b16 %v6096
  %v6256 = vunpack.c.h.b16 %v6096
  %v6257 = vunpack.c.l.b16 %v6097
  %v6258 = vunpack.c.h.b16 %v6097
  %v6259 = vunpack.c.l.b16 %v6098
  %v6260 = vunpack.c.h.b16 %v6098
  %v6261 = vunpack.c.l.b16 %v6099
  %v6262 = vunpack.c.h.b16 %v6099
  %v6263 = vunpack.c.l.b16 %v6100
  %v6264 = vunpack.c.h.b16 %v6100
  %v6265 = vunpack.c.l.b16 %v6101
  %v6266 = vunpack.c.h.b16 %v6101
  %v6267 = vunpack.c.l.b16 %v6102
  %v6268 = vunpack.c.h.b16 %v6102
  %v6269 = vunpack.c.l.b16 %v6103
  %v6270 = vunpack.c.h.b16 %v6103
  %v6271 = vunpack.c.l.b16 %v6104
  %v6272 = vunpack.c.h.b16 %v6104
  %v6273 = vunpack.c.l.b16 %v6105
  %v6274 = vunpack.c.h.b16 %v6105
  %v6275 = vunpack.c.l.b16 %v6106
  %v6276 = vunpack.c.h.b16 %v6106
  %v6277 = vunpack.c.l.b16 %v6107
  %v6278 = vunpack.c.h.b16 %v6107
  %v6279 = vunpack.c.l.b16 %v6108
  %v6280 = vunpack.c.h.b16 %v6108
  %v6281 = vunpack.c.l.b16 %v6109
  %v6282 = vunpack.c.h.b16 %v6109
  %v6283 = vunpack.c.l.b16 %v6110
  %v6284 = vunpack.c.h.b16 %v6110
  %v6285 = vunpack.c.l.b16 %v6111
  %v6286 = vunpack.c.h.b16 %v6111
  %v6287 = vunpack.c.l.b16 %v6112
  %v6288 = vunpack.c.h.b16 %v6112
  %v6289 = vunpack.c.l.b16 %v6113
  %v6290 = vunpack.c.h.b16 %v6113
  %v6291 = vunpack.c.l.b16 %v6114
  %v6292 = vunpack.c.h.b16 %v6114
  %v6293 = vunpack.c.l.b16 %v6115
  %v6294 = vunpack.c.h.b16 %v6115
  %v6295 = vunpack.c.l.b16 %v6116
  %v6296 = vunpack.c.h.b16 %v6116
  %v6297 = vunpack.c.l.b16 %v6117
  %v6298 = vunpack.c.h.b16 %v6117
  %v6299 = vunpack.c.l.b16 %v6118
  %v6300 = vunpack.c.h.b16 %v6118
  %v6301 = vunpack.c.l.b16 %v6119
  %v6302 = vunpack.c.h.b16 %v6119
  %v6303 = vunpack.c.l.b16 %v6120
  %v6304 = vunpack.c.h.b16 %v6120
  %v6305 = vunpack.c.l.b16 %v6121
  %v6306 = vunpack.c.h.b16 %v6121
  %v6307 = vunpack.c.l.b16 %v6122
  %v6308 = vunpack.c.h.b16 %v6122
  %v6309 = vunpack.c.l.b16 %v6123
  %v6310 = vunpack.c.h.b16 %v6123
  %v6311 = vunpack.c.l.b16 %v6124
  %v6312 = vunpack.c.h.b16 %v6124
  %v6313 = vunpack.c.l.b16 %v6125
  %v6314 = vunpack.c.h.b16 %v6125
  %v6315 = vunpack.c.l.b16 %v6126
  %v6316 = vunpack.c.h.b16 %v6126
  %v6317 = vunpack.c.l.b16 %v6127
  %v6318 = vunpack.c.h.b16 %v6127
  %v6319 = vunpack.c.l.b16 %v6128
  %v6320 = vunpack.c.h.b16 %v6128
  %v6321 = vunpack.c.l.b16 %v6129
  %v6322 = vunpack.c.h.b16 %v6129
  %v6323 = vunpack.c.l.b16 %v6130
  %v6324 = vunpack.c.h.b16 %v6130
  %v6325 = vunpack.c.l.b16 %v6131
  %v6326 = vunpack.c.h.b16 %v6131
  %v6327 = vunpack.c.l.b16 %v6132
  %v6328 = vunpack.c.h.b16 %v6132
  %v6329 = vunpack.c.l.b16 %v6133
  %v6330 = vunpack.c.h.b16 %v6133
  %v6331 = vunpack.c.l.b16 %v6134
  %v6332 = vunpack.c.h.b16 %v6134
  %v6333 = vunpack.c.l.b16 %v6135
  %v6334 = vunpack.c.h.b16 %v6135
  %v6335 = vunpack.c.l.b16 %v6136
  %v6336 = vunpack.c.h.b16 %v6136
  %v6337 = vunpack.c.l.b16 %v6137
  %v6338 = vunpack.c.h.b16 %v6137
  %v6339 = vunpack.c.l.b16 %v6138
  %v6340 = vunpack.c.h.b16 %v6138
  %v6341 = vunpack.c.l.b16 %v6139
  %v6342 = vunpack.c.h.b16 %v6139
  %v6343 = vunpack.c.l.b16 %v6140
  %v6344 = vunpack.c.h.b16 %v6140
  %v6345 = vunpack.c.l.b16 %v6141
  %v6346 = vunpack.c.h.b16 %v6141
  %v6347 = vunpack.c.l.b16 %v6142
  %v6348 = vunpack.c.h.b16 %v6142
  %v6349 = vunpack.c.l.b16 %v6143
  %v6350 = vunpack.c.h.b16 %v6143
  %v6351 = vunpack.c.l.b16 %v6144
  %v6352 = vunpack.c.h.b16 %v6144
  %v6353 = vunpack.c.l.b16 %v6145
  %v6354 = vunpack.c.h.b16 %v6145
  %v6355 = vunpack.c.l.b16 %v6146
  %v6356 = vunpack.c.h.b16 %v6146
  %v6357 = vunpack.c.l.b16 %v6147
  %v6358 = vunpack.c.h.b16 %v6147
  %v6359 = vunpack.c.l.b16 %v6148
  %v6360 = vunpack.c.h.b16 %v6148
  %v6361 = vunpack.c.l.b16 %v6149
  %v6362 = vunpack.c.h.b16 %v6149
  %v6363 = vunpack.c.l.b16 %v6150
  %v6364 = vunpack.c.h.b16 %v6150
  %v6365 = vunpack.c.l.b16 %v6151
  %v6366 = vunpack.c.h.b16 %v6151
  %v6367 = vunpack.c.l.b16 %v6152
  %v6368 = vunpack.c.h.b16 %v6152
  %v6369 = vpack.c.b16 %v6225, %v6225
  %v6370 = vpack.c.b16 %v6226, %v6226
  %v6371 = vpack.c.b16 %v6227, %v6227
  %v6372 = vpack.c.b16 %v6228, %v6228
  %v6373 = vpack.c.b16 %v6229, %v6229
  %v6374 = vpack.c.b16 %v6230, %v6230
  %v6375 = vpack.c.b16 %v6231, %v6231
  %v6376 = vpack.c.b16 %v6232, %v6232
  %v6377 = vpack.c.b16 %v6233, %v6233
  %v6378 = vpack.c.b16 %v6234, %v6234
  %v6379 = vpack.c.b16 %v6235, %v6235
  %v6380 = vpack.c.b16 %v6236, %v6236
  %v6381 = vpack.c.b16 %v6237, %v6237
  %v6382 = vpack.c.b16 %v6238, %v6238
  %v6383 = vpack.c.b16 %v6239, %v6239
  %v6384 = vpack.c.b16 %v6240, %v6240
  %v6385 = vpack.c.b16 %v6241, %v6241
  %v6386 = vpack.c.b16 %v6242, %v6242
  %v6387 = vpack.c.b16 %v6243, %v6243
  %v6388 = vpack.c.b16 %v6244, %v6244
  %v6389 = vpack.c.b16 %v6245, %v6245
  %v6390 = vpack.c.b16 %v6246, %v6246
  %v6391 = vpack.c.b16 %v6247, %v6247
  %v6392 = vpack.c.b16 %v6248, %v6248
  %v6393 = vpack.c.b16 %v6249, %v6249
  %v6394 = vpack.c.b16 %v6250, %v6250
  %v6395 = vpack.c.b16 %v6251, %v6251
  %v6396 = vpack.c.b16 %v6252, %v6252
  %v6397 = vpack.c.b16 %v6253, %v6253
  %v6398 = vpack.c.b16 %v6254, %v6254
  %v6399 = vpack.c.b16 %v6255, %v6255
  %v6400 = vpack.c.b16 %v6256, %v6256
  %v6401 = vpack.c.b16 %v6257, %v6257
  %v6402 = vpack.c.b16 %v6258, %v6258
  %v6403 = vpack.c.b16 %v6259, %v6259
  %v6404 = vpack.c.b16 %v6260, %v6260
  %v6405 = vpack.c.b16 %v6261, %v6261
  %v6406 = vpack.c.b16 %v6262, %v6262
  %v6407 = vpack.c.b16 %v6263, %v6263
  %v6408 = vpack.c.b16 %v6264, %v6264
  %v6409 = vpack.c.b16 %v6265, %v6265
  %v6410 = vpack.c.b16 %v6266, %v6266
  %v6411 = vpack.c.b16 %v6267, %v6267
  %v6412 = vpack.c.b16 %v6268, %v6268
  %v6413 = vpack.c.b16 %v6269, %v6269
  %v6414 = vpack.c.b16 %v6270, %v6270
  %v6415 = vpack.c.b16 %v6271, %v6271
  %v6416 = vpack.c.b16 %v6272, %v6272
  %v6417 = vpack.c.b16 %v6273, %v6273
  %v6418 = vpack.c.b16 %v6274, %v6274
  %v6419 = vpack.c.b16 %v6275, %v6275
  %v6420 = vpack.c.b16 %v6276, %v6276
  %v6421 = vpack.c.b16 %v6277, %v6277
  %v6422 = vpack.c.b16 %v6278, %v6278
  %v6423 = vpack.c.b16 %v6279, %v6279
  %v6424 = vpack.c.b16 %v6280, %v6280
  %v6425 = vpack.c.b16 %v6281, %v6281
  %v6426 = vpack.c.b16 %v6282, %v6282
  %v6427 = vpack.c.b16 %v6283, %v6283
  %v6428 = vpack.c.b16 %v6284, %v6284
  %v6429 = vpack.c.b16 %v6285, %v6285
  %v6430 = vpack.c.b16 %v6286, %v6286
  %v6431 = vpack.c.b16 %v6287, %v6287
  %v6432 = vpack.c.b16 %v6288, %v6288
  %v6433 = vpack.c.b16 %v6289, %v6289
  %v6434 = vpack.c.b16 %v6290, %v6290
  %v6435 = vpack.c.b16 %v6291, %v6291
  %v6436 = vpack.c.b16 %v6292, %v6292
  %v6437 = vpack.c.b16 %v6293, %v6293
  %v6438 = vpack.c.b16 %v6294, %v6294
  %v6439 = vpack.c.b16 %v6295, %v6295
  %v6440 = vpack.c.b16 %v6296, %v6296
  %v6441 = vpack.c.b16 %v6297, %v6297
  %v6442 = vpack.c.b16 %v6298, %v6298
  %v6443 = vpack.c.b16 %v6299, %v6299
  %v6444 = vpack.c.b16 %v6300, %v6300
  %v6445 = vpack.c.b16 %v6301, %v6301
  %v6446 = vpack.c.b16 %v6302, %v6302
  %v6447 = vpack.c.b16 %v6303, %v6303
  %v6448 = vpack.c.b16 %v6304, %v6304
  %v6449 = vpack.c.b16 %v6305, %v6305
  %v6450 = vpack.c.b16 %v6306, %v6306
  %v6451 = vpack.c.b16 %v6307, %v6307
  %v6452 = vpack.c.b16 %v6308, %v6308
  %v6453 = vpack.c.b16 %v6309, %v6309
  %v6454 = vpack.c.b16 %v6310, %v6310
  %v6455 = vpack.c.b16 %v6311, %v6311
  %v6456 = vpack.c.b16 %v6312, %v6312
  %v6457 = vpack.c.b16 %v6313, %v6313
  %v6458 = vpack.c.b16 %v6314, %v6314
  %v6459 = vpack.c.b16 %v6315, %v6315
  %v6460 = vpack.c.b16 %v6316, %v6316
  %v6461 = vpack.c.b16 %v6317, %v6317
  %v6462 = vpack.c.b16 %v6318, %v6318
  %v6463 = vpack.c.b16 %v6319, %v6319
  %v6464 = vpack.c.b16 %v6320, %v6320
  %v6465 = vpack.c.b16 %v6321, %v6321
  %v6466 = vpack.c.b16 %v6322, %v6322
  %v6467 = vpack.c.b16 %v6323, %v6323
  %v6468 = vpack.c.b16 %v6324, %v6324
  %v6469 = vpack.c.b16 %v6325, %v6325
  %v6470 = vpack.c.b16 %v6326, %v6326
  %v6471 = vpack.c.b16 %v6327, %v6327
  %v6472 = vpack.c.b16 %v6328, %v6328
  %v6473 = vpack.c.b16 %v6329, %v6329
  %v6474 = vpack.c.b16 %v6330, %v6330
  %v6475 = vpack.c.b16 %v6331, %v6331
  %v6476 = vpack.c.b16 %v6332, %v6332
  %v6477 = vpack.c.b16 %v6333, %v6333
  %v6478 = vpack.c.b16 %v6334, %v6334
  %v6479 = vpack.c.b16 %v6335, %v6335
  %v6480 = vpack.c.b16 %v6336, %v6336
  %v6481 = vpack.c.b16 %v6337, %v6337
  %v6482 = vpack.c.b16 %v6338, %v6338
  %v6483 = vpack.c.b16 %v6339, %v6339
  %v6484 = vpack.c.b16 %v6340, %v6340
  %v6485 = vpack.c.b16 %v6341, %v6341
  %v6486 = vpack.c.b16 %v6342, %v6342
  %v6487 = vpack.c.b16 %v6343, %v6343
  %v6488 = vpack.c.b16 %v6344, %v6344
  %v6489 = vpack.c.b16 %v6345, %v6345
  %v6490 = vpack.c.b16 %v6346, %v6346
  %v6491 = vpack.c.b16 %v6347, %v6347
  %v6492 = vpack.c.b16 %v6348, %v6348
  %v6493 = vpack.c.b16 %v6349, %v6349
  %v6494 = vpack.c.b16 %v6350, %v6350
  %v6495 = vpack.c.b16 %v6351, %v6351
  %v6496 = vpack.c.b16 %v6352, %v6352
  %v6497 = vpack.c.b16 %v6353, %v6353
  %v6498 = vpack.c.b16 %v6354, %v6354
  %v6499 = vpack.c.b16 %v6355, %v6355
  %v6500 = vpack.c.b16 %v6356, %v6356
  %v6501 = vpack.c.b16 %v6357, %v6357
  %v6502 = vpack.c.b16 %v6358, %v6358
  %v6503 = vpack.c.b16 %v6359, %v6359
  %v6504 = vpack.c.b16 %v6360, %v6360
  %v6505 = vpack.c.b16 %v6361, %v6361
  %v6506 = vpack.c.b16 %v6362, %v6362
  %v6507 = vpack.c.b16 %v6363, %v6363
  %v6508 = vpack.c.b16 %v6364, %v6364
  %v6509 = vpack.c.b16 %v6365, %v6365
  %v6510 = vpack.c.b16 %v6366, %v6366
  %v6511 = vpack.c.b16 %v6367, %v6367
  %v6512 = vpack.c.b16 %v6368, %v6368
  %6657 = vst [vmem:[%s3] sm:$0xf] %v6369
  %6658 = vst [vmem:[%s3 + $0x4] sm:$0xf] %v6370
  %6659 = vst [vmem:[%s3 + $0x8] sm:$0xf] %v6371
  %6660 = vst [vmem:[%s3 + $0xc] sm:$0xf] %v6372
  %6661 = vst [vmem:[%s3 + $0x10] sm:$0xf] %v6373
  %6662 = vst [vmem:[%s3 + $0x14] sm:$0xf] %v6374
  %6663 = vst [vmem:[%s3 + $0x18] sm:$0xf] %v6375
  %6664 = vst [vmem:[%s3 + $0x1c] sm:$0xf] %v6376
  %6665 = vst [vmem:[%s3 + $0x20] sm:$0xf] %v6377
  %6666 = vst [vmem:[%s3 + $0x24] sm:$0xf] %v6378
  %6667 = vst [vmem:[%s3 + $0x28] sm:$0xf] %v6379
  %6668 = vst [vmem:[%s3 + $0x2c] sm:$0xf] %v6380
  %6669 = vst [vmem:[%s3 + $0x30] sm:$0xf] %v6381
  %6670 = vst [vmem:[%s3 + $0x34] sm:$0xf] %v6382
  %6671 = vst [vmem:[%s3 + $0x38] sm:$0xf] %v6383
  %6672 = vst [vmem:[%s3 + $0x3c] sm:$0xf] %v6384
  %6673 = vst [vmem:[%s3 + $0x40] sm:$0xf] %v6385
  %6674 = vst [vmem:[%s3 + $0x44] sm:$0xf] %v6386
  %6675 = vst [vmem:[%s3 + $0x48] sm:$0xf] %v6387
  %6676 = vst [vmem:[%s3 + $0x4c] sm:$0xf] %v6388
  %6677 = vst [vmem:[%s3 + $0x50] sm:$0xf] %v6389
  %6678 = vst [vmem:[%s3 + $0x54] sm:$0xf] %v6390
  %6679 = vst [vmem:[%s3 + $0x58] sm:$0xf] %v6391
  %6680 = vst [vmem:[%s3 + $0x5c] sm:$0xf] %v6392
  %6681 = vst [vmem:[%s3 + $0x60] sm:$0xf] %v6393
  %6682 = vst [vmem:[%s3 + $0x64] sm:$0xf] %v6394
  %6683 = vst [vmem:[%s3 + $0x68] sm:$0xf] %v6395
  %6684 = vst [vmem:[%s3 + $0x6c] sm:$0xf] %v6396
  %6685 = vst [vmem:[%s3 + $0x70] sm:$0xf] %v6397
  %6686 = vst [vmem:[%s3 + $0x74] sm:$0xf] %v6398
  %6687 = vst [vmem:[%s3 + $0x78] sm:$0xf] %v6399
  %6688 = vst [vmem:[%s3 + $0x7c] sm:$0xf] %v6400
  %6689 = vst [vmem:[%s3 + $0x80] sm:$0xf] %v6401
  %6690 = vst [vmem:[%s3 + $0x84] sm:$0xf] %v6402
  %6691 = vst [vmem:[%s3 + $0x88] sm:$0xf] %v6403
  %6692 = vst [vmem:[%s3 + $0x8c] sm:$0xf] %v6404
  %6693 = vst [vmem:[%s3 + $0x90] sm:$0xf] %v6405
  %6694 = vst [vmem:[%s3 + $0x94] sm:$0xf] %v6406
  %6695 = vst [vmem:[%s3 + $0x98] sm:$0xf] %v6407
  %6696 = vst [vmem:[%s3 + $0x9c] sm:$0xf] %v6408
  %6697 = vst [vmem:[%s3 + $0xa0] sm:$0xf] %v6409
  %6698 = vst [vmem:[%s3 + $0xa4] sm:$0xf] %v6410
  %6699 = vst [vmem:[%s3 + $0xa8] sm:$0xf] %v6411
  %6700 = vst [vmem:[%s3 + $0xac] sm:$0xf] %v6412
  %6701 = vst [vmem:[%s3 + $0xb0] sm:$0xf] %v6413
  %6702 = vst [vmem:[%s3 + $0xb4] sm:$0xf] %v6414
  %6703 = vst [vmem:[%s3 + $0xb8] sm:$0xf] %v6415
  %6704 = vst [vmem:[%s3 + $0xbc] sm:$0xf] %v6416
  %6705 = vst [vmem:[%s3 + $0xc0] sm:$0xf] %v6417
  %6706 = vst [vmem:[%s3 + $0xc4] sm:$0xf] %v6418
  %6707 = vst [vmem:[%s3 + $0xc8] sm:$0xf] %v6419
  %6708 = vst [vmem:[%s3 + $0xcc] sm:$0xf] %v6420
  %6709 = vst [vmem:[%s3 + $0xd0] sm:$0xf] %v6421
  %6710 = vst [vmem:[%s3 + $0xd4] sm:$0xf] %v6422
  %6711 = vst [vmem:[%s3 + $0xd8] sm:$0xf] %v6423
  %6712 = vst [vmem:[%s3 + $0xdc] sm:$0xf] %v6424
  %6713 = vst [vmem:[%s3 + $0xe0] sm:$0xf] %v6425
  %6714 = vst [vmem:[%s3 + $0xe4] sm:$0xf] %v6426
  %6715 = vst [vmem:[%s3 + $0xe8] sm:$0xf] %v6427
  %6716 = vst [vmem:[%s3 + $0xec] sm:$0xf] %v6428
  %6717 = vst [vmem:[%s3 + $0xf0] sm:$0xf] %v6429
  %6718 = vst [vmem:[%s3 + $0xf4] sm:$0xf] %v6430
  %6719 = vst [vmem:[%s3 + $0xf8] sm:$0xf] %v6431
  %6720 = vst [vmem:[%s3 + $0xfc] sm:$0xf] %v6432
  %6721 = vst [vmem:[%s3 + $0x100] sm:$0xf] %v6433
  %6722 = vst [vmem:[%s3 + $0x104] sm:$0xf] %v6434
  %6723 = vst [vmem:[%s3 + $0x108] sm:$0xf] %v6435
  %6724 = vst [vmem:[%s3 + $0x10c] sm:$0xf] %v6436
  %6725 = vst [vmem:[%s3 + $0x110] sm:$0xf] %v6437
  %6726 = vst [vmem:[%s3 + $0x114] sm:$0xf] %v6438
  %6727 = vst [vmem:[%s3 + $0x118] sm:$0xf] %v6439
  %6728 = vst [vmem:[%s3 + $0x11c] sm:$0xf] %v6440
  %6729 = vst [vmem:[%s3 + $0x120] sm:$0xf] %v6441
  %6730 = vst [vmem:[%s3 + $0x124] sm:$0xf] %v6442
  %6731 = vst [vmem:[%s3 + $0x128] sm:$0xf] %v6443
  %6732 = vst [vmem:[%s3 + $0x12c] sm:$0xf] %v6444
  %6733 = vst [vmem:[%s3 + $0x130] sm:$0xf] %v6445
  %6734 = vst [vmem:[%s3 + $0x134] sm:$0xf] %v6446
  %6735 = vst [vmem:[%s3 + $0x138] sm:$0xf] %v6447
  %6736 = vst [vmem:[%s3 + $0x13c] sm:$0xf] %v6448
  %6737 = vst [vmem:[%s3 + $0x140] sm:$0xf] %v6449
  %6738 = vst [vmem:[%s3 + $0x144] sm:$0xf] %v6450
  %6739 = vst [vmem:[%s3 + $0x148] sm:$0xf] %v6451
  %6740 = vst [vmem:[%s3 + $0x14c] sm:$0xf] %v6452
  %6741 = vst [vmem:[%s3 + $0x150] sm:$0xf] %v6453
  %6742 = vst [vmem:[%s3 + $0x154] sm:$0xf] %v6454
  %6743 = vst [vmem:[%s3 + $0x158] sm:$0xf] %v6455
  %6744 = vst [vmem:[%s3 + $0x15c] sm:$0xf] %v6456
  %6745 = vst [vmem:[%s3 + $0x160] sm:$0xf] %v6457
  %6746 = vst [vmem:[%s3 + $0x164] sm:$0xf] %v6458
  %6747 = vst [vmem:[%s3 + $0x168] sm:$0xf] %v6459
  %6748 = vst [vmem:[%s3 + $0x16c] sm:$0xf] %v6460
  %6749 = vst [vmem:[%s3 + $0x170] sm:$0xf] %v6461
  %6750 = vst [vmem:[%s3 + $0x174] sm:$0xf] %v6462
  %6751 = vst [vmem:[%s3 + $0x178] sm:$0xf] %v6463
  %6752 = vst [vmem:[%s3 + $0x17c] sm:$0xf] %v6464
  %6753 = vst [vmem:[%s3 + $0x180] sm:$0xf] %v6465
  %6754 = vst [vmem:[%s3 + $0x184] sm:$0xf] %v6466
  %6755 = vst [vmem:[%s3 + $0x188] sm:$0xf] %v6467
  %6756 = vst [vmem:[%s3 + $0x18c] sm:$0xf] %v6468
  %6757 = vst [vmem:[%s3 + $0x190] sm:$0xf] %v6469
  %6758 = vst [vmem:[%s3 + $0x194] sm:$0xf] %v6470
  %6759 = vst [vmem:[%s3 + $0x198] sm:$0xf] %v6471
  %6760 = vst [vmem:[%s3 + $0x19c] sm:$0xf] %v6472
  %6761 = vst [vmem:[%s3 + $0x1a0] sm:$0xf] %v6473
  %6762 = vst [vmem:[%s3 + $0x1a4] sm:$0xf] %v6474
  %6763 = vst [vmem:[%s3 + $0x1a8] sm:$0xf] %v6475
  %6764 = vst [vmem:[%s3 + $0x1ac] sm:$0xf] %v6476
  %6765 = vst [vmem:[%s3 + $0x1b0] sm:$0xf] %v6477
  %6766 = vst [vmem:[%s3 + $0x1b4] sm:$0xf] %v6478
  %6767 = vst [vmem:[%s3 + $0x1b8] sm:$0xf] %v6479
  %6768 = vst [vmem:[%s3 + $0x1bc] sm:$0xf] %v6480
  %6769 = vst [vmem:[%s3 + $0x1c0] sm:$0xf] %v6481
  %6770 = vst [vmem:[%s3 + $0x1c4] sm:$0xf] %v6482
  %6771 = vst [vmem:[%s3 + $0x1c8] sm:$0xf] %v6483
  %6772 = vst [vmem:[%s3 + $0x1cc] sm:$0xf] %v6484
  %6773 = vst [vmem:[%s3 + $0x1d0] sm:$0xf] %v6485
  %6774 = vst [vmem:[%s3 + $0x1d4] sm:$0xf] %v6486
  %6775 = vst [vmem:[%s3 + $0x1d8] sm:$0xf] %v6487
  %6776 = vst [vmem:[%s3 + $0x1dc] sm:$0xf] %v6488
  %6777 = vst [vmem:[%s3 + $0x1e0] sm:$0xf] %v6489
  %6778 = vst [vmem:[%s3 + $0x1e4] sm:$0xf] %v6490
  %6779 = vst [vmem:[%s3 + $0x1e8] sm:$0xf] %v6491
  %6780 = vst [vmem:[%s3 + $0x1ec] sm:$0xf] %v6492
  %6781 = vst [vmem:[%s3 + $0x1f0] sm:$0xf] %v6493
  %6782 = vst [vmem:[%s3 + $0x1f4] sm:$0xf] %v6494
  %6783 = vst [vmem:[%s3 + $0x1f8] sm:$0xf] %v6495
  %6784 = vst [vmem:[%s3 + $0x1fc] sm:$0xf] %v6496
  %6785 = vst [vmem:[%s3 + $0x200] sm:$0xf] %v6497
  %6786 = vst [vmem:[%s3 + $0x204] sm:$0xf] %v6498
  %6787 = vst [vmem:[%s3 + $0x208] sm:$0xf] %v6499
  %6788 = vst [vmem:[%s3 + $0x20c] sm:$0xf] %v6500
  %6789 = vst [vmem:[%s3 + $0x210] sm:$0xf] %v6501
  %6790 = vst [vmem:[%s3 + $0x214] sm:$0xf] %v6502
  %6791 = vst [vmem:[%s3 + $0x218] sm:$0xf] %v6503
  %6792 = vst [vmem:[%s3 + $0x21c] sm:$0xf] %v6504
  %6793 = vst [vmem:[%s3 + $0x220] sm:$0xf] %v6505
  %6794 = vst [vmem:[%s3 + $0x224] sm:$0xf] %v6506
  %6795 = vst [vmem:[%s3 + $0x228] sm:$0xf] %v6507
  %6796 = vst [vmem:[%s3 + $0x22c] sm:$0xf] %v6508
  %6797 = vst [vmem:[%s3 + $0x230] sm:$0xf] %v6509
  %6798 = vst [vmem:[%s3 + $0x234] sm:$0xf] %v6510
  %6799 = vst [vmem:[%s3 + $0x238] sm:$0xf] %v6511
  %6800 = vst [vmem:[%s3 + $0x23c] sm:$0xf] %v6512
  // Predicated region
  $region14: #{lenet_forward.3} parent=0 // pred_check
    _
  $region15: #{lenet_forward.3} parent=0 // pred_check_branch
    %6802 = sbr.rel (0) target = $region17
  $region16: #{lenet_forward.3} parent=0 // pred_region
    _
  $region17: #{lenet_forward.3} parent=0 // pred_fallthru
    _
  // Predicated region
  $region18: #{lenet_forward.3} parent=0 // pred_check
    _
  $region19: #{lenet_forward.3} parent=0 // pred_check_branch
    %6804 = sbr.rel (0) target = $region21
  $region20: #{lenet_forward.3} parent=0 // pred_region
    _
  $region21: #{lenet_forward.3} parent=0 // pred_fallthru
    _

// kernel: lenet_forward.4
$region0: #{lenet_forward.4}
  #allocation0 [shape = 'u32[]', space=smem, size = 0x4, offset = 0x4, fixed_abs, tag = 'smem constant byte address 0x4 - core index']
  #allocation1 [shape = 'u32[144,128]{1,0:T(1,128)}', space=vmem, size = 0x12000, scoped, tag = 'internal scratch']
  %s0 = inlined_call_operand.vmem [shape: bf16[8,64,500], index: 0, kind: input, shape index: {}]
  %s1 = inlined_call_operand.vmem [shape: bf16[500,128], index: 1, kind: input, shape index: {}]
  %s2 = inlined_call_operand.vmem [shape: f32[1,128], index: 2, kind: input, shape index: {}]
  %s3 = inlined_call_operand.vmem [shape: bf16[8,16,128], index: 3, kind: output, shape index: {}]
  %s4 = sld [smem:[#allocation0]]
  $region22: #{lenet_forward.4} parent=0
    _
  %s6 = ssub.s32 1, %s4
  %s7 = scalar_select 0, %s6, %s4
  // Predicated region
  $region2: #{lenet_forward.4} parent=0 // pred_check
    _
  $region3: #{lenet_forward.4} parent=0 // pred_check_branch
    %9 = sbr.rel (0) target = $region5
  $region4: #{lenet_forward.4} parent=0 // pred_region
    _
  $region5: #{lenet_forward.4} parent=0 // pred_fallthru
    _
  // Predicated region
  $region6: #{lenet_forward.4} parent=0 // pred_check
    _
  $region7: #{lenet_forward.4} parent=0 // pred_check_branch
    %11 = sbr.rel (0) target = $region9
  $region8: #{lenet_forward.4} parent=0 // pred_region
    _
  $region9: #{lenet_forward.4} parent=0 // pred_fallthru
    _
  // Predicated region
  $region10: #{lenet_forward.4} parent=0 // pred_check
    _
  $region11: #{lenet_forward.4} parent=0 // pred_check_branch
    %13 = sbr.rel (0) target = $region13
  $region12: #{lenet_forward.4} parent=0 // pred_region
    _
  $region13: #{lenet_forward.4} parent=0 // pred_fallthru
    _
  %v15 = vld [vmem:[%s1] sm:$0xf]
  %v16 = vld [vmem:[%s1 + $0x4] sm:$0xf]
  %v17 = vld [vmem:[%s1 + $0x8] sm:$0xf]
  %v18 = vld [vmem:[%s1 + $0xc] sm:$0xf]
  %v19 = vld [vmem:[%s1 + $0x10] sm:$0xf]
  %v20 = vld [vmem:[%s1 + $0x14] sm:$0xf]
  %v21 = vld [vmem:[%s1 + $0x18] sm:$0xf]
  %v22 = vld [vmem:[%s1 + $0x1c] sm:$0xf]
  %v23 = vld [vmem:[%s1 + $0x20] sm:$0xf]
  %v24 = vld [vmem:[%s1 + $0x24] sm:$0xf]
  %v25 = vld [vmem:[%s1 + $0x28] sm:$0xf]
  %v26 = vld [vmem:[%s1 + $0x2c] sm:$0xf]
  %v27 = vld [vmem:[%s1 + $0x30] sm:$0xf]
  %v28 = vld [vmem:[%s1 + $0x34] sm:$0xf]
  %v29 = vld [vmem:[%s1 + $0x38] sm:$0xf]
  %v30 = vld [vmem:[%s1 + $0x3c] sm:$0xf]
  %v31 = vld [vmem:[%s1 + $0x40] sm:$0xf]
  %v32 = vld [vmem:[%s1 + $0x44] sm:$0xf]
  %v33 = vld [vmem:[%s1 + $0x48] sm:$0xf]
  %v34 = vld [vmem:[%s1 + $0x4c] sm:$0xf]
  %v35 = vld [vmem:[%s1 + $0x50] sm:$0xf]
  %v36 = vld [vmem:[%s1 + $0x54] sm:$0xf]
  %v37 = vld [vmem:[%s1 + $0x58] sm:$0xf]
  %v38 = vld [vmem:[%s1 + $0x5c] sm:$0xf]
  %v39 = vld [vmem:[%s1 + $0x60] sm:$0xf]
  %v40 = vld [vmem:[%s1 + $0x64] sm:$0xf]
  %v41 = vld [vmem:[%s1 + $0x68] sm:$0xf]
  %v42 = vld [vmem:[%s1 + $0x6c] sm:$0xf]
  %v43 = vld [vmem:[%s1 + $0x70] sm:$0xf]
  %v44 = vld [vmem:[%s1 + $0x74] sm:$0xf]
  %v45 = vld [vmem:[%s1 + $0x78] sm:$0xf]
  %v46 = vld [vmem:[%s1 + $0x7c] sm:$0xf]
  %v47 = vld [vmem:[%s1 + $0x80] sm:$0xf]
  %v48 = vld [vmem:[%s1 + $0x84] sm:$0xf]
  %v49 = vld [vmem:[%s1 + $0x88] sm:$0xf]
  %v50 = vld [vmem:[%s1 + $0x8c] sm:$0xf]
  %v51 = vld [vmem:[%s1 + $0x90] sm:$0xf]
  %v52 = vld [vmem:[%s1 + $0x94] sm:$0xf]
  %v53 = vld [vmem:[%s1 + $0x98] sm:$0xf]
  %v54 = vld [vmem:[%s1 + $0x9c] sm:$0xf]
  %v55 = vld [vmem:[%s1 + $0xa0] sm:$0xf]
  %v56 = vld [vmem:[%s1 + $0xa4] sm:$0xf]
  %v57 = vld [vmem:[%s1 + $0xa8] sm:$0xf]
  %v58 = vld [vmem:[%s1 + $0xac] sm:$0xf]
  %v59 = vld [vmem:[%s1 + $0xb0] sm:$0xf]
  %v60 = vld [vmem:[%s1 + $0xb4] sm:$0xf]
  %v61 = vld [vmem:[%s1 + $0xb8] sm:$0xf]
  %v62 = vld [vmem:[%s1 + $0xbc] sm:$0xf]
  %v63 = vld [vmem:[%s1 + $0xc0] sm:$0xf]
  %v64 = vld [vmem:[%s1 + $0xc4] sm:$0xf]
  %v65 = vld [vmem:[%s1 + $0xc8] sm:$0xf]
  %v66 = vld [vmem:[%s1 + $0xcc] sm:$0xf]
  %v67 = vld [vmem:[%s1 + $0xd0] sm:$0xf]
  %v68 = vld [vmem:[%s1 + $0xd4] sm:$0xf]
  %v69 = vld [vmem:[%s1 + $0xd8] sm:$0xf]
  %v70 = vld [vmem:[%s1 + $0xdc] sm:$0xf]
  %v71 = vld [vmem:[%s1 + $0xe0] sm:$0xf]
  %v72 = vld [vmem:[%s1 + $0xe4] sm:$0xf]
  %v73 = vld [vmem:[%s1 + $0xe8] sm:$0xf]
  %v74 = vld [vmem:[%s1 + $0xec] sm:$0xf]
  %v75 = vld [vmem:[%s1 + $0xf0] sm:$0xf]
  %v76 = vld [vmem:[%s1 + $0xf4] sm:$0xf]
  %v77 = vld [vmem:[%s1 + $0xf8] sm:$0x3]
  %v78 = vld [vmem:[%s0] sm:$0xff]
  %v79 = vld [vmem:[%s0 + $0x8] sm:$0xff]
  %v80 = vld [vmem:[%s0 + $0x10] sm:$0xff]
  %v81 = vld [vmem:[%s0 + $0x18] sm:$0xff]
  %v82 = vld [vmem:[%s0 + $0x80] sm:$0xff]
  %v83 = vld [vmem:[%s0 + $0x88] sm:$0xff]
  %v84 = vld [vmem:[%s0 + $0x90] sm:$0xff]
  %v85 = vld [vmem:[%s0 + $0x98] sm:$0xff]
  %v86 = vld [vmem:[%s0 + $0x100] sm:$0xff]
  %v87 = vld [vmem:[%s0 + $0x108] sm:$0xff]
  %v88 = vld [vmem:[%s0 + $0x110] sm:$0xff]
  %v89 = vld [vmem:[%s0 + $0x118] sm:$0xff]
  %v90 = vld [vmem:[%s0 + $0x180] sm:$0xff]
  %v91 = vld [vmem:[%s0 + $0x188] sm:$0xff]
  %v92 = vld [vmem:[%s0 + $0x190] sm:$0xff]
  %v93 = vld [vmem:[%s0 + $0x198] sm:$0xff]
  %v94 = vld [vmem:[%s0 + $0x200] sm:$0xff]
  %v95 = vld [vmem:[%s0 + $0x208] sm:$0xff]
  %v96 = vld [vmem:[%s0 + $0x210] sm:$0xff]
  %v97 = vld [vmem:[%s0 + $0x218] sm:$0xff]
  %v98 = vld [vmem:[%s0 + $0x280] sm:$0xff]
  %v99 = vld [vmem:[%s0 + $0x288] sm:$0xff]
  %v100 = vld [vmem:[%s0 + $0x290] sm:$0xff]
  %v101 = vld [vmem:[%s0 + $0x298] sm:$0xff]
  %v102 = vld [vmem:[%s0 + $0x300] sm:$0xff]
  %v103 = vld [vmem:[%s0 + $0x308] sm:$0xff]
  %v104 = vld [vmem:[%s0 + $0x310] sm:$0xff]
  %v105 = vld [vmem:[%s0 + $0x318] sm:$0xff]
  %v106 = vld [vmem:[%s0 + $0x380] sm:$0xff]
  %v107 = vld [vmem:[%s0 + $0x388] sm:$0xff]
  %v108 = vld [vmem:[%s0 + $0x390] sm:$0xff]
  %v109 = vld [vmem:[%s0 + $0x398] sm:$0xff]
  %v142 = vunpack.c.l.b16 %v78
  %v143 = vunpack.c.h.b16 %v78
  %v144 = vunpack.c.l.b16 %v79
  %v145 = vunpack.c.h.b16 %v79
  %v146 = vunpack.c.l.b16 %v80
  %v147 = vunpack.c.h.b16 %v80
  %v148 = vunpack.c.l.b16 %v81
  %v149 = vunpack.c.h.b16 %v81
  %v150 = vunpack.c.l.b16 %v82
  %v151 = vunpack.c.h.b16 %v82
  %v152 = vunpack.c.l.b16 %v83
  %v153 = vunpack.c.h.b16 %v83
  %v154 = vunpack.c.l.b16 %v84
  %v155 = vunpack.c.h.b16 %v84
  %v156 = vunpack.c.l.b16 %v85
  %v157 = vunpack.c.h.b16 %v85
  %v158 = vunpack.c.l.b16 %v86
  %v159 = vunpack.c.h.b16 %v86
  %v160 = vunpack.c.l.b16 %v87
  %v161 = vunpack.c.h.b16 %v87
  %v162 = vunpack.c.l.b16 %v88
  %v163 = vunpack.c.h.b16 %v88
  %v164 = vunpack.c.l.b16 %v89
  %v165 = vunpack.c.h.b16 %v89
  %v166 = vunpack.c.l.b16 %v90
  %v167 = vunpack.c.h.b16 %v90
  %v168 = vunpack.c.l.b16 %v91
  %v169 = vunpack.c.h.b16 %v91
  %v170 = vunpack.c.l.b16 %v92
  %v171 = vunpack.c.h.b16 %v92
  %v172 = vunpack.c.l.b16 %v93
  %v173 = vunpack.c.h.b16 %v93
  %v174 = vunpack.c.l.b16 %v94
  %v175 = vunpack.c.h.b16 %v94
  %v176 = vunpack.c.l.b16 %v95
  %v177 = vunpack.c.h.b16 %v95
  %v178 = vunpack.c.l.b16 %v96
  %v179 = vunpack.c.h.b16 %v96
  %v180 = vunpack.c.l.b16 %v97
  %v181 = vunpack.c.h.b16 %v97
  %v182 = vunpack.c.l.b16 %v98
  %v183 = vunpack.c.h.b16 %v98
  %v184 = vunpack.c.l.b16 %v99
  %v185 = vunpack.c.h.b16 %v99
  %v186 = vunpack.c.l.b16 %v100
  %v187 = vunpack.c.h.b16 %v100
  %v188 = vunpack.c.l.b16 %v101
  %v189 = vunpack.c.h.b16 %v101
  %v190 = vunpack.c.l.b16 %v102
  %v191 = vunpack.c.h.b16 %v102
  %v192 = vunpack.c.l.b16 %v103
  %v193 = vunpack.c.h.b16 %v103
  %v194 = vunpack.c.l.b16 %v104
  %v195 = vunpack.c.h.b16 %v104
  %v196 = vunpack.c.l.b16 %v105
  %v197 = vunpack.c.h.b16 %v105
  %v198 = vunpack.c.l.b16 %v106
  %v199 = vunpack.c.h.b16 %v106
  %v200 = vunpack.c.l.b16 %v107
  %v201 = vunpack.c.h.b16 %v107
  %v202 = vunpack.c.l.b16 %v108
  %v203 = vunpack.c.h.b16 %v108
  %v204 = vunpack.c.l.b16 %v109
  %v205 = vunpack.c.h.b16 %v109
  %v206 = vpack.c.b16 %v146, %v142
  %v207 = vpack.c.b16 %v147, %v143
  %v208 = vpack.c.b16 %v148, %v144
  %v209 = vpack.c.b16 %v149, %v145
  %v210 = vpack.c.b16 %v154, %v150
  %v211 = vpack.c.b16 %v155, %v151
  %v212 = vpack.c.b16 %v156, %v152
  %v213 = vpack.c.b16 %v157, %v153
  %v214 = vpack.c.b16 %v162, %v158
  %v215 = vpack.c.b16 %v163, %v159
  %v216 = vpack.c.b16 %v164, %v160
  %v217 = vpack.c.b16 %v165, %v161
  %v218 = vpack.c.b16 %v170, %v166
  %v219 = vpack.c.b16 %v171, %v167
  %v220 = vpack.c.b16 %v172, %v168
  %v221 = vpack.c.b16 %v173, %v169
  %v222 = vpack.c.b16 %v178, %v174
  %v223 = vpack.c.b16 %v179, %v175
  %v224 = vpack.c.b16 %v180, %v176
  %v225 = vpack.c.b16 %v181, %v177
  %v226 = vpack.c.b16 %v186, %v182
  %v227 = vpack.c.b16 %v187, %v183
  %v228 = vpack.c.b16 %v188, %v184
  %v229 = vpack.c.b16 %v189, %v185
  %v230 = vpack.c.b16 %v194, %v190
  %v231 = vpack.c.b16 %v195, %v191
  %v232 = vpack.c.b16 %v196, %v192
  %v233 = vpack.c.b16 %v197, %v193
  %v234 = vpack.c.b16 %v202, %v198
  %v235 = vpack.c.b16 %v203, %v199
  %v236 = vpack.c.b16 %v204, %v200
  %v237 = vpack.c.b16 %v205, %v201
  %v325 = vunpack.c.l.b16 %v15
  %v326 = vunpack.c.l.b16 %v16
  %v327 = vunpack.c.l.b16 %v17
  %v328 = vunpack.c.l.b16 %v18
  %v329 = vunpack.c.l.b16 %v19
  %v330 = vunpack.c.l.b16 %v20
  %v331 = vunpack.c.l.b16 %v21
  %v332 = vunpack.c.l.b16 %v22
  %v333 = vunpack.c.l.b16 %v23
  %v334 = vunpack.c.l.b16 %v24
  %v335 = vunpack.c.l.b16 %v25
  %v336 = vunpack.c.l.b16 %v26
  %v337 = vunpack.c.l.b16 %v27
  %v338 = vunpack.c.l.b16 %v28
  %v339 = vunpack.c.l.b16 %v29
  %v340 = vunpack.c.l.b16 %v30
  %v341 = vunpack.c.l.b16 %v31
  %v342 = vunpack.c.l.b16 %v32
  %v343 = vunpack.c.l.b16 %v33
  %v344 = vunpack.c.l.b16 %v34
  %v345 = vunpack.c.l.b16 %v35
  %v346 = vunpack.c.l.b16 %v36
  %v347 = vunpack.c.l.b16 %v37
  %v348 = vunpack.c.l.b16 %v38
  %v349 = vunpack.c.l.b16 %v39
  %v350 = vunpack.c.l.b16 %v40
  %v351 = vunpack.c.l.b16 %v41
  %v352 = vunpack.c.l.b16 %v42
  %v353 = vunpack.c.l.b16 %v43
  %v354 = vunpack.c.l.b16 %v44
  %v355 = vunpack.c.l.b16 %v45
  %v356 = vunpack.c.l.b16 %v46
  %v357 = vunpack.c.l.b16 %v47
  %v358 = vunpack.c.l.b16 %v48
  %v359 = vunpack.c.l.b16 %v49
  %v360 = vunpack.c.l.b16 %v50
  %v361 = vunpack.c.l.b16 %v51
  %v362 = vunpack.c.l.b16 %v52
  %v363 = vunpack.c.l.b16 %v53
  %v364 = vunpack.c.l.b16 %v54
  %v365 = vunpack.c.l.b16 %v55
  %v366 = vunpack.c.l.b16 %v56
  %v367 = vunpack.c.l.b16 %v57
  %v368 = vunpack.c.l.b16 %v58
  %v369 = vunpack.c.l.b16 %v59
  %v370 = vunpack.c.l.b16 %v60
  %v371 = vunpack.c.l.b16 %v61
  %v372 = vunpack.c.l.b16 %v62
  %v373 = vunpack.c.l.b16 %v63
  %v374 = vunpack.c.l.b16 %v64
  %v375 = vunpack.c.l.b16 %v65
  %v376 = vunpack.c.l.b16 %v66
  %v377 = vunpack.c.l.b16 %v67
  %v378 = vunpack.c.l.b16 %v68
  %v379 = vunpack.c.l.b16 %v69
  %v380 = vunpack.c.l.b16 %v70
  %v381 = vunpack.c.l.b16 %v71
  %v382 = vunpack.c.l.b16 %v72
  %v383 = vunpack.c.l.b16 %v73
  %v384 = vunpack.c.l.b16 %v74
  %v385 = vunpack.c.l.b16 %v75
  %v386 = vunpack.c.l.b16 %v76
  %v387 = vunpack.c.l.b16 %v77
  %v388 = vpack.c.b16 %v326, %v325
  %v389 = vpack.c.b16 %v328, %v327
  %v390 = vpack.c.b16 %v330, %v329
  %v391 = vpack.c.b16 %v332, %v331
  %v392 = vpack.c.b16 %v334, %v333
  %v393 = vpack.c.b16 %v336, %v335
  %v394 = vpack.c.b16 %v338, %v337
  %v395 = vpack.c.b16 %v340, %v339
  %v396 = vpack.c.b16 %v342, %v341
  %v397 = vpack.c.b16 %v344, %v343
  %v398 = vpack.c.b16 %v346, %v345
  %v399 = vpack.c.b16 %v348, %v347
  %v400 = vpack.c.b16 %v350, %v349
  %v401 = vpack.c.b16 %v352, %v351
  %v402 = vpack.c.b16 %v354, %v353
  %v403 = vpack.c.b16 %v356, %v355
  %v404 = vpack.c.b16 %v358, %v357
  %v405 = vpack.c.b16 %v360, %v359
  %v406 = vpack.c.b16 %v362, %v361
  %v407 = vpack.c.b16 %v364, %v363
  %v408 = vpack.c.b16 %v366, %v365
  %v409 = vpack.c.b16 %v368, %v367
  %v410 = vpack.c.b16 %v370, %v369
  %v411 = vpack.c.b16 %v372, %v371
  %v412 = vpack.c.b16 %v374, %v373
  %v413 = vpack.c.b16 %v376, %v375
  %v414 = vpack.c.b16 %v378, %v377
  %v415 = vpack.c.b16 %v380, %v379
  %v416 = vpack.c.b16 %v382, %v381
  %v417 = vpack.c.b16 %v384, %v383
  %v418 = vpack.c.b16 %v386, %v385
  %v419 = vpack.c.b16 %v387, %v387
  %vm451 = vcmask 949248
  %v453 = vsel %vm451, %v209, 0
  %v456 = vsel %vm451, %v213, 0
  %v459 = vsel %vm451, %v217, 0
  %v462 = vsel %vm451, %v221, 0
  %v465 = vsel %vm451, %v225, 0
  %v468 = vsel %vm451, %v229, 0
  %v471 = vsel %vm451, %v233, 0
  %v474 = vsel %vm451, %v237, 0
  %vm476 = vcmask 1041408
  %v478 = vsel %vm476, %v419, 0
  %480 = vmatprep.subr.bf16.mxu0 0
  %481 = vmatpush1.bf16.msra.mxu0 %v395
  %482 = vmatprep.subr.bf16.mxu0 0
  %483 = vmatpush1.bf16.msra.mxu0 %v394
  %484 = vmatprep.subr.bf16.mxu0 0
  %485 = vmatpush1.bf16.msra.mxu0 %v393
  %486 = vmatprep.subr.bf16.mxu0 0
  %487 = vmatpush1.bf16.msra.mxu0 %v392
  %488 = vmatprep.subr.bf16.mxu0 0
  %489 = vmatpush1.bf16.msra.mxu0 %v391
  %490 = vmatprep.subr.bf16.mxu0 0
  %491 = vmatpush1.bf16.msra.mxu0 %v390
  %492 = vmatprep.subr.bf16.mxu0 0
  %493 = vmatpush1.bf16.msra.mxu0 %v389
  %494 = vmatprep.subr.bf16.mxu0 0
  %495 = vmatpush1.bf16.msra.mxu0 %v388
  %496 = vmatprep.subr.bf16.mxu0 0
  %497 = vmatpush2.bf16.msra.mxu0 %v403
  %498 = vmatprep.subr.bf16.mxu0 0
  %499 = vmatpush2.bf16.msra.mxu0 %v402
  %500 = vmatprep.subr.bf16.mxu0 0
  %501 = vmatpush2.bf16.msra.mxu0 %v401
  %502 = vmatprep.subr.bf16.mxu0 0
  %503 = vmatpush2.bf16.msra.mxu0 %v400
  %504 = vmatprep.subr.bf16.mxu0 0
  %505 = vmatpush2.bf16.msra.mxu0 %v399
  %506 = vmatprep.subr.bf16.mxu0 0
  %507 = vmatpush2.bf16.msra.mxu0 %v398
  %508 = vmatprep.subr.bf16.mxu0 0
  %509 = vmatpush2.bf16.msra.mxu0 %v397
  %510 = vmatprep.subr.bf16.mxu0 0
  %511 = vmatpush2.bf16.msra.mxu0 %v396
  %512 = vmatprep.mubr.bf16.mxu0 %v207
  %513 = vmatmul.mubr.bf16.gmra.mxu0 %v206
  %v514 = vpop.f32.mrf.mxu0
  %v515 = vadd.f32 0.0, %v514
  %v516 = vpop.f32.mrf.mxu0
  %v517 = vpop.f32.mrf.mxu0
  %v518 = vadd.f32 0.0, %v517
  %v519 = vpop.f32.mrf.mxu0
  %520 = vmatprep.mubr.bf16.mxu0 %v211
  %521 = vmatmul.mubr.bf16.gmra.mxu0 %v210
  %v522 = vpop.f32.mrf.mxu0
  %v523 = vadd.f32 0.0, %v522
  %v524 = vpop.f32.mrf.mxu0
  %v525 = vpop.f32.mrf.mxu0
  %v526 = vadd.f32 0.0, %v525
  %v527 = vpop.f32.mrf.mxu0
  %528 = vmatprep.mubr.bf16.mxu0 %v215
  %529 = vmatmul.mubr.bf16.gmra.mxu0 %v214
  %v530 = vpop.f32.mrf.mxu0
  %v531 = vadd.f32 0.0, %v530
  %v532 = vpop.f32.mrf.mxu0
  %v533 = vpop.f32.mrf.mxu0
  %v534 = vadd.f32 0.0, %v533
  %v535 = vpop.f32.mrf.mxu0
  %536 = vmatprep.mubr.bf16.mxu0 %v219
  %537 = vmatmul.mubr.bf16.gmra.mxu0 %v218
  %v538 = vpop.f32.mrf.mxu0
  %v539 = vadd.f32 0.0, %v538
  %v540 = vpop.f32.mrf.mxu0
  %v541 = vpop.f32.mrf.mxu0
  %v542 = vadd.f32 0.0, %v541
  %v543 = vpop.f32.mrf.mxu0
  %544 = vmatprep.mubr.bf16.mxu0 %v223
  %545 = vmatmul.mubr.bf16.gmra.mxu0 %v222
  %v546 = vpop.f32.mrf.mxu0
  %v547 = vadd.f32 0.0, %v546
  %v548 = vpop.f32.mrf.mxu0
  %v549 = vpop.f32.mrf.mxu0
  %v550 = vadd.f32 0.0, %v549
  %v551 = vpop.f32.mrf.mxu0
  %552 = vmatprep.mubr.bf16.mxu0 %v227
  %553 = vmatmul.mubr.bf16.gmra.mxu0 %v226
  %v554 = vpop.f32.mrf.mxu0
  %v555 = vadd.f32 0.0, %v554
  %v556 = vpop.f32.mrf.mxu0
  %v557 = vpop.f32.mrf.mxu0
  %v558 = vadd.f32 0.0, %v557
  %v559 = vpop.f32.mrf.mxu0
  %560 = vmatprep.mubr.bf16.mxu0 %v231
  %561 = vmatmul.mubr.bf16.gmra.mxu0 %v230
  %v562 = vpop.f32.mrf.mxu0
  %v563 = vadd.f32 0.0, %v562
  %v564 = vpop.f32.mrf.mxu0
  %v565 = vpop.f32.mrf.mxu0
  %v566 = vadd.f32 0.0, %v565
  %v567 = vpop.f32.mrf.mxu0
  %568 = vmatprep.mubr.bf16.mxu0 %v235
  %569 = vmatmul.mubr.bf16.gmra.mxu0 %v234
  %v570 = vpop.f32.mrf.mxu0
  %v571 = vadd.f32 0.0, %v570
  %v572 = vpop.f32.mrf.mxu0
  %v573 = vpop.f32.mrf.mxu0
  %v574 = vadd.f32 0.0, %v573
  %v575 = vpop.f32.mrf.mxu0
  %576 = vdwg.mxu0
  %577 = vmatprep.subr.bf16.mxu0 0
  %578 = vmatpush1.bf16.msra.mxu0 %v411
  %579 = vmatprep.subr.bf16.mxu0 0
  %580 = vmatpush1.bf16.msra.mxu0 %v410
  %581 = vmatprep.subr.bf16.mxu0 0
  %582 = vmatpush1.bf16.msra.mxu0 %v409
  %583 = vmatprep.subr.bf16.mxu0 0
  %584 = vmatpush1.bf16.msra.mxu0 %v408
  %585 = vmatprep.subr.bf16.mxu0 0
  %586 = vmatpush1.bf16.msra.mxu0 %v407
  %587 = vmatprep.subr.bf16.mxu0 0
  %588 = vmatpush1.bf16.msra.mxu0 %v406
  %589 = vmatprep.subr.bf16.mxu0 0
  %590 = vmatpush1.bf16.msra.mxu0 %v405
  %591 = vmatprep.subr.bf16.mxu0 0
  %592 = vmatpush1.bf16.msra.mxu0 %v404
  %593 = vmatprep.subr.bf16.mxu0 0
  %594 = vmatpush2.bf16.msra.mxu0 %v478
  %595 = vmatprep.subr.bf16.mxu0 0
  %596 = vmatpush2.bf16.msra.mxu0 %v418
  %597 = vmatprep.subr.bf16.mxu0 0
  %598 = vmatpush2.bf16.msra.mxu0 %v417
  %599 = vmatprep.subr.bf16.mxu0 0
  %600 = vmatpush2.bf16.msra.mxu0 %v416
  %601 = vmatprep.subr.bf16.mxu0 0
  %602 = vmatpush2.bf16.msra.mxu0 %v415
  %603 = vmatprep.subr.bf16.mxu0 0
  %604 = vmatpush2.bf16.msra.mxu0 %v414
  %605 = vmatprep.subr.bf16.mxu0 0
  %606 = vmatpush2.bf16.msra.mxu0 %v413
  %607 = vmatprep.subr.bf16.mxu0 0
  %608 = vmatpush2.bf16.msra.mxu0 %v412
  %609 = vmatprep.mubr.bf16.mxu0 %v453
  %610 = vmatmul.mubr.bf16.gmra.mxu0 %v208
  %v611 = vpop.f32.mrf.mxu0
  %v612 = vadd.f32 %v515, %v611
  %v613 = vpop.f32.mrf.mxu0
  %v614 = vpop.f32.mrf.mxu0
  %v615 = vadd.f32 %v518, %v614
  %v616 = vpop.f32.mrf.mxu0
  %617 = vmatprep.mubr.bf16.mxu0 %v456
  %618 = vmatmul.mubr.bf16.gmra.mxu0 %v212
  %v619 = vpop.f32.mrf.mxu0
  %v620 = vadd.f32 %v523, %v619
  %v621 = vpop.f32.mrf.mxu0
  %v622 = vpop.f32.mrf.mxu0
  %v623 = vadd.f32 %v526, %v622
  %v624 = vpop.f32.mrf.mxu0
  %625 = vmatprep.mubr.bf16.mxu0 %v459
  %626 = vmatmul.mubr.bf16.gmra.mxu0 %v216
  %v627 = vpop.f32.mrf.mxu0
  %v628 = vadd.f32 %v531, %v627
  %v629 = vpop.f32.mrf.mxu0
  %v630 = vpop.f32.mrf.mxu0
  %v631 = vadd.f32 %v534, %v630
  %v632 = vpop.f32.mrf.mxu0
  %633 = vmatprep.mubr.bf16.mxu0 %v462
  %634 = vmatmul.mubr.bf16.gmra.mxu0 %v220
  %v635 = vpop.f32.mrf.mxu0
  %v636 = vadd.f32 %v539, %v635
  %v637 = vpop.f32.mrf.mxu0
  %v638 = vpop.f32.mrf.mxu0
  %v639 = vadd.f32 %v542, %v638
  %v640 = vpop.f32.mrf.mxu0
  %641 = vmatprep.mubr.bf16.mxu0 %v465
  %642 = vmatmul.mubr.bf16.gmra.mxu0 %v224
  %v643 = vpop.f32.mrf.mxu0
  %v644 = vadd.f32 %v547, %v643
  %v645 = vpop.f32.mrf.mxu0
  %v646 = vpop.f32.mrf.mxu0
  %v647 = vadd.f32 %v550, %v646
  %v648 = vpop.f32.mrf.mxu0
  %649 = vmatprep.mubr.bf16.mxu0 %v468
  %650 = vmatmul.mubr.bf16.gmra.mxu0 %v228
  %v651 = vpop.f32.mrf.mxu0
  %v652 = vadd.f32 %v555, %v651
  %v653 = vpop.f32.mrf.mxu0
  %v654 = vpop.f32.mrf.mxu0
  %v655 = vadd.f32 %v558, %v654
  %v656 = vpop.f32.mrf.mxu0
  %657 = vmatprep.mubr.bf16.mxu0 %v471
  %658 = vmatmul.mubr.bf16.gmra.mxu0 %v232
  %v659 = vpop.f32.mrf.mxu0
  %v660 = vadd.f32 %v563, %v659
  %v661 = vpop.f32.mrf.mxu0
  %v662 = vpop.f32.mrf.mxu0
  %v663 = vadd.f32 %v566, %v662
  %v664 = vpop.f32.mrf.mxu0
  %665 = vmatprep.mubr.bf16.mxu0 %v474
  %666 = vmatmul.mubr.bf16.gmra.mxu0 %v236
  %v667 = vpop.f32.mrf.mxu0
  %v668 = vadd.f32 %v571, %v667
  %v669 = vpop.f32.mrf.mxu0
  %v670 = vpop.f32.mrf.mxu0
  %v671 = vadd.f32 %v574, %v670
  %v672 = vpop.f32.mrf.mxu0
  %673 = vdwg.mxu0
  %v674 = vld [vmem:[%s0 + $0x20] sm:$0xff]
  %v675 = vld [vmem:[%s0 + $0x28] sm:$0xff]
  %v676 = vld [vmem:[%s0 + $0x30] sm:$0xff]
  %v677 = vld [vmem:[%s0 + $0x38] sm:$0xff]
  %v678 = vld [vmem:[%s0 + $0xa0] sm:$0xff]
  %v679 = vld [vmem:[%s0 + $0xa8] sm:$0xff]
  %v680 = vld [vmem:[%s0 + $0xb0] sm:$0xff]
  %v681 = vld [vmem:[%s0 + $0xb8] sm:$0xff]
  %v682 = vld [vmem:[%s0 + $0x120] sm:$0xff]
  %v683 = vld [vmem:[%s0 + $0x128] sm:$0xff]
  %v684 = vld [vmem:[%s0 + $0x130] sm:$0xff]
  %v685 = vld [vmem:[%s0 + $0x138] sm:$0xff]
  %v686 = vld [vmem:[%s0 + $0x1a0] sm:$0xff]
  %v687 = vld [vmem:[%s0 + $0x1a8] sm:$0xff]
  %v688 = vld [vmem:[%s0 + $0x1b0] sm:$0xff]
  %v689 = vld [vmem:[%s0 + $0x1b8] sm:$0xff]
  %v690 = vld [vmem:[%s0 + $0x220] sm:$0xff]
  %v691 = vld [vmem:[%s0 + $0x228] sm:$0xff]
  %v692 = vld [vmem:[%s0 + $0x230] sm:$0xff]
  %v693 = vld [vmem:[%s0 + $0x238] sm:$0xff]
  %v694 = vld [vmem:[%s0 + $0x2a0] sm:$0xff]
  %v695 = vld [vmem:[%s0 + $0x2a8] sm:$0xff]
  %v696 = vld [vmem:[%s0 + $0x2b0] sm:$0xff]
  %v697 = vld [vmem:[%s0 + $0x2b8] sm:$0xff]
  %v698 = vld [vmem:[%s0 + $0x320] sm:$0xff]
  %v699 = vld [vmem:[%s0 + $0x328] sm:$0xff]
  %v700 = vld [vmem:[%s0 + $0x330] sm:$0xff]
  %v701 = vld [vmem:[%s0 + $0x338] sm:$0xff]
  %v702 = vld [vmem:[%s0 + $0x3a0] sm:$0xff]
  %v703 = vld [vmem:[%s0 + $0x3a8] sm:$0xff]
  %v704 = vld [vmem:[%s0 + $0x3b0] sm:$0xff]
  %v705 = vld [vmem:[%s0 + $0x3b8] sm:$0xff]
  %v738 = vunpack.c.l.b16 %v674
  %v739 = vunpack.c.h.b16 %v674
  %v740 = vunpack.c.l.b16 %v675
  %v741 = vunpack.c.h.b16 %v675
  %v742 = vunpack.c.l.b16 %v676
  %v743 = vunpack.c.h.b16 %v676
  %v744 = vunpack.c.l.b16 %v677
  %v745 = vunpack.c.h.b16 %v677
  %v746 = vunpack.c.l.b16 %v678
  %v747 = vunpack.c.h.b16 %v678
  %v748 = vunpack.c.l.b16 %v679
  %v749 = vunpack.c.h.b16 %v679
  %v750 = vunpack.c.l.b16 %v680
  %v751 = vunpack.c.h.b16 %v680
  %v752 = vunpack.c.l.b16 %v681
  %v753 = vunpack.c.h.b16 %v681
  %v754 = vunpack.c.l.b16 %v682
  %v755 = vunpack.c.h.b16 %v682
  %v756 = vunpack.c.l.b16 %v683
  %v757 = vunpack.c.h.b16 %v683
  %v758 = vunpack.c.l.b16 %v684
  %v759 = vunpack.c.h.b16 %v684
  %v760 = vunpack.c.l.b16 %v685
  %v761 = vunpack.c.h.b16 %v685
  %v762 = vunpack.c.l.b16 %v686
  %v763 = vunpack.c.h.b16 %v686
  %v764 = vunpack.c.l.b16 %v687
  %v765 = vunpack.c.h.b16 %v687
  %v766 = vunpack.c.l.b16 %v688
  %v767 = vunpack.c.h.b16 %v688
  %v768 = vunpack.c.l.b16 %v689
  %v769 = vunpack.c.h.b16 %v689
  %v770 = vunpack.c.l.b16 %v690
  %v771 = vunpack.c.h.b16 %v690
  %v772 = vunpack.c.l.b16 %v691
  %v773 = vunpack.c.h.b16 %v691
  %v774 = vunpack.c.l.b16 %v692
  %v775 = vunpack.c.h.b16 %v692
  %v776 = vunpack.c.l.b16 %v693
  %v777 = vunpack.c.h.b16 %v693
  %v778 = vunpack.c.l.b16 %v694
  %v779 = vunpack.c.h.b16 %v694
  %v780 = vunpack.c.l.b16 %v695
  %v781 = vunpack.c.h.b16 %v695
  %v782 = vunpack.c.l.b16 %v696
  %v783 = vunpack.c.h.b16 %v696
  %v784 = vunpack.c.l.b16 %v697
  %v785 = vunpack.c.h.b16 %v697
  %v786 = vunpack.c.l.b16 %v698
  %v787 = vunpack.c.h.b16 %v698
  %v788 = vunpack.c.l.b16 %v699
  %v789 = vunpack.c.h.b16 %v699
  %v790 = vunpack.c.l.b16 %v700
  %v791 = vunpack.c.h.b16 %v700
  %v792 = vunpack.c.l.b16 %v701
  %v793 = vunpack.c.h.b16 %v701
  %v794 = vunpack.c.l.b16 %v702
  %v795 = vunpack.c.h.b16 %v702
  %v796 = vunpack.c.l.b16 %v703
  %v797 = vunpack.c.h.b16 %v703
  %v798 = vunpack.c.l.b16 %v704
  %v799 = vunpack.c.h.b16 %v704
  %v800 = vunpack.c.l.b16 %v705
  %v801 = vunpack.c.h.b16 %v705
  %v802 = vpack.c.b16 %v742, %v738
  %v803 = vpack.c.b16 %v743, %v739
  %v804 = vpack.c.b16 %v744, %v740
  %v805 = vpack.c.b16 %v745, %v741
  %v806 = vpack.c.b16 %v750, %v746
  %v807 = vpack.c.b16 %v751, %v747
  %v808 = vpack.c.b16 %v752, %v748
  %v809 = vpack.c.b16 %v753, %v749
  %v810 = vpack.c.b16 %v758, %v754
  %v811 = vpack.c.b16 %v759, %v755
  %v812 = vpack.c.b16 %v760, %v756
  %v813 = vpack.c.b16 %v761, %v757
  %v814 = vpack.c.b16 %v766, %v762
  %v815 = vpack.c.b16 %v767, %v763
  %v816 = vpack.c.b16 %v768, %v764
  %v817 = vpack.c.b16 %v769, %v765
  %v818 = vpack.c.b16 %v774, %v770
  %v819 = vpack.c.b16 %v775, %v771
  %v820 = vpack.c.b16 %v776, %v772
  %v821 = vpack.c.b16 %v777, %v773
  %v822 = vpack.c.b16 %v782, %v778
  %v823 = vpack.c.b16 %v783, %v779
  %v824 = vpack.c.b16 %v784, %v780
  %v825 = vpack.c.b16 %v785, %v781
  %v826 = vpack.c.b16 %v790, %v786
  %v827 = vpack.c.b16 %v791, %v787
  %v828 = vpack.c.b16 %v792, %v788
  %v829 = vpack.c.b16 %v793, %v789
  %v830 = vpack.c.b16 %v798, %v794
  %v831 = vpack.c.b16 %v799, %v795
  %v832 = vpack.c.b16 %v800, %v796
  %v833 = vpack.c.b16 %v801, %v797
  %v859 = vsel %vm451, %v805, 0
  %v862 = vsel %vm451, %v809, 0
  %v865 = vsel %vm451, %v813, 0
  %v868 = vsel %vm451, %v817, 0
  %v871 = vsel %vm451, %v821, 0
  %v874 = vsel %vm451, %v825, 0
  %v877 = vsel %vm451, %v829, 0
  %v880 = vsel %vm451, %v833, 0
  %882 = vmatprep.subr.bf16.mxu0 0
  %883 = vmatpush1.bf16.msra.mxu0 %v395
  %884 = vmatprep.subr.bf16.mxu0 0
  %885 = vmatpush1.bf16.msra.mxu0 %v394
  %886 = vmatprep.subr.bf16.mxu0 0
  %887 = vmatpush1.bf16.msra.mxu0 %v393
  %888 = vmatprep.subr.bf16.mxu0 0
  %889 = vmatpush1.bf16.msra.mxu0 %v392
  %890 = vmatprep.subr.bf16.mxu0 0
  %891 = vmatpush1.bf16.msra.mxu0 %v391
  %892 = vmatprep.subr.bf16.mxu0 0
  %893 = vmatpush1.bf16.msra.mxu0 %v390
  %894 = vmatprep.subr.bf16.mxu0 0
  %895 = vmatpush1.bf16.msra.mxu0 %v389
  %896 = vmatprep.subr.bf16.mxu0 0
  %897 = vmatpush1.bf16.msra.mxu0 %v388
  %898 = vmatprep.subr.bf16.mxu0 0
  %899 = vmatpush2.bf16.msra.mxu0 %v403
  %900 = vmatprep.subr.bf16.mxu0 0
  %901 = vmatpush2.bf16.msra.mxu0 %v402
  %902 = vmatprep.subr.bf16.mxu0 0
  %903 = vmatpush2.bf16.msra.mxu0 %v401
  %904 = vmatprep.subr.bf16.mxu0 0
  %905 = vmatpush2.bf16.msra.mxu0 %v400
  %906 = vmatprep.subr.bf16.mxu0 0
  %907 = vmatpush2.bf16.msra.mxu0 %v399
  %908 = vmatprep.subr.bf16.mxu0 0
  %909 = vmatpush2.bf16.msra.mxu0 %v398
  %910 = vmatprep.subr.bf16.mxu0 0
  %911 = vmatpush2.bf16.msra.mxu0 %v397
  %912 = vmatprep.subr.bf16.mxu0 0
  %913 = vmatpush2.bf16.msra.mxu0 %v396
  %914 = vmatprep.mubr.bf16.mxu0 %v803
  %915 = vmatmul.mubr.bf16.gmra.mxu0 %v802
  %v916 = vpop.f32.mrf.mxu0
  %v917 = vadd.f32 0.0, %v916
  %v918 = vpop.f32.mrf.mxu0
  %v919 = vpop.f32.mrf.mxu0
  %v920 = vadd.f32 0.0, %v919
  %v921 = vpop.f32.mrf.mxu0
  %922 = vmatprep.mubr.bf16.mxu0 %v807
  %923 = vmatmul.mubr.bf16.gmra.mxu0 %v806
  %v924 = vpop.f32.mrf.mxu0
  %v925 = vadd.f32 0.0, %v924
  %v926 = vpop.f32.mrf.mxu0
  %v927 = vpop.f32.mrf.mxu0
  %v928 = vadd.f32 0.0, %v927
  %v929 = vpop.f32.mrf.mxu0
  %930 = vmatprep.mubr.bf16.mxu0 %v811
  %931 = vmatmul.mubr.bf16.gmra.mxu0 %v810
  %v932 = vpop.f32.mrf.mxu0
  %v933 = vadd.f32 0.0, %v932
  %v934 = vpop.f32.mrf.mxu0
  %v935 = vpop.f32.mrf.mxu0
  %v936 = vadd.f32 0.0, %v935
  %v937 = vpop.f32.mrf.mxu0
  %938 = vmatprep.mubr.bf16.mxu0 %v815
  %939 = vmatmul.mubr.bf16.gmra.mxu0 %v814
  %v940 = vpop.f32.mrf.mxu0
  %v941 = vadd.f32 0.0, %v940
  %v942 = vpop.f32.mrf.mxu0
  %v943 = vpop.f32.mrf.mxu0
  %v944 = vadd.f32 0.0, %v943
  %v945 = vpop.f32.mrf.mxu0
  %946 = vmatprep.mubr.bf16.mxu0 %v819
  %947 = vmatmul.mubr.bf16.gmra.mxu0 %v818
  %v948 = vpop.f32.mrf.mxu0
  %v949 = vadd.f32 0.0, %v948
  %v950 = vpop.f32.mrf.mxu0
  %v951 = vpop.f32.mrf.mxu0
  %v952 = vadd.f32 0.0, %v951
  %v953 = vpop.f32.mrf.mxu0
  %954 = vmatprep.mubr.bf16.mxu0 %v823
  %955 = vmatmul.mubr.bf16.gmra.mxu0 %v822
  %v956 = vpop.f32.mrf.mxu0
  %v957 = vadd.f32 0.0, %v956
  %v958 = vpop.f32.mrf.mxu0
  %v959 = vpop.f32.mrf.mxu0
  %v960 = vadd.f32 0.0, %v959
  %v961 = vpop.f32.mrf.mxu0
  %962 = vmatprep.mubr.bf16.mxu0 %v827
  %963 = vmatmul.mubr.bf16.gmra.mxu0 %v826
  %v964 = vpop.f32.mrf.mxu0
  %v965 = vadd.f32 0.0, %v964
  %v966 = vpop.f32.mrf.mxu0
  %v967 = vpop.f32.mrf.mxu0
  %v968 = vadd.f32 0.0, %v967
  %v969 = vpop.f32.mrf.mxu0
  %970 = vmatprep.mubr.bf16.mxu0 %v831
  %971 = vmatmul.mubr.bf16.gmra.mxu0 %v830
  %v972 = vpop.f32.mrf.mxu0
  %v973 = vadd.f32 0.0, %v972
  %v974 = vpop.f32.mrf.mxu0
  %v975 = vpop.f32.mrf.mxu0
  %v976 = vadd.f32 0.0, %v975
  %v977 = vpop.f32.mrf.mxu0
  %978 = vdwg.mxu0
  %979 = vmatprep.subr.bf16.mxu0 0
  %980 = vmatpush1.bf16.msra.mxu0 %v411
  %981 = vmatprep.subr.bf16.mxu0 0
  %982 = vmatpush1.bf16.msra.mxu0 %v410
  %983 = vmatprep.subr.bf16.mxu0 0
  %984 = vmatpush1.bf16.msra.mxu0 %v409
  %985 = vmatprep.subr.bf16.mxu0 0
  %986 = vmatpush1.bf16.msra.mxu0 %v408
  %987 = vmatprep.subr.bf16.mxu0 0
  %988 = vmatpush1.bf16.msra.mxu0 %v407
  %989 = vmatprep.subr.bf16.mxu0 0
  %990 = vmatpush1.bf16.msra.mxu0 %v406
  %991 = vmatprep.subr.bf16.mxu0 0
  %992 = vmatpush1.bf16.msra.mxu0 %v405
  %993 = vmatprep.subr.bf16.mxu0 0
  %994 = vmatpush1.bf16.msra.mxu0 %v404
  %995 = vmatprep.subr.bf16.mxu0 0
  %996 = vmatpush2.bf16.msra.mxu0 %v478
  %997 = vmatprep.subr.bf16.mxu0 0
  %998 = vmatpush2.bf16.msra.mxu0 %v418
  %999 = vmatprep.subr.bf16.mxu0 0
  %1000 = vmatpush2.bf16.msra.mxu0 %v417
  %1001 = vmatprep.subr.bf16.mxu0 0
  %1002 = vmatpush2.bf16.msra.mxu0 %v416
  %1003 = vmatprep.subr.bf16.mxu0 0
  %1004 = vmatpush2.bf16.msra.mxu0 %v415
  %1005 = vmatprep.subr.bf16.mxu0 0
  %1006 = vmatpush2.bf16.msra.mxu0 %v414
  %1007 = vmatprep.subr.bf16.mxu0 0
  %1008 = vmatpush2.bf16.msra.mxu0 %v413
  %1009 = vmatprep.subr.bf16.mxu0 0
  %1010 = vmatpush2.bf16.msra.mxu0 %v412
  %1011 = vmatprep.mubr.bf16.mxu0 %v859
  %1012 = vmatmul.mubr.bf16.gmra.mxu0 %v804
  %v1013 = vpop.f32.mrf.mxu0
  %v1014 = vadd.f32 %v917, %v1013
  %v1015 = vpop.f32.mrf.mxu0
  %v1016 = vpop.f32.mrf.mxu0
  %v1017 = vadd.f32 %v920, %v1016
  %v1018 = vpop.f32.mrf.mxu0
  %1019 = vmatprep.mubr.bf16.mxu0 %v862
  %1020 = vmatmul.mubr.bf16.gmra.mxu0 %v808
  %v1021 = vpop.f32.mrf.mxu0
  %v1022 = vadd.f32 %v925, %v1021
  %v1023 = vpop.f32.mrf.mxu0
  %v1024 = vpop.f32.mrf.mxu0
  %v1025 = vadd.f32 %v928, %v1024
  %v1026 = vpop.f32.mrf.mxu0
  %1027 = vmatprep.mubr.bf16.mxu0 %v865
  %1028 = vmatmul.mubr.bf16.gmra.mxu0 %v812
  %v1029 = vpop.f32.mrf.mxu0
  %v1030 = vadd.f32 %v933, %v1029
  %v1031 = vpop.f32.mrf.mxu0
  %v1032 = vpop.f32.mrf.mxu0
  %v1033 = vadd.f32 %v936, %v1032
  %v1034 = vpop.f32.mrf.mxu0
  %1035 = vmatprep.mubr.bf16.mxu0 %v868
  %1036 = vmatmul.mubr.bf16.gmra.mxu0 %v816
  %v1037 = vpop.f32.mrf.mxu0
  %v1038 = vadd.f32 %v941, %v1037
  %v1039 = vpop.f32.mrf.mxu0
  %v1040 = vpop.f32.mrf.mxu0
  %v1041 = vadd.f32 %v944, %v1040
  %v1042 = vpop.f32.mrf.mxu0
  %1043 = vmatprep.mubr.bf16.mxu0 %v871
  %1044 = vmatmul.mubr.bf16.gmra.mxu0 %v820
  %v1045 = vpop.f32.mrf.mxu0
  %v1046 = vadd.f32 %v949, %v1045
  %v1047 = vpop.f32.mrf.mxu0
  %v1048 = vpop.f32.mrf.mxu0
  %v1049 = vadd.f32 %v952, %v1048
  %v1050 = vpop.f32.mrf.mxu0
  %1051 = vmatprep.mubr.bf16.mxu0 %v874
  %1052 = vmatmul.mubr.bf16.gmra.mxu0 %v824
  %v1053 = vpop.f32.mrf.mxu0
  %v1054 = vadd.f32 %v957, %v1053
  %v1055 = vpop.f32.mrf.mxu0
  %v1056 = vpop.f32.mrf.mxu0
  %v1057 = vadd.f32 %v960, %v1056
  %v1058 = vpop.f32.mrf.mxu0
  %1059 = vmatprep.mubr.bf16.mxu0 %v877
  %1060 = vmatmul.mubr.bf16.gmra.mxu0 %v828
  %v1061 = vpop.f32.mrf.mxu0
  %v1062 = vadd.f32 %v965, %v1061
  %v1063 = vpop.f32.mrf.mxu0
  %v1064 = vpop.f32.mrf.mxu0
  %v1065 = vadd.f32 %v968, %v1064
  %v1066 = vpop.f32.mrf.mxu0
  %1067 = vmatprep.mubr.bf16.mxu0 %v880
  %1068 = vmatmul.mubr.bf16.gmra.mxu0 %v832
  %v1069 = vpop.f32.mrf.mxu0
  %v1070 = vadd.f32 %v973, %v1069
  %v1071 = vpop.f32.mrf.mxu0
  %v1072 = vpop.f32.mrf.mxu0
  %v1073 = vadd.f32 %v976, %v1072
  %v1074 = vpop.f32.mrf.mxu0
  %1075 = vdwg.mxu0
  %v1076 = vmax.f32 %v612, %v1014
  %v1077 = vmax.f32 %v615, %v1017
  %v1078 = vmax.f32 %v620, %v1022
  %v1079 = vmax.f32 %v623, %v1025
  %v1080 = vmax.f32 %v628, %v1030
  %v1081 = vmax.f32 %v631, %v1033
  %v1082 = vmax.f32 %v636, %v1038
  %v1083 = vmax.f32 %v639, %v1041
  %v1084 = vmax.f32 %v644, %v1046
  %v1085 = vmax.f32 %v647, %v1049
  %v1086 = vmax.f32 %v652, %v1054
  %v1087 = vmax.f32 %v655, %v1057
  %v1088 = vmax.f32 %v660, %v1062
  %v1089 = vmax.f32 %v663, %v1065
  %v1090 = vmax.f32 %v668, %v1070
  %v1091 = vmax.f32 %v671, %v1073
  %v1092 = vld [vmem:[%s0 + $0x40] sm:$0xff]
  %v1093 = vld [vmem:[%s0 + $0x48] sm:$0xff]
  %v1094 = vld [vmem:[%s0 + $0x50] sm:$0xff]
  %v1095 = vld [vmem:[%s0 + $0x58] sm:$0xff]
  %v1096 = vld [vmem:[%s0 + $0xc0] sm:$0xff]
  %v1097 = vld [vmem:[%s0 + $0xc8] sm:$0xff]
  %v1098 = vld [vmem:[%s0 + $0xd0] sm:$0xff]
  %v1099 = vld [vmem:[%s0 + $0xd8] sm:$0xff]
  %v1100 = vld [vmem:[%s0 + $0x140] sm:$0xff]
  %v1101 = vld [vmem:[%s0 + $0x148] sm:$0xff]
  %v1102 = vld [vmem:[%s0 + $0x150] sm:$0xff]
  %v1103 = vld [vmem:[%s0 + $0x158] sm:$0xff]
  %v1104 = vld [vmem:[%s0 + $0x1c0] sm:$0xff]
  %v1105 = vld [vmem:[%s0 + $0x1c8] sm:$0xff]
  %v1106 = vld [vmem:[%s0 + $0x1d0] sm:$0xff]
  %v1107 = vld [vmem:[%s0 + $0x1d8] sm:$0xff]
  %v1108 = vld [vmem:[%s0 + $0x240] sm:$0xff]
  %v1109 = vld [vmem:[%s0 + $0x248] sm:$0xff]
  %v1110 = vld [vmem:[%s0 + $0x250] sm:$0xff]
  %v1111 = vld [vmem:[%s0 + $0x258] sm:$0xff]
  %v1112 = vld [vmem:[%s0 + $0x2c0] sm:$0xff]
  %v1113 = vld [vmem:[%s0 + $0x2c8] sm:$0xff]
  %v1114 = vld [vmem:[%s0 + $0x2d0] sm:$0xff]
  %v1115 = vld [vmem:[%s0 + $0x2d8] sm:$0xff]
  %v1116 = vld [vmem:[%s0 + $0x340] sm:$0xff]
  %v1117 = vld [vmem:[%s0 + $0x348] sm:$0xff]
  %v1118 = vld [vmem:[%s0 + $0x350] sm:$0xff]
  %v1119 = vld [vmem:[%s0 + $0x358] sm:$0xff]
  %v1120 = vld [vmem:[%s0 + $0x3c0] sm:$0xff]
  %v1121 = vld [vmem:[%s0 + $0x3c8] sm:$0xff]
  %v1122 = vld [vmem:[%s0 + $0x3d0] sm:$0xff]
  %v1123 = vld [vmem:[%s0 + $0x3d8] sm:$0xff]
  %v1156 = vunpack.c.l.b16 %v1092
  %v1157 = vunpack.c.h.b16 %v1092
  %v1158 = vunpack.c.l.b16 %v1093
  %v1159 = vunpack.c.h.b16 %v1093
  %v1160 = vunpack.c.l.b16 %v1094
  %v1161 = vunpack.c.h.b16 %v1094
  %v1162 = vunpack.c.l.b16 %v1095
  %v1163 = vunpack.c.h.b16 %v1095
  %v1164 = vunpack.c.l.b16 %v1096
  %v1165 = vunpack.c.h.b16 %v1096
  %v1166 = vunpack.c.l.b16 %v1097
  %v1167 = vunpack.c.h.b16 %v1097
  %v1168 = vunpack.c.l.b16 %v1098
  %v1169 = vunpack.c.h.b16 %v1098
  %v1170 = vunpack.c.l.b16 %v1099
  %v1171 = vunpack.c.h.b16 %v1099
  %v1172 = vunpack.c.l.b16 %v1100
  %v1173 = vunpack.c.h.b16 %v1100
  %v1174 = vunpack.c.l.b16 %v1101
  %v1175 = vunpack.c.h.b16 %v1101
  %v1176 = vunpack.c.l.b16 %v1102
  %v1177 = vunpack.c.h.b16 %v1102
  %v1178 = vunpack.c.l.b16 %v1103
  %v1179 = vunpack.c.h.b16 %v1103
  %v1180 = vunpack.c.l.b16 %v1104
  %v1181 = vunpack.c.h.b16 %v1104
  %v1182 = vunpack.c.l.b16 %v1105
  %v1183 = vunpack.c.h.b16 %v1105
  %v1184 = vunpack.c.l.b16 %v1106
  %v1185 = vunpack.c.h.b16 %v1106
  %v1186 = vunpack.c.l.b16 %v1107
  %v1187 = vunpack.c.h.b16 %v1107
  %v1188 = vunpack.c.l.b16 %v1108
  %v1189 = vunpack.c.h.b16 %v1108
  %v1190 = vunpack.c.l.b16 %v1109
  %v1191 = vunpack.c.h.b16 %v1109
  %v1192 = vunpack.c.l.b16 %v1110
  %v1193 = vunpack.c.h.b16 %v1110
  %v1194 = vunpack.c.l.b16 %v1111
  %v1195 = vunpack.c.h.b16 %v1111
  %v1196 = vunpack.c.l.b16 %v1112
  %v1197 = vunpack.c.h.b16 %v1112
  %v1198 = vunpack.c.l.b16 %v1113
  %v1199 = vunpack.c.h.b16 %v1113
  %v1200 = vunpack.c.l.b16 %v1114
  %v1201 = vunpack.c.h.b16 %v1114
  %v1202 = vunpack.c.l.b16 %v1115
  %v1203 = vunpack.c.h.b16 %v1115
  %v1204 = vunpack.c.l.b16 %v1116
  %v1205 = vunpack.c.h.b16 %v1116
  %v1206 = vunpack.c.l.b16 %v1117
  %v1207 = vunpack.c.h.b16 %v1117
  %v1208 = vunpack.c.l.b16 %v1118
  %v1209 = vunpack.c.h.b16 %v1118
  %v1210 = vunpack.c.l.b16 %v1119
  %v1211 = vunpack.c.h.b16 %v1119
  %v1212 = vunpack.c.l.b16 %v1120
  %v1213 = vunpack.c.h.b16 %v1120
  %v1214 = vunpack.c.l.b16 %v1121
  %v1215 = vunpack.c.h.b16 %v1121
  %v1216 = vunpack.c.l.b16 %v1122
  %v1217 = vunpack.c.h.b16 %v1122
  %v1218 = vunpack.c.l.b16 %v1123
  %v1219 = vunpack.c.h.b16 %v1123
  %v1220 = vpack.c.b16 %v1160, %v1156
  %v1221 = vpack.c.b16 %v1161, %v1157
  %v1222 = vpack.c.b16 %v1162, %v1158
  %v1223 = vpack.c.b16 %v1163, %v1159
  %v1224 = vpack.c.b16 %v1168, %v1164
  %v1225 = vpack.c.b16 %v1169, %v1165
  %v1226 = vpack.c.b16 %v1170, %v1166
  %v1227 = vpack.c.b16 %v1171, %v1167
  %v1228 = vpack.c.b16 %v1176, %v1172
  %v1229 = vpack.c.b16 %v1177, %v1173
  %v1230 = vpack.c.b16 %v1178, %v1174
  %v1231 = vpack.c.b16 %v1179, %v1175
  %v1232 = vpack.c.b16 %v1184, %v1180
  %v1233 = vpack.c.b16 %v1185, %v1181
  %v1234 = vpack.c.b16 %v1186, %v1182
  %v1235 = vpack.c.b16 %v1187, %v1183
  %v1236 = vpack.c.b16 %v1192, %v1188
  %v1237 = vpack.c.b16 %v1193, %v1189
  %v1238 = vpack.c.b16 %v1194, %v1190
  %v1239 = vpack.c.b16 %v1195, %v1191
  %v1240 = vpack.c.b16 %v1200, %v1196
  %v1241 = vpack.c.b16 %v1201, %v1197
  %v1242 = vpack.c.b16 %v1202, %v1198
  %v1243 = vpack.c.b16 %v1203, %v1199
  %v1244 = vpack.c.b16 %v1208, %v1204
  %v1245 = vpack.c.b16 %v1209, %v1205
  %v1246 = vpack.c.b16 %v1210, %v1206
  %v1247 = vpack.c.b16 %v1211, %v1207
  %v1248 = vpack.c.b16 %v1216, %v1212
  %v1249 = vpack.c.b16 %v1217, %v1213
  %v1250 = vpack.c.b16 %v1218, %v1214
  %v1251 = vpack.c.b16 %v1219, %v1215
  %v1277 = vsel %vm451, %v1223, 0
  %v1280 = vsel %vm451, %v1227, 0
  %v1283 = vsel %vm451, %v1231, 0
  %v1286 = vsel %vm451, %v1235, 0
  %v1289 = vsel %vm451, %v1239, 0
  %v1292 = vsel %vm451, %v1243, 0
  %v1295 = vsel %vm451, %v1247, 0
  %v1298 = vsel %vm451, %v1251, 0
  %1300 = vmatprep.subr.bf16.mxu0 0
  %1301 = vmatpush1.bf16.msra.mxu0 %v395
  %1302 = vmatprep.subr.bf16.mxu0 0
  %1303 = vmatpush1.bf16.msra.mxu0 %v394
  %1304 = vmatprep.subr.bf16.mxu0 0
  %1305 = vmatpush1.bf16.msra.mxu0 %v393
  %1306 = vmatprep.subr.bf16.mxu0 0
  %1307 = vmatpush1.bf16.msra.mxu0 %v392
  %1308 = vmatprep.subr.bf16.mxu0 0
  %1309 = vmatpush1.bf16.msra.mxu0 %v391
  %1310 = vmatprep.subr.bf16.mxu0 0
  %1311 = vmatpush1.bf16.msra.mxu0 %v390
  %1312 = vmatprep.subr.bf16.mxu0 0
  %1313 = vmatpush1.bf16.msra.mxu0 %v389
  %1314 = vmatprep.subr.bf16.mxu0 0
  %1315 = vmatpush1.bf16.msra.mxu0 %v388
  %1316 = vmatprep.subr.bf16.mxu0 0
  %1317 = vmatpush2.bf16.msra.mxu0 %v403
  %1318 = vmatprep.subr.bf16.mxu0 0
  %1319 = vmatpush2.bf16.msra.mxu0 %v402
  %1320 = vmatprep.subr.bf16.mxu0 0
  %1321 = vmatpush2.bf16.msra.mxu0 %v401
  %1322 = vmatprep.subr.bf16.mxu0 0
  %1323 = vmatpush2.bf16.msra.mxu0 %v400
  %1324 = vmatprep.subr.bf16.mxu0 0
  %1325 = vmatpush2.bf16.msra.mxu0 %v399
  %1326 = vmatprep.subr.bf16.mxu0 0
  %1327 = vmatpush2.bf16.msra.mxu0 %v398
  %1328 = vmatprep.subr.bf16.mxu0 0
  %1329 = vmatpush2.bf16.msra.mxu0 %v397
  %1330 = vmatprep.subr.bf16.mxu0 0
  %1331 = vmatpush2.bf16.msra.mxu0 %v396
  %1332 = vmatprep.mubr.bf16.mxu0 %v1221
  %1333 = vmatmul.mubr.bf16.gmra.mxu0 %v1220
  %v1334 = vpop.f32.mrf.mxu0
  %v1335 = vadd.f32 0.0, %v1334
  %v1336 = vpop.f32.mrf.mxu0
  %v1337 = vpop.f32.mrf.mxu0
  %v1338 = vadd.f32 0.0, %v1337
  %v1339 = vpop.f32.mrf.mxu0
  %1340 = vmatprep.mubr.bf16.mxu0 %v1225
  %1341 = vmatmul.mubr.bf16.gmra.mxu0 %v1224
  %v1342 = vpop.f32.mrf.mxu0
  %v1343 = vadd.f32 0.0, %v1342
  %v1344 = vpop.f32.mrf.mxu0
  %v1345 = vpop.f32.mrf.mxu0
  %v1346 = vadd.f32 0.0, %v1345
  %v1347 = vpop.f32.mrf.mxu0
  %1348 = vmatprep.mubr.bf16.mxu0 %v1229
  %1349 = vmatmul.mubr.bf16.gmra.mxu0 %v1228
  %v1350 = vpop.f32.mrf.mxu0
  %v1351 = vadd.f32 0.0, %v1350
  %v1352 = vpop.f32.mrf.mxu0
  %v1353 = vpop.f32.mrf.mxu0
  %v1354 = vadd.f32 0.0, %v1353
  %v1355 = vpop.f32.mrf.mxu0
  %1356 = vmatprep.mubr.bf16.mxu0 %v1233
  %1357 = vmatmul.mubr.bf16.gmra.mxu0 %v1232
  %v1358 = vpop.f32.mrf.mxu0
  %v1359 = vadd.f32 0.0, %v1358
  %v1360 = vpop.f32.mrf.mxu0
  %v1361 = vpop.f32.mrf.mxu0
  %v1362 = vadd.f32 0.0, %v1361
  %v1363 = vpop.f32.mrf.mxu0
  %1364 = vmatprep.mubr.bf16.mxu0 %v1237
  %1365 = vmatmul.mubr.bf16.gmra.mxu0 %v1236
  %v1366 = vpop.f32.mrf.mxu0
  %v1367 = vadd.f32 0.0, %v1366
  %v1368 = vpop.f32.mrf.mxu0
  %v1369 = vpop.f32.mrf.mxu0
  %v1370 = vadd.f32 0.0, %v1369
  %v1371 = vpop.f32.mrf.mxu0
  %1372 = vmatprep.mubr.bf16.mxu0 %v1241
  %1373 = vmatmul.mubr.bf16.gmra.mxu0 %v1240
  %v1374 = vpop.f32.mrf.mxu0
  %v1375 = vadd.f32 0.0, %v1374
  %v1376 = vpop.f32.mrf.mxu0
  %v1377 = vpop.f32.mrf.mxu0
  %v1378 = vadd.f32 0.0, %v1377
  %v1379 = vpop.f32.mrf.mxu0
  %1380 = vmatprep.mubr.bf16.mxu0 %v1245
  %1381 = vmatmul.mubr.bf16.gmra.mxu0 %v1244
  %v1382 = vpop.f32.mrf.mxu0
  %v1383 = vadd.f32 0.0, %v1382
  %v1384 = vpop.f32.mrf.mxu0
  %v1385 = vpop.f32.mrf.mxu0
  %v1386 = vadd.f32 0.0, %v1385
  %v1387 = vpop.f32.mrf.mxu0
  %1388 = vmatprep.mubr.bf16.mxu0 %v1249
  %1389 = vmatmul.mubr.bf16.gmra.mxu0 %v1248
  %v1390 = vpop.f32.mrf.mxu0
  %v1391 = vadd.f32 0.0, %v1390
  %v1392 = vpop.f32.mrf.mxu0
  %v1393 = vpop.f32.mrf.mxu0
  %v1394 = vadd.f32 0.0, %v1393
  %v1395 = vpop.f32.mrf.mxu0
  %1396 = vdwg.mxu0
  %1397 = vmatprep.subr.bf16.mxu0 0
  %1398 = vmatpush1.bf16.msra.mxu0 %v411
  %1399 = vmatprep.subr.bf16.mxu0 0
  %1400 = vmatpush1.bf16.msra.mxu0 %v410
  %1401 = vmatprep.subr.bf16.mxu0 0
  %1402 = vmatpush1.bf16.msra.mxu0 %v409
  %1403 = vmatprep.subr.bf16.mxu0 0
  %1404 = vmatpush1.bf16.msra.mxu0 %v408
  %1405 = vmatprep.subr.bf16.mxu0 0
  %1406 = vmatpush1.bf16.msra.mxu0 %v407
  %1407 = vmatprep.subr.bf16.mxu0 0
  %1408 = vmatpush1.bf16.msra.mxu0 %v406
  %1409 = vmatprep.subr.bf16.mxu0 0
  %1410 = vmatpush1.bf16.msra.mxu0 %v405
  %1411 = vmatprep.subr.bf16.mxu0 0
  %1412 = vmatpush1.bf16.msra.mxu0 %v404
  %1413 = vmatprep.subr.bf16.mxu0 0
  %1414 = vmatpush2.bf16.msra.mxu0 %v478
  %1415 = vmatprep.subr.bf16.mxu0 0
  %1416 = vmatpush2.bf16.msra.mxu0 %v418
  %1417 = vmatprep.subr.bf16.mxu0 0
  %1418 = vmatpush2.bf16.msra.mxu0 %v417
  %1419 = vmatprep.subr.bf16.mxu0 0
  %1420 = vmatpush2.bf16.msra.mxu0 %v416
  %1421 = vmatprep.subr.bf16.mxu0 0
  %1422 = vmatpush2.bf16.msra.mxu0 %v415
  %1423 = vmatprep.subr.bf16.mxu0 0
  %1424 = vmatpush2.bf16.msra.mxu0 %v414
  %1425 = vmatprep.subr.bf16.mxu0 0
  %1426 = vmatpush2.bf16.msra.mxu0 %v413
  %1427 = vmatprep.subr.bf16.mxu0 0
  %1428 = vmatpush2.bf16.msra.mxu0 %v412
  %1429 = vmatprep.mubr.bf16.mxu0 %v1277
  %1430 = vmatmul.mubr.bf16.gmra.mxu0 %v1222
  %v1431 = vpop.f32.mrf.mxu0
  %v1432 = vadd.f32 %v1335, %v1431
  %v1433 = vpop.f32.mrf.mxu0
  %v1434 = vpop.f32.mrf.mxu0
  %v1435 = vadd.f32 %v1338, %v1434
  %v1436 = vpop.f32.mrf.mxu0
  %1437 = vmatprep.mubr.bf16.mxu0 %v1280
  %1438 = vmatmul.mubr.bf16.gmra.mxu0 %v1226
  %v1439 = vpop.f32.mrf.mxu0
  %v1440 = vadd.f32 %v1343, %v1439
  %v1441 = vpop.f32.mrf.mxu0
  %v1442 = vpop.f32.mrf.mxu0
  %v1443 = vadd.f32 %v1346, %v1442
  %v1444 = vpop.f32.mrf.mxu0
  %1445 = vmatprep.mubr.bf16.mxu0 %v1283
  %1446 = vmatmul.mubr.bf16.gmra.mxu0 %v1230
  %v1447 = vpop.f32.mrf.mxu0
  %v1448 = vadd.f32 %v1351, %v1447
  %v1449 = vpop.f32.mrf.mxu0
  %v1450 = vpop.f32.mrf.mxu0
  %v1451 = vadd.f32 %v1354, %v1450
  %v1452 = vpop.f32.mrf.mxu0
  %1453 = vmatprep.mubr.bf16.mxu0 %v1286
  %1454 = vmatmul.mubr.bf16.gmra.mxu0 %v1234
  %v1455 = vpop.f32.mrf.mxu0
  %v1456 = vadd.f32 %v1359, %v1455
  %v1457 = vpop.f32.mrf.mxu0
  %v1458 = vpop.f32.mrf.mxu0
  %v1459 = vadd.f32 %v1362, %v1458
  %v1460 = vpop.f32.mrf.mxu0
  %1461 = vmatprep.mubr.bf16.mxu0 %v1289
  %1462 = vmatmul.mubr.bf16.gmra.mxu0 %v1238
  %v1463 = vpop.f32.mrf.mxu0
  %v1464 = vadd.f32 %v1367, %v1463
  %v1465 = vpop.f32.mrf.mxu0
  %v1466 = vpop.f32.mrf.mxu0
  %v1467 = vadd.f32 %v1370, %v1466
  %v1468 = vpop.f32.mrf.mxu0
  %1469 = vmatprep.mubr.bf16.mxu0 %v1292
  %1470 = vmatmul.mubr.bf16.gmra.mxu0 %v1242
  %v1471 = vpop.f32.mrf.mxu0
  %v1472 = vadd.f32 %v1375, %v1471
  %v1473 = vpop.f32.mrf.mxu0
  %v1474 = vpop.f32.mrf.mxu0
  %v1475 = vadd.f32 %v1378, %v1474
  %v1476 = vpop.f32.mrf.mxu0
  %1477 = vmatprep.mubr.bf16.mxu0 %v1295
  %1478 = vmatmul.mubr.bf16.gmra.mxu0 %v1246
  %v1479 = vpop.f32.mrf.mxu0
  %v1480 = vadd.f32 %v1383, %v1479
  %v1481 = vpop.f32.mrf.mxu0
  %v1482 = vpop.f32.mrf.mxu0
  %v1483 = vadd.f32 %v1386, %v1482
  %v1484 = vpop.f32.mrf.mxu0
  %1485 = vmatprep.mubr.bf16.mxu0 %v1298
  %1486 = vmatmul.mubr.bf16.gmra.mxu0 %v1250
  %v1487 = vpop.f32.mrf.mxu0
  %v1488 = vadd.f32 %v1391, %v1487
  %v1489 = vpop.f32.mrf.mxu0
  %v1490 = vpop.f32.mrf.mxu0
  %v1491 = vadd.f32 %v1394, %v1490
  %v1492 = vpop.f32.mrf.mxu0
  %1493 = vdwg.mxu0
  %v1494 = vmax.f32 %v1076, %v1432
  %v1495 = vmax.f32 %v1077, %v1435
  %v1496 = vmax.f32 %v1078, %v1440
  %v1497 = vmax.f32 %v1079, %v1443
  %v1498 = vmax.f32 %v1080, %v1448
  %v1499 = vmax.f32 %v1081, %v1451
  %v1500 = vmax.f32 %v1082, %v1456
  %v1501 = vmax.f32 %v1083, %v1459
  %v1502 = vmax.f32 %v1084, %v1464
  %v1503 = vmax.f32 %v1085, %v1467
  %v1504 = vmax.f32 %v1086, %v1472
  %v1505 = vmax.f32 %v1087, %v1475
  %v1506 = vmax.f32 %v1088, %v1480
  %v1507 = vmax.f32 %v1089, %v1483
  %v1508 = vmax.f32 %v1090, %v1488
  %v1509 = vmax.f32 %v1091, %v1491
  %v1510 = vld [vmem:[%s0 + $0x60] sm:$0xff]
  %v1511 = vld [vmem:[%s0 + $0x68] sm:$0xff]
  %v1512 = vld [vmem:[%s0 + $0x70] sm:$0xff]
  %v1513 = vld [vmem:[%s0 + $0x78] sm:$0xff]
  %v1514 = vld [vmem:[%s0 + $0xe0] sm:$0xff]
  %v1515 = vld [vmem:[%s0 + $0xe8] sm:$0xff]
  %v1516 = vld [vmem:[%s0 + $0xf0] sm:$0xff]
  %v1517 = vld [vmem:[%s0 + $0xf8] sm:$0xff]
  %v1518 = vld [vmem:[%s0 + $0x160] sm:$0xff]
  %v1519 = vld [vmem:[%s0 + $0x168] sm:$0xff]
  %v1520 = vld [vmem:[%s0 + $0x170] sm:$0xff]
  %v1521 = vld [vmem:[%s0 + $0x178] sm:$0xff]
  %v1522 = vld [vmem:[%s0 + $0x1e0] sm:$0xff]
  %v1523 = vld [vmem:[%s0 + $0x1e8] sm:$0xff]
  %v1524 = vld [vmem:[%s0 + $0x1f0] sm:$0xff]
  %v1525 = vld [vmem:[%s0 + $0x1f8] sm:$0xff]
  %v1526 = vld [vmem:[%s0 + $0x260] sm:$0xff]
  %v1527 = vld [vmem:[%s0 + $0x268] sm:$0xff]
  %v1528 = vld [vmem:[%s0 + $0x270] sm:$0xff]
  %v1529 = vld [vmem:[%s0 + $0x278] sm:$0xff]
  %v1530 = vld [vmem:[%s0 + $0x2e0] sm:$0xff]
  %v1531 = vld [vmem:[%s0 + $0x2e8] sm:$0xff]
  %v1532 = vld [vmem:[%s0 + $0x2f0] sm:$0xff]
  %v1533 = vld [vmem:[%s0 + $0x2f8] sm:$0xff]
  %v1534 = vld [vmem:[%s0 + $0x360] sm:$0xff]
  %v1535 = vld [vmem:[%s0 + $0x368] sm:$0xff]
  %v1536 = vld [vmem:[%s0 + $0x370] sm:$0xff]
  %v1537 = vld [vmem:[%s0 + $0x378] sm:$0xff]
  %v1538 = vld [vmem:[%s0 + $0x3e0] sm:$0xff]
  %v1539 = vld [vmem:[%s0 + $0x3e8] sm:$0xff]
  %v1540 = vld [vmem:[%s0 + $0x3f0] sm:$0xff]
  %v1541 = vld [vmem:[%s0 + $0x3f8] sm:$0xff]
  %v1574 = vunpack.c.l.b16 %v1510
  %v1575 = vunpack.c.h.b16 %v1510
  %v1576 = vunpack.c.l.b16 %v1511
  %v1577 = vunpack.c.h.b16 %v1511
  %v1578 = vunpack.c.l.b16 %v1512
  %v1579 = vunpack.c.h.b16 %v1512
  %v1580 = vunpack.c.l.b16 %v1513
  %v1581 = vunpack.c.h.b16 %v1513
  %v1582 = vunpack.c.l.b16 %v1514
  %v1583 = vunpack.c.h.b16 %v1514
  %v1584 = vunpack.c.l.b16 %v1515
  %v1585 = vunpack.c.h.b16 %v1515
  %v1586 = vunpack.c.l.b16 %v1516
  %v1587 = vunpack.c.h.b16 %v1516
  %v1588 = vunpack.c.l.b16 %v1517
  %v1589 = vunpack.c.h.b16 %v1517
  %v1590 = vunpack.c.l.b16 %v1518
  %v1591 = vunpack.c.h.b16 %v1518
  %v1592 = vunpack.c.l.b16 %v1519
  %v1593 = vunpack.c.h.b16 %v1519
  %v1594 = vunpack.c.l.b16 %v1520
  %v1595 = vunpack.c.h.b16 %v1520
  %v1596 = vunpack.c.l.b16 %v1521
  %v1597 = vunpack.c.h.b16 %v1521
  %v1598 = vunpack.c.l.b16 %v1522
  %v1599 = vunpack.c.h.b16 %v1522
  %v1600 = vunpack.c.l.b16 %v1523
  %v1601 = vunpack.c.h.b16 %v1523
  %v1602 = vunpack.c.l.b16 %v1524
  %v1603 = vunpack.c.h.b16 %v1524
  %v1604 = vunpack.c.l.b16 %v1525
  %v1605 = vunpack.c.h.b16 %v1525
  %v1606 = vunpack.c.l.b16 %v1526
  %v1607 = vunpack.c.h.b16 %v1526
  %v1608 = vunpack.c.l.b16 %v1527
  %v1609 = vunpack.c.h.b16 %v1527
  %v1610 = vunpack.c.l.b16 %v1528
  %v1611 = vunpack.c.h.b16 %v1528
  %v1612 = vunpack.c.l.b16 %v1529
  %v1613 = vunpack.c.h.b16 %v1529
  %v1614 = vunpack.c.l.b16 %v1530
  %v1615 = vunpack.c.h.b16 %v1530
  %v1616 = vunpack.c.l.b16 %v1531
  %v1617 = vunpack.c.h.b16 %v1531
  %v1618 = vunpack.c.l.b16 %v1532
  %v1619 = vunpack.c.h.b16 %v1532
  %v1620 = vunpack.c.l.b16 %v1533
  %v1621 = vunpack.c.h.b16 %v1533
  %v1622 = vunpack.c.l.b16 %v1534
  %v1623 = vunpack.c.h.b16 %v1534
  %v1624 = vunpack.c.l.b16 %v1535
  %v1625 = vunpack.c.h.b16 %v1535
  %v1626 = vunpack.c.l.b16 %v1536
  %v1627 = vunpack.c.h.b16 %v1536
  %v1628 = vunpack.c.l.b16 %v1537
  %v1629 = vunpack.c.h.b16 %v1537
  %v1630 = vunpack.c.l.b16 %v1538
  %v1631 = vunpack.c.h.b16 %v1538
  %v1632 = vunpack.c.l.b16 %v1539
  %v1633 = vunpack.c.h.b16 %v1539
  %v1634 = vunpack.c.l.b16 %v1540
  %v1635 = vunpack.c.h.b16 %v1540
  %v1636 = vunpack.c.l.b16 %v1541
  %v1637 = vunpack.c.h.b16 %v1541
  %v1638 = vpack.c.b16 %v1578, %v1574
  %v1639 = vpack.c.b16 %v1579, %v1575
  %v1640 = vpack.c.b16 %v1580, %v1576
  %v1641 = vpack.c.b16 %v1581, %v1577
  %v1642 = vpack.c.b16 %v1586, %v1582
  %v1643 = vpack.c.b16 %v1587, %v1583
  %v1644 = vpack.c.b16 %v1588, %v1584
  %v1645 = vpack.c.b16 %v1589, %v1585
  %v1646 = vpack.c.b16 %v1594, %v1590
  %v1647 = vpack.c.b16 %v1595, %v1591
  %v1648 = vpack.c.b16 %v1596, %v1592
  %v1649 = vpack.c.b16 %v1597, %v1593
  %v1650 = vpack.c.b16 %v1602, %v1598
  %v1651 = vpack.c.b16 %v1603, %v1599
  %v1652 = vpack.c.b16 %v1604, %v1600
  %v1653 = vpack.c.b16 %v1605, %v1601
  %v1654 = vpack.c.b16 %v1610, %v1606
  %v1655 = vpack.c.b16 %v1611, %v1607
  %v1656 = vpack.c.b16 %v1612, %v1608
  %v1657 = vpack.c.b16 %v1613, %v1609
  %v1658 = vpack.c.b16 %v1618, %v1614
  %v1659 = vpack.c.b16 %v1619, %v1615
  %v1660 = vpack.c.b16 %v1620, %v1616
  %v1661 = vpack.c.b16 %v1621, %v1617
  %v1662 = vpack.c.b16 %v1626, %v1622
  %v1663 = vpack.c.b16 %v1627, %v1623
  %v1664 = vpack.c.b16 %v1628, %v1624
  %v1665 = vpack.c.b16 %v1629, %v1625
  %v1666 = vpack.c.b16 %v1634, %v1630
  %v1667 = vpack.c.b16 %v1635, %v1631
  %v1668 = vpack.c.b16 %v1636, %v1632
  %v1669 = vpack.c.b16 %v1637, %v1633
  %v1695 = vsel %vm451, %v1641, 0
  %v1698 = vsel %vm451, %v1645, 0
  %v1701 = vsel %vm451, %v1649, 0
  %v1704 = vsel %vm451, %v1653, 0
  %v1707 = vsel %vm451, %v1657, 0
  %v1710 = vsel %vm451, %v1661, 0
  %v1713 = vsel %vm451, %v1665, 0
  %v1716 = vsel %vm451, %v1669, 0
  %1718 = vmatprep.subr.bf16.mxu0 0
  %1719 = vmatpush1.bf16.msra.mxu0 %v395
  %1720 = vmatprep.subr.bf16.mxu0 0
  %1721 = vmatpush1.bf16.msra.mxu0 %v394
  %1722 = vmatprep.subr.bf16.mxu0 0
  %1723 = vmatpush1.bf16.msra.mxu0 %v393
  %1724 = vmatprep.subr.bf16.mxu0 0
  %1725 = vmatpush1.bf16.msra.mxu0 %v392
  %1726 = vmatprep.subr.bf16.mxu0 0
  %1727 = vmatpush1.bf16.msra.mxu0 %v391
  %1728 = vmatprep.subr.bf16.mxu0 0
  %1729 = vmatpush1.bf16.msra.mxu0 %v390
  %1730 = vmatprep.subr.bf16.mxu0 0
  %1731 = vmatpush1.bf16.msra.mxu0 %v389
  %1732 = vmatprep.subr.bf16.mxu0 0
  %1733 = vmatpush1.bf16.msra.mxu0 %v388
  %1734 = vmatprep.subr.bf16.mxu0 0
  %1735 = vmatpush2.bf16.msra.mxu0 %v403
  %1736 = vmatprep.subr.bf16.mxu0 0
  %1737 = vmatpush2.bf16.msra.mxu0 %v402
  %1738 = vmatprep.subr.bf16.mxu0 0
  %1739 = vmatpush2.bf16.msra.mxu0 %v401
  %1740 = vmatprep.subr.bf16.mxu0 0
  %1741 = vmatpush2.bf16.msra.mxu0 %v400
  %1742 = vmatprep.subr.bf16.mxu0 0
  %1743 = vmatpush2.bf16.msra.mxu0 %v399
  %1744 = vmatprep.subr.bf16.mxu0 0
  %1745 = vmatpush2.bf16.msra.mxu0 %v398
  %1746 = vmatprep.subr.bf16.mxu0 0
  %1747 = vmatpush2.bf16.msra.mxu0 %v397
  %1748 = vmatprep.subr.bf16.mxu0 0
  %1749 = vmatpush2.bf16.msra.mxu0 %v396
  %1750 = vmatprep.mubr.bf16.mxu0 %v1639
  %1751 = vmatmul.mubr.bf16.gmra.mxu0 %v1638
  %v1752 = vpop.f32.mrf.mxu0
  %v1753 = vadd.f32 0.0, %v1752
  %v1754 = vpop.f32.mrf.mxu0
  %v1755 = vpop.f32.mrf.mxu0
  %v1756 = vadd.f32 0.0, %v1755
  %v1757 = vpop.f32.mrf.mxu0
  %1758 = vmatprep.mubr.bf16.mxu0 %v1643
  %1759 = vmatmul.mubr.bf16.gmra.mxu0 %v1642
  %v1760 = vpop.f32.mrf.mxu0
  %v1761 = vadd.f32 0.0, %v1760
  %v1762 = vpop.f32.mrf.mxu0
  %v1763 = vpop.f32.mrf.mxu0
  %v1764 = vadd.f32 0.0, %v1763
  %v1765 = vpop.f32.mrf.mxu0
  %1766 = vmatprep.mubr.bf16.mxu0 %v1647
  %1767 = vmatmul.mubr.bf16.gmra.mxu0 %v1646
  %v1768 = vpop.f32.mrf.mxu0
  %v1769 = vadd.f32 0.0, %v1768
  %v1770 = vpop.f32.mrf.mxu0
  %v1771 = vpop.f32.mrf.mxu0
  %v1772 = vadd.f32 0.0, %v1771
  %v1773 = vpop.f32.mrf.mxu0
  %1774 = vmatprep.mubr.bf16.mxu0 %v1651
  %1775 = vmatmul.mubr.bf16.gmra.mxu0 %v1650
  %v1776 = vpop.f32.mrf.mxu0
  %v1777 = vadd.f32 0.0, %v1776
  %v1778 = vpop.f32.mrf.mxu0
  %v1779 = vpop.f32.mrf.mxu0
  %v1780 = vadd.f32 0.0, %v1779
  %v1781 = vpop.f32.mrf.mxu0
  %1782 = vmatprep.mubr.bf16.mxu0 %v1655
  %1783 = vmatmul.mubr.bf16.gmra.mxu0 %v1654
  %v1784 = vpop.f32.mrf.mxu0
  %v1785 = vadd.f32 0.0, %v1784
  %v1786 = vpop.f32.mrf.mxu0
  %v1787 = vpop.f32.mrf.mxu0
  %v1788 = vadd.f32 0.0, %v1787
  %v1789 = vpop.f32.mrf.mxu0
  %1790 = vmatprep.mubr.bf16.mxu0 %v1659
  %1791 = vmatmul.mubr.bf16.gmra.mxu0 %v1658
  %v1792 = vpop.f32.mrf.mxu0
  %v1793 = vadd.f32 0.0, %v1792
  %v1794 = vpop.f32.mrf.mxu0
  %v1795 = vpop.f32.mrf.mxu0
  %v1796 = vadd.f32 0.0, %v1795
  %v1797 = vpop.f32.mrf.mxu0
  %1798 = vmatprep.mubr.bf16.mxu0 %v1663
  %1799 = vmatmul.mubr.bf16.gmra.mxu0 %v1662
  %v1800 = vpop.f32.mrf.mxu0
  %v1801 = vadd.f32 0.0, %v1800
  %v1802 = vpop.f32.mrf.mxu0
  %v1803 = vpop.f32.mrf.mxu0
  %v1804 = vadd.f32 0.0, %v1803
  %v1805 = vpop.f32.mrf.mxu0
  %1806 = vmatprep.mubr.bf16.mxu0 %v1667
  %1807 = vmatmul.mubr.bf16.gmra.mxu0 %v1666
  %v1808 = vpop.f32.mrf.mxu0
  %v1809 = vadd.f32 0.0, %v1808
  %v1810 = vpop.f32.mrf.mxu0
  %v1811 = vpop.f32.mrf.mxu0
  %v1812 = vadd.f32 0.0, %v1811
  %v1813 = vpop.f32.mrf.mxu0
  %1814 = vdwg.mxu0
  %1815 = vmatprep.subr.bf16.mxu0 0
  %1816 = vmatpush1.bf16.msra.mxu0 %v411
  %1817 = vmatprep.subr.bf16.mxu0 0
  %1818 = vmatpush1.bf16.msra.mxu0 %v410
  %1819 = vmatprep.subr.bf16.mxu0 0
  %1820 = vmatpush1.bf16.msra.mxu0 %v409
  %1821 = vmatprep.subr.bf16.mxu0 0
  %1822 = vmatpush1.bf16.msra.mxu0 %v408
  %1823 = vmatprep.subr.bf16.mxu0 0
  %1824 = vmatpush1.bf16.msra.mxu0 %v407
  %1825 = vmatprep.subr.bf16.mxu0 0
  %1826 = vmatpush1.bf16.msra.mxu0 %v406
  %1827 = vmatprep.subr.bf16.mxu0 0
  %1828 = vmatpush1.bf16.msra.mxu0 %v405
  %1829 = vmatprep.subr.bf16.mxu0 0
  %1830 = vmatpush1.bf16.msra.mxu0 %v404
  %1831 = vmatprep.subr.bf16.mxu0 0
  %1832 = vmatpush2.bf16.msra.mxu0 %v478
  %1833 = vmatprep.subr.bf16.mxu0 0
  %1834 = vmatpush2.bf16.msra.mxu0 %v418
  %1835 = vmatprep.subr.bf16.mxu0 0
  %1836 = vmatpush2.bf16.msra.mxu0 %v417
  %1837 = vmatprep.subr.bf16.mxu0 0
  %1838 = vmatpush2.bf16.msra.mxu0 %v416
  %1839 = vmatprep.subr.bf16.mxu0 0
  %1840 = vmatpush2.bf16.msra.mxu0 %v415
  %1841 = vmatprep.subr.bf16.mxu0 0
  %1842 = vmatpush2.bf16.msra.mxu0 %v414
  %1843 = vmatprep.subr.bf16.mxu0 0
  %1844 = vmatpush2.bf16.msra.mxu0 %v413
  %1845 = vmatprep.subr.bf16.mxu0 0
  %1846 = vmatpush2.bf16.msra.mxu0 %v412
  %1847 = vmatprep.mubr.bf16.mxu0 %v1695
  %1848 = vmatmul.mubr.bf16.gmra.mxu0 %v1640
  %v1849 = vpop.f32.mrf.mxu0
  %v1850 = vadd.f32 %v1753, %v1849
  %v1851 = vpop.f32.mrf.mxu0
  %v1852 = vpop.f32.mrf.mxu0
  %v1853 = vadd.f32 %v1756, %v1852
  %v1854 = vpop.f32.mrf.mxu0
  %1855 = vmatprep.mubr.bf16.mxu0 %v1698
  %1856 = vmatmul.mubr.bf16.gmra.mxu0 %v1644
  %v1857 = vpop.f32.mrf.mxu0
  %v1858 = vadd.f32 %v1761, %v1857
  %v1859 = vpop.f32.mrf.mxu0
  %v1860 = vpop.f32.mrf.mxu0
  %v1861 = vadd.f32 %v1764, %v1860
  %v1862 = vpop.f32.mrf.mxu0
  %1863 = vmatprep.mubr.bf16.mxu0 %v1701
  %1864 = vmatmul.mubr.bf16.gmra.mxu0 %v1648
  %v1865 = vpop.f32.mrf.mxu0
  %v1866 = vadd.f32 %v1769, %v1865
  %v1867 = vpop.f32.mrf.mxu0
  %v1868 = vpop.f32.mrf.mxu0
  %v1869 = vadd.f32 %v1772, %v1868
  %v1870 = vpop.f32.mrf.mxu0
  %1871 = vmatprep.mubr.bf16.mxu0 %v1704
  %1872 = vmatmul.mubr.bf16.gmra.mxu0 %v1652
  %v1873 = vpop.f32.mrf.mxu0
  %v1874 = vadd.f32 %v1777, %v1873
  %v1875 = vpop.f32.mrf.mxu0
  %v1876 = vpop.f32.mrf.mxu0
  %v1877 = vadd.f32 %v1780, %v1876
  %v1878 = vpop.f32.mrf.mxu0
  %1879 = vmatprep.mubr.bf16.mxu0 %v1707
  %1880 = vmatmul.mubr.bf16.gmra.mxu0 %v1656
  %v1881 = vpop.f32.mrf.mxu0
  %v1882 = vadd.f32 %v1785, %v1881
  %v1883 = vpop.f32.mrf.mxu0
  %v1884 = vpop.f32.mrf.mxu0
  %v1885 = vadd.f32 %v1788, %v1884
  %v1886 = vpop.f32.mrf.mxu0
  %1887 = vmatprep.mubr.bf16.mxu0 %v1710
  %1888 = vmatmul.mubr.bf16.gmra.mxu0 %v1660
  %v1889 = vpop.f32.mrf.mxu0
  %v1890 = vadd.f32 %v1793, %v1889
  %v1891 = vpop.f32.mrf.mxu0
  %v1892 = vpop.f32.mrf.mxu0
  %v1893 = vadd.f32 %v1796, %v1892
  %v1894 = vpop.f32.mrf.mxu0
  %1895 = vmatprep.mubr.bf16.mxu0 %v1713
  %1896 = vmatmul.mubr.bf16.gmra.mxu0 %v1664
  %v1897 = vpop.f32.mrf.mxu0
  %v1898 = vadd.f32 %v1801, %v1897
  %v1899 = vpop.f32.mrf.mxu0
  %v1900 = vpop.f32.mrf.mxu0
  %v1901 = vadd.f32 %v1804, %v1900
  %v1902 = vpop.f32.mrf.mxu0
  %1903 = vmatprep.mubr.bf16.mxu0 %v1716
  %1904 = vmatmul.mubr.bf16.gmra.mxu0 %v1668
  %v1905 = vpop.f32.mrf.mxu0
  %v1906 = vadd.f32 %v1809, %v1905
  %v1907 = vpop.f32.mrf.mxu0
  %v1908 = vpop.f32.mrf.mxu0
  %v1909 = vadd.f32 %v1812, %v1908
  %v1910 = vpop.f32.mrf.mxu0
  %1911 = vdwg.mxu0
  %v1912 = vmax.f32 %v1494, %v1850
  %v1913 = vmax.f32 %v1495, %v1853
  %v1914 = vmax.f32 %v1496, %v1858
  %v1915 = vmax.f32 %v1497, %v1861
  %v1916 = vmax.f32 %v1498, %v1866
  %v1917 = vmax.f32 %v1499, %v1869
  %v1918 = vmax.f32 %v1500, %v1874
  %v1919 = vmax.f32 %v1501, %v1877
  %v1920 = vmax.f32 %v1502, %v1882
  %v1921 = vmax.f32 %v1503, %v1885
  %v1922 = vmax.f32 %v1504, %v1890
  %v1923 = vmax.f32 %v1505, %v1893
  %v1924 = vmax.f32 %v1506, %v1898
  %v1925 = vmax.f32 %v1507, %v1901
  %v1926 = vmax.f32 %v1508, %v1906
  %v1927 = vmax.f32 %v1509, %v1909
  %v1928 = vld [vmem:[%s2] sm:$0x1]
  %v1930 = vlaneseq
  %v1931 = vshrl.u32 %v1930, 7
  %v1932 = vsub.s32 0, %v1931
  %v1933 = vrot.slane %v1928, %v1932
  %v1935 = vadd.f32 %v1912, %v1933
  %v1936 = vadd.f32 %v1913, %v1933
  %v1937 = vadd.f32 %v1914, %v1933
  %v1938 = vadd.f32 %v1915, %v1933
  %v1939 = vadd.f32 %v1916, %v1933
  %v1940 = vadd.f32 %v1917, %v1933
  %v1941 = vadd.f32 %v1918, %v1933
  %v1942 = vadd.f32 %v1919, %v1933
  %v1943 = vadd.f32 %v1920, %v1933
  %v1944 = vadd.f32 %v1921, %v1933
  %v1945 = vadd.f32 %v1922, %v1933
  %v1946 = vadd.f32 %v1923, %v1933
  %v1947 = vadd.f32 %v1924, %v1933
  %v1948 = vadd.f32 %v1925, %v1933
  %v1949 = vadd.f32 %v1926, %v1933
  %v1950 = vadd.f32 %v1927, %v1933
  %v1951 = vmax.f32 %v1935, 0.0
  %v1952 = vmax.f32 %v1936, 0.0
  %v1953 = vmax.f32 %v1937, 0.0
  %v1954 = vmax.f32 %v1938, 0.0
  %v1955 = vmax.f32 %v1939, 0.0
  %v1956 = vmax.f32 %v1940, 0.0
  %v1957 = vmax.f32 %v1941, 0.0
  %v1958 = vmax.f32 %v1942, 0.0
  %v1959 = vmax.f32 %v1943, 0.0
  %v1960 = vmax.f32 %v1944, 0.0
  %v1961 = vmax.f32 %v1945, 0.0
  %v1962 = vmax.f32 %v1946, 0.0
  %v1963 = vmax.f32 %v1947, 0.0
  %v1964 = vmax.f32 %v1948, 0.0
  %v1965 = vmax.f32 %v1949, 0.0
  %v1966 = vmax.f32 %v1950, 0.0
  %v1967 = vpack.c.bf16 %v1952, %v1951
  %v1968 = vpack.c.bf16 %v1954, %v1953
  %v1969 = vpack.c.bf16 %v1956, %v1955
  %v1970 = vpack.c.bf16 %v1958, %v1957
  %v1971 = vpack.c.bf16 %v1960, %v1959
  %v1972 = vpack.c.bf16 %v1962, %v1961
  %v1973 = vpack.c.bf16 %v1964, %v1963
  %v1974 = vpack.c.bf16 %v1966, %v1965
  %v1983 = vunpack.c.l.b16 %v1967
  %v1984 = vunpack.c.h.b16 %v1967
  %v1985 = vunpack.c.l.b16 %v1968
  %v1986 = vunpack.c.h.b16 %v1968
  %v1987 = vunpack.c.l.b16 %v1969
  %v1988 = vunpack.c.h.b16 %v1969
  %v1989 = vunpack.c.l.b16 %v1970
  %v1990 = vunpack.c.h.b16 %v1970
  %v1991 = vunpack.c.l.b16 %v1971
  %v1992 = vunpack.c.h.b16 %v1971
  %v1993 = vunpack.c.l.b16 %v1972
  %v1994 = vunpack.c.h.b16 %v1972
  %v1995 = vunpack.c.l.b16 %v1973
  %v1996 = vunpack.c.h.b16 %v1973
  %v1997 = vunpack.c.l.b16 %v1974
  %v1998 = vunpack.c.h.b16 %v1974
  %v1999 = vpack.c.b16 %v1983, %v1983
  %v2000 = vpack.c.b16 %v1984, %v1984
  %v2001 = vpack.c.b16 %v1985, %v1985
  %v2002 = vpack.c.b16 %v1986, %v1986
  %v2003 = vpack.c.b16 %v1987, %v1987
  %v2004 = vpack.c.b16 %v1988, %v1988
  %v2005 = vpack.c.b16 %v1989, %v1989
  %v2006 = vpack.c.b16 %v1990, %v1990
  %v2007 = vpack.c.b16 %v1991, %v1991
  %v2008 = vpack.c.b16 %v1992, %v1992
  %v2009 = vpack.c.b16 %v1993, %v1993
  %v2010 = vpack.c.b16 %v1994, %v1994
  %v2011 = vpack.c.b16 %v1995, %v1995
  %v2012 = vpack.c.b16 %v1996, %v1996
  %v2013 = vpack.c.b16 %v1997, %v1997
  %v2014 = vpack.c.b16 %v1998, %v1998
  %2031 = vst [vmem:[%s3] sm:$0xf] %v1999
  %2032 = vst [vmem:[%s3 + $0x4] sm:$0xf] %v2000
  %2033 = vst [vmem:[%s3 + $0x8] sm:$0xf] %v2001
  %2034 = vst [vmem:[%s3 + $0xc] sm:$0xf] %v2002
  %2035 = vst [vmem:[%s3 + $0x10] sm:$0xf] %v2003
  %2036 = vst [vmem:[%s3 + $0x14] sm:$0xf] %v2004
  %2037 = vst [vmem:[%s3 + $0x18] sm:$0xf] %v2005
  %2038 = vst [vmem:[%s3 + $0x1c] sm:$0xf] %v2006
  %2039 = vst [vmem:[%s3 + $0x20] sm:$0xf] %v2007
  %2040 = vst [vmem:[%s3 + $0x24] sm:$0xf] %v2008
  %2041 = vst [vmem:[%s3 + $0x28] sm:$0xf] %v2009
  %2042 = vst [vmem:[%s3 + $0x2c] sm:$0xf] %v2010
  %2043 = vst [vmem:[%s3 + $0x30] sm:$0xf] %v2011
  %2044 = vst [vmem:[%s3 + $0x34] sm:$0xf] %v2012
  %2045 = vst [vmem:[%s3 + $0x38] sm:$0xf] %v2013
  %2046 = vst [vmem:[%s3 + $0x3c] sm:$0xf] %v2014
  // Predicated region
  $region14: #{lenet_forward.4} parent=0 // pred_check
    _
  $region15: #{lenet_forward.4} parent=0 // pred_check_branch
    %2048 = sbr.rel (0) target = $region17
  $region16: #{lenet_forward.4} parent=0 // pred_region
    _
  $region17: #{lenet_forward.4} parent=0 // pred_fallthru
    _
  // Predicated region
  $region18: #{lenet_forward.4} parent=0 // pred_check
    _
  $region19: #{lenet_forward.4} parent=0 // pred_check_branch
    %2050 = sbr.rel (0) target = $region21
  $region20: #{lenet_forward.4} parent=0 // pred_region
    _
  $region21: #{lenet_forward.4} parent=0 // pred_fallthru
    _

// kernel: lenet_forward.5
$region0: #{lenet_forward.5}
  #allocation0 [shape = 'u32[]', space=smem, size = 0x4, offset = 0x4, fixed_abs, tag = 'smem constant byte address 0x4 - core index']
  #allocation1 [shape = 'u32[144,128]{1,0:T(1,128)}', space=vmem, size = 0x12000, scoped, tag = 'internal scratch']
  %s0 = inlined_call_operand.vmem [shape: bf16[8,2048], index: 0, kind: input, shape index: {}]
  %s1 = inlined_call_operand.vmem [shape: bf16[2048,512], index: 1, kind: input, shape index: {}]
  %s2 = inlined_call_operand.vmem [shape: f32[1,512], index: 2, kind: input, shape index: {}]
  %s3 = inlined_call_operand.vmem [shape: bf16[512,128], index: 3, kind: input, shape index: {}]
  %s4 = inlined_call_operand.vmem [shape: f32[1,128], index: 4, kind: input, shape index: {}]
  %s5 = inlined_call_operand.vmem [shape: f32[8,128], index: 5, kind: output, shape index: {}]
  %s6 = sld [smem:[#allocation0]]
  $region30: #{lenet_forward.5} parent=0
    _
  %s8 = ssub.s32 1, %s6
  %s9 = scalar_select 0, %s8, %s6
  // Predicated region
  $region2: #{lenet_forward.5} parent=0 // pred_check
    _
  $region3: #{lenet_forward.5} parent=0 // pred_check_branch
    %11 = sbr.rel (0) target = $region5
  $region4: #{lenet_forward.5} parent=0 // pred_region
    _
  $region5: #{lenet_forward.5} parent=0 // pred_fallthru
    _
  // Predicated region
  $region6: #{lenet_forward.5} parent=0 // pred_check
    _
  $region7: #{lenet_forward.5} parent=0 // pred_check_branch
    %13 = sbr.rel (0) target = $region9
  $region8: #{lenet_forward.5} parent=0 // pred_region
    _
  $region9: #{lenet_forward.5} parent=0 // pred_fallthru
    _
  // Predicated region
  $region10: #{lenet_forward.5} parent=0 // pred_check
    _
  $region11: #{lenet_forward.5} parent=0 // pred_check_branch
    %15 = sbr.rel (0) target = $region13
  $region12: #{lenet_forward.5} parent=0 // pred_region
    _
  $region13: #{lenet_forward.5} parent=0 // pred_fallthru
    _
  // Predicated region
  $region14: #{lenet_forward.5} parent=0 // pred_check
    _
  $region15: #{lenet_forward.5} parent=0 // pred_check_branch
    %17 = sbr.rel (0) target = $region17
  $region16: #{lenet_forward.5} parent=0 // pred_region
    _
  $region17: #{lenet_forward.5} parent=0 // pred_fallthru
    _
  // Predicated region
  $region18: #{lenet_forward.5} parent=0 // pred_check
    _
  $region19: #{lenet_forward.5} parent=0 // pred_check_branch
    %19 = sbr.rel (0) target = $region21
  $region20: #{lenet_forward.5} parent=0 // pred_region
    _
  $region21: #{lenet_forward.5} parent=0 // pred_fallthru
    _
  %v21 = vld [vmem:[%s0] sm:$0xff]
  %v22 = vld [vmem:[%s0 + $0x8] sm:$0xff]
  %v23 = vld [vmem:[%s0 + $0x10] sm:$0xff]
  %v24 = vld [vmem:[%s0 + $0x18] sm:$0xff]
  %v25 = vld [vmem:[%s0 + $0x20] sm:$0xff]
  %v26 = vld [vmem:[%s0 + $0x28] sm:$0xff]
  %v27 = vld [vmem:[%s0 + $0x30] sm:$0xff]
  %v28 = vld [vmem:[%s0 + $0x38] sm:$0xff]
  %v29 = vld [vmem:[%s1] sm:$0xff]
  %v30 = vld [vmem:[%s1 + $0x8] sm:$0xff]
  %v31 = vld [vmem:[%s1 + $0x10] sm:$0xff]
  %v32 = vld [vmem:[%s1 + $0x18] sm:$0xff]
  %v33 = vld [vmem:[%s1 + $0x20] sm:$0xff]
  %v34 = vld [vmem:[%s1 + $0x28] sm:$0xff]
  %v35 = vld [vmem:[%s1 + $0x30] sm:$0xff]
  %v36 = vld [vmem:[%s1 + $0x38] sm:$0xff]
  %v37 = vld [vmem:[%s1 + $0x40] sm:$0xff]
  %v38 = vld [vmem:[%s1 + $0x48] sm:$0xff]
  %v39 = vld [vmem:[%s1 + $0x50] sm:$0xff]
  %v40 = vld [vmem:[%s1 + $0x58] sm:$0xff]
  %v41 = vld [vmem:[%s1 + $0x60] sm:$0xff]
  %v42 = vld [vmem:[%s1 + $0x68] sm:$0xff]
  %v43 = vld [vmem:[%s1 + $0x70] sm:$0xff]
  %v44 = vld [vmem:[%s1 + $0x78] sm:$0xff]
  %v45 = vld [vmem:[%s1 + $0x80] sm:$0xff]
  %v46 = vld [vmem:[%s1 + $0x88] sm:$0xff]
  %v47 = vld [vmem:[%s1 + $0x90] sm:$0xff]
  %v48 = vld [vmem:[%s1 + $0x98] sm:$0xff]
  %v49 = vld [vmem:[%s1 + $0xa0] sm:$0xff]
  %v50 = vld [vmem:[%s1 + $0xa8] sm:$0xff]
  %v51 = vld [vmem:[%s1 + $0xb0] sm:$0xff]
  %v52 = vld [vmem:[%s1 + $0xb8] sm:$0xff]
  %v53 = vld [vmem:[%s1 + $0xc0] sm:$0xff]
  %v54 = vld [vmem:[%s1 + $0xc8] sm:$0xff]
  %v55 = vld [vmem:[%s1 + $0xd0] sm:$0xff]
  %v56 = vld [vmem:[%s1 + $0xd8] sm:$0xff]
  %v57 = vld [vmem:[%s1 + $0xe0] sm:$0xff]
  %v58 = vld [vmem:[%s1 + $0xe8] sm:$0xff]
  %v59 = vld [vmem:[%s1 + $0xf0] sm:$0xff]
  %v60 = vld [vmem:[%s1 + $0xf8] sm:$0xff]
  %v61 = vld [vmem:[%s1 + $0x100] sm:$0xff]
  %v62 = vld [vmem:[%s1 + $0x108] sm:$0xff]
  %v63 = vld [vmem:[%s1 + $0x110] sm:$0xff]
  %v64 = vld [vmem:[%s1 + $0x118] sm:$0xff]
  %v65 = vld [vmem:[%s1 + $0x120] sm:$0xff]
  %v66 = vld [vmem:[%s1 + $0x128] sm:$0xff]
  %v67 = vld [vmem:[%s1 + $0x130] sm:$0xff]
  %v68 = vld [vmem:[%s1 + $0x138] sm:$0xff]
  %v69 = vld [vmem:[%s1 + $0x140] sm:$0xff]
  %v70 = vld [vmem:[%s1 + $0x148] sm:$0xff]
  %v71 = vld [vmem:[%s1 + $0x150] sm:$0xff]
  %v72 = vld [vmem:[%s1 + $0x158] sm:$0xff]
  %v73 = vld [vmem:[%s1 + $0x160] sm:$0xff]
  %v74 = vld [vmem:[%s1 + $0x168] sm:$0xff]
  %v75 = vld [vmem:[%s1 + $0x170] sm:$0xff]
  %v76 = vld [vmem:[%s1 + $0x178] sm:$0xff]
  %v77 = vld [vmem:[%s1 + $0x180] sm:$0xff]
  %v78 = vld [vmem:[%s1 + $0x188] sm:$0xff]
  %v79 = vld [vmem:[%s1 + $0x190] sm:$0xff]
  %v80 = vld [vmem:[%s1 + $0x198] sm:$0xff]
  %v81 = vld [vmem:[%s1 + $0x1a0] sm:$0xff]
  %v82 = vld [vmem:[%s1 + $0x1a8] sm:$0xff]
  %v83 = vld [vmem:[%s1 + $0x1b0] sm:$0xff]
  %v84 = vld [vmem:[%s1 + $0x1b8] sm:$0xff]
  %v85 = vld [vmem:[%s1 + $0x1c0] sm:$0xff]
  %v86 = vld [vmem:[%s1 + $0x1c8] sm:$0xff]
  %v87 = vld [vmem:[%s1 + $0x1d0] sm:$0xff]
  %v88 = vld [vmem:[%s1 + $0x1d8] sm:$0xff]
  %v89 = vld [vmem:[%s1 + $0x1e0] sm:$0xff]
  %v90 = vld [vmem:[%s1 + $0x1e8] sm:$0xff]
  %v91 = vld [vmem:[%s1 + $0x1f0] sm:$0xff]
  %v92 = vld [vmem:[%s1 + $0x1f8] sm:$0xff]
  %v93 = vld [vmem:[%s1 + $0x200] sm:$0xff]
  %v94 = vld [vmem:[%s1 + $0x208] sm:$0xff]
  %v95 = vld [vmem:[%s1 + $0x210] sm:$0xff]
  %v96 = vld [vmem:[%s1 + $0x218] sm:$0xff]
  %v97 = vld [vmem:[%s1 + $0x220] sm:$0xff]
  %v98 = vld [vmem:[%s1 + $0x228] sm:$0xff]
  %v99 = vld [vmem:[%s1 + $0x230] sm:$0xff]
  %v100 = vld [vmem:[%s1 + $0x238] sm:$0xff]
  %v101 = vld [vmem:[%s1 + $0x240] sm:$0xff]
  %v102 = vld [vmem:[%s1 + $0x248] sm:$0xff]
  %v103 = vld [vmem:[%s1 + $0x250] sm:$0xff]
  %v104 = vld [vmem:[%s1 + $0x258] sm:$0xff]
  %v105 = vld [vmem:[%s1 + $0x260] sm:$0xff]
  %v106 = vld [vmem:[%s1 + $0x268] sm:$0xff]
  %v107 = vld [vmem:[%s1 + $0x270] sm:$0xff]
  %v108 = vld [vmem:[%s1 + $0x278] sm:$0xff]
  %v109 = vld [vmem:[%s1 + $0x280] sm:$0xff]
  %v110 = vld [vmem:[%s1 + $0x288] sm:$0xff]
  %v111 = vld [vmem:[%s1 + $0x290] sm:$0xff]
  %v112 = vld [vmem:[%s1 + $0x298] sm:$0xff]
  %v113 = vld [vmem:[%s1 + $0x2a0] sm:$0xff]
  %v114 = vld [vmem:[%s1 + $0x2a8] sm:$0xff]
  %v115 = vld [vmem:[%s1 + $0x2b0] sm:$0xff]
  %v116 = vld [vmem:[%s1 + $0x2b8] sm:$0xff]
  %v117 = vld [vmem:[%s1 + $0x2c0] sm:$0xff]
  %v118 = vld [vmem:[%s1 + $0x2c8] sm:$0xff]
  %v119 = vld [vmem:[%s1 + $0x2d0] sm:$0xff]
  %v120 = vld [vmem:[%s1 + $0x2d8] sm:$0xff]
  %v121 = vld [vmem:[%s1 + $0x2e0] sm:$0xff]
  %v122 = vld [vmem:[%s1 + $0x2e8] sm:$0xff]
  %v123 = vld [vmem:[%s1 + $0x2f0] sm:$0xff]
  %v124 = vld [vmem:[%s1 + $0x2f8] sm:$0xff]
  %v125 = vld [vmem:[%s1 + $0x300] sm:$0xff]
  %v126 = vld [vmem:[%s1 + $0x308] sm:$0xff]
  %v127 = vld [vmem:[%s1 + $0x310] sm:$0xff]
  %v128 = vld [vmem:[%s1 + $0x318] sm:$0xff]
  %v129 = vld [vmem:[%s1 + $0x320] sm:$0xff]
  %v130 = vld [vmem:[%s1 + $0x328] sm:$0xff]
  %v131 = vld [vmem:[%s1 + $0x330] sm:$0xff]
  %v132 = vld [vmem:[%s1 + $0x338] sm:$0xff]
  %v133 = vld [vmem:[%s1 + $0x340] sm:$0xff]
  %v134 = vld [vmem:[%s1 + $0x348] sm:$0xff]
  %v135 = vld [vmem:[%s1 + $0x350] sm:$0xff]
  %v136 = vld [vmem:[%s1 + $0x358] sm:$0xff]
  %v137 = vld [vmem:[%s1 + $0x360] sm:$0xff]
  %v138 = vld [vmem:[%s1 + $0x368] sm:$0xff]
  %v139 = vld [vmem:[%s1 + $0x370] sm:$0xff]
  %v140 = vld [vmem:[%s1 + $0x378] sm:$0xff]
  %v141 = vld [vmem:[%s1 + $0x380] sm:$0xff]
  %v142 = vld [vmem:[%s1 + $0x388] sm:$0xff]
  %v143 = vld [vmem:[%s1 + $0x390] sm:$0xff]
  %v144 = vld [vmem:[%s1 + $0x398] sm:$0xff]
  %v145 = vld [vmem:[%s1 + $0x3a0] sm:$0xff]
  %v146 = vld [vmem:[%s1 + $0x3a8] sm:$0xff]
  %v147 = vld [vmem:[%s1 + $0x3b0] sm:$0xff]
  %v148 = vld [vmem:[%s1 + $0x3b8] sm:$0xff]
  %v149 = vld [vmem:[%s1 + $0x3c0] sm:$0xff]
  %v150 = vld [vmem:[%s1 + $0x3c8] sm:$0xff]
  %v151 = vld [vmem:[%s1 + $0x3d0] sm:$0xff]
  %v152 = vld [vmem:[%s1 + $0x3d8] sm:$0xff]
  %v153 = vld [vmem:[%s1 + $0x3e0] sm:$0xff]
  %v154 = vld [vmem:[%s1 + $0x3e8] sm:$0xff]
  %v155 = vld [vmem:[%s1 + $0x3f0] sm:$0xff]
  %v156 = vld [vmem:[%s1 + $0x3f8] sm:$0xff]
  %v157 = vld [vmem:[%s1 + $0x400] sm:$0xff]
  %v158 = vld [vmem:[%s1 + $0x408] sm:$0xff]
  %v159 = vld [vmem:[%s1 + $0x410] sm:$0xff]
  %v160 = vld [vmem:[%s1 + $0x418] sm:$0xff]
  %v161 = vld [vmem:[%s1 + $0x420] sm:$0xff]
  %v162 = vld [vmem:[%s1 + $0x428] sm:$0xff]
  %v163 = vld [vmem:[%s1 + $0x430] sm:$0xff]
  %v164 = vld [vmem:[%s1 + $0x438] sm:$0xff]
  %v165 = vld [vmem:[%s1 + $0x440] sm:$0xff]
  %v166 = vld [vmem:[%s1 + $0x448] sm:$0xff]
  %v167 = vld [vmem:[%s1 + $0x450] sm:$0xff]
  %v168 = vld [vmem:[%s1 + $0x458] sm:$0xff]
  %v169 = vld [vmem:[%s1 + $0x460] sm:$0xff]
  %v170 = vld [vmem:[%s1 + $0x468] sm:$0xff]
  %v171 = vld [vmem:[%s1 + $0x470] sm:$0xff]
  %v172 = vld [vmem:[%s1 + $0x478] sm:$0xff]
  %v173 = vld [vmem:[%s1 + $0x480] sm:$0xff]
  %v174 = vld [vmem:[%s1 + $0x488] sm:$0xff]
  %v175 = vld [vmem:[%s1 + $0x490] sm:$0xff]
  %v176 = vld [vmem:[%s1 + $0x498] sm:$0xff]
  %v177 = vld [vmem:[%s1 + $0x4a0] sm:$0xff]
  %v178 = vld [vmem:[%s1 + $0x4a8] sm:$0xff]
  %v179 = vld [vmem:[%s1 + $0x4b0] sm:$0xff]
  %v180 = vld [vmem:[%s1 + $0x4b8] sm:$0xff]
  %v181 = vld [vmem:[%s1 + $0x4c0] sm:$0xff]
  %v182 = vld [vmem:[%s1 + $0x4c8] sm:$0xff]
  %v183 = vld [vmem:[%s1 + $0x4d0] sm:$0xff]
  %v184 = vld [vmem:[%s1 + $0x4d8] sm:$0xff]
  %v185 = vld [vmem:[%s1 + $0x4e0] sm:$0xff]
  %v186 = vld [vmem:[%s1 + $0x4e8] sm:$0xff]
  %v187 = vld [vmem:[%s1 + $0x4f0] sm:$0xff]
  %v188 = vld [vmem:[%s1 + $0x4f8] sm:$0xff]
  %v189 = vld [vmem:[%s1 + $0x500] sm:$0xff]
  %v190 = vld [vmem:[%s1 + $0x508] sm:$0xff]
  %v191 = vld [vmem:[%s1 + $0x510] sm:$0xff]
  %v192 = vld [vmem:[%s1 + $0x518] sm:$0xff]
  %v193 = vld [vmem:[%s1 + $0x520] sm:$0xff]
  %v194 = vld [vmem:[%s1 + $0x528] sm:$0xff]
  %v195 = vld [vmem:[%s1 + $0x530] sm:$0xff]
  %v196 = vld [vmem:[%s1 + $0x538] sm:$0xff]
  %v197 = vld [vmem:[%s1 + $0x540] sm:$0xff]
  %v198 = vld [vmem:[%s1 + $0x548] sm:$0xff]
  %v199 = vld [vmem:[%s1 + $0x550] sm:$0xff]
  %v200 = vld [vmem:[%s1 + $0x558] sm:$0xff]
  %v201 = vld [vmem:[%s1 + $0x560] sm:$0xff]
  %v202 = vld [vmem:[%s1 + $0x568] sm:$0xff]
  %v203 = vld [vmem:[%s1 + $0x570] sm:$0xff]
  %v204 = vld [vmem:[%s1 + $0x578] sm:$0xff]
  %v205 = vld [vmem:[%s1 + $0x580] sm:$0xff]
  %v206 = vld [vmem:[%s1 + $0x588] sm:$0xff]
  %v207 = vld [vmem:[%s1 + $0x590] sm:$0xff]
  %v208 = vld [vmem:[%s1 + $0x598] sm:$0xff]
  %v209 = vld [vmem:[%s1 + $0x5a0] sm:$0xff]
  %v210 = vld [vmem:[%s1 + $0x5a8] sm:$0xff]
  %v211 = vld [vmem:[%s1 + $0x5b0] sm:$0xff]
  %v212 = vld [vmem:[%s1 + $0x5b8] sm:$0xff]
  %v213 = vld [vmem:[%s1 + $0x5c0] sm:$0xff]
  %v214 = vld [vmem:[%s1 + $0x5c8] sm:$0xff]
  %v215 = vld [vmem:[%s1 + $0x5d0] sm:$0xff]
  %v216 = vld [vmem:[%s1 + $0x5d8] sm:$0xff]
  %v217 = vld [vmem:[%s1 + $0x5e0] sm:$0xff]
  %v218 = vld [vmem:[%s1 + $0x5e8] sm:$0xff]
  %v219 = vld [vmem:[%s1 + $0x5f0] sm:$0xff]
  %v220 = vld [vmem:[%s1 + $0x5f8] sm:$0xff]
  %v221 = vld [vmem:[%s1 + $0x600] sm:$0xff]
  %v222 = vld [vmem:[%s1 + $0x608] sm:$0xff]
  %v223 = vld [vmem:[%s1 + $0x610] sm:$0xff]
  %v224 = vld [vmem:[%s1 + $0x618] sm:$0xff]
  %v225 = vld [vmem:[%s1 + $0x620] sm:$0xff]
  %v226 = vld [vmem:[%s1 + $0x628] sm:$0xff]
  %v227 = vld [vmem:[%s1 + $0x630] sm:$0xff]
  %v228 = vld [vmem:[%s1 + $0x638] sm:$0xff]
  %v229 = vld [vmem:[%s1 + $0x640] sm:$0xff]
  %v230 = vld [vmem:[%s1 + $0x648] sm:$0xff]
  %v231 = vld [vmem:[%s1 + $0x650] sm:$0xff]
  %v232 = vld [vmem:[%s1 + $0x658] sm:$0xff]
  %v233 = vld [vmem:[%s1 + $0x660] sm:$0xff]
  %v234 = vld [vmem:[%s1 + $0x668] sm:$0xff]
  %v235 = vld [vmem:[%s1 + $0x670] sm:$0xff]
  %v236 = vld [vmem:[%s1 + $0x678] sm:$0xff]
  %v237 = vld [vmem:[%s1 + $0x680] sm:$0xff]
  %v238 = vld [vmem:[%s1 + $0x688] sm:$0xff]
  %v239 = vld [vmem:[%s1 + $0x690] sm:$0xff]
  %v240 = vld [vmem:[%s1 + $0x698] sm:$0xff]
  %v241 = vld [vmem:[%s1 + $0x6a0] sm:$0xff]
  %v242 = vld [vmem:[%s1 + $0x6a8] sm:$0xff]
  %v243 = vld [vmem:[%s1 + $0x6b0] sm:$0xff]
  %v244 = vld [vmem:[%s1 + $0x6b8] sm:$0xff]
  %v245 = vld [vmem:[%s1 + $0x6c0] sm:$0xff]
  %v246 = vld [vmem:[%s1 + $0x6c8] sm:$0xff]
  %v247 = vld [vmem:[%s1 + $0x6d0] sm:$0xff]
  %v248 = vld [vmem:[%s1 + $0x6d8] sm:$0xff]
  %v249 = vld [vmem:[%s1 + $0x6e0] sm:$0xff]
  %v250 = vld [vmem:[%s1 + $0x6e8] sm:$0xff]
  %v251 = vld [vmem:[%s1 + $0x6f0] sm:$0xff]
  %v252 = vld [vmem:[%s1 + $0x6f8] sm:$0xff]
  %v253 = vld [vmem:[%s1 + $0x700] sm:$0xff]
  %v254 = vld [vmem:[%s1 + $0x708] sm:$0xff]
  %v255 = vld [vmem:[%s1 + $0x710] sm:$0xff]
  %v256 = vld [vmem:[%s1 + $0x718] sm:$0xff]
  %v257 = vld [vmem:[%s1 + $0x720] sm:$0xff]
  %v258 = vld [vmem:[%s1 + $0x728] sm:$0xff]
  %v259 = vld [vmem:[%s1 + $0x730] sm:$0xff]
  %v260 = vld [vmem:[%s1 + $0x738] sm:$0xff]
  %v261 = vld [vmem:[%s1 + $0x740] sm:$0xff]
  %v262 = vld [vmem:[%s1 + $0x748] sm:$0xff]
  %v263 = vld [vmem:[%s1 + $0x750] sm:$0xff]
  %v264 = vld [vmem:[%s1 + $0x758] sm:$0xff]
  %v265 = vld [vmem:[%s1 + $0x760] sm:$0xff]
  %v266 = vld [vmem:[%s1 + $0x768] sm:$0xff]
  %v267 = vld [vmem:[%s1 + $0x770] sm:$0xff]
  %v268 = vld [vmem:[%s1 + $0x778] sm:$0xff]
  %v269 = vld [vmem:[%s1 + $0x780] sm:$0xff]
  %v270 = vld [vmem:[%s1 + $0x788] sm:$0xff]
  %v271 = vld [vmem:[%s1 + $0x790] sm:$0xff]
  %v272 = vld [vmem:[%s1 + $0x798] sm:$0xff]
  %v273 = vld [vmem:[%s1 + $0x7a0] sm:$0xff]
  %v274 = vld [vmem:[%s1 + $0x7a8] sm:$0xff]
  %v275 = vld [vmem:[%s1 + $0x7b0] sm:$0xff]
  %v276 = vld [vmem:[%s1 + $0x7b8] sm:$0xff]
  %v277 = vld [vmem:[%s1 + $0x7c0] sm:$0xff]
  %v278 = vld [vmem:[%s1 + $0x7c8] sm:$0xff]
  %v279 = vld [vmem:[%s1 + $0x7d0] sm:$0xff]
  %v280 = vld [vmem:[%s1 + $0x7d8] sm:$0xff]
  %v281 = vld [vmem:[%s1 + $0x7e0] sm:$0xff]
  %v282 = vld [vmem:[%s1 + $0x7e8] sm:$0xff]
  %v283 = vld [vmem:[%s1 + $0x7f0] sm:$0xff]
  %v284 = vld [vmem:[%s1 + $0x7f8] sm:$0xff]
  %v285 = vld [vmem:[%s1 + $0x800] sm:$0xff]
  %v286 = vld [vmem:[%s1 + $0x808] sm:$0xff]
  %v287 = vld [vmem:[%s1 + $0x810] sm:$0xff]
  %v288 = vld [vmem:[%s1 + $0x818] sm:$0xff]
  %v289 = vld [vmem:[%s1 + $0x820] sm:$0xff]
  %v290 = vld [vmem:[%s1 + $0x828] sm:$0xff]
  %v291 = vld [vmem:[%s1 + $0x830] sm:$0xff]
  %v292 = vld [vmem:[%s1 + $0x838] sm:$0xff]
  %v293 = vld [vmem:[%s1 + $0x840] sm:$0xff]
  %v294 = vld [vmem:[%s1 + $0x848] sm:$0xff]
  %v295 = vld [vmem:[%s1 + $0x850] sm:$0xff]
  %v296 = vld [vmem:[%s1 + $0x858] sm:$0xff]
  %v297 = vld [vmem:[%s1 + $0x860] sm:$0xff]
  %v298 = vld [vmem:[%s1 + $0x868] sm:$0xff]
  %v299 = vld [vmem:[%s1 + $0x870] sm:$0xff]
  %v300 = vld [vmem:[%s1 + $0x878] sm:$0xff]
  %v301 = vld [vmem:[%s1 + $0x880] sm:$0xff]
  %v302 = vld [vmem:[%s1 + $0x888] sm:$0xff]
  %v303 = vld [vmem:[%s1 + $0x890] sm:$0xff]
  %v304 = vld [vmem:[%s1 + $0x898] sm:$0xff]
  %v305 = vld [vmem:[%s1 + $0x8a0] sm:$0xff]
  %v306 = vld [vmem:[%s1 + $0x8a8] sm:$0xff]
  %v307 = vld [vmem:[%s1 + $0x8b0] sm:$0xff]
  %v308 = vld [vmem:[%s1 + $0x8b8] sm:$0xff]
  %v309 = vld [vmem:[%s1 + $0x8c0] sm:$0xff]
  %v310 = vld [vmem:[%s1 + $0x8c8] sm:$0xff]
  %v311 = vld [vmem:[%s1 + $0x8d0] sm:$0xff]
  %v312 = vld [vmem:[%s1 + $0x8d8] sm:$0xff]
  %v313 = vld [vmem:[%s1 + $0x8e0] sm:$0xff]
  %v314 = vld [vmem:[%s1 + $0x8e8] sm:$0xff]
  %v315 = vld [vmem:[%s1 + $0x8f0] sm:$0xff]
  %v316 = vld [vmem:[%s1 + $0x8f8] sm:$0xff]
  %v317 = vld [vmem:[%s1 + $0x900] sm:$0xff]
  %v318 = vld [vmem:[%s1 + $0x908] sm:$0xff]
  %v319 = vld [vmem:[%s1 + $0x910] sm:$0xff]
  %v320 = vld [vmem:[%s1 + $0x918] sm:$0xff]
  %v321 = vld [vmem:[%s1 + $0x920] sm:$0xff]
  %v322 = vld [vmem:[%s1 + $0x928] sm:$0xff]
  %v323 = vld [vmem:[%s1 + $0x930] sm:$0xff]
  %v324 = vld [vmem:[%s1 + $0x938] sm:$0xff]
  %v325 = vld [vmem:[%s1 + $0x940] sm:$0xff]
  %v326 = vld [vmem:[%s1 + $0x948] sm:$0xff]
  %v327 = vld [vmem:[%s1 + $0x950] sm:$0xff]
  %v328 = vld [vmem:[%s1 + $0x958] sm:$0xff]
  %v329 = vld [vmem:[%s1 + $0x960] sm:$0xff]
  %v330 = vld [vmem:[%s1 + $0x968] sm:$0xff]
  %v331 = vld [vmem:[%s1 + $0x970] sm:$0xff]
  %v332 = vld [vmem:[%s1 + $0x978] sm:$0xff]
  %v333 = vld [vmem:[%s1 + $0x980] sm:$0xff]
  %v334 = vld [vmem:[%s1 + $0x988] sm:$0xff]
  %v335 = vld [vmem:[%s1 + $0x990] sm:$0xff]
  %v336 = vld [vmem:[%s1 + $0x998] sm:$0xff]
  %v337 = vld [vmem:[%s1 + $0x9a0] sm:$0xff]
  %v338 = vld [vmem:[%s1 + $0x9a8] sm:$0xff]
  %v339 = vld [vmem:[%s1 + $0x9b0] sm:$0xff]
  %v340 = vld [vmem:[%s1 + $0x9b8] sm:$0xff]
  %v341 = vld [vmem:[%s1 + $0x9c0] sm:$0xff]
  %v342 = vld [vmem:[%s1 + $0x9c8] sm:$0xff]
  %v343 = vld [vmem:[%s1 + $0x9d0] sm:$0xff]
  %v344 = vld [vmem:[%s1 + $0x9d8] sm:$0xff]
  %v345 = vld [vmem:[%s1 + $0x9e0] sm:$0xff]
  %v346 = vld [vmem:[%s1 + $0x9e8] sm:$0xff]
  %v347 = vld [vmem:[%s1 + $0x9f0] sm:$0xff]
  %v348 = vld [vmem:[%s1 + $0x9f8] sm:$0xff]
  %v349 = vld [vmem:[%s1 + $0xa00] sm:$0xff]
  %v350 = vld [vmem:[%s1 + $0xa08] sm:$0xff]
  %v351 = vld [vmem:[%s1 + $0xa10] sm:$0xff]
  %v352 = vld [vmem:[%s1 + $0xa18] sm:$0xff]
  %v353 = vld [vmem:[%s1 + $0xa20] sm:$0xff]
  %v354 = vld [vmem:[%s1 + $0xa28] sm:$0xff]
  %v355 = vld [vmem:[%s1 + $0xa30] sm:$0xff]
  %v356 = vld [vmem:[%s1 + $0xa38] sm:$0xff]
  %v357 = vld [vmem:[%s1 + $0xa40] sm:$0xff]
  %v358 = vld [vmem:[%s1 + $0xa48] sm:$0xff]
  %v359 = vld [vmem:[%s1 + $0xa50] sm:$0xff]
  %v360 = vld [vmem:[%s1 + $0xa58] sm:$0xff]
  %v361 = vld [vmem:[%s1 + $0xa60] sm:$0xff]
  %v362 = vld [vmem:[%s1 + $0xa68] sm:$0xff]
  %v363 = vld [vmem:[%s1 + $0xa70] sm:$0xff]
  %v364 = vld [vmem:[%s1 + $0xa78] sm:$0xff]
  %v365 = vld [vmem:[%s1 + $0xa80] sm:$0xff]
  %v366 = vld [vmem:[%s1 + $0xa88] sm:$0xff]
  %v367 = vld [vmem:[%s1 + $0xa90] sm:$0xff]
  %v368 = vld [vmem:[%s1 + $0xa98] sm:$0xff]
  %v369 = vld [vmem:[%s1 + $0xaa0] sm:$0xff]
  %v370 = vld [vmem:[%s1 + $0xaa8] sm:$0xff]
  %v371 = vld [vmem:[%s1 + $0xab0] sm:$0xff]
  %v372 = vld [vmem:[%s1 + $0xab8] sm:$0xff]
  %v373 = vld [vmem:[%s1 + $0xac0] sm:$0xff]
  %v374 = vld [vmem:[%s1 + $0xac8] sm:$0xff]
  %v375 = vld [vmem:[%s1 + $0xad0] sm:$0xff]
  %v376 = vld [vmem:[%s1 + $0xad8] sm:$0xff]
  %v377 = vld [vmem:[%s1 + $0xae0] sm:$0xff]
  %v378 = vld [vmem:[%s1 + $0xae8] sm:$0xff]
  %v379 = vld [vmem:[%s1 + $0xaf0] sm:$0xff]
  %v380 = vld [vmem:[%s1 + $0xaf8] sm:$0xff]
  %v381 = vld [vmem:[%s1 + $0xb00] sm:$0xff]
  %v382 = vld [vmem:[%s1 + $0xb08] sm:$0xff]
  %v383 = vld [vmem:[%s1 + $0xb10] sm:$0xff]
  %v384 = vld [vmem:[%s1 + $0xb18] sm:$0xff]
  %v385 = vld [vmem:[%s1 + $0xb20] sm:$0xff]
  %v386 = vld [vmem:[%s1 + $0xb28] sm:$0xff]
  %v387 = vld [vmem:[%s1 + $0xb30] sm:$0xff]
  %v388 = vld [vmem:[%s1 + $0xb38] sm:$0xff]
  %v389 = vld [vmem:[%s1 + $0xb40] sm:$0xff]
  %v390 = vld [vmem:[%s1 + $0xb48] sm:$0xff]
  %v391 = vld [vmem:[%s1 + $0xb50] sm:$0xff]
  %v392 = vld [vmem:[%s1 + $0xb58] sm:$0xff]
  %v393 = vld [vmem:[%s1 + $0xb60] sm:$0xff]
  %v394 = vld [vmem:[%s1 + $0xb68] sm:$0xff]
  %v395 = vld [vmem:[%s1 + $0xb70] sm:$0xff]
  %v396 = vld [vmem:[%s1 + $0xb78] sm:$0xff]
  %v397 = vld [vmem:[%s1 + $0xb80] sm:$0xff]
  %v398 = vld [vmem:[%s1 + $0xb88] sm:$0xff]
  %v399 = vld [vmem:[%s1 + $0xb90] sm:$0xff]
  %v400 = vld [vmem:[%s1 + $0xb98] sm:$0xff]
  %v401 = vld [vmem:[%s1 + $0xba0] sm:$0xff]
  %v402 = vld [vmem:[%s1 + $0xba8] sm:$0xff]
  %v403 = vld [vmem:[%s1 + $0xbb0] sm:$0xff]
  %v404 = vld [vmem:[%s1 + $0xbb8] sm:$0xff]
  %v405 = vld [vmem:[%s1 + $0xbc0] sm:$0xff]
  %v406 = vld [vmem:[%s1 + $0xbc8] sm:$0xff]
  %v407 = vld [vmem:[%s1 + $0xbd0] sm:$0xff]
  %v408 = vld [vmem:[%s1 + $0xbd8] sm:$0xff]
  %v409 = vld [vmem:[%s1 + $0xbe0] sm:$0xff]
  %v410 = vld [vmem:[%s1 + $0xbe8] sm:$0xff]
  %v411 = vld [vmem:[%s1 + $0xbf0] sm:$0xff]
  %v412 = vld [vmem:[%s1 + $0xbf8] sm:$0xff]
  %v413 = vld [vmem:[%s1 + $0xc00] sm:$0xff]
  %v414 = vld [vmem:[%s1 + $0xc08] sm:$0xff]
  %v415 = vld [vmem:[%s1 + $0xc10] sm:$0xff]
  %v416 = vld [vmem:[%s1 + $0xc18] sm:$0xff]
  %v417 = vld [vmem:[%s1 + $0xc20] sm:$0xff]
  %v418 = vld [vmem:[%s1 + $0xc28] sm:$0xff]
  %v419 = vld [vmem:[%s1 + $0xc30] sm:$0xff]
  %v420 = vld [vmem:[%s1 + $0xc38] sm:$0xff]
  %v421 = vld [vmem:[%s1 + $0xc40] sm:$0xff]
  %v422 = vld [vmem:[%s1 + $0xc48] sm:$0xff]
  %v423 = vld [vmem:[%s1 + $0xc50] sm:$0xff]
  %v424 = vld [vmem:[%s1 + $0xc58] sm:$0xff]
  %v425 = vld [vmem:[%s1 + $0xc60] sm:$0xff]
  %v426 = vld [vmem:[%s1 + $0xc68] sm:$0xff]
  %v427 = vld [vmem:[%s1 + $0xc70] sm:$0xff]
  %v428 = vld [vmem:[%s1 + $0xc78] sm:$0xff]
  %v429 = vld [vmem:[%s1 + $0xc80] sm:$0xff]
  %v430 = vld [vmem:[%s1 + $0xc88] sm:$0xff]
  %v431 = vld [vmem:[%s1 + $0xc90] sm:$0xff]
  %v432 = vld [vmem:[%s1 + $0xc98] sm:$0xff]
  %v433 = vld [vmem:[%s1 + $0xca0] sm:$0xff]
  %v434 = vld [vmem:[%s1 + $0xca8] sm:$0xff]
  %v435 = vld [vmem:[%s1 + $0xcb0] sm:$0xff]
  %v436 = vld [vmem:[%s1 + $0xcb8] sm:$0xff]
  %v437 = vld [vmem:[%s1 + $0xcc0] sm:$0xff]
  %v438 = vld [vmem:[%s1 + $0xcc8] sm:$0xff]
  %v439 = vld [vmem:[%s1 + $0xcd0] sm:$0xff]
  %v440 = vld [vmem:[%s1 + $0xcd8] sm:$0xff]
  %v441 = vld [vmem:[%s1 + $0xce0] sm:$0xff]
  %v442 = vld [vmem:[%s1 + $0xce8] sm:$0xff]
  %v443 = vld [vmem:[%s1 + $0xcf0] sm:$0xff]
  %v444 = vld [vmem:[%s1 + $0xcf8] sm:$0xff]
  %v445 = vld [vmem:[%s1 + $0xd00] sm:$0xff]
  %v446 = vld [vmem:[%s1 + $0xd08] sm:$0xff]
  %v447 = vld [vmem:[%s1 + $0xd10] sm:$0xff]
  %v448 = vld [vmem:[%s1 + $0xd18] sm:$0xff]
  %v449 = vld [vmem:[%s1 + $0xd20] sm:$0xff]
  %v450 = vld [vmem:[%s1 + $0xd28] sm:$0xff]
  %v451 = vld [vmem:[%s1 + $0xd30] sm:$0xff]
  %v452 = vld [vmem:[%s1 + $0xd38] sm:$0xff]
  %v453 = vld [vmem:[%s1 + $0xd40] sm:$0xff]
  %v454 = vld [vmem:[%s1 + $0xd48] sm:$0xff]
  %v455 = vld [vmem:[%s1 + $0xd50] sm:$0xff]
  %v456 = vld [vmem:[%s1 + $0xd58] sm:$0xff]
  %v457 = vld [vmem:[%s1 + $0xd60] sm:$0xff]
  %v458 = vld [vmem:[%s1 + $0xd68] sm:$0xff]
  %v459 = vld [vmem:[%s1 + $0xd70] sm:$0xff]
  %v460 = vld [vmem:[%s1 + $0xd78] sm:$0xff]
  %v461 = vld [vmem:[%s1 + $0xd80] sm:$0xff]
  %v462 = vld [vmem:[%s1 + $0xd88] sm:$0xff]
  %v463 = vld [vmem:[%s1 + $0xd90] sm:$0xff]
  %v464 = vld [vmem:[%s1 + $0xd98] sm:$0xff]
  %v465 = vld [vmem:[%s1 + $0xda0] sm:$0xff]
  %v466 = vld [vmem:[%s1 + $0xda8] sm:$0xff]
  %v467 = vld [vmem:[%s1 + $0xdb0] sm:$0xff]
  %v468 = vld [vmem:[%s1 + $0xdb8] sm:$0xff]
  %v469 = vld [vmem:[%s1 + $0xdc0] sm:$0xff]
  %v470 = vld [vmem:[%s1 + $0xdc8] sm:$0xff]
  %v471 = vld [vmem:[%s1 + $0xdd0] sm:$0xff]
  %v472 = vld [vmem:[%s1 + $0xdd8] sm:$0xff]
  %v473 = vld [vmem:[%s1 + $0xde0] sm:$0xff]
  %v474 = vld [vmem:[%s1 + $0xde8] sm:$0xff]
  %v475 = vld [vmem:[%s1 + $0xdf0] sm:$0xff]
  %v476 = vld [vmem:[%s1 + $0xdf8] sm:$0xff]
  %v477 = vld [vmem:[%s1 + $0xe00] sm:$0xff]
  %v478 = vld [vmem:[%s1 + $0xe08] sm:$0xff]
  %v479 = vld [vmem:[%s1 + $0xe10] sm:$0xff]
  %v480 = vld [vmem:[%s1 + $0xe18] sm:$0xff]
  %v481 = vld [vmem:[%s1 + $0xe20] sm:$0xff]
  %v482 = vld [vmem:[%s1 + $0xe28] sm:$0xff]
  %v483 = vld [vmem:[%s1 + $0xe30] sm:$0xff]
  %v484 = vld [vmem:[%s1 + $0xe38] sm:$0xff]
  %v485 = vld [vmem:[%s1 + $0xe40] sm:$0xff]
  %v486 = vld [vmem:[%s1 + $0xe48] sm:$0xff]
  %v487 = vld [vmem:[%s1 + $0xe50] sm:$0xff]
  %v488 = vld [vmem:[%s1 + $0xe58] sm:$0xff]
  %v489 = vld [vmem:[%s1 + $0xe60] sm:$0xff]
  %v490 = vld [vmem:[%s1 + $0xe68] sm:$0xff]
  %v491 = vld [vmem:[%s1 + $0xe70] sm:$0xff]
  %v492 = vld [vmem:[%s1 + $0xe78] sm:$0xff]
  %v493 = vld [vmem:[%s1 + $0xe80] sm:$0xff]
  %v494 = vld [vmem:[%s1 + $0xe88] sm:$0xff]
  %v495 = vld [vmem:[%s1 + $0xe90] sm:$0xff]
  %v496 = vld [vmem:[%s1 + $0xe98] sm:$0xff]
  %v497 = vld [vmem:[%s1 + $0xea0] sm:$0xff]
  %v498 = vld [vmem:[%s1 + $0xea8] sm:$0xff]
  %v499 = vld [vmem:[%s1 + $0xeb0] sm:$0xff]
  %v500 = vld [vmem:[%s1 + $0xeb8] sm:$0xff]
  %v501 = vld [vmem:[%s1 + $0xec0] sm:$0xff]
  %v502 = vld [vmem:[%s1 + $0xec8] sm:$0xff]
  %v503 = vld [vmem:[%s1 + $0xed0] sm:$0xff]
  %v504 = vld [vmem:[%s1 + $0xed8] sm:$0xff]
  %v505 = vld [vmem:[%s1 + $0xee0] sm:$0xff]
  %v506 = vld [vmem:[%s1 + $0xee8] sm:$0xff]
  %v507 = vld [vmem:[%s1 + $0xef0] sm:$0xff]
  %v508 = vld [vmem:[%s1 + $0xef8] sm:$0xff]
  %v509 = vld [vmem:[%s1 + $0xf00] sm:$0xff]
  %v510 = vld [vmem:[%s1 + $0xf08] sm:$0xff]
  %v511 = vld [vmem:[%s1 + $0xf10] sm:$0xff]
  %v512 = vld [vmem:[%s1 + $0xf18] sm:$0xff]
  %v513 = vld [vmem:[%s1 + $0xf20] sm:$0xff]
  %v514 = vld [vmem:[%s1 + $0xf28] sm:$0xff]
  %v515 = vld [vmem:[%s1 + $0xf30] sm:$0xff]
  %v516 = vld [vmem:[%s1 + $0xf38] sm:$0xff]
  %v517 = vld [vmem:[%s1 + $0xf40] sm:$0xff]
  %v518 = vld [vmem:[%s1 + $0xf48] sm:$0xff]
  %v519 = vld [vmem:[%s1 + $0xf50] sm:$0xff]
  %v520 = vld [vmem:[%s1 + $0xf58] sm:$0xff]
  %v521 = vld [vmem:[%s1 + $0xf60] sm:$0xff]
  %v522 = vld [vmem:[%s1 + $0xf68] sm:$0xff]
  %v523 = vld [vmem:[%s1 + $0xf70] sm:$0xff]
  %v524 = vld [vmem:[%s1 + $0xf78] sm:$0xff]
  %v525 = vld [vmem:[%s1 + $0xf80] sm:$0xff]
  %v526 = vld [vmem:[%s1 + $0xf88] sm:$0xff]
  %v527 = vld [vmem:[%s1 + $0xf90] sm:$0xff]
  %v528 = vld [vmem:[%s1 + $0xf98] sm:$0xff]
  %v529 = vld [vmem:[%s1 + $0xfa0] sm:$0xff]
  %v530 = vld [vmem:[%s1 + $0xfa8] sm:$0xff]
  %v531 = vld [vmem:[%s1 + $0xfb0] sm:$0xff]
  %v532 = vld [vmem:[%s1 + $0xfb8] sm:$0xff]
  %v533 = vld [vmem:[%s1 + $0xfc0] sm:$0xff]
  %v534 = vld [vmem:[%s1 + $0xfc8] sm:$0xff]
  %v535 = vld [vmem:[%s1 + $0xfd0] sm:$0xff]
  %v536 = vld [vmem:[%s1 + $0xfd8] sm:$0xff]
  %v537 = vld [vmem:[%s1 + $0xfe0] sm:$0xff]
  %v538 = vld [vmem:[%s1 + $0xfe8] sm:$0xff]
  %v539 = vld [vmem:[%s1 + $0xff0] sm:$0xff]
  %v540 = vld [vmem:[%s1 + $0xff8] sm:$0xff]
  %v541 = vld [vmem:[%s2] sm:$0xf]
  %v543 = vlaneseq
  %v544 = vshrl.u32 %v543, 7
  %v545 = vsub.s32 0, %v544
  %v546 = vrot.slane %v541, %v545
  %v547 = vlaneseq
  %v548 = vshrl.u32 %v547, 7
  %v549 = vsub.s32 1, %v548
  %v550 = vrot.slane %v541, %v549
  %v551 = vlaneseq
  %v552 = vshrl.u32 %v551, 7
  %v553 = vsub.s32 2, %v552
  %v554 = vrot.slane %v541, %v553
  %v555 = vlaneseq
  %v556 = vshrl.u32 %v555, 7
  %v557 = vsub.s32 3, %v556
  %v558 = vrot.slane %v541, %v557
  %v571 = vunpack.c.l.b16 %v21
  %v572 = vunpack.c.h.b16 %v21
  %v573 = vunpack.c.l.b16 %v22
  %v574 = vunpack.c.h.b16 %v22
  %v575 = vunpack.c.l.b16 %v23
  %v576 = vunpack.c.h.b16 %v23
  %v577 = vunpack.c.l.b16 %v24
  %v578 = vunpack.c.h.b16 %v24
  %v579 = vunpack.c.l.b16 %v25
  %v580 = vunpack.c.h.b16 %v25
  %v581 = vunpack.c.l.b16 %v26
  %v582 = vunpack.c.h.b16 %v26
  %v583 = vunpack.c.l.b16 %v27
  %v584 = vunpack.c.h.b16 %v27
  %v585 = vunpack.c.l.b16 %v28
  %v586 = vunpack.c.h.b16 %v28
  %v587 = vpack.c.b16 %v571, %v571
  %v588 = vpack.c.b16 %v572, %v572
  %v589 = vpack.c.b16 %v573, %v573
  %v590 = vpack.c.b16 %v574, %v574
  %v591 = vpack.c.b16 %v575, %v575
  %v592 = vpack.c.b16 %v576, %v576
  %v593 = vpack.c.b16 %v577, %v577
  %v594 = vpack.c.b16 %v578, %v578
  %v595 = vpack.c.b16 %v579, %v579
  %v596 = vpack.c.b16 %v580, %v580
  %v597 = vpack.c.b16 %v581, %v581
  %v598 = vpack.c.b16 %v582, %v582
  %v599 = vpack.c.b16 %v583, %v583
  %v600 = vpack.c.b16 %v584, %v584
  %v601 = vpack.c.b16 %v585, %v585
  %v602 = vpack.c.b16 %v586, %v586
  %v1131 = vunpack.c.l.b16 %v29
  %v1132 = vunpack.c.h.b16 %v29
  %v1133 = vunpack.c.l.b16 %v30
  %v1134 = vunpack.c.h.b16 %v30
  %v1135 = vunpack.c.l.b16 %v31
  %v1136 = vunpack.c.h.b16 %v31
  %v1137 = vunpack.c.l.b16 %v32
  %v1138 = vunpack.c.h.b16 %v32
  %v1139 = vunpack.c.l.b16 %v33
  %v1140 = vunpack.c.h.b16 %v33
  %v1141 = vunpack.c.l.b16 %v34
  %v1142 = vunpack.c.h.b16 %v34
  %v1143 = vunpack.c.l.b16 %v35
  %v1144 = vunpack.c.h.b16 %v35
  %v1145 = vunpack.c.l.b16 %v36
  %v1146 = vunpack.c.h.b16 %v36
  %v1147 = vunpack.c.l.b16 %v37
  %v1148 = vunpack.c.h.b16 %v37
  %v1149 = vunpack.c.l.b16 %v38
  %v1150 = vunpack.c.h.b16 %v38
  %v1151 = vunpack.c.l.b16 %v39
  %v1152 = vunpack.c.h.b16 %v39
  %v1153 = vunpack.c.l.b16 %v40
  %v1154 = vunpack.c.h.b16 %v40
  %v1155 = vunpack.c.l.b16 %v41
  %v1156 = vunpack.c.h.b16 %v41
  %v1157 = vunpack.c.l.b16 %v42
  %v1158 = vunpack.c.h.b16 %v42
  %v1159 = vunpack.c.l.b16 %v43
  %v1160 = vunpack.c.h.b16 %v43
  %v1161 = vunpack.c.l.b16 %v44
  %v1162 = vunpack.c.h.b16 %v44
  %v1163 = vunpack.c.l.b16 %v45
  %v1164 = vunpack.c.h.b16 %v45
  %v1165 = vunpack.c.l.b16 %v46
  %v1166 = vunpack.c.h.b16 %v46
  %v1167 = vunpack.c.l.b16 %v47
  %v1168 = vunpack.c.h.b16 %v47
  %v1169 = vunpack.c.l.b16 %v48
  %v1170 = vunpack.c.h.b16 %v48
  %v1171 = vunpack.c.l.b16 %v49
  %v1172 = vunpack.c.h.b16 %v49
  %v1173 = vunpack.c.l.b16 %v50
  %v1174 = vunpack.c.h.b16 %v50
  %v1175 = vunpack.c.l.b16 %v51
  %v1176 = vunpack.c.h.b16 %v51
  %v1177 = vunpack.c.l.b16 %v52
  %v1178 = vunpack.c.h.b16 %v52
  %v1179 = vunpack.c.l.b16 %v53
  %v1180 = vunpack.c.h.b16 %v53
  %v1181 = vunpack.c.l.b16 %v54
  %v1182 = vunpack.c.h.b16 %v54
  %v1183 = vunpack.c.l.b16 %v55
  %v1184 = vunpack.c.h.b16 %v55
  %v1185 = vunpack.c.l.b16 %v56
  %v1186 = vunpack.c.h.b16 %v56
  %v1187 = vunpack.c.l.b16 %v57
  %v1188 = vunpack.c.h.b16 %v57
  %v1189 = vunpack.c.l.b16 %v58
  %v1190 = vunpack.c.h.b16 %v58
  %v1191 = vunpack.c.l.b16 %v59
  %v1192 = vunpack.c.h.b16 %v59
  %v1193 = vunpack.c.l.b16 %v60
  %v1194 = vunpack.c.h.b16 %v60
  %v1195 = vunpack.c.l.b16 %v61
  %v1196 = vunpack.c.h.b16 %v61
  %v1197 = vunpack.c.l.b16 %v62
  %v1198 = vunpack.c.h.b16 %v62
  %v1199 = vunpack.c.l.b16 %v63
  %v1200 = vunpack.c.h.b16 %v63
  %v1201 = vunpack.c.l.b16 %v64
  %v1202 = vunpack.c.h.b16 %v64
  %v1203 = vunpack.c.l.b16 %v65
  %v1204 = vunpack.c.h.b16 %v65
  %v1205 = vunpack.c.l.b16 %v66
  %v1206 = vunpack.c.h.b16 %v66
  %v1207 = vunpack.c.l.b16 %v67
  %v1208 = vunpack.c.h.b16 %v67
  %v1209 = vunpack.c.l.b16 %v68
  %v1210 = vunpack.c.h.b16 %v68
  %v1211 = vunpack.c.l.b16 %v69
  %v1212 = vunpack.c.h.b16 %v69
  %v1213 = vunpack.c.l.b16 %v70
  %v1214 = vunpack.c.h.b16 %v70
  %v1215 = vunpack.c.l.b16 %v71
  %v1216 = vunpack.c.h.b16 %v71
  %v1217 = vunpack.c.l.b16 %v72
  %v1218 = vunpack.c.h.b16 %v72
  %v1219 = vunpack.c.l.b16 %v73
  %v1220 = vunpack.c.h.b16 %v73
  %v1221 = vunpack.c.l.b16 %v74
  %v1222 = vunpack.c.h.b16 %v74
  %v1223 = vunpack.c.l.b16 %v75
  %v1224 = vunpack.c.h.b16 %v75
  %v1225 = vunpack.c.l.b16 %v76
  %v1226 = vunpack.c.h.b16 %v76
  %v1227 = vunpack.c.l.b16 %v77
  %v1228 = vunpack.c.h.b16 %v77
  %v1229 = vunpack.c.l.b16 %v78
  %v1230 = vunpack.c.h.b16 %v78
  %v1231 = vunpack.c.l.b16 %v79
  %v1232 = vunpack.c.h.b16 %v79
  %v1233 = vunpack.c.l.b16 %v80
  %v1234 = vunpack.c.h.b16 %v80
  %v1235 = vunpack.c.l.b16 %v81
  %v1236 = vunpack.c.h.b16 %v81
  %v1237 = vunpack.c.l.b16 %v82
  %v1238 = vunpack.c.h.b16 %v82
  %v1239 = vunpack.c.l.b16 %v83
  %v1240 = vunpack.c.h.b16 %v83
  %v1241 = vunpack.c.l.b16 %v84
  %v1242 = vunpack.c.h.b16 %v84
  %v1243 = vunpack.c.l.b16 %v85
  %v1244 = vunpack.c.h.b16 %v85
  %v1245 = vunpack.c.l.b16 %v86
  %v1246 = vunpack.c.h.b16 %v86
  %v1247 = vunpack.c.l.b16 %v87
  %v1248 = vunpack.c.h.b16 %v87
  %v1249 = vunpack.c.l.b16 %v88
  %v1250 = vunpack.c.h.b16 %v88
  %v1251 = vunpack.c.l.b16 %v89
  %v1252 = vunpack.c.h.b16 %v89
  %v1253 = vunpack.c.l.b16 %v90
  %v1254 = vunpack.c.h.b16 %v90
  %v1255 = vunpack.c.l.b16 %v91
  %v1256 = vunpack.c.h.b16 %v91
  %v1257 = vunpack.c.l.b16 %v92
  %v1258 = vunpack.c.h.b16 %v92
  %v1259 = vunpack.c.l.b16 %v93
  %v1260 = vunpack.c.h.b16 %v93
  %v1261 = vunpack.c.l.b16 %v94
  %v1262 = vunpack.c.h.b16 %v94
  %v1263 = vunpack.c.l.b16 %v95
  %v1264 = vunpack.c.h.b16 %v95
  %v1265 = vunpack.c.l.b16 %v96
  %v1266 = vunpack.c.h.b16 %v96
  %v1267 = vunpack.c.l.b16 %v97
  %v1268 = vunpack.c.h.b16 %v97
  %v1269 = vunpack.c.l.b16 %v98
  %v1270 = vunpack.c.h.b16 %v98
  %v1271 = vunpack.c.l.b16 %v99
  %v1272 = vunpack.c.h.b16 %v99
  %v1273 = vunpack.c.l.b16 %v100
  %v1274 = vunpack.c.h.b16 %v100
  %v1275 = vunpack.c.l.b16 %v101
  %v1276 = vunpack.c.h.b16 %v101
  %v1277 = vunpack.c.l.b16 %v102
  %v1278 = vunpack.c.h.b16 %v102
  %v1279 = vunpack.c.l.b16 %v103
  %v1280 = vunpack.c.h.b16 %v103
  %v1281 = vunpack.c.l.b16 %v104
  %v1282 = vunpack.c.h.b16 %v104
  %v1283 = vunpack.c.l.b16 %v105
  %v1284 = vunpack.c.h.b16 %v105
  %v1285 = vunpack.c.l.b16 %v106
  %v1286 = vunpack.c.h.b16 %v106
  %v1287 = vunpack.c.l.b16 %v107
  %v1288 = vunpack.c.h.b16 %v107
  %v1289 = vunpack.c.l.b16 %v108
  %v1290 = vunpack.c.h.b16 %v108
  %v1291 = vunpack.c.l.b16 %v109
  %v1292 = vunpack.c.h.b16 %v109
  %v1293 = vunpack.c.l.b16 %v110
  %v1294 = vunpack.c.h.b16 %v110
  %v1295 = vunpack.c.l.b16 %v111
  %v1296 = vunpack.c.h.b16 %v111
  %v1297 = vunpack.c.l.b16 %v112
  %v1298 = vunpack.c.h.b16 %v112
  %v1299 = vunpack.c.l.b16 %v113
  %v1300 = vunpack.c.h.b16 %v113
  %v1301 = vunpack.c.l.b16 %v114
  %v1302 = vunpack.c.h.b16 %v114
  %v1303 = vunpack.c.l.b16 %v115
  %v1304 = vunpack.c.h.b16 %v115
  %v1305 = vunpack.c.l.b16 %v116
  %v1306 = vunpack.c.h.b16 %v116
  %v1307 = vunpack.c.l.b16 %v117
  %v1308 = vunpack.c.h.b16 %v117
  %v1309 = vunpack.c.l.b16 %v118
  %v1310 = vunpack.c.h.b16 %v118
  %v1311 = vunpack.c.l.b16 %v119
  %v1312 = vunpack.c.h.b16 %v119
  %v1313 = vunpack.c.l.b16 %v120
  %v1314 = vunpack.c.h.b16 %v120
  %v1315 = vunpack.c.l.b16 %v121
  %v1316 = vunpack.c.h.b16 %v121
  %v1317 = vunpack.c.l.b16 %v122
  %v1318 = vunpack.c.h.b16 %v122
  %v1319 = vunpack.c.l.b16 %v123
  %v1320 = vunpack.c.h.b16 %v123
  %v1321 = vunpack.c.l.b16 %v124
  %v1322 = vunpack.c.h.b16 %v124
  %v1323 = vunpack.c.l.b16 %v125
  %v1324 = vunpack.c.h.b16 %v125
  %v1325 = vunpack.c.l.b16 %v126
  %v1326 = vunpack.c.h.b16 %v126
  %v1327 = vunpack.c.l.b16 %v127
  %v1328 = vunpack.c.h.b16 %v127
  %v1329 = vunpack.c.l.b16 %v128
  %v1330 = vunpack.c.h.b16 %v128
  %v1331 = vunpack.c.l.b16 %v129
  %v1332 = vunpack.c.h.b16 %v129
  %v1333 = vunpack.c.l.b16 %v130
  %v1334 = vunpack.c.h.b16 %v130
  %v1335 = vunpack.c.l.b16 %v131
  %v1336 = vunpack.c.h.b16 %v131
  %v1337 = vunpack.c.l.b16 %v132
  %v1338 = vunpack.c.h.b16 %v132
  %v1339 = vunpack.c.l.b16 %v133
  %v1340 = vunpack.c.h.b16 %v133
  %v1341 = vunpack.c.l.b16 %v134
  %v1342 = vunpack.c.h.b16 %v134
  %v1343 = vunpack.c.l.b16 %v135
  %v1344 = vunpack.c.h.b16 %v135
  %v1345 = vunpack.c.l.b16 %v136
  %v1346 = vunpack.c.h.b16 %v136
  %v1347 = vunpack.c.l.b16 %v137
  %v1348 = vunpack.c.h.b16 %v137
  %v1349 = vunpack.c.l.b16 %v138
  %v1350 = vunpack.c.h.b16 %v138
  %v1351 = vunpack.c.l.b16 %v139
  %v1352 = vunpack.c.h.b16 %v139
  %v1353 = vunpack.c.l.b16 %v140
  %v1354 = vunpack.c.h.b16 %v140
  %v1355 = vunpack.c.l.b16 %v141
  %v1356 = vunpack.c.h.b16 %v141
  %v1357 = vunpack.c.l.b16 %v142
  %v1358 = vunpack.c.h.b16 %v142
  %v1359 = vunpack.c.l.b16 %v143
  %v1360 = vunpack.c.h.b16 %v143
  %v1361 = vunpack.c.l.b16 %v144
  %v1362 = vunpack.c.h.b16 %v144
  %v1363 = vunpack.c.l.b16 %v145
  %v1364 = vunpack.c.h.b16 %v145
  %v1365 = vunpack.c.l.b16 %v146
  %v1366 = vunpack.c.h.b16 %v146
  %v1367 = vunpack.c.l.b16 %v147
  %v1368 = vunpack.c.h.b16 %v147
  %v1369 = vunpack.c.l.b16 %v148
  %v1370 = vunpack.c.h.b16 %v148
  %v1371 = vunpack.c.l.b16 %v149
  %v1372 = vunpack.c.h.b16 %v149
  %v1373 = vunpack.c.l.b16 %v150
  %v1374 = vunpack.c.h.b16 %v150
  %v1375 = vunpack.c.l.b16 %v151
  %v1376 = vunpack.c.h.b16 %v151
  %v1377 = vunpack.c.l.b16 %v152
  %v1378 = vunpack.c.h.b16 %v152
  %v1379 = vunpack.c.l.b16 %v153
  %v1380 = vunpack.c.h.b16 %v153
  %v1381 = vunpack.c.l.b16 %v154
  %v1382 = vunpack.c.h.b16 %v154
  %v1383 = vunpack.c.l.b16 %v155
  %v1384 = vunpack.c.h.b16 %v155
  %v1385 = vunpack.c.l.b16 %v156
  %v1386 = vunpack.c.h.b16 %v156
  %v1387 = vunpack.c.l.b16 %v157
  %v1388 = vunpack.c.h.b16 %v157
  %v1389 = vunpack.c.l.b16 %v158
  %v1390 = vunpack.c.h.b16 %v158
  %v1391 = vunpack.c.l.b16 %v159
  %v1392 = vunpack.c.h.b16 %v159
  %v1393 = vunpack.c.l.b16 %v160
  %v1394 = vunpack.c.h.b16 %v160
  %v1395 = vunpack.c.l.b16 %v161
  %v1396 = vunpack.c.h.b16 %v161
  %v1397 = vunpack.c.l.b16 %v162
  %v1398 = vunpack.c.h.b16 %v162
  %v1399 = vunpack.c.l.b16 %v163
  %v1400 = vunpack.c.h.b16 %v163
  %v1401 = vunpack.c.l.b16 %v164
  %v1402 = vunpack.c.h.b16 %v164
  %v1403 = vunpack.c.l.b16 %v165
  %v1404 = vunpack.c.h.b16 %v165
  %v1405 = vunpack.c.l.b16 %v166
  %v1406 = vunpack.c.h.b16 %v166
  %v1407 = vunpack.c.l.b16 %v167
  %v1408 = vunpack.c.h.b16 %v167
  %v1409 = vunpack.c.l.b16 %v168
  %v1410 = vunpack.c.h.b16 %v168
  %v1411 = vunpack.c.l.b16 %v169
  %v1412 = vunpack.c.h.b16 %v169
  %v1413 = vunpack.c.l.b16 %v170
  %v1414 = vunpack.c.h.b16 %v170
  %v1415 = vunpack.c.l.b16 %v171
  %v1416 = vunpack.c.h.b16 %v171
  %v1417 = vunpack.c.l.b16 %v172
  %v1418 = vunpack.c.h.b16 %v172
  %v1419 = vunpack.c.l.b16 %v173
  %v1420 = vunpack.c.h.b16 %v173
  %v1421 = vunpack.c.l.b16 %v174
  %v1422 = vunpack.c.h.b16 %v174
  %v1423 = vunpack.c.l.b16 %v175
  %v1424 = vunpack.c.h.b16 %v175
  %v1425 = vunpack.c.l.b16 %v176
  %v1426 = vunpack.c.h.b16 %v176
  %v1427 = vunpack.c.l.b16 %v177
  %v1428 = vunpack.c.h.b16 %v177
  %v1429 = vunpack.c.l.b16 %v178
  %v1430 = vunpack.c.h.b16 %v178
  %v1431 = vunpack.c.l.b16 %v179
  %v1432 = vunpack.c.h.b16 %v179
  %v1433 = vunpack.c.l.b16 %v180
  %v1434 = vunpack.c.h.b16 %v180
  %v1435 = vunpack.c.l.b16 %v181
  %v1436 = vunpack.c.h.b16 %v181
  %v1437 = vunpack.c.l.b16 %v182
  %v1438 = vunpack.c.h.b16 %v182
  %v1439 = vunpack.c.l.b16 %v183
  %v1440 = vunpack.c.h.b16 %v183
  %v1441 = vunpack.c.l.b16 %v184
  %v1442 = vunpack.c.h.b16 %v184
  %v1443 = vunpack.c.l.b16 %v185
  %v1444 = vunpack.c.h.b16 %v185
  %v1445 = vunpack.c.l.b16 %v186
  %v1446 = vunpack.c.h.b16 %v186
  %v1447 = vunpack.c.l.b16 %v187
  %v1448 = vunpack.c.h.b16 %v187
  %v1449 = vunpack.c.l.b16 %v188
  %v1450 = vunpack.c.h.b16 %v188
  %v1451 = vunpack.c.l.b16 %v189
  %v1452 = vunpack.c.h.b16 %v189
  %v1453 = vunpack.c.l.b16 %v190
  %v1454 = vunpack.c.h.b16 %v190
  %v1455 = vunpack.c.l.b16 %v191
  %v1456 = vunpack.c.h.b16 %v191
  %v1457 = vunpack.c.l.b16 %v192
  %v1458 = vunpack.c.h.b16 %v192
  %v1459 = vunpack.c.l.b16 %v193
  %v1460 = vunpack.c.h.b16 %v193
  %v1461 = vunpack.c.l.b16 %v194
  %v1462 = vunpack.c.h.b16 %v194
  %v1463 = vunpack.c.l.b16 %v195
  %v1464 = vunpack.c.h.b16 %v195
  %v1465 = vunpack.c.l.b16 %v196
  %v1466 = vunpack.c.h.b16 %v196
  %v1467 = vunpack.c.l.b16 %v197
  %v1468 = vunpack.c.h.b16 %v197
  %v1469 = vunpack.c.l.b16 %v198
  %v1470 = vunpack.c.h.b16 %v198
  %v1471 = vunpack.c.l.b16 %v199
  %v1472 = vunpack.c.h.b16 %v199
  %v1473 = vunpack.c.l.b16 %v200
  %v1474 = vunpack.c.h.b16 %v200
  %v1475 = vunpack.c.l.b16 %v201
  %v1476 = vunpack.c.h.b16 %v201
  %v1477 = vunpack.c.l.b16 %v202
  %v1478 = vunpack.c.h.b16 %v202
  %v1479 = vunpack.c.l.b16 %v203
  %v1480 = vunpack.c.h.b16 %v203
  %v1481 = vunpack.c.l.b16 %v204
  %v1482 = vunpack.c.h.b16 %v204
  %v1483 = vunpack.c.l.b16 %v205
  %v1484 = vunpack.c.h.b16 %v205
  %v1485 = vunpack.c.l.b16 %v206
  %v1486 = vunpack.c.h.b16 %v206
  %v1487 = vunpack.c.l.b16 %v207
  %v1488 = vunpack.c.h.b16 %v207
  %v1489 = vunpack.c.l.b16 %v208
  %v1490 = vunpack.c.h.b16 %v208
  %v1491 = vunpack.c.l.b16 %v209
  %v1492 = vunpack.c.h.b16 %v209
  %v1493 = vunpack.c.l.b16 %v210
  %v1494 = vunpack.c.h.b16 %v210
  %v1495 = vunpack.c.l.b16 %v211
  %v1496 = vunpack.c.h.b16 %v211
  %v1497 = vunpack.c.l.b16 %v212
  %v1498 = vunpack.c.h.b16 %v212
  %v1499 = vunpack.c.l.b16 %v213
  %v1500 = vunpack.c.h.b16 %v213
  %v1501 = vunpack.c.l.b16 %v214
  %v1502 = vunpack.c.h.b16 %v214
  %v1503 = vunpack.c.l.b16 %v215
  %v1504 = vunpack.c.h.b16 %v215
  %v1505 = vunpack.c.l.b16 %v216
  %v1506 = vunpack.c.h.b16 %v216
  %v1507 = vunpack.c.l.b16 %v217
  %v1508 = vunpack.c.h.b16 %v217
  %v1509 = vunpack.c.l.b16 %v218
  %v1510 = vunpack.c.h.b16 %v218
  %v1511 = vunpack.c.l.b16 %v219
  %v1512 = vunpack.c.h.b16 %v219
  %v1513 = vunpack.c.l.b16 %v220
  %v1514 = vunpack.c.h.b16 %v220
  %v1515 = vunpack.c.l.b16 %v221
  %v1516 = vunpack.c.h.b16 %v221
  %v1517 = vunpack.c.l.b16 %v222
  %v1518 = vunpack.c.h.b16 %v222
  %v1519 = vunpack.c.l.b16 %v223
  %v1520 = vunpack.c.h.b16 %v223
  %v1521 = vunpack.c.l.b16 %v224
  %v1522 = vunpack.c.h.b16 %v224
  %v1523 = vunpack.c.l.b16 %v225
  %v1524 = vunpack.c.h.b16 %v225
  %v1525 = vunpack.c.l.b16 %v226
  %v1526 = vunpack.c.h.b16 %v226
  %v1527 = vunpack.c.l.b16 %v227
  %v1528 = vunpack.c.h.b16 %v227
  %v1529 = vunpack.c.l.b16 %v228
  %v1530 = vunpack.c.h.b16 %v228
  %v1531 = vunpack.c.l.b16 %v229
  %v1532 = vunpack.c.h.b16 %v229
  %v1533 = vunpack.c.l.b16 %v230
  %v1534 = vunpack.c.h.b16 %v230
  %v1535 = vunpack.c.l.b16 %v231
  %v1536 = vunpack.c.h.b16 %v231
  %v1537 = vunpack.c.l.b16 %v232
  %v1538 = vunpack.c.h.b16 %v232
  %v1539 = vunpack.c.l.b16 %v233
  %v1540 = vunpack.c.h.b16 %v233
  %v1541 = vunpack.c.l.b16 %v234
  %v1542 = vunpack.c.h.b16 %v234
  %v1543 = vunpack.c.l.b16 %v235
  %v1544 = vunpack.c.h.b16 %v235
  %v1545 = vunpack.c.l.b16 %v236
  %v1546 = vunpack.c.h.b16 %v236
  %v1547 = vunpack.c.l.b16 %v237
  %v1548 = vunpack.c.h.b16 %v237
  %v1549 = vunpack.c.l.b16 %v238
  %v1550 = vunpack.c.h.b16 %v238
  %v1551 = vunpack.c.l.b16 %v239
  %v1552 = vunpack.c.h.b16 %v239
  %v1553 = vunpack.c.l.b16 %v240
  %v1554 = vunpack.c.h.b16 %v240
  %v1555 = vunpack.c.l.b16 %v241
  %v1556 = vunpack.c.h.b16 %v241
  %v1557 = vunpack.c.l.b16 %v242
  %v1558 = vunpack.c.h.b16 %v242
  %v1559 = vunpack.c.l.b16 %v243
  %v1560 = vunpack.c.h.b16 %v243
  %v1561 = vunpack.c.l.b16 %v244
  %v1562 = vunpack.c.h.b16 %v244
  %v1563 = vunpack.c.l.b16 %v245
  %v1564 = vunpack.c.h.b16 %v245
  %v1565 = vunpack.c.l.b16 %v246
  %v1566 = vunpack.c.h.b16 %v246
  %v1567 = vunpack.c.l.b16 %v247
  %v1568 = vunpack.c.h.b16 %v247
  %v1569 = vunpack.c.l.b16 %v248
  %v1570 = vunpack.c.h.b16 %v248
  %v1571 = vunpack.c.l.b16 %v249
  %v1572 = vunpack.c.h.b16 %v249
  %v1573 = vunpack.c.l.b16 %v250
  %v1574 = vunpack.c.h.b16 %v250
  %v1575 = vunpack.c.l.b16 %v251
  %v1576 = vunpack.c.h.b16 %v251
  %v1577 = vunpack.c.l.b16 %v252
  %v1578 = vunpack.c.h.b16 %v252
  %v1579 = vunpack.c.l.b16 %v253
  %v1580 = vunpack.c.h.b16 %v253
  %v1581 = vunpack.c.l.b16 %v254
  %v1582 = vunpack.c.h.b16 %v254
  %v1583 = vunpack.c.l.b16 %v255
  %v1584 = vunpack.c.h.b16 %v255
  %v1585 = vunpack.c.l.b16 %v256
  %v1586 = vunpack.c.h.b16 %v256
  %v1587 = vunpack.c.l.b16 %v257
  %v1588 = vunpack.c.h.b16 %v257
  %v1589 = vunpack.c.l.b16 %v258
  %v1590 = vunpack.c.h.b16 %v258
  %v1591 = vunpack.c.l.b16 %v259
  %v1592 = vunpack.c.h.b16 %v259
  %v1593 = vunpack.c.l.b16 %v260
  %v1594 = vunpack.c.h.b16 %v260
  %v1595 = vunpack.c.l.b16 %v261
  %v1596 = vunpack.c.h.b16 %v261
  %v1597 = vunpack.c.l.b16 %v262
  %v1598 = vunpack.c.h.b16 %v262
  %v1599 = vunpack.c.l.b16 %v263
  %v1600 = vunpack.c.h.b16 %v263
  %v1601 = vunpack.c.l.b16 %v264
  %v1602 = vunpack.c.h.b16 %v264
  %v1603 = vunpack.c.l.b16 %v265
  %v1604 = vunpack.c.h.b16 %v265
  %v1605 = vunpack.c.l.b16 %v266
  %v1606 = vunpack.c.h.b16 %v266
  %v1607 = vunpack.c.l.b16 %v267
  %v1608 = vunpack.c.h.b16 %v267
  %v1609 = vunpack.c.l.b16 %v268
  %v1610 = vunpack.c.h.b16 %v268
  %v1611 = vunpack.c.l.b16 %v269
  %v1612 = vunpack.c.h.b16 %v269
  %v1613 = vunpack.c.l.b16 %v270
  %v1614 = vunpack.c.h.b16 %v270
  %v1615 = vunpack.c.l.b16 %v271
  %v1616 = vunpack.c.h.b16 %v271
  %v1617 = vunpack.c.l.b16 %v272
  %v1618 = vunpack.c.h.b16 %v272
  %v1619 = vunpack.c.l.b16 %v273
  %v1620 = vunpack.c.h.b16 %v273
  %v1621 = vunpack.c.l.b16 %v274
  %v1622 = vunpack.c.h.b16 %v274
  %v1623 = vunpack.c.l.b16 %v275
  %v1624 = vunpack.c.h.b16 %v275
  %v1625 = vunpack.c.l.b16 %v276
  %v1626 = vunpack.c.h.b16 %v276
  %v1627 = vunpack.c.l.b16 %v277
  %v1628 = vunpack.c.h.b16 %v277
  %v1629 = vunpack.c.l.b16 %v278
  %v1630 = vunpack.c.h.b16 %v278
  %v1631 = vunpack.c.l.b16 %v279
  %v1632 = vunpack.c.h.b16 %v279
  %v1633 = vunpack.c.l.b16 %v280
  %v1634 = vunpack.c.h.b16 %v280
  %v1635 = vunpack.c.l.b16 %v281
  %v1636 = vunpack.c.h.b16 %v281
  %v1637 = vunpack.c.l.b16 %v282
  %v1638 = vunpack.c.h.b16 %v282
  %v1639 = vunpack.c.l.b16 %v283
  %v1640 = vunpack.c.h.b16 %v283
  %v1641 = vunpack.c.l.b16 %v284
  %v1642 = vunpack.c.h.b16 %v284
  %v1643 = vunpack.c.l.b16 %v285
  %v1644 = vunpack.c.h.b16 %v285
  %v1645 = vunpack.c.l.b16 %v286
  %v1646 = vunpack.c.h.b16 %v286
  %v1647 = vunpack.c.l.b16 %v287
  %v1648 = vunpack.c.h.b16 %v287
  %v1649 = vunpack.c.l.b16 %v288
  %v1650 = vunpack.c.h.b16 %v288
  %v1651 = vunpack.c.l.b16 %v289
  %v1652 = vunpack.c.h.b16 %v289
  %v1653 = vunpack.c.l.b16 %v290
  %v1654 = vunpack.c.h.b16 %v290
  %v1655 = vunpack.c.l.b16 %v291
  %v1656 = vunpack.c.h.b16 %v291
  %v1657 = vunpack.c.l.b16 %v292
  %v1658 = vunpack.c.h.b16 %v292
  %v1659 = vunpack.c.l.b16 %v293
  %v1660 = vunpack.c.h.b16 %v293
  %v1661 = vunpack.c.l.b16 %v294
  %v1662 = vunpack.c.h.b16 %v294
  %v1663 = vunpack.c.l.b16 %v295
  %v1664 = vunpack.c.h.b16 %v295
  %v1665 = vunpack.c.l.b16 %v296
  %v1666 = vunpack.c.h.b16 %v296
  %v1667 = vunpack.c.l.b16 %v297
  %v1668 = vunpack.c.h.b16 %v297
  %v1669 = vunpack.c.l.b16 %v298
  %v1670 = vunpack.c.h.b16 %v298
  %v1671 = vunpack.c.l.b16 %v299
  %v1672 = vunpack.c.h.b16 %v299
  %v1673 = vunpack.c.l.b16 %v300
  %v1674 = vunpack.c.h.b16 %v300
  %v1675 = vunpack.c.l.b16 %v301
  %v1676 = vunpack.c.h.b16 %v301
  %v1677 = vunpack.c.l.b16 %v302
  %v1678 = vunpack.c.h.b16 %v302
  %v1679 = vunpack.c.l.b16 %v303
  %v1680 = vunpack.c.h.b16 %v303
  %v1681 = vunpack.c.l.b16 %v304
  %v1682 = vunpack.c.h.b16 %v304
  %v1683 = vunpack.c.l.b16 %v305
  %v1684 = vunpack.c.h.b16 %v305
  %v1685 = vunpack.c.l.b16 %v306
  %v1686 = vunpack.c.h.b16 %v306
  %v1687 = vunpack.c.l.b16 %v307
  %v1688 = vunpack.c.h.b16 %v307
  %v1689 = vunpack.c.l.b16 %v308
  %v1690 = vunpack.c.h.b16 %v308
  %v1691 = vunpack.c.l.b16 %v309
  %v1692 = vunpack.c.h.b16 %v309
  %v1693 = vunpack.c.l.b16 %v310
  %v1694 = vunpack.c.h.b16 %v310
  %v1695 = vunpack.c.l.b16 %v311
  %v1696 = vunpack.c.h.b16 %v311
  %v1697 = vunpack.c.l.b16 %v312
  %v1698 = vunpack.c.h.b16 %v312
  %v1699 = vunpack.c.l.b16 %v313
  %v1700 = vunpack.c.h.b16 %v313
  %v1701 = vunpack.c.l.b16 %v314
  %v1702 = vunpack.c.h.b16 %v314
  %v1703 = vunpack.c.l.b16 %v315
  %v1704 = vunpack.c.h.b16 %v315
  %v1705 = vunpack.c.l.b16 %v316
  %v1706 = vunpack.c.h.b16 %v316
  %v1707 = vunpack.c.l.b16 %v317
  %v1708 = vunpack.c.h.b16 %v317
  %v1709 = vunpack.c.l.b16 %v318
  %v1710 = vunpack.c.h.b16 %v318
  %v1711 = vunpack.c.l.b16 %v319
  %v1712 = vunpack.c.h.b16 %v319
  %v1713 = vunpack.c.l.b16 %v320
  %v1714 = vunpack.c.h.b16 %v320
  %v1715 = vunpack.c.l.b16 %v321
  %v1716 = vunpack.c.h.b16 %v321
  %v1717 = vunpack.c.l.b16 %v322
  %v1718 = vunpack.c.h.b16 %v322
  %v1719 = vunpack.c.l.b16 %v323
  %v1720 = vunpack.c.h.b16 %v323
  %v1721 = vunpack.c.l.b16 %v324
  %v1722 = vunpack.c.h.b16 %v324
  %v1723 = vunpack.c.l.b16 %v325
  %v1724 = vunpack.c.h.b16 %v325
  %v1725 = vunpack.c.l.b16 %v326
  %v1726 = vunpack.c.h.b16 %v326
  %v1727 = vunpack.c.l.b16 %v327
  %v1728 = vunpack.c.h.b16 %v327
  %v1729 = vunpack.c.l.b16 %v328
  %v1730 = vunpack.c.h.b16 %v328
  %v1731 = vunpack.c.l.b16 %v329
  %v1732 = vunpack.c.h.b16 %v329
  %v1733 = vunpack.c.l.b16 %v330
  %v1734 = vunpack.c.h.b16 %v330
  %v1735 = vunpack.c.l.b16 %v331
  %v1736 = vunpack.c.h.b16 %v331
  %v1737 = vunpack.c.l.b16 %v332
  %v1738 = vunpack.c.h.b16 %v332
  %v1739 = vunpack.c.l.b16 %v333
  %v1740 = vunpack.c.h.b16 %v333
  %v1741 = vunpack.c.l.b16 %v334
  %v1742 = vunpack.c.h.b16 %v334
  %v1743 = vunpack.c.l.b16 %v335
  %v1744 = vunpack.c.h.b16 %v335
  %v1745 = vunpack.c.l.b16 %v336
  %v1746 = vunpack.c.h.b16 %v336
  %v1747 = vunpack.c.l.b16 %v337
  %v1748 = vunpack.c.h.b16 %v337
  %v1749 = vunpack.c.l.b16 %v338
  %v1750 = vunpack.c.h.b16 %v338
  %v1751 = vunpack.c.l.b16 %v339
  %v1752 = vunpack.c.h.b16 %v339
  %v1753 = vunpack.c.l.b16 %v340
  %v1754 = vunpack.c.h.b16 %v340
  %v1755 = vunpack.c.l.b16 %v341
  %v1756 = vunpack.c.h.b16 %v341
  %v1757 = vunpack.c.l.b16 %v342
  %v1758 = vunpack.c.h.b16 %v342
  %v1759 = vunpack.c.l.b16 %v343
  %v1760 = vunpack.c.h.b16 %v343
  %v1761 = vunpack.c.l.b16 %v344
  %v1762 = vunpack.c.h.b16 %v344
  %v1763 = vunpack.c.l.b16 %v345
  %v1764 = vunpack.c.h.b16 %v345
  %v1765 = vunpack.c.l.b16 %v346
  %v1766 = vunpack.c.h.b16 %v346
  %v1767 = vunpack.c.l.b16 %v347
  %v1768 = vunpack.c.h.b16 %v347
  %v1769 = vunpack.c.l.b16 %v348
  %v1770 = vunpack.c.h.b16 %v348
  %v1771 = vunpack.c.l.b16 %v349
  %v1772 = vunpack.c.h.b16 %v349
  %v1773 = vunpack.c.l.b16 %v350
  %v1774 = vunpack.c.h.b16 %v350
  %v1775 = vunpack.c.l.b16 %v351
  %v1776 = vunpack.c.h.b16 %v351
  %v1777 = vunpack.c.l.b16 %v352
  %v1778 = vunpack.c.h.b16 %v352
  %v1779 = vunpack.c.l.b16 %v353
  %v1780 = vunpack.c.h.b16 %v353
  %v1781 = vunpack.c.l.b16 %v354
  %v1782 = vunpack.c.h.b16 %v354
  %v1783 = vunpack.c.l.b16 %v355
  %v1784 = vunpack.c.h.b16 %v355
  %v1785 = vunpack.c.l.b16 %v356
  %v1786 = vunpack.c.h.b16 %v356
  %v1787 = vunpack.c.l.b16 %v357
  %v1788 = vunpack.c.h.b16 %v357
  %v1789 = vunpack.c.l.b16 %v358
  %v1790 = vunpack.c.h.b16 %v358
  %v1791 = vunpack.c.l.b16 %v359
  %v1792 = vunpack.c.h.b16 %v359
  %v1793 = vunpack.c.l.b16 %v360
  %v1794 = vunpack.c.h.b16 %v360
  %v1795 = vunpack.c.l.b16 %v361
  %v1796 = vunpack.c.h.b16 %v361
  %v1797 = vunpack.c.l.b16 %v362
  %v1798 = vunpack.c.h.b16 %v362
  %v1799 = vunpack.c.l.b16 %v363
  %v1800 = vunpack.c.h.b16 %v363
  %v1801 = vunpack.c.l.b16 %v364
  %v1802 = vunpack.c.h.b16 %v364
  %v1803 = vunpack.c.l.b16 %v365
  %v1804 = vunpack.c.h.b16 %v365
  %v1805 = vunpack.c.l.b16 %v366
  %v1806 = vunpack.c.h.b16 %v366
  %v1807 = vunpack.c.l.b16 %v367
  %v1808 = vunpack.c.h.b16 %v367
  %v1809 = vunpack.c.l.b16 %v368
  %v1810 = vunpack.c.h.b16 %v368
  %v1811 = vunpack.c.l.b16 %v369
  %v1812 = vunpack.c.h.b16 %v369
  %v1813 = vunpack.c.l.b16 %v370
  %v1814 = vunpack.c.h.b16 %v370
  %v1815 = vunpack.c.l.b16 %v371
  %v1816 = vunpack.c.h.b16 %v371
  %v1817 = vunpack.c.l.b16 %v372
  %v1818 = vunpack.c.h.b16 %v372
  %v1819 = vunpack.c.l.b16 %v373
  %v1820 = vunpack.c.h.b16 %v373
  %v1821 = vunpack.c.l.b16 %v374
  %v1822 = vunpack.c.h.b16 %v374
  %v1823 = vunpack.c.l.b16 %v375
  %v1824 = vunpack.c.h.b16 %v375
  %v1825 = vunpack.c.l.b16 %v376
  %v1826 = vunpack.c.h.b16 %v376
  %v1827 = vunpack.c.l.b16 %v377
  %v1828 = vunpack.c.h.b16 %v377
  %v1829 = vunpack.c.l.b16 %v378
  %v1830 = vunpack.c.h.b16 %v378
  %v1831 = vunpack.c.l.b16 %v379
  %v1832 = vunpack.c.h.b16 %v379
  %v1833 = vunpack.c.l.b16 %v380
  %v1834 = vunpack.c.h.b16 %v380
  %v1835 = vunpack.c.l.b16 %v381
  %v1836 = vunpack.c.h.b16 %v381
  %v1837 = vunpack.c.l.b16 %v382
  %v1838 = vunpack.c.h.b16 %v382
  %v1839 = vunpack.c.l.b16 %v383
  %v1840 = vunpack.c.h.b16 %v383
  %v1841 = vunpack.c.l.b16 %v384
  %v1842 = vunpack.c.h.b16 %v384
  %v1843 = vunpack.c.l.b16 %v385
  %v1844 = vunpack.c.h.b16 %v385
  %v1845 = vunpack.c.l.b16 %v386
  %v1846 = vunpack.c.h.b16 %v386
  %v1847 = vunpack.c.l.b16 %v387
  %v1848 = vunpack.c.h.b16 %v387
  %v1849 = vunpack.c.l.b16 %v388
  %v1850 = vunpack.c.h.b16 %v388
  %v1851 = vunpack.c.l.b16 %v389
  %v1852 = vunpack.c.h.b16 %v389
  %v1853 = vunpack.c.l.b16 %v390
  %v1854 = vunpack.c.h.b16 %v390
  %v1855 = vunpack.c.l.b16 %v391
  %v1856 = vunpack.c.h.b16 %v391
  %v1857 = vunpack.c.l.b16 %v392
  %v1858 = vunpack.c.h.b16 %v392
  %v1859 = vunpack.c.l.b16 %v393
  %v1860 = vunpack.c.h.b16 %v393
  %v1861 = vunpack.c.l.b16 %v394
  %v1862 = vunpack.c.h.b16 %v394
  %v1863 = vunpack.c.l.b16 %v395
  %v1864 = vunpack.c.h.b16 %v395
  %v1865 = vunpack.c.l.b16 %v396
  %v1866 = vunpack.c.h.b16 %v396
  %v1867 = vunpack.c.l.b16 %v397
  %v1868 = vunpack.c.h.b16 %v397
  %v1869 = vunpack.c.l.b16 %v398
  %v1870 = vunpack.c.h.b16 %v398
  %v1871 = vunpack.c.l.b16 %v399
  %v1872 = vunpack.c.h.b16 %v399
  %v1873 = vunpack.c.l.b16 %v400
  %v1874 = vunpack.c.h.b16 %v400
  %v1875 = vunpack.c.l.b16 %v401
  %v1876 = vunpack.c.h.b16 %v401
  %v1877 = vunpack.c.l.b16 %v402
  %v1878 = vunpack.c.h.b16 %v402
  %v1879 = vunpack.c.l.b16 %v403
  %v1880 = vunpack.c.h.b16 %v403
  %v1881 = vunpack.c.l.b16 %v404
  %v1882 = vunpack.c.h.b16 %v404
  %v1883 = vunpack.c.l.b16 %v405
  %v1884 = vunpack.c.h.b16 %v405
  %v1885 = vunpack.c.l.b16 %v406
  %v1886 = vunpack.c.h.b16 %v406
  %v1887 = vunpack.c.l.b16 %v407
  %v1888 = vunpack.c.h.b16 %v407
  %v1889 = vunpack.c.l.b16 %v408
  %v1890 = vunpack.c.h.b16 %v408
  %v1891 = vunpack.c.l.b16 %v409
  %v1892 = vunpack.c.h.b16 %v409
  %v1893 = vunpack.c.l.b16 %v410
  %v1894 = vunpack.c.h.b16 %v410
  %v1895 = vunpack.c.l.b16 %v411
  %v1896 = vunpack.c.h.b16 %v411
  %v1897 = vunpack.c.l.b16 %v412
  %v1898 = vunpack.c.h.b16 %v412
  %v1899 = vunpack.c.l.b16 %v413
  %v1900 = vunpack.c.h.b16 %v413
  %v1901 = vunpack.c.l.b16 %v414
  %v1902 = vunpack.c.h.b16 %v414
  %v1903 = vunpack.c.l.b16 %v415
  %v1904 = vunpack.c.h.b16 %v415
  %v1905 = vunpack.c.l.b16 %v416
  %v1906 = vunpack.c.h.b16 %v416
  %v1907 = vunpack.c.l.b16 %v417
  %v1908 = vunpack.c.h.b16 %v417
  %v1909 = vunpack.c.l.b16 %v418
  %v1910 = vunpack.c.h.b16 %v418
  %v1911 = vunpack.c.l.b16 %v419
  %v1912 = vunpack.c.h.b16 %v419
  %v1913 = vunpack.c.l.b16 %v420
  %v1914 = vunpack.c.h.b16 %v420
  %v1915 = vunpack.c.l.b16 %v421
  %v1916 = vunpack.c.h.b16 %v421
  %v1917 = vunpack.c.l.b16 %v422
  %v1918 = vunpack.c.h.b16 %v422
  %v1919 = vunpack.c.l.b16 %v423
  %v1920 = vunpack.c.h.b16 %v423
  %v1921 = vunpack.c.l.b16 %v424
  %v1922 = vunpack.c.h.b16 %v424
  %v1923 = vunpack.c.l.b16 %v425
  %v1924 = vunpack.c.h.b16 %v425
  %v1925 = vunpack.c.l.b16 %v426
  %v1926 = vunpack.c.h.b16 %v426
  %v1927 = vunpack.c.l.b16 %v427
  %v1928 = vunpack.c.h.b16 %v427
  %v1929 = vunpack.c.l.b16 %v428
  %v1930 = vunpack.c.h.b16 %v428
  %v1931 = vunpack.c.l.b16 %v429
  %v1932 = vunpack.c.h.b16 %v429
  %v1933 = vunpack.c.l.b16 %v430
  %v1934 = vunpack.c.h.b16 %v430
  %v1935 = vunpack.c.l.b16 %v431
  %v1936 = vunpack.c.h.b16 %v431
  %v1937 = vunpack.c.l.b16 %v432
  %v1938 = vunpack.c.h.b16 %v432
  %v1939 = vunpack.c.l.b16 %v433
  %v1940 = vunpack.c.h.b16 %v433
  %v1941 = vunpack.c.l.b16 %v434
  %v1942 = vunpack.c.h.b16 %v434
  %v1943 = vunpack.c.l.b16 %v435
  %v1944 = vunpack.c.h.b16 %v435
  %v1945 = vunpack.c.l.b16 %v436
  %v1946 = vunpack.c.h.b16 %v436
  %v1947 = vunpack.c.l.b16 %v437
  %v1948 = vunpack.c.h.b16 %v437
  %v1949 = vunpack.c.l.b16 %v438
  %v1950 = vunpack.c.h.b16 %v438
  %v1951 = vunpack.c.l.b16 %v439
  %v1952 = vunpack.c.h.b16 %v439
  %v1953 = vunpack.c.l.b16 %v440
  %v1954 = vunpack.c.h.b16 %v440
  %v1955 = vunpack.c.l.b16 %v441
  %v1956 = vunpack.c.h.b16 %v441
  %v1957 = vunpack.c.l.b16 %v442
  %v1958 = vunpack.c.h.b16 %v442
  %v1959 = vunpack.c.l.b16 %v443
  %v1960 = vunpack.c.h.b16 %v443
  %v1961 = vunpack.c.l.b16 %v444
  %v1962 = vunpack.c.h.b16 %v444
  %v1963 = vunpack.c.l.b16 %v445
  %v1964 = vunpack.c.h.b16 %v445
  %v1965 = vunpack.c.l.b16 %v446
  %v1966 = vunpack.c.h.b16 %v446
  %v1967 = vunpack.c.l.b16 %v447
  %v1968 = vunpack.c.h.b16 %v447
  %v1969 = vunpack.c.l.b16 %v448
  %v1970 = vunpack.c.h.b16 %v448
  %v1971 = vunpack.c.l.b16 %v449
  %v1972 = vunpack.c.h.b16 %v449
  %v1973 = vunpack.c.l.b16 %v450
  %v1974 = vunpack.c.h.b16 %v450
  %v1975 = vunpack.c.l.b16 %v451
  %v1976 = vunpack.c.h.b16 %v451
  %v1977 = vunpack.c.l.b16 %v452
  %v1978 = vunpack.c.h.b16 %v452
  %v1979 = vunpack.c.l.b16 %v453
  %v1980 = vunpack.c.h.b16 %v453
  %v1981 = vunpack.c.l.b16 %v454
  %v1982 = vunpack.c.h.b16 %v454
  %v1983 = vunpack.c.l.b16 %v455
  %v1984 = vunpack.c.h.b16 %v455
  %v1985 = vunpack.c.l.b16 %v456
  %v1986 = vunpack.c.h.b16 %v456
  %v1987 = vunpack.c.l.b16 %v457
  %v1988 = vunpack.c.h.b16 %v457
  %v1989 = vunpack.c.l.b16 %v458
  %v1990 = vunpack.c.h.b16 %v458
  %v1991 = vunpack.c.l.b16 %v459
  %v1992 = vunpack.c.h.b16 %v459
  %v1993 = vunpack.c.l.b16 %v460
  %v1994 = vunpack.c.h.b16 %v460
  %v1995 = vunpack.c.l.b16 %v461
  %v1996 = vunpack.c.h.b16 %v461
  %v1997 = vunpack.c.l.b16 %v462
  %v1998 = vunpack.c.h.b16 %v462
  %v1999 = vunpack.c.l.b16 %v463
  %v2000 = vunpack.c.h.b16 %v463
  %v2001 = vunpack.c.l.b16 %v464
  %v2002 = vunpack.c.h.b16 %v464
  %v2003 = vunpack.c.l.b16 %v465
  %v2004 = vunpack.c.h.b16 %v465
  %v2005 = vunpack.c.l.b16 %v466
  %v2006 = vunpack.c.h.b16 %v466
  %v2007 = vunpack.c.l.b16 %v467
  %v2008 = vunpack.c.h.b16 %v467
  %v2009 = vunpack.c.l.b16 %v468
  %v2010 = vunpack.c.h.b16 %v468
  %v2011 = vunpack.c.l.b16 %v469
  %v2012 = vunpack.c.h.b16 %v469
  %v2013 = vunpack.c.l.b16 %v470
  %v2014 = vunpack.c.h.b16 %v470
  %v2015 = vunpack.c.l.b16 %v471
  %v2016 = vunpack.c.h.b16 %v471
  %v2017 = vunpack.c.l.b16 %v472
  %v2018 = vunpack.c.h.b16 %v472
  %v2019 = vunpack.c.l.b16 %v473
  %v2020 = vunpack.c.h.b16 %v473
  %v2021 = vunpack.c.l.b16 %v474
  %v2022 = vunpack.c.h.b16 %v474
  %v2023 = vunpack.c.l.b16 %v475
  %v2024 = vunpack.c.h.b16 %v475
  %v2025 = vunpack.c.l.b16 %v476
  %v2026 = vunpack.c.h.b16 %v476
  %v2027 = vunpack.c.l.b16 %v477
  %v2028 = vunpack.c.h.b16 %v477
  %v2029 = vunpack.c.l.b16 %v478
  %v2030 = vunpack.c.h.b16 %v478
  %v2031 = vunpack.c.l.b16 %v479
  %v2032 = vunpack.c.h.b16 %v479
  %v2033 = vunpack.c.l.b16 %v480
  %v2034 = vunpack.c.h.b16 %v480
  %v2035 = vunpack.c.l.b16 %v481
  %v2036 = vunpack.c.h.b16 %v481
  %v2037 = vunpack.c.l.b16 %v482
  %v2038 = vunpack.c.h.b16 %v482
  %v2039 = vunpack.c.l.b16 %v483
  %v2040 = vunpack.c.h.b16 %v483
  %v2041 = vunpack.c.l.b16 %v484
  %v2042 = vunpack.c.h.b16 %v484
  %v2043 = vunpack.c.l.b16 %v485
  %v2044 = vunpack.c.h.b16 %v485
  %v2045 = vunpack.c.l.b16 %v486
  %v2046 = vunpack.c.h.b16 %v486
  %v2047 = vunpack.c.l.b16 %v487
  %v2048 = vunpack.c.h.b16 %v487
  %v2049 = vunpack.c.l.b16 %v488
  %v2050 = vunpack.c.h.b16 %v488
  %v2051 = vunpack.c.l.b16 %v489
  %v2052 = vunpack.c.h.b16 %v489
  %v2053 = vunpack.c.l.b16 %v490
  %v2054 = vunpack.c.h.b16 %v490
  %v2055 = vunpack.c.l.b16 %v491
  %v2056 = vunpack.c.h.b16 %v491
  %v2057 = vunpack.c.l.b16 %v492
  %v2058 = vunpack.c.h.b16 %v492
  %v2059 = vunpack.c.l.b16 %v493
  %v2060 = vunpack.c.h.b16 %v493
  %v2061 = vunpack.c.l.b16 %v494
  %v2062 = vunpack.c.h.b16 %v494
  %v2063 = vunpack.c.l.b16 %v495
  %v2064 = vunpack.c.h.b16 %v495
  %v2065 = vunpack.c.l.b16 %v496
  %v2066 = vunpack.c.h.b16 %v496
  %v2067 = vunpack.c.l.b16 %v497
  %v2068 = vunpack.c.h.b16 %v497
  %v2069 = vunpack.c.l.b16 %v498
  %v2070 = vunpack.c.h.b16 %v498
  %v2071 = vunpack.c.l.b16 %v499
  %v2072 = vunpack.c.h.b16 %v499
  %v2073 = vunpack.c.l.b16 %v500
  %v2074 = vunpack.c.h.b16 %v500
  %v2075 = vunpack.c.l.b16 %v501
  %v2076 = vunpack.c.h.b16 %v501
  %v2077 = vunpack.c.l.b16 %v502
  %v2078 = vunpack.c.h.b16 %v502
  %v2079 = vunpack.c.l.b16 %v503
  %v2080 = vunpack.c.h.b16 %v503
  %v2081 = vunpack.c.l.b16 %v504
  %v2082 = vunpack.c.h.b16 %v504
  %v2083 = vunpack.c.l.b16 %v505
  %v2084 = vunpack.c.h.b16 %v505
  %v2085 = vunpack.c.l.b16 %v506
  %v2086 = vunpack.c.h.b16 %v506
  %v2087 = vunpack.c.l.b16 %v507
  %v2088 = vunpack.c.h.b16 %v507
  %v2089 = vunpack.c.l.b16 %v508
  %v2090 = vunpack.c.h.b16 %v508
  %v2091 = vunpack.c.l.b16 %v509
  %v2092 = vunpack.c.h.b16 %v509
  %v2093 = vunpack.c.l.b16 %v510
  %v2094 = vunpack.c.h.b16 %v510
  %v2095 = vunpack.c.l.b16 %v511
  %v2096 = vunpack.c.h.b16 %v511
  %v2097 = vunpack.c.l.b16 %v512
  %v2098 = vunpack.c.h.b16 %v512
  %v2099 = vunpack.c.l.b16 %v513
  %v2100 = vunpack.c.h.b16 %v513
  %v2101 = vunpack.c.l.b16 %v514
  %v2102 = vunpack.c.h.b16 %v514
  %v2103 = vunpack.c.l.b16 %v515
  %v2104 = vunpack.c.h.b16 %v515
  %v2105 = vunpack.c.l.b16 %v516
  %v2106 = vunpack.c.h.b16 %v516
  %v2107 = vunpack.c.l.b16 %v517
  %v2108 = vunpack.c.h.b16 %v517
  %v2109 = vunpack.c.l.b16 %v518
  %v2110 = vunpack.c.h.b16 %v518
  %v2111 = vunpack.c.l.b16 %v519
  %v2112 = vunpack.c.h.b16 %v519
  %v2113 = vunpack.c.l.b16 %v520
  %v2114 = vunpack.c.h.b16 %v520
  %v2115 = vunpack.c.l.b16 %v521
  %v2116 = vunpack.c.h.b16 %v521
  %v2117 = vunpack.c.l.b16 %v522
  %v2118 = vunpack.c.h.b16 %v522
  %v2119 = vunpack.c.l.b16 %v523
  %v2120 = vunpack.c.h.b16 %v523
  %v2121 = vunpack.c.l.b16 %v524
  %v2122 = vunpack.c.h.b16 %v524
  %v2123 = vunpack.c.l.b16 %v525
  %v2124 = vunpack.c.h.b16 %v525
  %v2125 = vunpack.c.l.b16 %v526
  %v2126 = vunpack.c.h.b16 %v526
  %v2127 = vunpack.c.l.b16 %v527
  %v2128 = vunpack.c.h.b16 %v527
  %v2129 = vunpack.c.l.b16 %v528
  %v2130 = vunpack.c.h.b16 %v528
  %v2131 = vunpack.c.l.b16 %v529
  %v2132 = vunpack.c.h.b16 %v529
  %v2133 = vunpack.c.l.b16 %v530
  %v2134 = vunpack.c.h.b16 %v530
  %v2135 = vunpack.c.l.b16 %v531
  %v2136 = vunpack.c.h.b16 %v531
  %v2137 = vunpack.c.l.b16 %v532
  %v2138 = vunpack.c.h.b16 %v532
  %v2139 = vunpack.c.l.b16 %v533
  %v2140 = vunpack.c.h.b16 %v533
  %v2141 = vunpack.c.l.b16 %v534
  %v2142 = vunpack.c.h.b16 %v534
  %v2143 = vunpack.c.l.b16 %v535
  %v2144 = vunpack.c.h.b16 %v535
  %v2145 = vunpack.c.l.b16 %v536
  %v2146 = vunpack.c.h.b16 %v536
  %v2147 = vunpack.c.l.b16 %v537
  %v2148 = vunpack.c.h.b16 %v537
  %v2149 = vunpack.c.l.b16 %v538
  %v2150 = vunpack.c.h.b16 %v538
  %v2151 = vunpack.c.l.b16 %v539
  %v2152 = vunpack.c.h.b16 %v539
  %v2153 = vunpack.c.l.b16 %v540
  %v2154 = vunpack.c.h.b16 %v540
  %v2155 = vpack.c.b16 %v1135, %v1131
  %v2156 = vpack.c.b16 %v1136, %v1132
  %v2157 = vpack.c.b16 %v1137, %v1133
  %v2158 = vpack.c.b16 %v1138, %v1134
  %v2159 = vpack.c.b16 %v1143, %v1139
  %v2160 = vpack.c.b16 %v1144, %v1140
  %v2161 = vpack.c.b16 %v1145, %v1141
  %v2162 = vpack.c.b16 %v1146, %v1142
  %v2163 = vpack.c.b16 %v1151, %v1147
  %v2164 = vpack.c.b16 %v1152, %v1148
  %v2165 = vpack.c.b16 %v1153, %v1149
  %v2166 = vpack.c.b16 %v1154, %v1150
  %v2167 = vpack.c.b16 %v1159, %v1155
  %v2168 = vpack.c.b16 %v1160, %v1156
  %v2169 = vpack.c.b16 %v1161, %v1157
  %v2170 = vpack.c.b16 %v1162, %v1158
  %v2171 = vpack.c.b16 %v1167, %v1163
  %v2172 = vpack.c.b16 %v1168, %v1164
  %v2173 = vpack.c.b16 %v1169, %v1165
  %v2174 = vpack.c.b16 %v1170, %v1166
  %v2175 = vpack.c.b16 %v1175, %v1171
  %v2176 = vpack.c.b16 %v1176, %v1172
  %v2177 = vpack.c.b16 %v1177, %v1173
  %v2178 = vpack.c.b16 %v1178, %v1174
  %v2179 = vpack.c.b16 %v1183, %v1179
  %v2180 = vpack.c.b16 %v1184, %v1180
  %v2181 = vpack.c.b16 %v1185, %v1181
  %v2182 = vpack.c.b16 %v1186, %v1182
  %v2183 = vpack.c.b16 %v1191, %v1187
  %v2184 = vpack.c.b16 %v1192, %v1188
  %v2185 = vpack.c.b16 %v1193, %v1189
  %v2186 = vpack.c.b16 %v1194, %v1190
  %v2187 = vpack.c.b16 %v1199, %v1195
  %v2188 = vpack.c.b16 %v1200, %v1196
  %v2189 = vpack.c.b16 %v1201, %v1197
  %v2190 = vpack.c.b16 %v1202, %v1198
  %v2191 = vpack.c.b16 %v1207, %v1203
  %v2192 = vpack.c.b16 %v1208, %v1204
  %v2193 = vpack.c.b16 %v1209, %v1205
  %v2194 = vpack.c.b16 %v1210, %v1206
  %v2195 = vpack.c.b16 %v1215, %v1211
  %v2196 = vpack.c.b16 %v1216, %v1212
  %v2197 = vpack.c.b16 %v1217, %v1213
  %v2198 = vpack.c.b16 %v1218, %v1214
  %v2199 = vpack.c.b16 %v1223, %v1219
  %v2200 = vpack.c.b16 %v1224, %v1220
  %v2201 = vpack.c.b16 %v1225, %v1221
  %v2202 = vpack.c.b16 %v1226, %v1222
  %v2203 = vpack.c.b16 %v1231, %v1227
  %v2204 = vpack.c.b16 %v1232, %v1228
  %v2205 = vpack.c.b16 %v1233, %v1229
  %v2206 = vpack.c.b16 %v1234, %v1230
  %v2207 = vpack.c.b16 %v1239, %v1235
  %v2208 = vpack.c.b16 %v1240, %v1236
  %v2209 = vpack.c.b16 %v1241, %v1237
  %v2210 = vpack.c.b16 %v1242, %v1238
  %v2211 = vpack.c.b16 %v1247, %v1243
  %v2212 = vpack.c.b16 %v1248, %v1244
  %v2213 = vpack.c.b16 %v1249, %v1245
  %v2214 = vpack.c.b16 %v1250, %v1246
  %v2215 = vpack.c.b16 %v1255, %v1251
  %v2216 = vpack.c.b16 %v1256, %v1252
  %v2217 = vpack.c.b16 %v1257, %v1253
  %v2218 = vpack.c.b16 %v1258, %v1254
  %v2219 = vpack.c.b16 %v1263, %v1259
  %v2220 = vpack.c.b16 %v1264, %v1260
  %v2221 = vpack.c.b16 %v1265, %v1261
  %v2222 = vpack.c.b16 %v1266, %v1262
  %v2223 = vpack.c.b16 %v1271, %v1267
  %v2224 = vpack.c.b16 %v1272, %v1268
  %v2225 = vpack.c.b16 %v1273, %v1269
  %v2226 = vpack.c.b16 %v1274, %v1270
  %v2227 = vpack.c.b16 %v1279, %v1275
  %v2228 = vpack.c.b16 %v1280, %v1276
  %v2229 = vpack.c.b16 %v1281, %v1277
  %v2230 = vpack.c.b16 %v1282, %v1278
  %v2231 = vpack.c.b16 %v1287, %v1283
  %v2232 = vpack.c.b16 %v1288, %v1284
  %v2233 = vpack.c.b16 %v1289, %v1285
  %v2234 = vpack.c.b16 %v1290, %v1286
  %v2235 = vpack.c.b16 %v1295, %v1291
  %v2236 = vpack.c.b16 %v1296, %v1292
  %v2237 = vpack.c.b16 %v1297, %v1293
  %v2238 = vpack.c.b16 %v1298, %v1294
  %v2239 = vpack.c.b16 %v1303, %v1299
  %v2240 = vpack.c.b16 %v1304, %v1300
  %v2241 = vpack.c.b16 %v1305, %v1301
  %v2242 = vpack.c.b16 %v1306, %v1302
  %v2243 = vpack.c.b16 %v1311, %v1307
  %v2244 = vpack.c.b16 %v1312, %v1308
  %v2245 = vpack.c.b16 %v1313, %v1309
  %v2246 = vpack.c.b16 %v1314, %v1310
  %v2247 = vpack.c.b16 %v1319, %v1315
  %v2248 = vpack.c.b16 %v1320, %v1316
  %v2249 = vpack.c.b16 %v1321, %v1317
  %v2250 = vpack.c.b16 %v1322, %v1318
  %v2251 = vpack.c.b16 %v1327, %v1323
  %v2252 = vpack.c.b16 %v1328, %v1324
  %v2253 = vpack.c.b16 %v1329, %v1325
  %v2254 = vpack.c.b16 %v1330, %v1326
  %v2255 = vpack.c.b16 %v1335, %v1331
  %v2256 = vpack.c.b16 %v1336, %v1332
  %v2257 = vpack.c.b16 %v1337, %v1333
  %v2258 = vpack.c.b16 %v1338, %v1334
  %v2259 = vpack.c.b16 %v1343, %v1339
  %v2260 = vpack.c.b16 %v1344, %v1340
  %v2261 = vpack.c.b16 %v1345, %v1341
  %v2262 = vpack.c.b16 %v1346, %v1342
  %v2263 = vpack.c.b16 %v1351, %v1347
  %v2264 = vpack.c.b16 %v1352, %v1348
  %v2265 = vpack.c.b16 %v1353, %v1349
  %v2266 = vpack.c.b16 %v1354, %v1350
  %v2267 = vpack.c.b16 %v1359, %v1355
  %v2268 = vpack.c.b16 %v1360, %v1356
  %v2269 = vpack.c.b16 %v1361, %v1357
  %v2270 = vpack.c.b16 %v1362, %v1358
  %v2271 = vpack.c.b16 %v1367, %v1363
  %v2272 = vpack.c.b16 %v1368, %v1364
  %v2273 = vpack.c.b16 %v1369, %v1365
  %v2274 = vpack.c.b16 %v1370, %v1366
  %v2275 = vpack.c.b16 %v1375, %v1371
  %v2276 = vpack.c.b16 %v1376, %v1372
  %v2277 = vpack.c.b16 %v1377, %v1373
  %v2278 = vpack.c.b16 %v1378, %v1374
  %v2279 = vpack.c.b16 %v1383, %v1379
  %v2280 = vpack.c.b16 %v1384, %v1380
  %v2281 = vpack.c.b16 %v1385, %v1381
  %v2282 = vpack.c.b16 %v1386, %v1382
  %v2283 = vpack.c.b16 %v1391, %v1387
  %v2284 = vpack.c.b16 %v1392, %v1388
  %v2285 = vpack.c.b16 %v1393, %v1389
  %v2286 = vpack.c.b16 %v1394, %v1390
  %v2287 = vpack.c.b16 %v1399, %v1395
  %v2288 = vpack.c.b16 %v1400, %v1396
  %v2289 = vpack.c.b16 %v1401, %v1397
  %v2290 = vpack.c.b16 %v1402, %v1398
  %v2291 = vpack.c.b16 %v1407, %v1403
  %v2292 = vpack.c.b16 %v1408, %v1404
  %v2293 = vpack.c.b16 %v1409, %v1405
  %v2294 = vpack.c.b16 %v1410, %v1406
  %v2295 = vpack.c.b16 %v1415, %v1411
  %v2296 = vpack.c.b16 %v1416, %v1412
  %v2297 = vpack.c.b16 %v1417, %v1413
  %v2298 = vpack.c.b16 %v1418, %v1414
  %v2299 = vpack.c.b16 %v1423, %v1419
  %v2300 = vpack.c.b16 %v1424, %v1420
  %v2301 = vpack.c.b16 %v1425, %v1421
  %v2302 = vpack.c.b16 %v1426, %v1422
  %v2303 = vpack.c.b16 %v1431, %v1427
  %v2304 = vpack.c.b16 %v1432, %v1428
  %v2305 = vpack.c.b16 %v1433, %v1429
  %v2306 = vpack.c.b16 %v1434, %v1430
  %v2307 = vpack.c.b16 %v1439, %v1435
  %v2308 = vpack.c.b16 %v1440, %v1436
  %v2309 = vpack.c.b16 %v1441, %v1437
  %v2310 = vpack.c.b16 %v1442, %v1438
  %v2311 = vpack.c.b16 %v1447, %v1443
  %v2312 = vpack.c.b16 %v1448, %v1444
  %v2313 = vpack.c.b16 %v1449, %v1445
  %v2314 = vpack.c.b16 %v1450, %v1446
  %v2315 = vpack.c.b16 %v1455, %v1451
  %v2316 = vpack.c.b16 %v1456, %v1452
  %v2317 = vpack.c.b16 %v1457, %v1453
  %v2318 = vpack.c.b16 %v1458, %v1454
  %v2319 = vpack.c.b16 %v1463, %v1459
  %v2320 = vpack.c.b16 %v1464, %v1460
  %v2321 = vpack.c.b16 %v1465, %v1461
  %v2322 = vpack.c.b16 %v1466, %v1462
  %v2323 = vpack.c.b16 %v1471, %v1467
  %v2324 = vpack.c.b16 %v1472, %v1468
  %v2325 = vpack.c.b16 %v1473, %v1469
  %v2326 = vpack.c.b16 %v1474, %v1470
  %v2327 = vpack.c.b16 %v1479, %v1475
  %v2328 = vpack.c.b16 %v1480, %v1476
  %v2329 = vpack.c.b16 %v1481, %v1477
  %v2330 = vpack.c.b16 %v1482, %v1478
  %v2331 = vpack.c.b16 %v1487, %v1483
  %v2332 = vpack.c.b16 %v1488, %v1484
  %v2333 = vpack.c.b16 %v1489, %v1485
  %v2334 = vpack.c.b16 %v1490, %v1486
  %v2335 = vpack.c.b16 %v1495, %v1491
  %v2336 = vpack.c.b16 %v1496, %v1492
  %v2337 = vpack.c.b16 %v1497, %v1493
  %v2338 = vpack.c.b16 %v1498, %v1494
  %v2339 = vpack.c.b16 %v1503, %v1499
  %v2340 = vpack.c.b16 %v1504, %v1500
  %v2341 = vpack.c.b16 %v1505, %v1501
  %v2342 = vpack.c.b16 %v1506, %v1502
  %v2343 = vpack.c.b16 %v1511, %v1507
  %v2344 = vpack.c.b16 %v1512, %v1508
  %v2345 = vpack.c.b16 %v1513, %v1509
  %v2346 = vpack.c.b16 %v1514, %v1510
  %v2347 = vpack.c.b16 %v1519, %v1515
  %v2348 = vpack.c.b16 %v1520, %v1516
  %v2349 = vpack.c.b16 %v1521, %v1517
  %v2350 = vpack.c.b16 %v1522, %v1518
  %v2351 = vpack.c.b16 %v1527, %v1523
  %v2352 = vpack.c.b16 %v1528, %v1524
  %v2353 = vpack.c.b16 %v1529, %v1525
  %v2354 = vpack.c.b16 %v1530, %v1526
  %v2355 = vpack.c.b16 %v1535, %v1531
  %v2356 = vpack.c.b16 %v1536, %v1532
  %v2357 = vpack.c.b16 %v1537, %v1533
  %v2358 = vpack.c.b16 %v1538, %v1534
  %v2359 = vpack.c.b16 %v1543, %v1539
  %v2360 = vpack.c.b16 %v1544, %v1540
  %v2361 = vpack.c.b16 %v1545, %v1541
  %v2362 = vpack.c.b16 %v1546, %v1542
  %v2363 = vpack.c.b16 %v1551, %v1547
  %v2364 = vpack.c.b16 %v1552, %v1548
  %v2365 = vpack.c.b16 %v1553, %v1549
  %v2366 = vpack.c.b16 %v1554, %v1550
  %v2367 = vpack.c.b16 %v1559, %v1555
  %v2368 = vpack.c.b16 %v1560, %v1556
  %v2369 = vpack.c.b16 %v1561, %v1557
  %v2370 = vpack.c.b16 %v1562, %v1558
  %v2371 = vpack.c.b16 %v1567, %v1563
  %v2372 = vpack.c.b16 %v1568, %v1564
  %v2373 = vpack.c.b16 %v1569, %v1565
  %v2374 = vpack.c.b16 %v1570, %v1566
  %v2375 = vpack.c.b16 %v1575, %v1571
  %v2376 = vpack.c.b16 %v1576, %v1572
  %v2377 = vpack.c.b16 %v1577, %v1573
  %v2378 = vpack.c.b16 %v1578, %v1574
  %v2379 = vpack.c.b16 %v1583, %v1579
  %v2380 = vpack.c.b16 %v1584, %v1580
  %v2381 = vpack.c.b16 %v1585, %v1581
  %v2382 = vpack.c.b16 %v1586, %v1582
  %v2383 = vpack.c.b16 %v1591, %v1587
  %v2384 = vpack.c.b16 %v1592, %v1588
  %v2385 = vpack.c.b16 %v1593, %v1589
  %v2386 = vpack.c.b16 %v1594, %v1590
  %v2387 = vpack.c.b16 %v1599, %v1595
  %v2388 = vpack.c.b16 %v1600, %v1596
  %v2389 = vpack.c.b16 %v1601, %v1597
  %v2390 = vpack.c.b16 %v1602, %v1598
  %v2391 = vpack.c.b16 %v1607, %v1603
  %v2392 = vpack.c.b16 %v1608, %v1604
  %v2393 = vpack.c.b16 %v1609, %v1605
  %v2394 = vpack.c.b16 %v1610, %v1606
  %v2395 = vpack.c.b16 %v1615, %v1611
  %v2396 = vpack.c.b16 %v1616, %v1612
  %v2397 = vpack.c.b16 %v1617, %v1613
  %v2398 = vpack.c.b16 %v1618, %v1614
  %v2399 = vpack.c.b16 %v1623, %v1619
  %v2400 = vpack.c.b16 %v1624, %v1620
  %v2401 = vpack.c.b16 %v1625, %v1621
  %v2402 = vpack.c.b16 %v1626, %v1622
  %v2403 = vpack.c.b16 %v1631, %v1627
  %v2404 = vpack.c.b16 %v1632, %v1628
  %v2405 = vpack.c.b16 %v1633, %v1629
  %v2406 = vpack.c.b16 %v1634, %v1630
  %v2407 = vpack.c.b16 %v1639, %v1635
  %v2408 = vpack.c.b16 %v1640, %v1636
  %v2409 = vpack.c.b16 %v1641, %v1637
  %v2410 = vpack.c.b16 %v1642, %v1638
  %v2411 = vpack.c.b16 %v1647, %v1643
  %v2412 = vpack.c.b16 %v1648, %v1644
  %v2413 = vpack.c.b16 %v1649, %v1645
  %v2414 = vpack.c.b16 %v1650, %v1646
  %v2415 = vpack.c.b16 %v1655, %v1651
  %v2416 = vpack.c.b16 %v1656, %v1652
  %v2417 = vpack.c.b16 %v1657, %v1653
  %v2418 = vpack.c.b16 %v1658, %v1654
  %v2419 = vpack.c.b16 %v1663, %v1659
  %v2420 = vpack.c.b16 %v1664, %v1660
  %v2421 = vpack.c.b16 %v1665, %v1661
  %v2422 = vpack.c.b16 %v1666, %v1662
  %v2423 = vpack.c.b16 %v1671, %v1667
  %v2424 = vpack.c.b16 %v1672, %v1668
  %v2425 = vpack.c.b16 %v1673, %v1669
  %v2426 = vpack.c.b16 %v1674, %v1670
  %v2427 = vpack.c.b16 %v1679, %v1675
  %v2428 = vpack.c.b16 %v1680, %v1676
  %v2429 = vpack.c.b16 %v1681, %v1677
  %v2430 = vpack.c.b16 %v1682, %v1678
  %v2431 = vpack.c.b16 %v1687, %v1683
  %v2432 = vpack.c.b16 %v1688, %v1684
  %v2433 = vpack.c.b16 %v1689, %v1685
  %v2434 = vpack.c.b16 %v1690, %v1686
  %v2435 = vpack.c.b16 %v1695, %v1691
  %v2436 = vpack.c.b16 %v1696, %v1692
  %v2437 = vpack.c.b16 %v1697, %v1693
  %v2438 = vpack.c.b16 %v1698, %v1694
  %v2439 = vpack.c.b16 %v1703, %v1699
  %v2440 = vpack.c.b16 %v1704, %v1700
  %v2441 = vpack.c.b16 %v1705, %v1701
  %v2442 = vpack.c.b16 %v1706, %v1702
  %v2443 = vpack.c.b16 %v1711, %v1707
  %v2444 = vpack.c.b16 %v1712, %v1708
  %v2445 = vpack.c.b16 %v1713, %v1709
  %v2446 = vpack.c.b16 %v1714, %v1710
  %v2447 = vpack.c.b16 %v1719, %v1715
  %v2448 = vpack.c.b16 %v1720, %v1716
  %v2449 = vpack.c.b16 %v1721, %v1717
  %v2450 = vpack.c.b16 %v1722, %v1718
  %v2451 = vpack.c.b16 %v1727, %v1723
  %v2452 = vpack.c.b16 %v1728, %v1724
  %v2453 = vpack.c.b16 %v1729, %v1725
  %v2454 = vpack.c.b16 %v1730, %v1726
  %v2455 = vpack.c.b16 %v1735, %v1731
  %v2456 = vpack.c.b16 %v1736, %v1732
  %v2457 = vpack.c.b16 %v1737, %v1733
  %v2458 = vpack.c.b16 %v1738, %v1734
  %v2459 = vpack.c.b16 %v1743, %v1739
  %v2460 = vpack.c.b16 %v1744, %v1740
  %v2461 = vpack.c.b16 %v1745, %v1741
  %v2462 = vpack.c.b16 %v1746, %v1742
  %v2463 = vpack.c.b16 %v1751, %v1747
  %v2464 = vpack.c.b16 %v1752, %v1748
  %v2465 = vpack.c.b16 %v1753, %v1749
  %v2466 = vpack.c.b16 %v1754, %v1750
  %v2467 = vpack.c.b16 %v1759, %v1755
  %v2468 = vpack.c.b16 %v1760, %v1756
  %v2469 = vpack.c.b16 %v1761, %v1757
  %v2470 = vpack.c.b16 %v1762, %v1758
  %v2471 = vpack.c.b16 %v1767, %v1763
  %v2472 = vpack.c.b16 %v1768, %v1764
  %v2473 = vpack.c.b16 %v1769, %v1765
  %v2474 = vpack.c.b16 %v1770, %v1766
  %v2475 = vpack.c.b16 %v1775, %v1771
  %v2476 = vpack.c.b16 %v1776, %v1772
  %v2477 = vpack.c.b16 %v1777, %v1773
  %v2478 = vpack.c.b16 %v1778, %v1774
  %v2479 = vpack.c.b16 %v1783, %v1779
  %v2480 = vpack.c.b16 %v1784, %v1780
  %v2481 = vpack.c.b16 %v1785, %v1781
  %v2482 = vpack.c.b16 %v1786, %v1782
  %v2483 = vpack.c.b16 %v1791, %v1787
  %v2484 = vpack.c.b16 %v1792, %v1788
  %v2485 = vpack.c.b16 %v1793, %v1789
  %v2486 = vpack.c.b16 %v1794, %v1790
  %v2487 = vpack.c.b16 %v1799, %v1795
  %v2488 = vpack.c.b16 %v1800, %v1796
  %v2489 = vpack.c.b16 %v1801, %v1797
  %v2490 = vpack.c.b16 %v1802, %v1798
  %v2491 = vpack.c.b16 %v1807, %v1803
  %v2492 = vpack.c.b16 %v1808, %v1804
  %v2493 = vpack.c.b16 %v1809, %v1805
  %v2494 = vpack.c.b16 %v1810, %v1806
  %v2495 = vpack.c.b16 %v1815, %v1811
  %v2496 = vpack.c.b16 %v1816, %v1812
  %v2497 = vpack.c.b16 %v1817, %v1813
  %v2498 = vpack.c.b16 %v1818, %v1814
  %v2499 = vpack.c.b16 %v1823, %v1819
  %v2500 = vpack.c.b16 %v1824, %v1820
  %v2501 = vpack.c.b16 %v1825, %v1821
  %v2502 = vpack.c.b16 %v1826, %v1822
  %v2503 = vpack.c.b16 %v1831, %v1827
  %v2504 = vpack.c.b16 %v1832, %v1828
  %v2505 = vpack.c.b16 %v1833, %v1829
  %v2506 = vpack.c.b16 %v1834, %v1830
  %v2507 = vpack.c.b16 %v1839, %v1835
  %v2508 = vpack.c.b16 %v1840, %v1836
  %v2509 = vpack.c.b16 %v1841, %v1837
  %v2510 = vpack.c.b16 %v1842, %v1838
  %v2511 = vpack.c.b16 %v1847, %v1843
  %v2512 = vpack.c.b16 %v1848, %v1844
  %v2513 = vpack.c.b16 %v1849, %v1845
  %v2514 = vpack.c.b16 %v1850, %v1846
  %v2515 = vpack.c.b16 %v1855, %v1851
  %v2516 = vpack.c.b16 %v1856, %v1852
  %v2517 = vpack.c.b16 %v1857, %v1853
  %v2518 = vpack.c.b16 %v1858, %v1854
  %v2519 = vpack.c.b16 %v1863, %v1859
  %v2520 = vpack.c.b16 %v1864, %v1860
  %v2521 = vpack.c.b16 %v1865, %v1861
  %v2522 = vpack.c.b16 %v1866, %v1862
  %v2523 = vpack.c.b16 %v1871, %v1867
  %v2524 = vpack.c.b16 %v1872, %v1868
  %v2525 = vpack.c.b16 %v1873, %v1869
  %v2526 = vpack.c.b16 %v1874, %v1870
  %v2527 = vpack.c.b16 %v1879, %v1875
  %v2528 = vpack.c.b16 %v1880, %v1876
  %v2529 = vpack.c.b16 %v1881, %v1877
  %v2530 = vpack.c.b16 %v1882, %v1878
  %v2531 = vpack.c.b16 %v1887, %v1883
  %v2532 = vpack.c.b16 %v1888, %v1884
  %v2533 = vpack.c.b16 %v1889, %v1885
  %v2534 = vpack.c.b16 %v1890, %v1886
  %v2535 = vpack.c.b16 %v1895, %v1891
  %v2536 = vpack.c.b16 %v1896, %v1892
  %v2537 = vpack.c.b16 %v1897, %v1893
  %v2538 = vpack.c.b16 %v1898, %v1894
  %v2539 = vpack.c.b16 %v1903, %v1899
  %v2540 = vpack.c.b16 %v1904, %v1900
  %v2541 = vpack.c.b16 %v1905, %v1901
  %v2542 = vpack.c.b16 %v1906, %v1902
  %v2543 = vpack.c.b16 %v1911, %v1907
  %v2544 = vpack.c.b16 %v1912, %v1908
  %v2545 = vpack.c.b16 %v1913, %v1909
  %v2546 = vpack.c.b16 %v1914, %v1910
  %v2547 = vpack.c.b16 %v1919, %v1915
  %v2548 = vpack.c.b16 %v1920, %v1916
  %v2549 = vpack.c.b16 %v1921, %v1917
  %v2550 = vpack.c.b16 %v1922, %v1918
  %v2551 = vpack.c.b16 %v1927, %v1923
  %v2552 = vpack.c.b16 %v1928, %v1924
  %v2553 = vpack.c.b16 %v1929, %v1925
  %v2554 = vpack.c.b16 %v1930, %v1926
  %v2555 = vpack.c.b16 %v1935, %v1931
  %v2556 = vpack.c.b16 %v1936, %v1932
  %v2557 = vpack.c.b16 %v1937, %v1933
  %v2558 = vpack.c.b16 %v1938, %v1934
  %v2559 = vpack.c.b16 %v1943, %v1939
  %v2560 = vpack.c.b16 %v1944, %v1940
  %v2561 = vpack.c.b16 %v1945, %v1941
  %v2562 = vpack.c.b16 %v1946, %v1942
  %v2563 = vpack.c.b16 %v1951, %v1947
  %v2564 = vpack.c.b16 %v1952, %v1948
  %v2565 = vpack.c.b16 %v1953, %v1949
  %v2566 = vpack.c.b16 %v1954, %v1950
  %v2567 = vpack.c.b16 %v1959, %v1955
  %v2568 = vpack.c.b16 %v1960, %v1956
  %v2569 = vpack.c.b16 %v1961, %v1957
  %v2570 = vpack.c.b16 %v1962, %v1958
  %v2571 = vpack.c.b16 %v1967, %v1963
  %v2572 = vpack.c.b16 %v1968, %v1964
  %v2573 = vpack.c.b16 %v1969, %v1965
  %v2574 = vpack.c.b16 %v1970, %v1966
  %v2575 = vpack.c.b16 %v1975, %v1971
  %v2576 = vpack.c.b16 %v1976, %v1972
  %v2577 = vpack.c.b16 %v1977, %v1973
  %v2578 = vpack.c.b16 %v1978, %v1974
  %v2579 = vpack.c.b16 %v1983, %v1979
  %v2580 = vpack.c.b16 %v1984, %v1980
  %v2581 = vpack.c.b16 %v1985, %v1981
  %v2582 = vpack.c.b16 %v1986, %v1982
  %v2583 = vpack.c.b16 %v1991, %v1987
  %v2584 = vpack.c.b16 %v1992, %v1988
  %v2585 = vpack.c.b16 %v1993, %v1989
  %v2586 = vpack.c.b16 %v1994, %v1990
  %v2587 = vpack.c.b16 %v1999, %v1995
  %v2588 = vpack.c.b16 %v2000, %v1996
  %v2589 = vpack.c.b16 %v2001, %v1997
  %v2590 = vpack.c.b16 %v2002, %v1998
  %v2591 = vpack.c.b16 %v2007, %v2003
  %v2592 = vpack.c.b16 %v2008, %v2004
  %v2593 = vpack.c.b16 %v2009, %v2005
  %v2594 = vpack.c.b16 %v2010, %v2006
  %v2595 = vpack.c.b16 %v2015, %v2011
  %v2596 = vpack.c.b16 %v2016, %v2012
  %v2597 = vpack.c.b16 %v2017, %v2013
  %v2598 = vpack.c.b16 %v2018, %v2014
  %v2599 = vpack.c.b16 %v2023, %v2019
  %v2600 = vpack.c.b16 %v2024, %v2020
  %v2601 = vpack.c.b16 %v2025, %v2021
  %v2602 = vpack.c.b16 %v2026, %v2022
  %v2603 = vpack.c.b16 %v2031, %v2027
  %v2604 = vpack.c.b16 %v2032, %v2028
  %v2605 = vpack.c.b16 %v2033, %v2029
  %v2606 = vpack.c.b16 %v2034, %v2030
  %v2607 = vpack.c.b16 %v2039, %v2035
  %v2608 = vpack.c.b16 %v2040, %v2036
  %v2609 = vpack.c.b16 %v2041, %v2037
  %v2610 = vpack.c.b16 %v2042, %v2038
  %v2611 = vpack.c.b16 %v2047, %v2043
  %v2612 = vpack.c.b16 %v2048, %v2044
  %v2613 = vpack.c.b16 %v2049, %v2045
  %v2614 = vpack.c.b16 %v2050, %v2046
  %v2615 = vpack.c.b16 %v2055, %v2051
  %v2616 = vpack.c.b16 %v2056, %v2052
  %v2617 = vpack.c.b16 %v2057, %v2053
  %v2618 = vpack.c.b16 %v2058, %v2054
  %v2619 = vpack.c.b16 %v2063, %v2059
  %v2620 = vpack.c.b16 %v2064, %v2060
  %v2621 = vpack.c.b16 %v2065, %v2061
  %v2622 = vpack.c.b16 %v2066, %v2062
  %v2623 = vpack.c.b16 %v2071, %v2067
  %v2624 = vpack.c.b16 %v2072, %v2068
  %v2625 = vpack.c.b16 %v2073, %v2069
  %v2626 = vpack.c.b16 %v2074, %v2070
  %v2627 = vpack.c.b16 %v2079, %v2075
  %v2628 = vpack.c.b16 %v2080, %v2076
  %v2629 = vpack.c.b16 %v2081, %v2077
  %v2630 = vpack.c.b16 %v2082, %v2078
  %v2631 = vpack.c.b16 %v2087, %v2083
  %v2632 = vpack.c.b16 %v2088, %v2084
  %v2633 = vpack.c.b16 %v2089, %v2085
  %v2634 = vpack.c.b16 %v2090, %v2086
  %v2635 = vpack.c.b16 %v2095, %v2091
  %v2636 = vpack.c.b16 %v2096, %v2092
  %v2637 = vpack.c.b16 %v2097, %v2093
  %v2638 = vpack.c.b16 %v2098, %v2094
  %v2639 = vpack.c.b16 %v2103, %v2099
  %v2640 = vpack.c.b16 %v2104, %v2100
  %v2641 = vpack.c.b16 %v2105, %v2101
  %v2642 = vpack.c.b16 %v2106, %v2102
  %v2643 = vpack.c.b16 %v2111, %v2107
  %v2644 = vpack.c.b16 %v2112, %v2108
  %v2645 = vpack.c.b16 %v2113, %v2109
  %v2646 = vpack.c.b16 %v2114, %v2110
  %v2647 = vpack.c.b16 %v2119, %v2115
  %v2648 = vpack.c.b16 %v2120, %v2116
  %v2649 = vpack.c.b16 %v2121, %v2117
  %v2650 = vpack.c.b16 %v2122, %v2118
  %v2651 = vpack.c.b16 %v2127, %v2123
  %v2652 = vpack.c.b16 %v2128, %v2124
  %v2653 = vpack.c.b16 %v2129, %v2125
  %v2654 = vpack.c.b16 %v2130, %v2126
  %v2655 = vpack.c.b16 %v2135, %v2131
  %v2656 = vpack.c.b16 %v2136, %v2132
  %v2657 = vpack.c.b16 %v2137, %v2133
  %v2658 = vpack.c.b16 %v2138, %v2134
  %v2659 = vpack.c.b16 %v2143, %v2139
  %v2660 = vpack.c.b16 %v2144, %v2140
  %v2661 = vpack.c.b16 %v2145, %v2141
  %v2662 = vpack.c.b16 %v2146, %v2142
  %v2663 = vpack.c.b16 %v2151, %v2147
  %v2664 = vpack.c.b16 %v2152, %v2148
  %v2665 = vpack.c.b16 %v2153, %v2149
  %v2666 = vpack.c.b16 %v2154, %v2150
  %3179 = vmatprep.subr.bf16.mxu0 %v2184
  %3180 = vmatpush1.bf16.msra.mxu0 %v2183
  %3181 = vmatprep.subr.bf16.mxu0 %v2180
  %3182 = vmatpush1.bf16.msra.mxu0 %v2179
  %3183 = vmatprep.subr.bf16.mxu0 %v2176
  %3184 = vmatpush1.bf16.msra.mxu0 %v2175
  %3185 = vmatprep.subr.bf16.mxu0 %v2172
  %3186 = vmatpush1.bf16.msra.mxu0 %v2171
  %3187 = vmatprep.subr.bf16.mxu0 %v2168
  %3188 = vmatpush1.bf16.msra.mxu0 %v2167
  %3189 = vmatprep.subr.bf16.mxu0 %v2164
  %3190 = vmatpush1.bf16.msra.mxu0 %v2163
  %3191 = vmatprep.subr.bf16.mxu0 %v2160
  %3192 = vmatpush1.bf16.msra.mxu0 %v2159
  %3193 = vmatprep.subr.bf16.mxu0 %v2156
  %3194 = vmatpush1.bf16.msra.mxu0 %v2155
  %3195 = vmatprep.subr.bf16.mxu0 %v2216
  %3196 = vmatpush2.bf16.msra.mxu0 %v2215
  %3197 = vmatprep.subr.bf16.mxu0 %v2212
  %3198 = vmatpush2.bf16.msra.mxu0 %v2211
  %3199 = vmatprep.subr.bf16.mxu0 %v2208
  %3200 = vmatpush2.bf16.msra.mxu0 %v2207
  %3201 = vmatprep.subr.bf16.mxu0 %v2204
  %3202 = vmatpush2.bf16.msra.mxu0 %v2203
  %3203 = vmatprep.subr.bf16.mxu0 %v2200
  %3204 = vmatpush2.bf16.msra.mxu0 %v2199
  %3205 = vmatprep.subr.bf16.mxu0 %v2196
  %3206 = vmatpush2.bf16.msra.mxu0 %v2195
  %3207 = vmatprep.subr.bf16.mxu0 %v2192
  %3208 = vmatpush2.bf16.msra.mxu0 %v2191
  %3209 = vmatprep.subr.bf16.mxu0 %v2188
  %3210 = vmatpush2.bf16.msra.mxu0 %v2187
  %3211 = vmatprep.mubr.bf16.mxu0 %v588
  %3212 = vmatmul.mubr.bf16.gmra.mxu0 %v587
  %v3213 = vpop.f32.mrf.mxu0
  %v3214 = vadd.f32 %v546, %v3213
  %v3215 = vpop.f32.mrf.mxu0
  %v3216 = vadd.f32 %v550, %v3215
  %v3217 = vpop.f32.mrf.mxu0
  %v3218 = vpop.f32.mrf.mxu0
  %3219 = vdwg.mxu0
  %3220 = vmatprep.subr.bf16.mxu0 %v2248
  %3221 = vmatpush1.bf16.msra.mxu0 %v2247
  %3222 = vmatprep.subr.bf16.mxu0 %v2244
  %3223 = vmatpush1.bf16.msra.mxu0 %v2243
  %3224 = vmatprep.subr.bf16.mxu0 %v2240
  %3225 = vmatpush1.bf16.msra.mxu0 %v2239
  %3226 = vmatprep.subr.bf16.mxu0 %v2236
  %3227 = vmatpush1.bf16.msra.mxu0 %v2235
  %3228 = vmatprep.subr.bf16.mxu0 %v2232
  %3229 = vmatpush1.bf16.msra.mxu0 %v2231
  %3230 = vmatprep.subr.bf16.mxu0 %v2228
  %3231 = vmatpush1.bf16.msra.mxu0 %v2227
  %3232 = vmatprep.subr.bf16.mxu0 %v2224
  %3233 = vmatpush1.bf16.msra.mxu0 %v2223
  %3234 = vmatprep.subr.bf16.mxu0 %v2220
  %3235 = vmatpush1.bf16.msra.mxu0 %v2219
  %3236 = vmatprep.subr.bf16.mxu0 %v2280
  %3237 = vmatpush2.bf16.msra.mxu0 %v2279
  %3238 = vmatprep.subr.bf16.mxu0 %v2276
  %3239 = vmatpush2.bf16.msra.mxu0 %v2275
  %3240 = vmatprep.subr.bf16.mxu0 %v2272
  %3241 = vmatpush2.bf16.msra.mxu0 %v2271
  %3242 = vmatprep.subr.bf16.mxu0 %v2268
  %3243 = vmatpush2.bf16.msra.mxu0 %v2267
  %3244 = vmatprep.subr.bf16.mxu0 %v2264
  %3245 = vmatpush2.bf16.msra.mxu0 %v2263
  %3246 = vmatprep.subr.bf16.mxu0 %v2260
  %3247 = vmatpush2.bf16.msra.mxu0 %v2259
  %3248 = vmatprep.subr.bf16.mxu0 %v2256
  %3249 = vmatpush2.bf16.msra.mxu0 %v2255
  %3250 = vmatprep.subr.bf16.mxu0 %v2252
  %3251 = vmatpush2.bf16.msra.mxu0 %v2251
  %3252 = vmatprep.mubr.bf16.mxu0 %v590
  %3253 = vmatmul.mubr.bf16.gmra.mxu0 %v589
  %v3254 = vpop.f32.mrf.mxu0
  %v3255 = vadd.f32 %v3214, %v3254
  %v3256 = vpop.f32.mrf.mxu0
  %v3257 = vadd.f32 %v3216, %v3256
  %v3258 = vpop.f32.mrf.mxu0
  %v3259 = vpop.f32.mrf.mxu0
  %3260 = vdwg.mxu0
  %3261 = vmatprep.subr.bf16.mxu0 %v2312
  %3262 = vmatpush1.bf16.msra.mxu0 %v2311
  %3263 = vmatprep.subr.bf16.mxu0 %v2308
  %3264 = vmatpush1.bf16.msra.mxu0 %v2307
  %3265 = vmatprep.subr.bf16.mxu0 %v2304
  %3266 = vmatpush1.bf16.msra.mxu0 %v2303
  %3267 = vmatprep.subr.bf16.mxu0 %v2300
  %3268 = vmatpush1.bf16.msra.mxu0 %v2299
  %3269 = vmatprep.subr.bf16.mxu0 %v2296
  %3270 = vmatpush1.bf16.msra.mxu0 %v2295
  %3271 = vmatprep.subr.bf16.mxu0 %v2292
  %3272 = vmatpush1.bf16.msra.mxu0 %v2291
  %3273 = vmatprep.subr.bf16.mxu0 %v2288
  %3274 = vmatpush1.bf16.msra.mxu0 %v2287
  %3275 = vmatprep.subr.bf16.mxu0 %v2284
  %3276 = vmatpush1.bf16.msra.mxu0 %v2283
  %3277 = vmatprep.subr.bf16.mxu0 %v2344
  %3278 = vmatpush2.bf16.msra.mxu0 %v2343
  %3279 = vmatprep.subr.bf16.mxu0 %v2340
  %3280 = vmatpush2.bf16.msra.mxu0 %v2339
  %3281 = vmatprep.subr.bf16.mxu0 %v2336
  %3282 = vmatpush2.bf16.msra.mxu0 %v2335
  %3283 = vmatprep.subr.bf16.mxu0 %v2332
  %3284 = vmatpush2.bf16.msra.mxu0 %v2331
  %3285 = vmatprep.subr.bf16.mxu0 %v2328
  %3286 = vmatpush2.bf16.msra.mxu0 %v2327
  %3287 = vmatprep.subr.bf16.mxu0 %v2324
  %3288 = vmatpush2.bf16.msra.mxu0 %v2323
  %3289 = vmatprep.subr.bf16.mxu0 %v2320
  %3290 = vmatpush2.bf16.msra.mxu0 %v2319
  %3291 = vmatprep.subr.bf16.mxu0 %v2316
  %3292 = vmatpush2.bf16.msra.mxu0 %v2315
  %3293 = vmatprep.mubr.bf16.mxu0 %v592
  %3294 = vmatmul.mubr.bf16.gmra.mxu0 %v591
  %v3295 = vpop.f32.mrf.mxu0
  %v3296 = vadd.f32 %v3255, %v3295
  %v3297 = vpop.f32.mrf.mxu0
  %v3298 = vadd.f32 %v3257, %v3297
  %v3299 = vpop.f32.mrf.mxu0
  %v3300 = vpop.f32.mrf.mxu0
  %3301 = vdwg.mxu0
  %3302 = vmatprep.subr.bf16.mxu0 %v2376
  %3303 = vmatpush1.bf16.msra.mxu0 %v2375
  %3304 = vmatprep.subr.bf16.mxu0 %v2372
  %3305 = vmatpush1.bf16.msra.mxu0 %v2371
  %3306 = vmatprep.subr.bf16.mxu0 %v2368
  %3307 = vmatpush1.bf16.msra.mxu0 %v2367
  %3308 = vmatprep.subr.bf16.mxu0 %v2364
  %3309 = vmatpush1.bf16.msra.mxu0 %v2363
  %3310 = vmatprep.subr.bf16.mxu0 %v2360
  %3311 = vmatpush1.bf16.msra.mxu0 %v2359
  %3312 = vmatprep.subr.bf16.mxu0 %v2356
  %3313 = vmatpush1.bf16.msra.mxu0 %v2355
  %3314 = vmatprep.subr.bf16.mxu0 %v2352
  %3315 = vmatpush1.bf16.msra.mxu0 %v2351
  %3316 = vmatprep.subr.bf16.mxu0 %v2348
  %3317 = vmatpush1.bf16.msra.mxu0 %v2347
  %3318 = vmatprep.subr.bf16.mxu0 %v2408
  %3319 = vmatpush2.bf16.msra.mxu0 %v2407
  %3320 = vmatprep.subr.bf16.mxu0 %v2404
  %3321 = vmatpush2.bf16.msra.mxu0 %v2403
  %3322 = vmatprep.subr.bf16.mxu0 %v2400
  %3323 = vmatpush2.bf16.msra.mxu0 %v2399
  %3324 = vmatprep.subr.bf16.mxu0 %v2396
  %3325 = vmatpush2.bf16.msra.mxu0 %v2395
  %3326 = vmatprep.subr.bf16.mxu0 %v2392
  %3327 = vmatpush2.bf16.msra.mxu0 %v2391
  %3328 = vmatprep.subr.bf16.mxu0 %v2388
  %3329 = vmatpush2.bf16.msra.mxu0 %v2387
  %3330 = vmatprep.subr.bf16.mxu0 %v2384
  %3331 = vmatpush2.bf16.msra.mxu0 %v2383
  %3332 = vmatprep.subr.bf16.mxu0 %v2380
  %3333 = vmatpush2.bf16.msra.mxu0 %v2379
  %3334 = vmatprep.mubr.bf16.mxu0 %v594
  %3335 = vmatmul.mubr.bf16.gmra.mxu0 %v593
  %v3336 = vpop.f32.mrf.mxu0
  %v3337 = vadd.f32 %v3296, %v3336
  %v3338 = vpop.f32.mrf.mxu0
  %v3339 = vadd.f32 %v3298, %v3338
  %v3340 = vpop.f32.mrf.mxu0
  %v3341 = vpop.f32.mrf.mxu0
  %3342 = vdwg.mxu0
  %3343 = vmatprep.subr.bf16.mxu0 %v2440
  %3344 = vmatpush1.bf16.msra.mxu0 %v2439
  %3345 = vmatprep.subr.bf16.mxu0 %v2436
  %3346 = vmatpush1.bf16.msra.mxu0 %v2435
  %3347 = vmatprep.subr.bf16.mxu0 %v2432
  %3348 = vmatpush1.bf16.msra.mxu0 %v2431
  %3349 = vmatprep.subr.bf16.mxu0 %v2428
  %3350 = vmatpush1.bf16.msra.mxu0 %v2427
  %3351 = vmatprep.subr.bf16.mxu0 %v2424
  %3352 = vmatpush1.bf16.msra.mxu0 %v2423
  %3353 = vmatprep.subr.bf16.mxu0 %v2420
  %3354 = vmatpush1.bf16.msra.mxu0 %v2419
  %3355 = vmatprep.subr.bf16.mxu0 %v2416
  %3356 = vmatpush1.bf16.msra.mxu0 %v2415
  %3357 = vmatprep.subr.bf16.mxu0 %v2412
  %3358 = vmatpush1.bf16.msra.mxu0 %v2411
  %3359 = vmatprep.subr.bf16.mxu0 %v2472
  %3360 = vmatpush2.bf16.msra.mxu0 %v2471
  %3361 = vmatprep.subr.bf16.mxu0 %v2468
  %3362 = vmatpush2.bf16.msra.mxu0 %v2467
  %3363 = vmatprep.subr.bf16.mxu0 %v2464
  %3364 = vmatpush2.bf16.msra.mxu0 %v2463
  %3365 = vmatprep.subr.bf16.mxu0 %v2460
  %3366 = vmatpush2.bf16.msra.mxu0 %v2459
  %3367 = vmatprep.subr.bf16.mxu0 %v2456
  %3368 = vmatpush2.bf16.msra.mxu0 %v2455
  %3369 = vmatprep.subr.bf16.mxu0 %v2452
  %3370 = vmatpush2.bf16.msra.mxu0 %v2451
  %3371 = vmatprep.subr.bf16.mxu0 %v2448
  %3372 = vmatpush2.bf16.msra.mxu0 %v2447
  %3373 = vmatprep.subr.bf16.mxu0 %v2444
  %3374 = vmatpush2.bf16.msra.mxu0 %v2443
  %3375 = vmatprep.mubr.bf16.mxu0 %v596
  %3376 = vmatmul.mubr.bf16.gmra.mxu0 %v595
  %v3377 = vpop.f32.mrf.mxu0
  %v3378 = vadd.f32 %v3337, %v3377
  %v3379 = vpop.f32.mrf.mxu0
  %v3380 = vadd.f32 %v3339, %v3379
  %v3381 = vpop.f32.mrf.mxu0
  %v3382 = vpop.f32.mrf.mxu0
  %3383 = vdwg.mxu0
  %3384 = vmatprep.subr.bf16.mxu0 %v2504
  %3385 = vmatpush1.bf16.msra.mxu0 %v2503
  %3386 = vmatprep.subr.bf16.mxu0 %v2500
  %3387 = vmatpush1.bf16.msra.mxu0 %v2499
  %3388 = vmatprep.subr.bf16.mxu0 %v2496
  %3389 = vmatpush1.bf16.msra.mxu0 %v2495
  %3390 = vmatprep.subr.bf16.mxu0 %v2492
  %3391 = vmatpush1.bf16.msra.mxu0 %v2491
  %3392 = vmatprep.subr.bf16.mxu0 %v2488
  %3393 = vmatpush1.bf16.msra.mxu0 %v2487
  %3394 = vmatprep.subr.bf16.mxu0 %v2484
  %3395 = vmatpush1.bf16.msra.mxu0 %v2483
  %3396 = vmatprep.subr.bf16.mxu0 %v2480
  %3397 = vmatpush1.bf16.msra.mxu0 %v2479
  %3398 = vmatprep.subr.bf16.mxu0 %v2476
  %3399 = vmatpush1.bf16.msra.mxu0 %v2475
  %3400 = vmatprep.subr.bf16.mxu0 %v2536
  %3401 = vmatpush2.bf16.msra.mxu0 %v2535
  %3402 = vmatprep.subr.bf16.mxu0 %v2532
  %3403 = vmatpush2.bf16.msra.mxu0 %v2531
  %3404 = vmatprep.subr.bf16.mxu0 %v2528
  %3405 = vmatpush2.bf16.msra.mxu0 %v2527
  %3406 = vmatprep.subr.bf16.mxu0 %v2524
  %3407 = vmatpush2.bf16.msra.mxu0 %v2523
  %3408 = vmatprep.subr.bf16.mxu0 %v2520
  %3409 = vmatpush2.bf16.msra.mxu0 %v2519
  %3410 = vmatprep.subr.bf16.mxu0 %v2516
  %3411 = vmatpush2.bf16.msra.mxu0 %v2515
  %3412 = vmatprep.subr.bf16.mxu0 %v2512
  %3413 = vmatpush2.bf16.msra.mxu0 %v2511
  %3414 = vmatprep.subr.bf16.mxu0 %v2508
  %3415 = vmatpush2.bf16.msra.mxu0 %v2507
  %3416 = vmatprep.mubr.bf16.mxu0 %v598
  %3417 = vmatmul.mubr.bf16.gmra.mxu0 %v597
  %v3418 = vpop.f32.mrf.mxu0
  %v3419 = vadd.f32 %v3378, %v3418
  %v3420 = vpop.f32.mrf.mxu0
  %v3421 = vadd.f32 %v3380, %v3420
  %v3422 = vpop.f32.mrf.mxu0
  %v3423 = vpop.f32.mrf.mxu0
  %3424 = vdwg.mxu0
  %3425 = vmatprep.subr.bf16.mxu0 %v2568
  %3426 = vmatpush1.bf16.msra.mxu0 %v2567
  %3427 = vmatprep.subr.bf16.mxu0 %v2564
  %3428 = vmatpush1.bf16.msra.mxu0 %v2563
  %3429 = vmatprep.subr.bf16.mxu0 %v2560
  %3430 = vmatpush1.bf16.msra.mxu0 %v2559
  %3431 = vmatprep.subr.bf16.mxu0 %v2556
  %3432 = vmatpush1.bf16.msra.mxu0 %v2555
  %3433 = vmatprep.subr.bf16.mxu0 %v2552
  %3434 = vmatpush1.bf16.msra.mxu0 %v2551
  %3435 = vmatprep.subr.bf16.mxu0 %v2548
  %3436 = vmatpush1.bf16.msra.mxu0 %v2547
  %3437 = vmatprep.subr.bf16.mxu0 %v2544
  %3438 = vmatpush1.bf16.msra.mxu0 %v2543
  %3439 = vmatprep.subr.bf16.mxu0 %v2540
  %3440 = vmatpush1.bf16.msra.mxu0 %v2539
  %3441 = vmatprep.subr.bf16.mxu0 %v2600
  %3442 = vmatpush2.bf16.msra.mxu0 %v2599
  %3443 = vmatprep.subr.bf16.mxu0 %v2596
  %3444 = vmatpush2.bf16.msra.mxu0 %v2595
  %3445 = vmatprep.subr.bf16.mxu0 %v2592
  %3446 = vmatpush2.bf16.msra.mxu0 %v2591
  %3447 = vmatprep.subr.bf16.mxu0 %v2588
  %3448 = vmatpush2.bf16.msra.mxu0 %v2587
  %3449 = vmatprep.subr.bf16.mxu0 %v2584
  %3450 = vmatpush2.bf16.msra.mxu0 %v2583
  %3451 = vmatprep.subr.bf16.mxu0 %v2580
  %3452 = vmatpush2.bf16.msra.mxu0 %v2579
  %3453 = vmatprep.subr.bf16.mxu0 %v2576
  %3454 = vmatpush2.bf16.msra.mxu0 %v2575
  %3455 = vmatprep.subr.bf16.mxu0 %v2572
  %3456 = vmatpush2.bf16.msra.mxu0 %v2571
  %3457 = vmatprep.mubr.bf16.mxu0 %v600
  %3458 = vmatmul.mubr.bf16.gmra.mxu0 %v599
  %v3459 = vpop.f32.mrf.mxu0
  %v3460 = vadd.f32 %v3419, %v3459
  %v3461 = vpop.f32.mrf.mxu0
  %v3462 = vadd.f32 %v3421, %v3461
  %v3463 = vpop.f32.mrf.mxu0
  %v3464 = vpop.f32.mrf.mxu0
  %3465 = vdwg.mxu0
  %3466 = vmatprep.subr.bf16.mxu0 %v2632
  %3467 = vmatpush1.bf16.msra.mxu0 %v2631
  %3468 = vmatprep.subr.bf16.mxu0 %v2628
  %3469 = vmatpush1.bf16.msra.mxu0 %v2627
  %3470 = vmatprep.subr.bf16.mxu0 %v2624
  %3471 = vmatpush1.bf16.msra.mxu0 %v2623
  %3472 = vmatprep.subr.bf16.mxu0 %v2620
  %3473 = vmatpush1.bf16.msra.mxu0 %v2619
  %3474 = vmatprep.subr.bf16.mxu0 %v2616
  %3475 = vmatpush1.bf16.msra.mxu0 %v2615
  %3476 = vmatprep.subr.bf16.mxu0 %v2612
  %3477 = vmatpush1.bf16.msra.mxu0 %v2611
  %3478 = vmatprep.subr.bf16.mxu0 %v2608
  %3479 = vmatpush1.bf16.msra.mxu0 %v2607
  %3480 = vmatprep.subr.bf16.mxu0 %v2604
  %3481 = vmatpush1.bf16.msra.mxu0 %v2603
  %3482 = vmatprep.subr.bf16.mxu0 %v2664
  %3483 = vmatpush2.bf16.msra.mxu0 %v2663
  %3484 = vmatprep.subr.bf16.mxu0 %v2660
  %3485 = vmatpush2.bf16.msra.mxu0 %v2659
  %3486 = vmatprep.subr.bf16.mxu0 %v2656
  %3487 = vmatpush2.bf16.msra.mxu0 %v2655
  %3488 = vmatprep.subr.bf16.mxu0 %v2652
  %3489 = vmatpush2.bf16.msra.mxu0 %v2651
  %3490 = vmatprep.subr.bf16.mxu0 %v2648
  %3491 = vmatpush2.bf16.msra.mxu0 %v2647
  %3492 = vmatprep.subr.bf16.mxu0 %v2644
  %3493 = vmatpush2.bf16.msra.mxu0 %v2643
  %3494 = vmatprep.subr.bf16.mxu0 %v2640
  %3495 = vmatpush2.bf16.msra.mxu0 %v2639
  %3496 = vmatprep.subr.bf16.mxu0 %v2636
  %3497 = vmatpush2.bf16.msra.mxu0 %v2635
  %3498 = vmatprep.mubr.bf16.mxu0 %v602
  %3499 = vmatmul.mubr.bf16.gmra.mxu0 %v601
  %v3500 = vpop.f32.mrf.mxu0
  %v3501 = vadd.f32 %v3460, %v3500
  %v3502 = vpop.f32.mrf.mxu0
  %v3503 = vadd.f32 %v3462, %v3502
  %v3504 = vpop.f32.mrf.mxu0
  %v3505 = vpop.f32.mrf.mxu0
  %3506 = vdwg.mxu0
  %3507 = vmatprep.subr.bf16.mxu0 %v2186
  %3508 = vmatpush1.bf16.msra.mxu0 %v2185
  %3509 = vmatprep.subr.bf16.mxu0 %v2182
  %3510 = vmatpush1.bf16.msra.mxu0 %v2181
  %3511 = vmatprep.subr.bf16.mxu0 %v2178
  %3512 = vmatpush1.bf16.msra.mxu0 %v2177
  %3513 = vmatprep.subr.bf16.mxu0 %v2174
  %3514 = vmatpush1.bf16.msra.mxu0 %v2173
  %3515 = vmatprep.subr.bf16.mxu0 %v2170
  %3516 = vmatpush1.bf16.msra.mxu0 %v2169
  %3517 = vmatprep.subr.bf16.mxu0 %v2166
  %3518 = vmatpush1.bf16.msra.mxu0 %v2165
  %3519 = vmatprep.subr.bf16.mxu0 %v2162
  %3520 = vmatpush1.bf16.msra.mxu0 %v2161
  %3521 = vmatprep.subr.bf16.mxu0 %v2158
  %3522 = vmatpush1.bf16.msra.mxu0 %v2157
  %3523 = vmatprep.subr.bf16.mxu0 %v2218
  %3524 = vmatpush2.bf16.msra.mxu0 %v2217
  %3525 = vmatprep.subr.bf16.mxu0 %v2214
  %3526 = vmatpush2.bf16.msra.mxu0 %v2213
  %3527 = vmatprep.subr.bf16.mxu0 %v2210
  %3528 = vmatpush2.bf16.msra.mxu0 %v2209
  %3529 = vmatprep.subr.bf16.mxu0 %v2206
  %3530 = vmatpush2.bf16.msra.mxu0 %v2205
  %3531 = vmatprep.subr.bf16.mxu0 %v2202
  %3532 = vmatpush2.bf16.msra.mxu0 %v2201
  %3533 = vmatprep.subr.bf16.mxu0 %v2198
  %3534 = vmatpush2.bf16.msra.mxu0 %v2197
  %3535 = vmatprep.subr.bf16.mxu0 %v2194
  %3536 = vmatpush2.bf16.msra.mxu0 %v2193
  %3537 = vmatprep.subr.bf16.mxu0 %v2190
  %3538 = vmatpush2.bf16.msra.mxu0 %v2189
  %3539 = vmatprep.mubr.bf16.mxu0 %v588
  %3540 = vmatmul.mubr.bf16.gmra.mxu0 %v587
  %v3541 = vpop.f32.mrf.mxu0
  %v3542 = vadd.f32 %v554, %v3541
  %v3543 = vpop.f32.mrf.mxu0
  %v3544 = vadd.f32 %v558, %v3543
  %v3545 = vpop.f32.mrf.mxu0
  %v3546 = vpop.f32.mrf.mxu0
  %3547 = vdwg.mxu0
  %3548 = vmatprep.subr.bf16.mxu0 %v2250
  %3549 = vmatpush1.bf16.msra.mxu0 %v2249
  %3550 = vmatprep.subr.bf16.mxu0 %v2246
  %3551 = vmatpush1.bf16.msra.mxu0 %v2245
  %3552 = vmatprep.subr.bf16.mxu0 %v2242
  %3553 = vmatpush1.bf16.msra.mxu0 %v2241
  %3554 = vmatprep.subr.bf16.mxu0 %v2238
  %3555 = vmatpush1.bf16.msra.mxu0 %v2237
  %3556 = vmatprep.subr.bf16.mxu0 %v2234
  %3557 = vmatpush1.bf16.msra.mxu0 %v2233
  %3558 = vmatprep.subr.bf16.mxu0 %v2230
  %3559 = vmatpush1.bf16.msra.mxu0 %v2229
  %3560 = vmatprep.subr.bf16.mxu0 %v2226
  %3561 = vmatpush1.bf16.msra.mxu0 %v2225
  %3562 = vmatprep.subr.bf16.mxu0 %v2222
  %3563 = vmatpush1.bf16.msra.mxu0 %v2221
  %3564 = vmatprep.subr.bf16.mxu0 %v2282
  %3565 = vmatpush2.bf16.msra.mxu0 %v2281
  %3566 = vmatprep.subr.bf16.mxu0 %v2278
  %3567 = vmatpush2.bf16.msra.mxu0 %v2277
  %3568 = vmatprep.subr.bf16.mxu0 %v2274
  %3569 = vmatpush2.bf16.msra.mxu0 %v2273
  %3570 = vmatprep.subr.bf16.mxu0 %v2270
  %3571 = vmatpush2.bf16.msra.mxu0 %v2269
  %3572 = vmatprep.subr.bf16.mxu0 %v2266
  %3573 = vmatpush2.bf16.msra.mxu0 %v2265
  %3574 = vmatprep.subr.bf16.mxu0 %v2262
  %3575 = vmatpush2.bf16.msra.mxu0 %v2261
  %3576 = vmatprep.subr.bf16.mxu0 %v2258
  %3577 = vmatpush2.bf16.msra.mxu0 %v2257
  %3578 = vmatprep.subr.bf16.mxu0 %v2254
  %3579 = vmatpush2.bf16.msra.mxu0 %v2253
  %3580 = vmatprep.mubr.bf16.mxu0 %v590
  %3581 = vmatmul.mubr.bf16.gmra.mxu0 %v589
  %v3582 = vpop.f32.mrf.mxu0
  %v3583 = vadd.f32 %v3542, %v3582
  %v3584 = vpop.f32.mrf.mxu0
  %v3585 = vadd.f32 %v3544, %v3584
  %v3586 = vpop.f32.mrf.mxu0
  %v3587 = vpop.f32.mrf.mxu0
  %3588 = vdwg.mxu0
  %3589 = vmatprep.subr.bf16.mxu0 %v2314
  %3590 = vmatpush1.bf16.msra.mxu0 %v2313
  %3591 = vmatprep.subr.bf16.mxu0 %v2310
  %3592 = vmatpush1.bf16.msra.mxu0 %v2309
  %3593 = vmatprep.subr.bf16.mxu0 %v2306
  %3594 = vmatpush1.bf16.msra.mxu0 %v2305
  %3595 = vmatprep.subr.bf16.mxu0 %v2302
  %3596 = vmatpush1.bf16.msra.mxu0 %v2301
  %3597 = vmatprep.subr.bf16.mxu0 %v2298
  %3598 = vmatpush1.bf16.msra.mxu0 %v2297
  %3599 = vmatprep.subr.bf16.mxu0 %v2294
  %3600 = vmatpush1.bf16.msra.mxu0 %v2293
  %3601 = vmatprep.subr.bf16.mxu0 %v2290
  %3602 = vmatpush1.bf16.msra.mxu0 %v2289
  %3603 = vmatprep.subr.bf16.mxu0 %v2286
  %3604 = vmatpush1.bf16.msra.mxu0 %v2285
  %3605 = vmatprep.subr.bf16.mxu0 %v2346
  %3606 = vmatpush2.bf16.msra.mxu0 %v2345
  %3607 = vmatprep.subr.bf16.mxu0 %v2342
  %3608 = vmatpush2.bf16.msra.mxu0 %v2341
  %3609 = vmatprep.subr.bf16.mxu0 %v2338
  %3610 = vmatpush2.bf16.msra.mxu0 %v2337
  %3611 = vmatprep.subr.bf16.mxu0 %v2334
  %3612 = vmatpush2.bf16.msra.mxu0 %v2333
  %3613 = vmatprep.subr.bf16.mxu0 %v2330
  %3614 = vmatpush2.bf16.msra.mxu0 %v2329
  %3615 = vmatprep.subr.bf16.mxu0 %v2326
  %3616 = vmatpush2.bf16.msra.mxu0 %v2325
  %3617 = vmatprep.subr.bf16.mxu0 %v2322
  %3618 = vmatpush2.bf16.msra.mxu0 %v2321
  %3619 = vmatprep.subr.bf16.mxu0 %v2318
  %3620 = vmatpush2.bf16.msra.mxu0 %v2317
  %3621 = vmatprep.mubr.bf16.mxu0 %v592
  %3622 = vmatmul.mubr.bf16.gmra.mxu0 %v591
  %v3623 = vpop.f32.mrf.mxu0
  %v3624 = vadd.f32 %v3583, %v3623
  %v3625 = vpop.f32.mrf.mxu0
  %v3626 = vadd.f32 %v3585, %v3625
  %v3627 = vpop.f32.mrf.mxu0
  %v3628 = vpop.f32.mrf.mxu0
  %3629 = vdwg.mxu0
  %3630 = vmatprep.subr.bf16.mxu0 %v2378
  %3631 = vmatpush1.bf16.msra.mxu0 %v2377
  %3632 = vmatprep.subr.bf16.mxu0 %v2374
  %3633 = vmatpush1.bf16.msra.mxu0 %v2373
  %3634 = vmatprep.subr.bf16.mxu0 %v2370
  %3635 = vmatpush1.bf16.msra.mxu0 %v2369
  %3636 = vmatprep.subr.bf16.mxu0 %v2366
  %3637 = vmatpush1.bf16.msra.mxu0 %v2365
  %3638 = vmatprep.subr.bf16.mxu0 %v2362
  %3639 = vmatpush1.bf16.msra.mxu0 %v2361
  %3640 = vmatprep.subr.bf16.mxu0 %v2358
  %3641 = vmatpush1.bf16.msra.mxu0 %v2357
  %3642 = vmatprep.subr.bf16.mxu0 %v2354
  %3643 = vmatpush1.bf16.msra.mxu0 %v2353
  %3644 = vmatprep.subr.bf16.mxu0 %v2350
  %3645 = vmatpush1.bf16.msra.mxu0 %v2349
  %3646 = vmatprep.subr.bf16.mxu0 %v2410
  %3647 = vmatpush2.bf16.msra.mxu0 %v2409
  %3648 = vmatprep.subr.bf16.mxu0 %v2406
  %3649 = vmatpush2.bf16.msra.mxu0 %v2405
  %3650 = vmatprep.subr.bf16.mxu0 %v2402
  %3651 = vmatpush2.bf16.msra.mxu0 %v2401
  %3652 = vmatprep.subr.bf16.mxu0 %v2398
  %3653 = vmatpush2.bf16.msra.mxu0 %v2397
  %3654 = vmatprep.subr.bf16.mxu0 %v2394
  %3655 = vmatpush2.bf16.msra.mxu0 %v2393
  %3656 = vmatprep.subr.bf16.mxu0 %v2390
  %3657 = vmatpush2.bf16.msra.mxu0 %v2389
  %3658 = vmatprep.subr.bf16.mxu0 %v2386
  %3659 = vmatpush2.bf16.msra.mxu0 %v2385
  %3660 = vmatprep.subr.bf16.mxu0 %v2382
  %3661 = vmatpush2.bf16.msra.mxu0 %v2381
  %3662 = vmatprep.mubr.bf16.mxu0 %v594
  %3663 = vmatmul.mubr.bf16.gmra.mxu0 %v593
  %v3664 = vpop.f32.mrf.mxu0
  %v3665 = vadd.f32 %v3624, %v3664
  %v3666 = vpop.f32.mrf.mxu0
  %v3667 = vadd.f32 %v3626, %v3666
  %v3668 = vpop.f32.mrf.mxu0
  %v3669 = vpop.f32.mrf.mxu0
  %3670 = vdwg.mxu0
  %3671 = vmatprep.subr.bf16.mxu0 %v2442
  %3672 = vmatpush1.bf16.msra.mxu0 %v2441
  %3673 = vmatprep.subr.bf16.mxu0 %v2438
  %3674 = vmatpush1.bf16.msra.mxu0 %v2437
  %3675 = vmatprep.subr.bf16.mxu0 %v2434
  %3676 = vmatpush1.bf16.msra.mxu0 %v2433
  %3677 = vmatprep.subr.bf16.mxu0 %v2430
  %3678 = vmatpush1.bf16.msra.mxu0 %v2429
  %3679 = vmatprep.subr.bf16.mxu0 %v2426
  %3680 = vmatpush1.bf16.msra.mxu0 %v2425
  %3681 = vmatprep.subr.bf16.mxu0 %v2422
  %3682 = vmatpush1.bf16.msra.mxu0 %v2421
  %3683 = vmatprep.subr.bf16.mxu0 %v2418
  %3684 = vmatpush1.bf16.msra.mxu0 %v2417
  %3685 = vmatprep.subr.bf16.mxu0 %v2414
  %3686 = vmatpush1.bf16.msra.mxu0 %v2413
  %3687 = vmatprep.subr.bf16.mxu0 %v2474
  %3688 = vmatpush2.bf16.msra.mxu0 %v2473
  %3689 = vmatprep.subr.bf16.mxu0 %v2470
  %3690 = vmatpush2.bf16.msra.mxu0 %v2469
  %3691 = vmatprep.subr.bf16.mxu0 %v2466
  %3692 = vmatpush2.bf16.msra.mxu0 %v2465
  %3693 = vmatprep.subr.bf16.mxu0 %v2462
  %3694 = vmatpush2.bf16.msra.mxu0 %v2461
  %3695 = vmatprep.subr.bf16.mxu0 %v2458
  %3696 = vmatpush2.bf16.msra.mxu0 %v2457
  %3697 = vmatprep.subr.bf16.mxu0 %v2454
  %3698 = vmatpush2.bf16.msra.mxu0 %v2453
  %3699 = vmatprep.subr.bf16.mxu0 %v2450
  %3700 = vmatpush2.bf16.msra.mxu0 %v2449
  %3701 = vmatprep.subr.bf16.mxu0 %v2446
  %3702 = vmatpush2.bf16.msra.mxu0 %v2445
  %3703 = vmatprep.mubr.bf16.mxu0 %v596
  %3704 = vmatmul.mubr.bf16.gmra.mxu0 %v595
  %v3705 = vpop.f32.mrf.mxu0
  %v3706 = vadd.f32 %v3665, %v3705
  %v3707 = vpop.f32.mrf.mxu0
  %v3708 = vadd.f32 %v3667, %v3707
  %v3709 = vpop.f32.mrf.mxu0
  %v3710 = vpop.f32.mrf.mxu0
  %3711 = vdwg.mxu0
  %3712 = vmatprep.subr.bf16.mxu0 %v2506
  %3713 = vmatpush1.bf16.msra.mxu0 %v2505
  %3714 = vmatprep.subr.bf16.mxu0 %v2502
  %3715 = vmatpush1.bf16.msra.mxu0 %v2501
  %3716 = vmatprep.subr.bf16.mxu0 %v2498
  %3717 = vmatpush1.bf16.msra.mxu0 %v2497
  %3718 = vmatprep.subr.bf16.mxu0 %v2494
  %3719 = vmatpush1.bf16.msra.mxu0 %v2493
  %3720 = vmatprep.subr.bf16.mxu0 %v2490
  %3721 = vmatpush1.bf16.msra.mxu0 %v2489
  %3722 = vmatprep.subr.bf16.mxu0 %v2486
  %3723 = vmatpush1.bf16.msra.mxu0 %v2485
  %3724 = vmatprep.subr.bf16.mxu0 %v2482
  %3725 = vmatpush1.bf16.msra.mxu0 %v2481
  %3726 = vmatprep.subr.bf16.mxu0 %v2478
  %3727 = vmatpush1.bf16.msra.mxu0 %v2477
  %3728 = vmatprep.subr.bf16.mxu0 %v2538
  %3729 = vmatpush2.bf16.msra.mxu0 %v2537
  %3730 = vmatprep.subr.bf16.mxu0 %v2534
  %3731 = vmatpush2.bf16.msra.mxu0 %v2533
  %3732 = vmatprep.subr.bf16.mxu0 %v2530
  %3733 = vmatpush2.bf16.msra.mxu0 %v2529
  %3734 = vmatprep.subr.bf16.mxu0 %v2526
  %3735 = vmatpush2.bf16.msra.mxu0 %v2525
  %3736 = vmatprep.subr.bf16.mxu0 %v2522
  %3737 = vmatpush2.bf16.msra.mxu0 %v2521
  %3738 = vmatprep.subr.bf16.mxu0 %v2518
  %3739 = vmatpush2.bf16.msra.mxu0 %v2517
  %3740 = vmatprep.subr.bf16.mxu0 %v2514
  %3741 = vmatpush2.bf16.msra.mxu0 %v2513
  %3742 = vmatprep.subr.bf16.mxu0 %v2510
  %3743 = vmatpush2.bf16.msra.mxu0 %v2509
  %3744 = vmatprep.mubr.bf16.mxu0 %v598
  %3745 = vmatmul.mubr.bf16.gmra.mxu0 %v597
  %v3746 = vpop.f32.mrf.mxu0
  %v3747 = vadd.f32 %v3706, %v3746
  %v3748 = vpop.f32.mrf.mxu0
  %v3749 = vadd.f32 %v3708, %v3748
  %v3750 = vpop.f32.mrf.mxu0
  %v3751 = vpop.f32.mrf.mxu0
  %3752 = vdwg.mxu0
  %3753 = vmatprep.subr.bf16.mxu0 %v2570
  %3754 = vmatpush1.bf16.msra.mxu0 %v2569
  %3755 = vmatprep.subr.bf16.mxu0 %v2566
  %3756 = vmatpush1.bf16.msra.mxu0 %v2565
  %3757 = vmatprep.subr.bf16.mxu0 %v2562
  %3758 = vmatpush1.bf16.msra.mxu0 %v2561
  %3759 = vmatprep.subr.bf16.mxu0 %v2558
  %3760 = vmatpush1.bf16.msra.mxu0 %v2557
  %3761 = vmatprep.subr.bf16.mxu0 %v2554
  %3762 = vmatpush1.bf16.msra.mxu0 %v2553
  %3763 = vmatprep.subr.bf16.mxu0 %v2550
  %3764 = vmatpush1.bf16.msra.mxu0 %v2549
  %3765 = vmatprep.subr.bf16.mxu0 %v2546
  %3766 = vmatpush1.bf16.msra.mxu0 %v2545
  %3767 = vmatprep.subr.bf16.mxu0 %v2542
  %3768 = vmatpush1.bf16.msra.mxu0 %v2541
  %3769 = vmatprep.subr.bf16.mxu0 %v2602
  %3770 = vmatpush2.bf16.msra.mxu0 %v2601
  %3771 = vmatprep.subr.bf16.mxu0 %v2598
  %3772 = vmatpush2.bf16.msra.mxu0 %v2597
  %3773 = vmatprep.subr.bf16.mxu0 %v2594
  %3774 = vmatpush2.bf16.msra.mxu0 %v2593
  %3775 = vmatprep.subr.bf16.mxu0 %v2590
  %3776 = vmatpush2.bf16.msra.mxu0 %v2589
  %3777 = vmatprep.subr.bf16.mxu0 %v2586
  %3778 = vmatpush2.bf16.msra.mxu0 %v2585
  %3779 = vmatprep.subr.bf16.mxu0 %v2582
  %3780 = vmatpush2.bf16.msra.mxu0 %v2581
  %3781 = vmatprep.subr.bf16.mxu0 %v2578
  %3782 = vmatpush2.bf16.msra.mxu0 %v2577
  %3783 = vmatprep.subr.bf16.mxu0 %v2574
  %3784 = vmatpush2.bf16.msra.mxu0 %v2573
  %3785 = vmatprep.mubr.bf16.mxu0 %v600
  %3786 = vmatmul.mubr.bf16.gmra.mxu0 %v599
  %v3787 = vpop.f32.mrf.mxu0
  %v3788 = vadd.f32 %v3747, %v3787
  %v3789 = vpop.f32.mrf.mxu0
  %v3790 = vadd.f32 %v3749, %v3789
  %v3791 = vpop.f32.mrf.mxu0
  %v3792 = vpop.f32.mrf.mxu0
  %3793 = vdwg.mxu0
  %3794 = vmatprep.subr.bf16.mxu0 %v2634
  %3795 = vmatpush1.bf16.msra.mxu0 %v2633
  %3796 = vmatprep.subr.bf16.mxu0 %v2630
  %3797 = vmatpush1.bf16.msra.mxu0 %v2629
  %3798 = vmatprep.subr.bf16.mxu0 %v2626
  %3799 = vmatpush1.bf16.msra.mxu0 %v2625
  %3800 = vmatprep.subr.bf16.mxu0 %v2622
  %3801 = vmatpush1.bf16.msra.mxu0 %v2621
  %3802 = vmatprep.subr.bf16.mxu0 %v2618
  %3803 = vmatpush1.bf16.msra.mxu0 %v2617
  %3804 = vmatprep.subr.bf16.mxu0 %v2614
  %3805 = vmatpush1.bf16.msra.mxu0 %v2613
  %3806 = vmatprep.subr.bf16.mxu0 %v2610
  %3807 = vmatpush1.bf16.msra.mxu0 %v2609
  %3808 = vmatprep.subr.bf16.mxu0 %v2606
  %3809 = vmatpush1.bf16.msra.mxu0 %v2605
  %3810 = vmatprep.subr.bf16.mxu0 %v2666
  %3811 = vmatpush2.bf16.msra.mxu0 %v2665
  %3812 = vmatprep.subr.bf16.mxu0 %v2662
  %3813 = vmatpush2.bf16.msra.mxu0 %v2661
  %3814 = vmatprep.subr.bf16.mxu0 %v2658
  %3815 = vmatpush2.bf16.msra.mxu0 %v2657
  %3816 = vmatprep.subr.bf16.mxu0 %v2654
  %3817 = vmatpush2.bf16.msra.mxu0 %v2653
  %3818 = vmatprep.subr.bf16.mxu0 %v2650
  %3819 = vmatpush2.bf16.msra.mxu0 %v2649
  %3820 = vmatprep.subr.bf16.mxu0 %v2646
  %3821 = vmatpush2.bf16.msra.mxu0 %v2645
  %3822 = vmatprep.subr.bf16.mxu0 %v2642
  %3823 = vmatpush2.bf16.msra.mxu0 %v2641
  %3824 = vmatprep.subr.bf16.mxu0 %v2638
  %3825 = vmatpush2.bf16.msra.mxu0 %v2637
  %3826 = vmatprep.mubr.bf16.mxu0 %v602
  %3827 = vmatmul.mubr.bf16.gmra.mxu0 %v601
  %v3828 = vpop.f32.mrf.mxu0
  %v3829 = vadd.f32 %v3788, %v3828
  %v3830 = vpop.f32.mrf.mxu0
  %v3831 = vadd.f32 %v3790, %v3830
  %v3832 = vpop.f32.mrf.mxu0
  %v3833 = vpop.f32.mrf.mxu0
  %3834 = vdwg.mxu0
  %v3835 = vmax.f32 %v3501, 0.0
  %v3836 = vmax.f32 %v3503, 0.0
  %v3837 = vmax.f32 %v3829, 0.0
  %v3838 = vmax.f32 %v3831, 0.0
  %v3839 = vpack.c.bf16 %v3835, %v3835
  %v3840 = vpack.c.bf16 %v3836, %v3836
  %v3841 = vpack.c.bf16 %v3837, %v3837
  %v3842 = vpack.c.bf16 %v3838, %v3838
  %v3843 = vld [vmem:[%s3] sm:$0xf]
  %v3844 = vld [vmem:[%s3 + $0x4] sm:$0xf]
  %v3845 = vld [vmem:[%s3 + $0x8] sm:$0xf]
  %v3846 = vld [vmem:[%s3 + $0xc] sm:$0xf]
  %v3847 = vld [vmem:[%s3 + $0x10] sm:$0xf]
  %v3848 = vld [vmem:[%s3 + $0x14] sm:$0xf]
  %v3849 = vld [vmem:[%s3 + $0x18] sm:$0xf]
  %v3850 = vld [vmem:[%s3 + $0x1c] sm:$0xf]
  %v3851 = vld [vmem:[%s3 + $0x20] sm:$0xf]
  %v3852 = vld [vmem:[%s3 + $0x24] sm:$0xf]
  %v3853 = vld [vmem:[%s3 + $0x28] sm:$0xf]
  %v3854 = vld [vmem:[%s3 + $0x2c] sm:$0xf]
  %v3855 = vld [vmem:[%s3 + $0x30] sm:$0xf]
  %v3856 = vld [vmem:[%s3 + $0x34] sm:$0xf]
  %v3857 = vld [vmem:[%s3 + $0x38] sm:$0xf]
  %v3858 = vld [vmem:[%s3 + $0x3c] sm:$0xf]
  %v3859 = vld [vmem:[%s3 + $0x40] sm:$0xf]
  %v3860 = vld [vmem:[%s3 + $0x44] sm:$0xf]
  %v3861 = vld [vmem:[%s3 + $0x48] sm:$0xf]
  %v3862 = vld [vmem:[%s3 + $0x4c] sm:$0xf]
  %v3863 = vld [vmem:[%s3 + $0x50] sm:$0xf]
  %v3864 = vld [vmem:[%s3 + $0x54] sm:$0xf]
  %v3865 = vld [vmem:[%s3 + $0x58] sm:$0xf]
  %v3866 = vld [vmem:[%s3 + $0x5c] sm:$0xf]
  %v3867 = vld [vmem:[%s3 + $0x60] sm:$0xf]
  %v3868 = vld [vmem:[%s3 + $0x64] sm:$0xf]
  %v3869 = vld [vmem:[%s3 + $0x68] sm:$0xf]
  %v3870 = vld [vmem:[%s3 + $0x6c] sm:$0xf]
  %v3871 = vld [vmem:[%s3 + $0x70] sm:$0xf]
  %v3872 = vld [vmem:[%s3 + $0x74] sm:$0xf]
  %v3873 = vld [vmem:[%s3 + $0x78] sm:$0xf]
  %v3874 = vld [vmem:[%s3 + $0x7c] sm:$0xf]
  %v3875 = vld [vmem:[%s3 + $0x80] sm:$0xf]
  %v3876 = vld [vmem:[%s3 + $0x84] sm:$0xf]
  %v3877 = vld [vmem:[%s3 + $0x88] sm:$0xf]
  %v3878 = vld [vmem:[%s3 + $0x8c] sm:$0xf]
  %v3879 = vld [vmem:[%s3 + $0x90] sm:$0xf]
  %v3880 = vld [vmem:[%s3 + $0x94] sm:$0xf]
  %v3881 = vld [vmem:[%s3 + $0x98] sm:$0xf]
  %v3882 = vld [vmem:[%s3 + $0x9c] sm:$0xf]
  %v3883 = vld [vmem:[%s3 + $0xa0] sm:$0xf]
  %v3884 = vld [vmem:[%s3 + $0xa4] sm:$0xf]
  %v3885 = vld [vmem:[%s3 + $0xa8] sm:$0xf]
  %v3886 = vld [vmem:[%s3 + $0xac] sm:$0xf]
  %v3887 = vld [vmem:[%s3 + $0xb0] sm:$0xf]
  %v3888 = vld [vmem:[%s3 + $0xb4] sm:$0xf]
  %v3889 = vld [vmem:[%s3 + $0xb8] sm:$0xf]
  %v3890 = vld [vmem:[%s3 + $0xbc] sm:$0xf]
  %v3891 = vld [vmem:[%s3 + $0xc0] sm:$0xf]
  %v3892 = vld [vmem:[%s3 + $0xc4] sm:$0xf]
  %v3893 = vld [vmem:[%s3 + $0xc8] sm:$0xf]
  %v3894 = vld [vmem:[%s3 + $0xcc] sm:$0xf]
  %v3895 = vld [vmem:[%s3 + $0xd0] sm:$0xf]
  %v3896 = vld [vmem:[%s3 + $0xd4] sm:$0xf]
  %v3897 = vld [vmem:[%s3 + $0xd8] sm:$0xf]
  %v3898 = vld [vmem:[%s3 + $0xdc] sm:$0xf]
  %v3899 = vld [vmem:[%s3 + $0xe0] sm:$0xf]
  %v3900 = vld [vmem:[%s3 + $0xe4] sm:$0xf]
  %v3901 = vld [vmem:[%s3 + $0xe8] sm:$0xf]
  %v3902 = vld [vmem:[%s3 + $0xec] sm:$0xf]
  %v3903 = vld [vmem:[%s3 + $0xf0] sm:$0xf]
  %v3904 = vld [vmem:[%s3 + $0xf4] sm:$0xf]
  %v3905 = vld [vmem:[%s3 + $0xf8] sm:$0xf]
  %v3906 = vld [vmem:[%s3 + $0xfc] sm:$0xf]
  %v3907 = vld [vmem:[%s4] sm:$0x1]
  %v3909 = vlaneseq
  %v3910 = vshrl.u32 %v3909, 7
  %v3911 = vsub.s32 0, %v3910
  %v3912 = vrot.slane %v3907, %v3911
  %v3978 = vunpack.c.l.b16 %v3843
  %v3979 = vunpack.c.l.b16 %v3844
  %v3980 = vunpack.c.l.b16 %v3845
  %v3981 = vunpack.c.l.b16 %v3846
  %v3982 = vunpack.c.l.b16 %v3847
  %v3983 = vunpack.c.l.b16 %v3848
  %v3984 = vunpack.c.l.b16 %v3849
  %v3985 = vunpack.c.l.b16 %v3850
  %v3986 = vunpack.c.l.b16 %v3851
  %v3987 = vunpack.c.l.b16 %v3852
  %v3988 = vunpack.c.l.b16 %v3853
  %v3989 = vunpack.c.l.b16 %v3854
  %v3990 = vunpack.c.l.b16 %v3855
  %v3991 = vunpack.c.l.b16 %v3856
  %v3992 = vunpack.c.l.b16 %v3857
  %v3993 = vunpack.c.l.b16 %v3858
  %v3994 = vunpack.c.l.b16 %v3859
  %v3995 = vunpack.c.l.b16 %v3860
  %v3996 = vunpack.c.l.b16 %v3861
  %v3997 = vunpack.c.l.b16 %v3862
  %v3998 = vunpack.c.l.b16 %v3863
  %v3999 = vunpack.c.l.b16 %v3864
  %v4000 = vunpack.c.l.b16 %v3865
  %v4001 = vunpack.c.l.b16 %v3866
  %v4002 = vunpack.c.l.b16 %v3867
  %v4003 = vunpack.c.l.b16 %v3868
  %v4004 = vunpack.c.l.b16 %v3869
  %v4005 = vunpack.c.l.b16 %v3870
  %v4006 = vunpack.c.l.b16 %v3871
  %v4007 = vunpack.c.l.b16 %v3872
  %v4008 = vunpack.c.l.b16 %v3873
  %v4009 = vunpack.c.l.b16 %v3874
  %v4010 = vunpack.c.l.b16 %v3875
  %v4011 = vunpack.c.l.b16 %v3876
  %v4012 = vunpack.c.l.b16 %v3877
  %v4013 = vunpack.c.l.b16 %v3878
  %v4014 = vunpack.c.l.b16 %v3879
  %v4015 = vunpack.c.l.b16 %v3880
  %v4016 = vunpack.c.l.b16 %v3881
  %v4017 = vunpack.c.l.b16 %v3882
  %v4018 = vunpack.c.l.b16 %v3883
  %v4019 = vunpack.c.l.b16 %v3884
  %v4020 = vunpack.c.l.b16 %v3885
  %v4021 = vunpack.c.l.b16 %v3886
  %v4022 = vunpack.c.l.b16 %v3887
  %v4023 = vunpack.c.l.b16 %v3888
  %v4024 = vunpack.c.l.b16 %v3889
  %v4025 = vunpack.c.l.b16 %v3890
  %v4026 = vunpack.c.l.b16 %v3891
  %v4027 = vunpack.c.l.b16 %v3892
  %v4028 = vunpack.c.l.b16 %v3893
  %v4029 = vunpack.c.l.b16 %v3894
  %v4030 = vunpack.c.l.b16 %v3895
  %v4031 = vunpack.c.l.b16 %v3896
  %v4032 = vunpack.c.l.b16 %v3897
  %v4033 = vunpack.c.l.b16 %v3898
  %v4034 = vunpack.c.l.b16 %v3899
  %v4035 = vunpack.c.l.b16 %v3900
  %v4036 = vunpack.c.l.b16 %v3901
  %v4037 = vunpack.c.l.b16 %v3902
  %v4038 = vunpack.c.l.b16 %v3903
  %v4039 = vunpack.c.l.b16 %v3904
  %v4040 = vunpack.c.l.b16 %v3905
  %v4041 = vunpack.c.l.b16 %v3906
  %v4042 = vpack.c.b16 %v3979, %v3978
  %v4043 = vpack.c.b16 %v3981, %v3980
  %v4044 = vpack.c.b16 %v3983, %v3982
  %v4045 = vpack.c.b16 %v3985, %v3984
  %v4046 = vpack.c.b16 %v3987, %v3986
  %v4047 = vpack.c.b16 %v3989, %v3988
  %v4048 = vpack.c.b16 %v3991, %v3990
  %v4049 = vpack.c.b16 %v3993, %v3992
  %v4050 = vpack.c.b16 %v3995, %v3994
  %v4051 = vpack.c.b16 %v3997, %v3996
  %v4052 = vpack.c.b16 %v3999, %v3998
  %v4053 = vpack.c.b16 %v4001, %v4000
  %v4054 = vpack.c.b16 %v4003, %v4002
  %v4055 = vpack.c.b16 %v4005, %v4004
  %v4056 = vpack.c.b16 %v4007, %v4006
  %v4057 = vpack.c.b16 %v4009, %v4008
  %v4058 = vpack.c.b16 %v4011, %v4010
  %v4059 = vpack.c.b16 %v4013, %v4012
  %v4060 = vpack.c.b16 %v4015, %v4014
  %v4061 = vpack.c.b16 %v4017, %v4016
  %v4062 = vpack.c.b16 %v4019, %v4018
  %v4063 = vpack.c.b16 %v4021, %v4020
  %v4064 = vpack.c.b16 %v4023, %v4022
  %v4065 = vpack.c.b16 %v4025, %v4024
  %v4066 = vpack.c.b16 %v4027, %v4026
  %v4067 = vpack.c.b16 %v4029, %v4028
  %v4068 = vpack.c.b16 %v4031, %v4030
  %v4069 = vpack.c.b16 %v4033, %v4032
  %v4070 = vpack.c.b16 %v4035, %v4034
  %v4071 = vpack.c.b16 %v4037, %v4036
  %v4072 = vpack.c.b16 %v4039, %v4038
  %v4073 = vpack.c.b16 %v4041, %v4040
  %4106 = vmatprep.subr.bf16.mxu0 0
  %4107 = vmatpush1.bf16.msra.mxu0 %v4049
  %4108 = vmatprep.subr.bf16.mxu0 0
  %4109 = vmatpush1.bf16.msra.mxu0 %v4048
  %4110 = vmatprep.subr.bf16.mxu0 0
  %4111 = vmatpush1.bf16.msra.mxu0 %v4047
  %4112 = vmatprep.subr.bf16.mxu0 0
  %4113 = vmatpush1.bf16.msra.mxu0 %v4046
  %4114 = vmatprep.subr.bf16.mxu0 0
  %4115 = vmatpush1.bf16.msra.mxu0 %v4045
  %4116 = vmatprep.subr.bf16.mxu0 0
  %4117 = vmatpush1.bf16.msra.mxu0 %v4044
  %4118 = vmatprep.subr.bf16.mxu0 0
  %4119 = vmatpush1.bf16.msra.mxu0 %v4043
  %4120 = vmatprep.subr.bf16.mxu0 0
  %4121 = vmatpush1.bf16.msra.mxu0 %v4042
  %4122 = vmatprep.subr.bf16.mxu0 0
  %4123 = vmatpush2.bf16.msra.mxu0 %v4057
  %4124 = vmatprep.subr.bf16.mxu0 0
  %4125 = vmatpush2.bf16.msra.mxu0 %v4056
  %4126 = vmatprep.subr.bf16.mxu0 0
  %4127 = vmatpush2.bf16.msra.mxu0 %v4055
  %4128 = vmatprep.subr.bf16.mxu0 0
  %4129 = vmatpush2.bf16.msra.mxu0 %v4054
  %4130 = vmatprep.subr.bf16.mxu0 0
  %4131 = vmatpush2.bf16.msra.mxu0 %v4053
  %4132 = vmatprep.subr.bf16.mxu0 0
  %4133 = vmatpush2.bf16.msra.mxu0 %v4052
  %4134 = vmatprep.subr.bf16.mxu0 0
  %4135 = vmatpush2.bf16.msra.mxu0 %v4051
  %4136 = vmatprep.subr.bf16.mxu0 0
  %4137 = vmatpush2.bf16.msra.mxu0 %v4050
  %4138 = vmatprep.mubr.bf16.mxu0 %v3840
  %4139 = vmatmul.mubr.bf16.gmra.mxu0 %v3839
  %v4140 = vpop.f32.mrf.mxu0
  %v4141 = vadd.f32 %v3912, %v4140
  %v4142 = vpop.f32.mrf.mxu0
  %v4143 = vpop.f32.mrf.mxu0
  %v4144 = vpop.f32.mrf.mxu0
  %4145 = vdwg.mxu0
  %4146 = vmatprep.subr.bf16.mxu0 0
  %4147 = vmatpush1.bf16.msra.mxu0 %v4065
  %4148 = vmatprep.subr.bf16.mxu0 0
  %4149 = vmatpush1.bf16.msra.mxu0 %v4064
  %4150 = vmatprep.subr.bf16.mxu0 0
  %4151 = vmatpush1.bf16.msra.mxu0 %v4063
  %4152 = vmatprep.subr.bf16.mxu0 0
  %4153 = vmatpush1.bf16.msra.mxu0 %v4062
  %4154 = vmatprep.subr.bf16.mxu0 0
  %4155 = vmatpush1.bf16.msra.mxu0 %v4061
  %4156 = vmatprep.subr.bf16.mxu0 0
  %4157 = vmatpush1.bf16.msra.mxu0 %v4060
  %4158 = vmatprep.subr.bf16.mxu0 0
  %4159 = vmatpush1.bf16.msra.mxu0 %v4059
  %4160 = vmatprep.subr.bf16.mxu0 0
  %4161 = vmatpush1.bf16.msra.mxu0 %v4058
  %4162 = vmatprep.subr.bf16.mxu0 0
  %4163 = vmatpush2.bf16.msra.mxu0 %v4073
  %4164 = vmatprep.subr.bf16.mxu0 0
  %4165 = vmatpush2.bf16.msra.mxu0 %v4072
  %4166 = vmatprep.subr.bf16.mxu0 0
  %4167 = vmatpush2.bf16.msra.mxu0 %v4071
  %4168 = vmatprep.subr.bf16.mxu0 0
  %4169 = vmatpush2.bf16.msra.mxu0 %v4070
  %4170 = vmatprep.subr.bf16.mxu0 0
  %4171 = vmatpush2.bf16.msra.mxu0 %v4069
  %4172 = vmatprep.subr.bf16.mxu0 0
  %4173 = vmatpush2.bf16.msra.mxu0 %v4068
  %4174 = vmatprep.subr.bf16.mxu0 0
  %4175 = vmatpush2.bf16.msra.mxu0 %v4067
  %4176 = vmatprep.subr.bf16.mxu0 0
  %4177 = vmatpush2.bf16.msra.mxu0 %v4066
  %4178 = vmatprep.mubr.bf16.mxu0 %v3842
  %4179 = vmatmul.mubr.bf16.gmra.mxu0 %v3841
  %v4180 = vpop.f32.mrf.mxu0
  %v4181 = vadd.f32 %v4141, %v4180
  %v4182 = vpop.f32.mrf.mxu0
  %v4183 = vpop.f32.mrf.mxu0
  %v4184 = vpop.f32.mrf.mxu0
  %4185 = vdwg.mxu0
  %4186 = vst [vmem:[%s5] sm:$0xff] %v4181
  // Predicated region
  $region22: #{lenet_forward.5} parent=0 // pred_check
    _
  $region23: #{lenet_forward.5} parent=0 // pred_check_branch
    %4188 = sbr.rel (0) target = $region25
  $region24: #{lenet_forward.5} parent=0 // pred_region
    _
  $region25: #{lenet_forward.5} parent=0 // pred_fallthru
    _
  // Predicated region
  $region26: #{lenet_forward.5} parent=0 // pred_check
    _
  $region27: #{lenet_forward.5} parent=0 // pred_check_branch
    %4190 = sbr.rel (0) target = $region29
  $region28: #{lenet_forward.5} parent=0 // pred_region
    _
  $region29: #{lenet_forward.5} parent=0 // pred_fallthru
    _

</llo_original>
